<compile_context>
chip_gen: v7x
topology: tpu7x:2x2x1
jax: 0.10.0
libtpu: 0.0.40
codegen_flags: <defaults>
</compile_context>

<pallas_src>
import jax
import jax.numpy as jnp
from jax.experimental import pallas as pl
from jax.experimental.pallas import tpu as pltpu


# -----------------------------------------------------------------------------
# Fused kernel factory
# -----------------------------------------------------------------------------
def _make_fused_kernel(plan):
    H, W = plan["H"], plan["W"]
    c_in, c_stem = plan["c_in"], plan["c_stem"]
    blocks = plan["blocks"]

    def _subsample2(y):
        """(h, w, c) -> (h//2, w//2, c), keeping even rows/cols, on a VMEM value."""
        h, w, _ = y.shape
        rows = jnp.concatenate([y[i:i + 1] for i in range(0, h, 2)], axis=0)
        return jnp.concatenate([rows[:, j:j + 1] for j in range(0, w, 2)], axis=1)

    def _conv3x3(act, h, w, cin, wk_ref, s_ref, b_ref, cout, relu):
        """3x3 'same' conv (stride 1) + folded-BN (+ReLU) as ONE im2col matmul."""
        # in-kernel zero padding (value-level; never touches HBM)
        zrow = jnp.zeros((1, w + 2, cin), jnp.float32)
        zcol = jnp.zeros((h, 1, cin), jnp.float32)
        padded = jnp.concatenate(
            [zrow, jnp.concatenate([zcol, act, zcol], axis=1), zrow], axis=0)
        # gather the 9 shifted taps along the channel (lane) axis -> (h, w, 9*cin)
        taps = [padded[dh:dh + h, dw:dw + w, :]
                for dh in range(3) for dw in range(3)]
        cols = jnp.concatenate(taps, axis=2).reshape(h * w, 9 * cin)
        cols = cols.astype(jnp.bfloat16)                      # bf16 MXU operand
        y = jnp.dot(cols, wk_ref[...], preferred_element_type=jnp.float32)
        y = y * s_ref[...] + b_ref[...]                       # folded BN, f32 epilogue
        if relu:
            y = jnp.maximum(y, 0.0)
        return y.reshape(h, w, cout)

    def kernel(*refs):
        it = iter(refs)
        x_ref = next(it)
        stem_w, stem_s, stem_b = next(it), next(it), next(it)
        blk_refs = []
        for bp in blocks:
            n = 9 if bp["has_down"] else 6
            blk_refs.append(tuple(next(it) for _ in range(n)))
        fc_w, fc_b = next(it), next(it)
        out_ref = next(it)

        # ---- stem: conv3x3(3->16) + bn + relu (single K=27 matmul) -----------
        act = x_ref[0]                                        # (H, W, c_in) f32
        act = _conv3x3(act, H, W, c_in, stem_w, stem_s, stem_b, c_stem, relu=True)
        h, w, c = H, W, c_stem

        # ---- residual stages (BasicBlocks), all VMEM-resident ----------------
        for bp, r in zip(blocks, blk_refs):
            cin, cout = bp["cin"], bp["cout"]
            stride, has_down = bp["stride"], bp["has_down"]
            if has_down:
                w1, s1, b1, w2, s2, b2, wd, sd, bd = r
            else:
                w1, s1, b1, w2, s2, b2 = r

            out = _conv3x3(act, h, w, cin, w1, s1, b1, cout, relu=True)
            ho, wo = h // stride, w // stride
            if stride == 2:
                out = _subsample2(out)                        # stride-2 in-kernel

            if has_down:                                      # 1x1 projection shortcut
                xs = _subsample2(act) if stride == 2 else act
                sc = jnp.dot(xs.reshape(ho * wo, cin).astype(jnp.bfloat16),
                             wd[...], preferred_element_type=jnp.float32)
                sc = (sc * sd[...] + bd[...]).reshape(ho, wo, cout)
            else:
                sc = act

            out = _conv3x3(out, ho, wo, cout, w2, s2, b2, cout, relu=False)
            act = jnp.maximum(out + sc, 0.0)                  # residual add + relu
            h, w, c = ho, wo, cout

        # ---- head: global average pool + fc, fused epilogue -------------------
        feat = act.reshape(h * w, c)
        pooled = jnp.mean(feat, axis=0, keepdims=True)        # (1, c)
        logits = jnp.dot(pooled, fc_w[...], preferred_element_type=jnp.float32)
        logits = logits + fc_b[...]
        out_ref[0] = logits.astype(out_ref.dtype)

    return kernel


# -----------------------------------------------------------------------------
# Wrapper around pallas_call
# -----------------------------------------------------------------------------
def _conv_w_to_im2col(w4):
    """(3,3,cin,cout) f32 -> (9*cin, cout) bf16, tap-major / channel-minor rows."""
    kh, kw, cin, cout = w4.shape
    return w4.reshape(kh * kw * cin, cout).astype(jnp.bfloat16)


def att_resnet_forward(params, x_nchw):
    """Forward pass.  x_nchw: (N, 3, H, W) like PyTorch; returns (N, num_classes)."""
    x = jnp.transpose(x_nchw, (0, 2, 3, 1)).astype(jnp.float32)   # NHWC (C on lanes)
    N, H, W, c_in = x.shape
    assert H % 4 == 0 and W % 4 == 0, "two stride-2 stages require H, W % 4 == 0"

    num_classes = params["fc_w"].shape[-1]
    c_stem = params["conv1_w"].shape[-1]

    operands = [x]
    in_specs = [pl.BlockSpec((1, H, W, c_in), lambda n: (n, 0, 0, 0))]

    def add_full(arr):
        # whole-array block, constant index map -> DMA'd to VMEM once for the grid
        operands.append(arr)
        in_specs.append(pl.BlockSpec(arr.shape, lambda n, _z=(0,) * arr.ndim: _z))

    # stem
    add_full(_conv_w_to_im2col(params["conv1_w"]))
    s_stem, b_stem = params["bn1"]
    add_full(s_stem)
    add_full(b_stem)

    # residual blocks (flattened across the 3 stages)
    blocks_plan = []
    cur = c_stem
    for layer in params["layers"]:
        for blk in layer:
            cout = blk["conv1_w"].shape[-1]
            has_down = "down_w" in blk
            blocks_plan.append(dict(cin=cur, cout=cout,
                                    stride=blk["stride"], has_down=has_down))
            add_full(_conv_w_to_im2col(blk["conv1_w"]))
            sa, ba = blk["bn1"]
            add_full(sa)
            add_full(ba)
            add_full(_conv_w_to_im2col(blk["conv2_w"]))
            sb, bb = blk["bn2"]
            add_full(sb)
            add_full(bb)
            if has_down:
                add_full(blk["down_w"].astype(jnp.bfloat16))
                sd, bd = blk["down_bn"]
                add_full(sd)
                add_full(bd)
            cur = cout

    # head
    add_full(params["fc_w"].astype(jnp.float32))
    add_full(params["fc_b"].astype(jnp.float32))

    plan = dict(H=H, W=W, c_in=c_in, c_stem=c_stem, blocks=blocks_plan)
    kernel = _make_fused_kernel(plan)

    # logits emitted as (N, 1, num_classes) so the block's last two dims equal the
    # full array dims (keeps the tiny output store layout-legal); squeezed outside.
    out = pl.pallas_call(
        kernel,
        out_shape=jax.ShapeDtypeStruct((N, 1, num_classes), jnp.float32),
        grid=(N,),
        in_specs=in_specs,
        out_specs=pl.BlockSpec((1, 1, num_classes), lambda n: (n, 0, 0)),
        compiler_params=pltpu.CompilerParams(dimension_semantics=("parallel",)),
    )(*operands)
    return out.reshape(N, num_classes)


# -----------------------------------------------------------------------------
# Parameter construction (deterministic, matches module shapes / init)
# -----------------------------------------------------------------------------
def _kaiming_conv(key, shape):
    # PyTorch kaiming_normal_(mode='fan_out', nonlinearity='relu'):
    # std = sqrt(2 / (kh*kw*cout)); shape is (kh, kw, cin, cout).
    fan_out = shape[0] * shape[1] * shape[3]
    std = (2.0 / fan_out) ** 0.5
    return std * jax.random.normal(key, shape, jnp.float32)


def _bn_folded(c):
    # BatchNorm2d init (gamma=1, beta=0, mean=0, var=1, eps=1e-5), inference fold:
    # scale = gamma / sqrt(var + eps), bias = beta - mean * scale.
    scale = jnp.full((1, c), 1.0 / (1.0 + 1e-5) ** 0.5, jnp.float32)
    bias = jnp.zeros((1, c), jnp.float32)
    return scale, bias


def init_params(key, n_size=1, num_classes=10):
    keys = iter(jax.random.split(key, 64))
    params = {}
    params["conv1_w"] = _kaiming_conv(next(keys), (3, 3, 3, 16))
    params["bn1"] = _bn_folded(16)

    layers = []
    inplane = 16
    for planes, stride in [(16, 1), (32, 2), (64, 2)]:
        blocks = []
        for bi in range(n_size):
            s = stride if bi == 0 else 1
            blk = {
                "stride": s,
                "conv1_w": _kaiming_conv(next(keys), (3, 3, inplane, planes)),
                "bn1": _bn_folded(planes),
                "conv2_w": _kaiming_conv(next(keys), (3, 3, planes, planes)),
                "bn2": _bn_folded(planes),
            }
            if s != 1 or inplane != planes:
                blk["down_w"] = _kaiming_conv(
                    next(keys), (1, 1, inplane, planes)).reshape(inplane, planes)
                blk["down_bn"] = _bn_folded(planes)
            blocks.append(blk)
            inplane = planes
        layers.append(blocks)
    params["layers"] = layers

    limit = 1.0 / (64 ** 0.5)
    params["fc_w"] = jax.random.uniform(next(keys), (64, num_classes),
                                        jnp.float32, -limit, limit)
    params["fc_b"] = jax.random.uniform(next(keys), (1, num_classes),
                                        jnp.float32, -limit, limit)

    # Architecture parameters (alphas): k = sum over nodes of (2+i) = 9 edges.
    # TODO(synk): ATT_PRIMITIVES is undefined in the given source; num_ops=8 is a
    # placeholder and alphas are not consumed by the forward pass.
    k = sum(1 for i in range(3) for _ in range(2 + i))
    params["alphas"] = 0.001 * jax.random.normal(next(keys), (k, 8), jnp.float32)
    return params


# -----------------------------------------------------------------------------
if __name__ == "__main__":
    key = jax.random.PRNGKey(0)
    pkey, xkey = jax.random.split(key)
    params = init_params(pkey, n_size=1, num_classes=10)

    # CIFAR-style input at small spatial size: (batch=2, channels=3, 16, 16), NCHW.
    x = jax.random.normal(xkey, (2, 3, 16, 16), jnp.float32)

    logits = att_resnet_forward(params, x)
    jax.block_until_ready(logits)
    assert logits.shape == (2, 10) and logits.dtype == jnp.float32
    assert bool(jnp.all(jnp.isfinite(logits)))
    print("KERNEL_OK")
</pallas_src>

<mosaic_0001>
module attributes {stable_mosaic.version = 11 : i64} {
  func.func @kernel(%arg0: i32, %arg1: memref<1x16x16x3xf32, #tpu.memory_space<vmem>>, %arg2: memref<27x16xbf16, #tpu.memory_space<vmem>>, %arg3: memref<1x16xf32, #tpu.memory_space<vmem>>, %arg4: memref<1x16xf32, #tpu.memory_space<vmem>>, %arg5: memref<144x16xbf16, #tpu.memory_space<vmem>>, %arg6: memref<1x16xf32, #tpu.memory_space<vmem>>, %arg7: memref<1x16xf32, #tpu.memory_space<vmem>>, %arg8: memref<144x16xbf16, #tpu.memory_space<vmem>>, %arg9: memref<1x16xf32, #tpu.memory_space<vmem>>, %arg10: memref<1x16xf32, #tpu.memory_space<vmem>>, %arg11: memref<144x32xbf16, #tpu.memory_space<vmem>>, %arg12: memref<1x32xf32, #tpu.memory_space<vmem>>, %arg13: memref<1x32xf32, #tpu.memory_space<vmem>>, %arg14: memref<288x32xbf16, #tpu.memory_space<vmem>>, %arg15: memref<1x32xf32, #tpu.memory_space<vmem>>, %arg16: memref<1x32xf32, #tpu.memory_space<vmem>>, %arg17: memref<16x32xbf16, #tpu.memory_space<vmem>>, %arg18: memref<1x32xf32, #tpu.memory_space<vmem>>, %arg19: memref<1x32xf32, #tpu.memory_space<vmem>>, %arg20: memref<288x64xbf16, #tpu.memory_space<vmem>>, %arg21: memref<1x64xf32, #tpu.memory_space<vmem>>, %arg22: memref<1x64xf32, #tpu.memory_space<vmem>>, %arg23: memref<576x64xbf16, #tpu.memory_space<vmem>>, %arg24: memref<1x64xf32, #tpu.memory_space<vmem>>, %arg25: memref<1x64xf32, #tpu.memory_space<vmem>>, %arg26: memref<32x64xbf16, #tpu.memory_space<vmem>>, %arg27: memref<1x64xf32, #tpu.memory_space<vmem>>, %arg28: memref<1x64xf32, #tpu.memory_space<vmem>>, %arg29: memref<64x10xf32, #tpu.memory_space<vmem>>, %arg30: memref<1x10xf32, #tpu.memory_space<vmem>>, %arg31: memref<1x1x10xf32, #tpu.memory_space<vmem>>) attributes {dimension_semantics = [#tpu.dimension_semantics<parallel>], iteration_bounds = array<i64: 2>, scalar_prefetch = 0 : i64, scratch_operands = 0 : i64, tpu.core_type = #tpu.core_type<tc>, window_params = [{transform_indices = @transform_0, window_bounds = array<i64: 1, 16, 16, 3>}, {pipeline_mode = #tpu.pipeline_mode<synchronous>, transform_indices = @transform_1, window_bounds = array<i64: 27, 16>}, {pipeline_mode = #tpu.pipeline_mode<synchronous>, transform_indices = @transform_2, window_bounds = array<i64: 1, 16>}, {pipeline_mode = #tpu.pipeline_mode<synchronous>, transform_indices = @transform_3, window_bounds = array<i64: 1, 16>}, {pipeline_mode = #tpu.pipeline_mode<synchronous>, transform_indices = @transform_4, window_bounds = array<i64: 144, 16>}, {pipeline_mode = #tpu.pipeline_mode<synchronous>, transform_indices = @transform_5, window_bounds = array<i64: 1, 16>}, {pipeline_mode = #tpu.pipeline_mode<synchronous>, transform_indices = @transform_6, window_bounds = array<i64: 1, 16>}, {pipeline_mode = #tpu.pipeline_mode<synchronous>, transform_indices = @transform_7, window_bounds = array<i64: 144, 16>}, {pipeline_mode = #tpu.pipeline_mode<synchronous>, transform_indices = @transform_8, window_bounds = array<i64: 1, 16>}, {pipeline_mode = #tpu.pipeline_mode<synchronous>, transform_indices = @transform_9, window_bounds = array<i64: 1, 16>}, {pipeline_mode = #tpu.pipeline_mode<synchronous>, transform_indices = @transform_10, window_bounds = array<i64: 144, 32>}, {pipeline_mode = #tpu.pipeline_mode<synchronous>, transform_indices = @transform_11, window_bounds = array<i64: 1, 32>}, {pipeline_mode = #tpu.pipeline_mode<synchronous>, transform_indices = @transform_12, window_bounds = array<i64: 1, 32>}, {pipeline_mode = #tpu.pipeline_mode<synchronous>, transform_indices = @transform_13, window_bounds = array<i64: 288, 32>}, {pipeline_mode = #tpu.pipeline_mode<synchronous>, transform_indices = @transform_14, window_bounds = array<i64: 1, 32>}, {pipeline_mode = #tpu.pipeline_mode<synchronous>, transform_indices = @transform_15, window_bounds = array<i64: 1, 32>}, {pipeline_mode = #tpu.pipeline_mode<synchronous>, transform_indices = @transform_16, window_bounds = array<i64: 16, 32>}, {pipeline_mode = #tpu.pipeline_mode<synchronous>, transform_indices = @transform_17, window_bounds = array<i64: 1, 32>}, {pipeline_mode = #tpu.pipeline_mode<synchronous>, transform_indices = @transform_18, window_bounds = array<i64: 1, 32>}, {pipeline_mode = #tpu.pipeline_mode<synchronous>, transform_indices = @transform_19, window_bounds = array<i64: 288, 64>}, {pipeline_mode = #tpu.pipeline_mode<synchronous>, transform_indices = @transform_20, window_bounds = array<i64: 1, 64>}, {pipeline_mode = #tpu.pipeline_mode<synchronous>, transform_indices = @transform_21, window_bounds = array<i64: 1, 64>}, {pipeline_mode = #tpu.pipeline_mode<synchronous>, transform_indices = @transform_22, window_bounds = array<i64: 576, 64>}, {pipeline_mode = #tpu.pipeline_mode<synchronous>, transform_indices = @transform_23, window_bounds = array<i64: 1, 64>}, {pipeline_mode = #tpu.pipeline_mode<synchronous>, transform_indices = @transform_24, window_bounds = array<i64: 1, 64>}, {pipeline_mode = #tpu.pipeline_mode<synchronous>, transform_indices = @transform_25, window_bounds = array<i64: 32, 64>}, {pipeline_mode = #tpu.pipeline_mode<synchronous>, transform_indices = @transform_26, window_bounds = array<i64: 1, 64>}, {pipeline_mode = #tpu.pipeline_mode<synchronous>, transform_indices = @transform_27, window_bounds = array<i64: 1, 64>}, {pipeline_mode = #tpu.pipeline_mode<synchronous>, transform_indices = @transform_28, window_bounds = array<i64: 64, 10>}, {pipeline_mode = #tpu.pipeline_mode<synchronous>, transform_indices = @transform_29, window_bounds = array<i64: 1, 10>}, {transform_indices = @transform_30, window_bounds = array<i64: 1, 1, 10>}]} {
    %c0 = arith.constant 0 : index
    %c0_0 = arith.constant 0 : index
    %c0_1 = arith.constant 0 : index
    %c0_2 = arith.constant 0 : index
    %0 = vector.load %arg1[%c0, %c0_0, %c0_1, %c0_2] : memref<1x16x16x3xf32, #tpu.memory_space<vmem>>, vector<1x16x16x3xf32>
    %1 = vector.shape_cast %0 : vector<1x16x16x3xf32> to vector<16x16x3xf32>
    %cst = arith.constant 0.000000e+00 : f32
    %2 = vector.broadcast %cst : f32 to vector<1x18x3xf32>
    %cst_3 = arith.constant 0.000000e+00 : f32
    %3 = vector.broadcast %cst_3 : f32 to vector<16x1x3xf32>
    %4 = tpu.concatenate %3, %1, %3 in 1 : vector<16x1x3xf32>, vector<16x16x3xf32>, vector<16x1x3xf32> -> vector<16x18x3xf32>
    %5 = tpu.concatenate %2, %4, %2 in 0 : vector<1x18x3xf32>, vector<16x18x3xf32>, vector<1x18x3xf32> -> vector<18x18x3xf32>
    %6 = vector.extract_strided_slice %5 {offsets = [0, 0, 0], sizes = [16, 16, 3], strides = [1, 1, 1]} : vector<18x18x3xf32> to vector<16x16x3xf32>
    %7 = vector.extract_strided_slice %5 {offsets = [0, 1, 0], sizes = [16, 16, 3], strides = [1, 1, 1]} : vector<18x18x3xf32> to vector<16x16x3xf32>
    %8 = vector.extract_strided_slice %5 {offsets = [0, 2, 0], sizes = [16, 16, 3], strides = [1, 1, 1]} : vector<18x18x3xf32> to vector<16x16x3xf32>
    %9 = vector.extract_strided_slice %5 {offsets = [1, 0, 0], sizes = [16, 16, 3], strides = [1, 1, 1]} : vector<18x18x3xf32> to vector<16x16x3xf32>
    %10 = vector.extract_strided_slice %5 {offsets = [1, 1, 0], sizes = [16, 16, 3], strides = [1, 1, 1]} : vector<18x18x3xf32> to vector<16x16x3xf32>
    %11 = vector.extract_strided_slice %5 {offsets = [1, 2, 0], sizes = [16, 16, 3], strides = [1, 1, 1]} : vector<18x18x3xf32> to vector<16x16x3xf32>
    %12 = vector.extract_strided_slice %5 {offsets = [2, 0, 0], sizes = [16, 16, 3], strides = [1, 1, 1]} : vector<18x18x3xf32> to vector<16x16x3xf32>
    %13 = vector.extract_strided_slice %5 {offsets = [2, 1, 0], sizes = [16, 16, 3], strides = [1, 1, 1]} : vector<18x18x3xf32> to vector<16x16x3xf32>
    %14 = vector.extract_strided_slice %5 {offsets = [2, 2, 0], sizes = [16, 16, 3], strides = [1, 1, 1]} : vector<18x18x3xf32> to vector<16x16x3xf32>
    %15 = tpu.concatenate %6, %7, %8, %9, %10, %11, %12, %13, %14 in 2 : vector<16x16x3xf32>, vector<16x16x3xf32>, vector<16x16x3xf32>, vector<16x16x3xf32>, vector<16x16x3xf32>, vector<16x16x3xf32>, vector<16x16x3xf32>, vector<16x16x3xf32>, vector<16x16x3xf32> -> vector<16x16x27xf32>
    %16 = vector.shape_cast %15 : vector<16x16x27xf32> to vector<256x27xf32>
    %17 = arith.truncf %16 : vector<256x27xf32> to vector<256x27xbf16>
    %c0_4 = arith.constant 0 : index
    %c0_5 = arith.constant 0 : index
    %18 = vector.load %arg2[%c0_4, %c0_5] : memref<27x16xbf16, #tpu.memory_space<vmem>>, vector<27x16xbf16>
    %cst_6 = arith.constant dense<0.000000e+00> : vector<256x16xf32>
    %19 = tpu.matmul %17, %18, %cst_6 {dimension_numbers = #tpu.dot_dimension_numbers<[1], [0], [0], [1], [0, 0, 1, 1], [], []>} : vector<256x27xbf16>, vector<27x16xbf16>, vector<256x16xf32> -> vector<256x16xf32>
    %c0_7 = arith.constant 0 : index
    %c0_8 = arith.constant 0 : index
    %20 = vector.load %arg3[%c0_7, %c0_8] : memref<1x16xf32, #tpu.memory_space<vmem>>, vector<1x16xf32>
    %21 = vector.broadcast %20 : vector<1x16xf32> to vector<256x16xf32>
    %22 = arith.mulf %19, %21 : vector<256x16xf32>
    %c0_9 = arith.constant 0 : index
    %c0_10 = arith.constant 0 : index
    %23 = vector.load %arg4[%c0_9, %c0_10] : memref<1x16xf32, #tpu.memory_space<vmem>>, vector<1x16xf32>
    %24 = vector.broadcast %23 : vector<1x16xf32> to vector<256x16xf32>
    %25 = arith.addf %22, %24 : vector<256x16xf32>
    %cst_11 = arith.constant 0.000000e+00 : f32
    %26 = vector.broadcast %cst_11 : f32 to vector<256x16xf32>
    %27 = arith.maximumf %25, %26 : vector<256x16xf32>
    %28 = vector.shape_cast %27 : vector<256x16xf32> to vector<16x16x16xf32>
    %cst_12 = arith.constant 0.000000e+00 : f32
    %29 = vector.broadcast %cst_12 : f32 to vector<1x18x16xf32>
    %cst_13 = arith.constant 0.000000e+00 : f32
    %30 = vector.broadcast %cst_13 : f32 to vector<16x1x16xf32>
    %31 = tpu.concatenate %30, %28, %30 in 1 : vector<16x1x16xf32>, vector<16x16x16xf32>, vector<16x1x16xf32> -> vector<16x18x16xf32>
    %32 = tpu.concatenate %29, %31, %29 in 0 : vector<1x18x16xf32>, vector<16x18x16xf32>, vector<1x18x16xf32> -> vector<18x18x16xf32>
    %33 = vector.extract_strided_slice %32 {offsets = [0, 0, 0], sizes = [16, 16, 16], strides = [1, 1, 1]} : vector<18x18x16xf32> to vector<16x16x16xf32>
    %34 = vector.extract_strided_slice %32 {offsets = [0, 1, 0], sizes = [16, 16, 16], strides = [1, 1, 1]} : vector<18x18x16xf32> to vector<16x16x16xf32>
    %35 = vector.extract_strided_slice %32 {offsets = [0, 2, 0], sizes = [16, 16, 16], strides = [1, 1, 1]} : vector<18x18x16xf32> to vector<16x16x16xf32>
    %36 = vector.extract_strided_slice %32 {offsets = [1, 0, 0], sizes = [16, 16, 16], strides = [1, 1, 1]} : vector<18x18x16xf32> to vector<16x16x16xf32>
    %37 = vector.extract_strided_slice %32 {offsets = [1, 1, 0], sizes = [16, 16, 16], strides = [1, 1, 1]} : vector<18x18x16xf32> to vector<16x16x16xf32>
    %38 = vector.extract_strided_slice %32 {offsets = [1, 2, 0], sizes = [16, 16, 16], strides = [1, 1, 1]} : vector<18x18x16xf32> to vector<16x16x16xf32>
    %39 = vector.extract_strided_slice %32 {offsets = [2, 0, 0], sizes = [16, 16, 16], strides = [1, 1, 1]} : vector<18x18x16xf32> to vector<16x16x16xf32>
    %40 = vector.extract_strided_slice %32 {offsets = [2, 1, 0], sizes = [16, 16, 16], strides = [1, 1, 1]} : vector<18x18x16xf32> to vector<16x16x16xf32>
    %41 = vector.extract_strided_slice %32 {offsets = [2, 2, 0], sizes = [16, 16, 16], strides = [1, 1, 1]} : vector<18x18x16xf32> to vector<16x16x16xf32>
    %42 = tpu.concatenate %33, %34, %35, %36, %37, %38, %39, %40, %41 in 2 : vector<16x16x16xf32>, vector<16x16x16xf32>, vector<16x16x16xf32>, vector<16x16x16xf32>, vector<16x16x16xf32>, vector<16x16x16xf32>, vector<16x16x16xf32>, vector<16x16x16xf32>, vector<16x16x16xf32> -> vector<16x16x144xf32>
    %43 = vector.shape_cast %42 : vector<16x16x144xf32> to vector<256x144xf32>
    %44 = arith.truncf %43 : vector<256x144xf32> to vector<256x144xbf16>
    %c0_14 = arith.constant 0 : index
    %c0_15 = arith.constant 0 : index
    %45 = vector.load %arg5[%c0_14, %c0_15] : memref<144x16xbf16, #tpu.memory_space<vmem>>, vector<144x16xbf16>
    %cst_16 = arith.constant dense<0.000000e+00> : vector<256x16xf32>
    %46 = tpu.matmul %44, %45, %cst_16 {dimension_numbers = #tpu.dot_dimension_numbers<[1], [0], [0], [1], [0, 0, 1, 1], [], []>} : vector<256x144xbf16>, vector<144x16xbf16>, vector<256x16xf32> -> vector<256x16xf32>
    %c0_17 = arith.constant 0 : index
    %c0_18 = arith.constant 0 : index
    %47 = vector.load %arg6[%c0_17, %c0_18] : memref<1x16xf32, #tpu.memory_space<vmem>>, vector<1x16xf32>
    %48 = vector.broadcast %47 : vector<1x16xf32> to vector<256x16xf32>
    %49 = arith.mulf %46, %48 : vector<256x16xf32>
    %c0_19 = arith.constant 0 : index
    %c0_20 = arith.constant 0 : index
    %50 = vector.load %arg7[%c0_19, %c0_20] : memref<1x16xf32, #tpu.memory_space<vmem>>, vector<1x16xf32>
    %51 = vector.broadcast %50 : vector<1x16xf32> to vector<256x16xf32>
    %52 = arith.addf %49, %51 : vector<256x16xf32>
    %cst_21 = arith.constant 0.000000e+00 : f32
    %53 = vector.broadcast %cst_21 : f32 to vector<256x16xf32>
    %54 = arith.maximumf %52, %53 : vector<256x16xf32>
    %55 = vector.shape_cast %54 : vector<256x16xf32> to vector<16x16x16xf32>
    %cst_22 = arith.constant 0.000000e+00 : f32
    %56 = vector.broadcast %cst_22 : f32 to vector<1x18x16xf32>
    %cst_23 = arith.constant 0.000000e+00 : f32
    %57 = vector.broadcast %cst_23 : f32 to vector<16x1x16xf32>
    %58 = tpu.concatenate %57, %55, %57 in 1 : vector<16x1x16xf32>, vector<16x16x16xf32>, vector<16x1x16xf32> -> vector<16x18x16xf32>
    %59 = tpu.concatenate %56, %58, %56 in 0 : vector<1x18x16xf32>, vector<16x18x16xf32>, vector<1x18x16xf32> -> vector<18x18x16xf32>
    %60 = vector.extract_strided_slice %59 {offsets = [0, 0, 0], sizes = [16, 16, 16], strides = [1, 1, 1]} : vector<18x18x16xf32> to vector<16x16x16xf32>
    %61 = vector.extract_strided_slice %59 {offsets = [0, 1, 0], sizes = [16, 16, 16], strides = [1, 1, 1]} : vector<18x18x16xf32> to vector<16x16x16xf32>
    %62 = vector.extract_strided_slice %59 {offsets = [0, 2, 0], sizes = [16, 16, 16], strides = [1, 1, 1]} : vector<18x18x16xf32> to vector<16x16x16xf32>
    %63 = vector.extract_strided_slice %59 {offsets = [1, 0, 0], sizes = [16, 16, 16], strides = [1, 1, 1]} : vector<18x18x16xf32> to vector<16x16x16xf32>
    %64 = vector.extract_strided_slice %59 {offsets = [1, 1, 0], sizes = [16, 16, 16], strides = [1, 1, 1]} : vector<18x18x16xf32> to vector<16x16x16xf32>
    %65 = vector.extract_strided_slice %59 {offsets = [1, 2, 0], sizes = [16, 16, 16], strides = [1, 1, 1]} : vector<18x18x16xf32> to vector<16x16x16xf32>
    %66 = vector.extract_strided_slice %59 {offsets = [2, 0, 0], sizes = [16, 16, 16], strides = [1, 1, 1]} : vector<18x18x16xf32> to vector<16x16x16xf32>
    %67 = vector.extract_strided_slice %59 {offsets = [2, 1, 0], sizes = [16, 16, 16], strides = [1, 1, 1]} : vector<18x18x16xf32> to vector<16x16x16xf32>
    %68 = vector.extract_strided_slice %59 {offsets = [2, 2, 0], sizes = [16, 16, 16], strides = [1, 1, 1]} : vector<18x18x16xf32> to vector<16x16x16xf32>
    %69 = tpu.concatenate %60, %61, %62, %63, %64, %65, %66, %67, %68 in 2 : vector<16x16x16xf32>, vector<16x16x16xf32>, vector<16x16x16xf32>, vector<16x16x16xf32>, vector<16x16x16xf32>, vector<16x16x16xf32>, vector<16x16x16xf32>, vector<16x16x16xf32>, vector<16x16x16xf32> -> vector<16x16x144xf32>
    %70 = vector.shape_cast %69 : vector<16x16x144xf32> to vector<256x144xf32>
    %71 = arith.truncf %70 : vector<256x144xf32> to vector<256x144xbf16>
    %c0_24 = arith.constant 0 : index
    %c0_25 = arith.constant 0 : index
    %72 = vector.load %arg8[%c0_24, %c0_25] : memref<144x16xbf16, #tpu.memory_space<vmem>>, vector<144x16xbf16>
    %cst_26 = arith.constant dense<0.000000e+00> : vector<256x16xf32>
    %73 = tpu.matmul %71, %72, %cst_26 {dimension_numbers = #tpu.dot_dimension_numbers<[1], [0], [0], [1], [0, 0, 1, 1], [], []>} : vector<256x144xbf16>, vector<144x16xbf16>, vector<256x16xf32> -> vector<256x16xf32>
    %c0_27 = arith.constant 0 : index
    %c0_28 = arith.constant 0 : index
    %74 = vector.load %arg9[%c0_27, %c0_28] : memref<1x16xf32, #tpu.memory_space<vmem>>, vector<1x16xf32>
    %75 = vector.broadcast %74 : vector<1x16xf32> to vector<256x16xf32>
    %76 = arith.mulf %73, %75 : vector<256x16xf32>
    %c0_29 = arith.constant 0 : index
    %c0_30 = arith.constant 0 : index
    %77 = vector.load %arg10[%c0_29, %c0_30] : memref<1x16xf32, #tpu.memory_space<vmem>>, vector<1x16xf32>
    %78 = vector.broadcast %77 : vector<1x16xf32> to vector<256x16xf32>
    %79 = arith.addf %76, %78 : vector<256x16xf32>
    %80 = vector.shape_cast %79 : vector<256x16xf32> to vector<16x16x16xf32>
    %81 = arith.addf %80, %28 : vector<16x16x16xf32>
    %cst_31 = arith.constant 0.000000e+00 : f32
    %82 = vector.broadcast %cst_31 : f32 to vector<16x16x16xf32>
    %83 = arith.maximumf %81, %82 : vector<16x16x16xf32>
    %cst_32 = arith.constant 0.000000e+00 : f32
    %84 = vector.broadcast %cst_32 : f32 to vector<1x18x16xf32>
    %cst_33 = arith.constant 0.000000e+00 : f32
    %85 = vector.broadcast %cst_33 : f32 to vector<16x1x16xf32>
    %86 = tpu.concatenate %85, %83, %85 in 1 : vector<16x1x16xf32>, vector<16x16x16xf32>, vector<16x1x16xf32> -> vector<16x18x16xf32>
    %87 = tpu.concatenate %84, %86, %84 in 0 : vector<1x18x16xf32>, vector<16x18x16xf32>, vector<1x18x16xf32> -> vector<18x18x16xf32>
    %88 = vector.extract_strided_slice %87 {offsets = [0, 0, 0], sizes = [16, 16, 16], strides = [1, 1, 1]} : vector<18x18x16xf32> to vector<16x16x16xf32>
    %89 = vector.extract_strided_slice %87 {offsets = [0, 1, 0], sizes = [16, 16, 16], strides = [1, 1, 1]} : vector<18x18x16xf32> to vector<16x16x16xf32>
    %90 = vector.extract_strided_slice %87 {offsets = [0, 2, 0], sizes = [16, 16, 16], strides = [1, 1, 1]} : vector<18x18x16xf32> to vector<16x16x16xf32>
    %91 = vector.extract_strided_slice %87 {offsets = [1, 0, 0], sizes = [16, 16, 16], strides = [1, 1, 1]} : vector<18x18x16xf32> to vector<16x16x16xf32>
    %92 = vector.extract_strided_slice %87 {offsets = [1, 1, 0], sizes = [16, 16, 16], strides = [1, 1, 1]} : vector<18x18x16xf32> to vector<16x16x16xf32>
    %93 = vector.extract_strided_slice %87 {offsets = [1, 2, 0], sizes = [16, 16, 16], strides = [1, 1, 1]} : vector<18x18x16xf32> to vector<16x16x16xf32>
    %94 = vector.extract_strided_slice %87 {offsets = [2, 0, 0], sizes = [16, 16, 16], strides = [1, 1, 1]} : vector<18x18x16xf32> to vector<16x16x16xf32>
    %95 = vector.extract_strided_slice %87 {offsets = [2, 1, 0], sizes = [16, 16, 16], strides = [1, 1, 1]} : vector<18x18x16xf32> to vector<16x16x16xf32>
    %96 = vector.extract_strided_slice %87 {offsets = [2, 2, 0], sizes = [16, 16, 16], strides = [1, 1, 1]} : vector<18x18x16xf32> to vector<16x16x16xf32>
    %97 = tpu.concatenate %88, %89, %90, %91, %92, %93, %94, %95, %96 in 2 : vector<16x16x16xf32>, vector<16x16x16xf32>, vector<16x16x16xf32>, vector<16x16x16xf32>, vector<16x16x16xf32>, vector<16x16x16xf32>, vector<16x16x16xf32>, vector<16x16x16xf32>, vector<16x16x16xf32> -> vector<16x16x144xf32>
    %98 = vector.shape_cast %97 : vector<16x16x144xf32> to vector<256x144xf32>
    %99 = arith.truncf %98 : vector<256x144xf32> to vector<256x144xbf16>
    %c0_34 = arith.constant 0 : index
    %c0_35 = arith.constant 0 : index
    %100 = vector.load %arg11[%c0_34, %c0_35] : memref<144x32xbf16, #tpu.memory_space<vmem>>, vector<144x32xbf16>
    %cst_36 = arith.constant dense<0.000000e+00> : vector<256x32xf32>
    %101 = tpu.matmul %99, %100, %cst_36 {dimension_numbers = #tpu.dot_dimension_numbers<[1], [0], [0], [1], [0, 0, 1, 1], [], []>} : vector<256x144xbf16>, vector<144x32xbf16>, vector<256x32xf32> -> vector<256x32xf32>
    %c0_37 = arith.constant 0 : index
    %c0_38 = arith.constant 0 : index
    %102 = vector.load %arg12[%c0_37, %c0_38] : memref<1x32xf32, #tpu.memory_space<vmem>>, vector<1x32xf32>
    %103 = vector.broadcast %102 : vector<1x32xf32> to vector<256x32xf32>
    %104 = arith.mulf %101, %103 : vector<256x32xf32>
    %c0_39 = arith.constant 0 : index
    %c0_40 = arith.constant 0 : index
    %105 = vector.load %arg13[%c0_39, %c0_40] : memref<1x32xf32, #tpu.memory_space<vmem>>, vector<1x32xf32>
    %106 = vector.broadcast %105 : vector<1x32xf32> to vector<256x32xf32>
    %107 = arith.addf %104, %106 : vector<256x32xf32>
    %cst_41 = arith.constant 0.000000e+00 : f32
    %108 = vector.broadcast %cst_41 : f32 to vector<256x32xf32>
    %109 = arith.maximumf %107, %108 : vector<256x32xf32>
    %110 = vector.shape_cast %109 : vector<256x32xf32> to vector<16x16x32xf32>
    %111 = vector.extract_strided_slice %110 {offsets = [0, 0, 0], sizes = [1, 16, 32], strides = [1, 1, 1]} : vector<16x16x32xf32> to vector<1x16x32xf32>
    %112 = vector.extract_strided_slice %110 {offsets = [2, 0, 0], sizes = [1, 16, 32], strides = [1, 1, 1]} : vector<16x16x32xf32> to vector<1x16x32xf32>
    %113 = vector.extract_strided_slice %110 {offsets = [4, 0, 0], sizes = [1, 16, 32], strides = [1, 1, 1]} : vector<16x16x32xf32> to vector<1x16x32xf32>
    %114 = vector.extract_strided_slice %110 {offsets = [6, 0, 0], sizes = [1, 16, 32], strides = [1, 1, 1]} : vector<16x16x32xf32> to vector<1x16x32xf32>
    %115 = vector.extract_strided_slice %110 {offsets = [8, 0, 0], sizes = [1, 16, 32], strides = [1, 1, 1]} : vector<16x16x32xf32> to vector<1x16x32xf32>
    %116 = vector.extract_strided_slice %110 {offsets = [10, 0, 0], sizes = [1, 16, 32], strides = [1, 1, 1]} : vector<16x16x32xf32> to vector<1x16x32xf32>
    %117 = vector.extract_strided_slice %110 {offsets = [12, 0, 0], sizes = [1, 16, 32], strides = [1, 1, 1]} : vector<16x16x32xf32> to vector<1x16x32xf32>
    %118 = vector.extract_strided_slice %110 {offsets = [14, 0, 0], sizes = [1, 16, 32], strides = [1, 1, 1]} : vector<16x16x32xf32> to vector<1x16x32xf32>
    %119 = tpu.concatenate %111, %112, %113, %114, %115, %116, %117, %118 in 0 : vector<1x16x32xf32>, vector<1x16x32xf32>, vector<1x16x32xf32>, vector<1x16x32xf32>, vector<1x16x32xf32>, vector<1x16x32xf32>, vector<1x16x32xf32>, vector<1x16x32xf32> -> vector<8x16x32xf32>
    %120 = vector.extract_strided_slice %119 {offsets = [0, 0, 0], sizes = [8, 1, 32], strides = [1, 1, 1]} : vector<8x16x32xf32> to vector<8x1x32xf32>
    %121 = vector.extract_strided_slice %119 {offsets = [0, 2, 0], sizes = [8, 1, 32], strides = [1, 1, 1]} : vector<8x16x32xf32> to vector<8x1x32xf32>
    %122 = vector.extract_strided_slice %119 {offsets = [0, 4, 0], sizes = [8, 1, 32], strides = [1, 1, 1]} : vector<8x16x32xf32> to vector<8x1x32xf32>
    %123 = vector.extract_strided_slice %119 {offsets = [0, 6, 0], sizes = [8, 1, 32], strides = [1, 1, 1]} : vector<8x16x32xf32> to vector<8x1x32xf32>
    %124 = vector.extract_strided_slice %119 {offsets = [0, 8, 0], sizes = [8, 1, 32], strides = [1, 1, 1]} : vector<8x16x32xf32> to vector<8x1x32xf32>
    %125 = vector.extract_strided_slice %119 {offsets = [0, 10, 0], sizes = [8, 1, 32], strides = [1, 1, 1]} : vector<8x16x32xf32> to vector<8x1x32xf32>
    %126 = vector.extract_strided_slice %119 {offsets = [0, 12, 0], sizes = [8, 1, 32], strides = [1, 1, 1]} : vector<8x16x32xf32> to vector<8x1x32xf32>
    %127 = vector.extract_strided_slice %119 {offsets = [0, 14, 0], sizes = [8, 1, 32], strides = [1, 1, 1]} : vector<8x16x32xf32> to vector<8x1x32xf32>
    %128 = tpu.concatenate %120, %121, %122, %123, %124, %125, %126, %127 in 1 : vector<8x1x32xf32>, vector<8x1x32xf32>, vector<8x1x32xf32>, vector<8x1x32xf32>, vector<8x1x32xf32>, vector<8x1x32xf32>, vector<8x1x32xf32>, vector<8x1x32xf32> -> vector<8x8x32xf32>
    %129 = vector.extract_strided_slice %83 {offsets = [0, 0, 0], sizes = [1, 16, 16], strides = [1, 1, 1]} : vector<16x16x16xf32> to vector<1x16x16xf32>
    %130 = vector.extract_strided_slice %83 {offsets = [2, 0, 0], sizes = [1, 16, 16], strides = [1, 1, 1]} : vector<16x16x16xf32> to vector<1x16x16xf32>
    %131 = vector.extract_strided_slice %83 {offsets = [4, 0, 0], sizes = [1, 16, 16], strides = [1, 1, 1]} : vector<16x16x16xf32> to vector<1x16x16xf32>
    %132 = vector.extract_strided_slice %83 {offsets = [6, 0, 0], sizes = [1, 16, 16], strides = [1, 1, 1]} : vector<16x16x16xf32> to vector<1x16x16xf32>
    %133 = vector.extract_strided_slice %83 {offsets = [8, 0, 0], sizes = [1, 16, 16], strides = [1, 1, 1]} : vector<16x16x16xf32> to vector<1x16x16xf32>
    %134 = vector.extract_strided_slice %83 {offsets = [10, 0, 0], sizes = [1, 16, 16], strides = [1, 1, 1]} : vector<16x16x16xf32> to vector<1x16x16xf32>
    %135 = vector.extract_strided_slice %83 {offsets = [12, 0, 0], sizes = [1, 16, 16], strides = [1, 1, 1]} : vector<16x16x16xf32> to vector<1x16x16xf32>
    %136 = vector.extract_strided_slice %83 {offsets = [14, 0, 0], sizes = [1, 16, 16], strides = [1, 1, 1]} : vector<16x16x16xf32> to vector<1x16x16xf32>
    %137 = tpu.concatenate %129, %130, %131, %132, %133, %134, %135, %136 in 0 : vector<1x16x16xf32>, vector<1x16x16xf32>, vector<1x16x16xf32>, vector<1x16x16xf32>, vector<1x16x16xf32>, vector<1x16x16xf32>, vector<1x16x16xf32>, vector<1x16x16xf32> -> vector<8x16x16xf32>
    %138 = vector.extract_strided_slice %137 {offsets = [0, 0, 0], sizes = [8, 1, 16], strides = [1, 1, 1]} : vector<8x16x16xf32> to vector<8x1x16xf32>
    %139 = vector.extract_strided_slice %137 {offsets = [0, 2, 0], sizes = [8, 1, 16], strides = [1, 1, 1]} : vector<8x16x16xf32> to vector<8x1x16xf32>
    %140 = vector.extract_strided_slice %137 {offsets = [0, 4, 0], sizes = [8, 1, 16], strides = [1, 1, 1]} : vector<8x16x16xf32> to vector<8x1x16xf32>
    %141 = vector.extract_strided_slice %137 {offsets = [0, 6, 0], sizes = [8, 1, 16], strides = [1, 1, 1]} : vector<8x16x16xf32> to vector<8x1x16xf32>
    %142 = vector.extract_strided_slice %137 {offsets = [0, 8, 0], sizes = [8, 1, 16], strides = [1, 1, 1]} : vector<8x16x16xf32> to vector<8x1x16xf32>
    %143 = vector.extract_strided_slice %137 {offsets = [0, 10, 0], sizes = [8, 1, 16], strides = [1, 1, 1]} : vector<8x16x16xf32> to vector<8x1x16xf32>
    %144 = vector.extract_strided_slice %137 {offsets = [0, 12, 0], sizes = [8, 1, 16], strides = [1, 1, 1]} : vector<8x16x16xf32> to vector<8x1x16xf32>
    %145 = vector.extract_strided_slice %137 {offsets = [0, 14, 0], sizes = [8, 1, 16], strides = [1, 1, 1]} : vector<8x16x16xf32> to vector<8x1x16xf32>
    %146 = tpu.concatenate %138, %139, %140, %141, %142, %143, %144, %145 in 1 : vector<8x1x16xf32>, vector<8x1x16xf32>, vector<8x1x16xf32>, vector<8x1x16xf32>, vector<8x1x16xf32>, vector<8x1x16xf32>, vector<8x1x16xf32>, vector<8x1x16xf32> -> vector<8x8x16xf32>
    %147 = vector.shape_cast %146 : vector<8x8x16xf32> to vector<64x16xf32>
    %148 = arith.truncf %147 : vector<64x16xf32> to vector<64x16xbf16>
    %c0_42 = arith.constant 0 : index
    %c0_43 = arith.constant 0 : index
    %149 = vector.load %arg17[%c0_42, %c0_43] : memref<16x32xbf16, #tpu.memory_space<vmem>>, vector<16x32xbf16>
    %cst_44 = arith.constant dense<0.000000e+00> : vector<64x32xf32>
    %150 = tpu.matmul %148, %149, %cst_44 {dimension_numbers = #tpu.dot_dimension_numbers<[1], [0], [0], [1], [0, 0, 1, 1], [], []>} : vector<64x16xbf16>, vector<16x32xbf16>, vector<64x32xf32> -> vector<64x32xf32>
    %c0_45 = arith.constant 0 : index
    %c0_46 = arith.constant 0 : index
    %151 = vector.load %arg18[%c0_45, %c0_46] : memref<1x32xf32, #tpu.memory_space<vmem>>, vector<1x32xf32>
    %152 = vector.broadcast %151 : vector<1x32xf32> to vector<64x32xf32>
    %153 = arith.mulf %150, %152 : vector<64x32xf32>
    %c0_47 = arith.constant 0 : index
    %c0_48 = arith.constant 0 : index
    %154 = vector.load %arg19[%c0_47, %c0_48] : memref<1x32xf32, #tpu.memory_space<vmem>>, vector<1x32xf32>
    %155 = vector.broadcast %154 : vector<1x32xf32> to vector<64x32xf32>
    %156 = arith.addf %153, %155 : vector<64x32xf32>
    %157 = vector.shape_cast %156 : vector<64x32xf32> to vector<8x8x32xf32>
    %cst_49 = arith.constant 0.000000e+00 : f32
    %158 = vector.broadcast %cst_49 : f32 to vector<1x10x32xf32>
    %cst_50 = arith.constant 0.000000e+00 : f32
    %159 = vector.broadcast %cst_50 : f32 to vector<8x1x32xf32>
    %160 = tpu.concatenate %159, %128, %159 in 1 : vector<8x1x32xf32>, vector<8x8x32xf32>, vector<8x1x32xf32> -> vector<8x10x32xf32>
    %161 = tpu.concatenate %158, %160, %158 in 0 : vector<1x10x32xf32>, vector<8x10x32xf32>, vector<1x10x32xf32> -> vector<10x10x32xf32>
    %162 = vector.extract_strided_slice %161 {offsets = [0, 0, 0], sizes = [8, 8, 32], strides = [1, 1, 1]} : vector<10x10x32xf32> to vector<8x8x32xf32>
    %163 = vector.extract_strided_slice %161 {offsets = [0, 1, 0], sizes = [8, 8, 32], strides = [1, 1, 1]} : vector<10x10x32xf32> to vector<8x8x32xf32>
    %164 = vector.extract_strided_slice %161 {offsets = [0, 2, 0], sizes = [8, 8, 32], strides = [1, 1, 1]} : vector<10x10x32xf32> to vector<8x8x32xf32>
    %165 = vector.extract_strided_slice %161 {offsets = [1, 0, 0], sizes = [8, 8, 32], strides = [1, 1, 1]} : vector<10x10x32xf32> to vector<8x8x32xf32>
    %166 = vector.extract_strided_slice %161 {offsets = [1, 1, 0], sizes = [8, 8, 32], strides = [1, 1, 1]} : vector<10x10x32xf32> to vector<8x8x32xf32>
    %167 = vector.extract_strided_slice %161 {offsets = [1, 2, 0], sizes = [8, 8, 32], strides = [1, 1, 1]} : vector<10x10x32xf32> to vector<8x8x32xf32>
    %168 = vector.extract_strided_slice %161 {offsets = [2, 0, 0], sizes = [8, 8, 32], strides = [1, 1, 1]} : vector<10x10x32xf32> to vector<8x8x32xf32>
    %169 = vector.extract_strided_slice %161 {offsets = [2, 1, 0], sizes = [8, 8, 32], strides = [1, 1, 1]} : vector<10x10x32xf32> to vector<8x8x32xf32>
    %170 = vector.extract_strided_slice %161 {offsets = [2, 2, 0], sizes = [8, 8, 32], strides = [1, 1, 1]} : vector<10x10x32xf32> to vector<8x8x32xf32>
    %171 = tpu.concatenate %162, %163, %164, %165, %166, %167, %168, %169, %170 in 2 : vector<8x8x32xf32>, vector<8x8x32xf32>, vector<8x8x32xf32>, vector<8x8x32xf32>, vector<8x8x32xf32>, vector<8x8x32xf32>, vector<8x8x32xf32>, vector<8x8x32xf32>, vector<8x8x32xf32> -> vector<8x8x288xf32>
    %172 = vector.shape_cast %171 : vector<8x8x288xf32> to vector<64x288xf32>
    %173 = arith.truncf %172 : vector<64x288xf32> to vector<64x288xbf16>
    %c0_51 = arith.constant 0 : index
    %c0_52 = arith.constant 0 : index
    %174 = vector.load %arg14[%c0_51, %c0_52] : memref<288x32xbf16, #tpu.memory_space<vmem>>, vector<288x32xbf16>
    %cst_53 = arith.constant dense<0.000000e+00> : vector<64x32xf32>
    %175 = tpu.matmul %173, %174, %cst_53 {dimension_numbers = #tpu.dot_dimension_numbers<[1], [0], [0], [1], [0, 0, 1, 1], [], []>} : vector<64x288xbf16>, vector<288x32xbf16>, vector<64x32xf32> -> vector<64x32xf32>
    %c0_54 = arith.constant 0 : index
    %c0_55 = arith.constant 0 : index
    %176 = vector.load %arg15[%c0_54, %c0_55] : memref<1x32xf32, #tpu.memory_space<vmem>>, vector<1x32xf32>
    %177 = vector.broadcast %176 : vector<1x32xf32> to vector<64x32xf32>
    %178 = arith.mulf %175, %177 : vector<64x32xf32>
    %c0_56 = arith.constant 0 : index
    %c0_57 = arith.constant 0 : index
    %179 = vector.load %arg16[%c0_56, %c0_57] : memref<1x32xf32, #tpu.memory_space<vmem>>, vector<1x32xf32>
    %180 = vector.broadcast %179 : vector<1x32xf32> to vector<64x32xf32>
    %181 = arith.addf %178, %180 : vector<64x32xf32>
    %182 = vector.shape_cast %181 : vector<64x32xf32> to vector<8x8x32xf32>
    %183 = arith.addf %182, %157 : vector<8x8x32xf32>
    %cst_58 = arith.constant 0.000000e+00 : f32
    %184 = vector.broadcast %cst_58 : f32 to vector<8x8x32xf32>
    %185 = arith.maximumf %183, %184 : vector<8x8x32xf32>
    %cst_59 = arith.constant 0.000000e+00 : f32
    %186 = vector.broadcast %cst_59 : f32 to vector<1x10x32xf32>
    %cst_60 = arith.constant 0.000000e+00 : f32
    %187 = vector.broadcast %cst_60 : f32 to vector<8x1x32xf32>
    %188 = tpu.concatenate %187, %185, %187 in 1 : vector<8x1x32xf32>, vector<8x8x32xf32>, vector<8x1x32xf32> -> vector<8x10x32xf32>
    %189 = tpu.concatenate %186, %188, %186 in 0 : vector<1x10x32xf32>, vector<8x10x32xf32>, vector<1x10x32xf32> -> vector<10x10x32xf32>
    %190 = vector.extract_strided_slice %189 {offsets = [0, 0, 0], sizes = [8, 8, 32], strides = [1, 1, 1]} : vector<10x10x32xf32> to vector<8x8x32xf32>
    %191 = vector.extract_strided_slice %189 {offsets = [0, 1, 0], sizes = [8, 8, 32], strides = [1, 1, 1]} : vector<10x10x32xf32> to vector<8x8x32xf32>
    %192 = vector.extract_strided_slice %189 {offsets = [0, 2, 0], sizes = [8, 8, 32], strides = [1, 1, 1]} : vector<10x10x32xf32> to vector<8x8x32xf32>
    %193 = vector.extract_strided_slice %189 {offsets = [1, 0, 0], sizes = [8, 8, 32], strides = [1, 1, 1]} : vector<10x10x32xf32> to vector<8x8x32xf32>
    %194 = vector.extract_strided_slice %189 {offsets = [1, 1, 0], sizes = [8, 8, 32], strides = [1, 1, 1]} : vector<10x10x32xf32> to vector<8x8x32xf32>
    %195 = vector.extract_strided_slice %189 {offsets = [1, 2, 0], sizes = [8, 8, 32], strides = [1, 1, 1]} : vector<10x10x32xf32> to vector<8x8x32xf32>
    %196 = vector.extract_strided_slice %189 {offsets = [2, 0, 0], sizes = [8, 8, 32], strides = [1, 1, 1]} : vector<10x10x32xf32> to vector<8x8x32xf32>
    %197 = vector.extract_strided_slice %189 {offsets = [2, 1, 0], sizes = [8, 8, 32], strides = [1, 1, 1]} : vector<10x10x32xf32> to vector<8x8x32xf32>
    %198 = vector.extract_strided_slice %189 {offsets = [2, 2, 0], sizes = [8, 8, 32], strides = [1, 1, 1]} : vector<10x10x32xf32> to vector<8x8x32xf32>
    %199 = tpu.concatenate %190, %191, %192, %193, %194, %195, %196, %197, %198 in 2 : vector<8x8x32xf32>, vector<8x8x32xf32>, vector<8x8x32xf32>, vector<8x8x32xf32>, vector<8x8x32xf32>, vector<8x8x32xf32>, vector<8x8x32xf32>, vector<8x8x32xf32>, vector<8x8x32xf32> -> vector<8x8x288xf32>
    %200 = vector.shape_cast %199 : vector<8x8x288xf32> to vector<64x288xf32>
    %201 = arith.truncf %200 : vector<64x288xf32> to vector<64x288xbf16>
    %c0_61 = arith.constant 0 : index
    %c0_62 = arith.constant 0 : index
    %202 = vector.load %arg20[%c0_61, %c0_62] : memref<288x64xbf16, #tpu.memory_space<vmem>>, vector<288x64xbf16>
    %cst_63 = arith.constant dense<0.000000e+00> : vector<64x64xf32>
    %203 = tpu.matmul %201, %202, %cst_63 {dimension_numbers = #tpu.dot_dimension_numbers<[1], [0], [0], [1], [0, 0, 1, 1], [], []>} : vector<64x288xbf16>, vector<288x64xbf16>, vector<64x64xf32> -> vector<64x64xf32>
    %c0_64 = arith.constant 0 : index
    %c0_65 = arith.constant 0 : index
    %204 = vector.load %arg21[%c0_64, %c0_65] : memref<1x64xf32, #tpu.memory_space<vmem>>, vector<1x64xf32>
    %205 = vector.broadcast %204 : vector<1x64xf32> to vector<64x64xf32>
    %206 = arith.mulf %203, %205 : vector<64x64xf32>
    %c0_66 = arith.constant 0 : index
    %c0_67 = arith.constant 0 : index
    %207 = vector.load %arg22[%c0_66, %c0_67] : memref<1x64xf32, #tpu.memory_space<vmem>>, vector<1x64xf32>
    %208 = vector.broadcast %207 : vector<1x64xf32> to vector<64x64xf32>
    %209 = arith.addf %206, %208 : vector<64x64xf32>
    %cst_68 = arith.constant 0.000000e+00 : f32
    %210 = vector.broadcast %cst_68 : f32 to vector<64x64xf32>
    %211 = arith.maximumf %209, %210 : vector<64x64xf32>
    %212 = vector.shape_cast %211 : vector<64x64xf32> to vector<8x8x64xf32>
    %213 = vector.extract_strided_slice %212 {offsets = [0, 0, 0], sizes = [1, 8, 64], strides = [1, 1, 1]} : vector<8x8x64xf32> to vector<1x8x64xf32>
    %214 = vector.extract_strided_slice %212 {offsets = [2, 0, 0], sizes = [1, 8, 64], strides = [1, 1, 1]} : vector<8x8x64xf32> to vector<1x8x64xf32>
    %215 = vector.extract_strided_slice %212 {offsets = [4, 0, 0], sizes = [1, 8, 64], strides = [1, 1, 1]} : vector<8x8x64xf32> to vector<1x8x64xf32>
    %216 = vector.extract_strided_slice %212 {offsets = [6, 0, 0], sizes = [1, 8, 64], strides = [1, 1, 1]} : vector<8x8x64xf32> to vector<1x8x64xf32>
    %217 = tpu.concatenate %213, %214, %215, %216 in 0 : vector<1x8x64xf32>, vector<1x8x64xf32>, vector<1x8x64xf32>, vector<1x8x64xf32> -> vector<4x8x64xf32>
    %218 = vector.extract_strided_slice %217 {offsets = [0, 0, 0], sizes = [4, 1, 64], strides = [1, 1, 1]} : vector<4x8x64xf32> to vector<4x1x64xf32>
    %219 = vector.extract_strided_slice %217 {offsets = [0, 2, 0], sizes = [4, 1, 64], strides = [1, 1, 1]} : vector<4x8x64xf32> to vector<4x1x64xf32>
    %220 = vector.extract_strided_slice %217 {offsets = [0, 4, 0], sizes = [4, 1, 64], strides = [1, 1, 1]} : vector<4x8x64xf32> to vector<4x1x64xf32>
    %221 = vector.extract_strided_slice %217 {offsets = [0, 6, 0], sizes = [4, 1, 64], strides = [1, 1, 1]} : vector<4x8x64xf32> to vector<4x1x64xf32>
    %222 = tpu.concatenate %218, %219, %220, %221 in 1 : vector<4x1x64xf32>, vector<4x1x64xf32>, vector<4x1x64xf32>, vector<4x1x64xf32> -> vector<4x4x64xf32>
    %223 = vector.extract_strided_slice %185 {offsets = [0, 0, 0], sizes = [1, 8, 32], strides = [1, 1, 1]} : vector<8x8x32xf32> to vector<1x8x32xf32>
    %224 = vector.extract_strided_slice %185 {offsets = [2, 0, 0], sizes = [1, 8, 32], strides = [1, 1, 1]} : vector<8x8x32xf32> to vector<1x8x32xf32>
    %225 = vector.extract_strided_slice %185 {offsets = [4, 0, 0], sizes = [1, 8, 32], strides = [1, 1, 1]} : vector<8x8x32xf32> to vector<1x8x32xf32>
    %226 = vector.extract_strided_slice %185 {offsets = [6, 0, 0], sizes = [1, 8, 32], strides = [1, 1, 1]} : vector<8x8x32xf32> to vector<1x8x32xf32>
    %227 = tpu.concatenate %223, %224, %225, %226 in 0 : vector<1x8x32xf32>, vector<1x8x32xf32>, vector<1x8x32xf32>, vector<1x8x32xf32> -> vector<4x8x32xf32>
    %228 = vector.extract_strided_slice %227 {offsets = [0, 0, 0], sizes = [4, 1, 32], strides = [1, 1, 1]} : vector<4x8x32xf32> to vector<4x1x32xf32>
    %229 = vector.extract_strided_slice %227 {offsets = [0, 2, 0], sizes = [4, 1, 32], strides = [1, 1, 1]} : vector<4x8x32xf32> to vector<4x1x32xf32>
    %230 = vector.extract_strided_slice %227 {offsets = [0, 4, 0], sizes = [4, 1, 32], strides = [1, 1, 1]} : vector<4x8x32xf32> to vector<4x1x32xf32>
    %231 = vector.extract_strided_slice %227 {offsets = [0, 6, 0], sizes = [4, 1, 32], strides = [1, 1, 1]} : vector<4x8x32xf32> to vector<4x1x32xf32>
    %232 = tpu.concatenate %228, %229, %230, %231 in 1 : vector<4x1x32xf32>, vector<4x1x32xf32>, vector<4x1x32xf32>, vector<4x1x32xf32> -> vector<4x4x32xf32>
    %233 = vector.shape_cast %232 : vector<4x4x32xf32> to vector<16x32xf32>
    %234 = arith.truncf %233 : vector<16x32xf32> to vector<16x32xbf16>
    %c0_69 = arith.constant 0 : index
    %c0_70 = arith.constant 0 : index
    %235 = vector.load %arg26[%c0_69, %c0_70] : memref<32x64xbf16, #tpu.memory_space<vmem>>, vector<32x64xbf16>
    %cst_71 = arith.constant dense<0.000000e+00> : vector<16x64xf32>
    %236 = tpu.matmul %234, %235, %cst_71 {dimension_numbers = #tpu.dot_dimension_numbers<[1], [0], [0], [1], [0, 0, 1, 1], [], []>} : vector<16x32xbf16>, vector<32x64xbf16>, vector<16x64xf32> -> vector<16x64xf32>
    %c0_72 = arith.constant 0 : index
    %c0_73 = arith.constant 0 : index
    %237 = vector.load %arg27[%c0_72, %c0_73] : memref<1x64xf32, #tpu.memory_space<vmem>>, vector<1x64xf32>
    %238 = vector.broadcast %237 : vector<1x64xf32> to vector<16x64xf32>
    %239 = arith.mulf %236, %238 : vector<16x64xf32>
    %c0_74 = arith.constant 0 : index
    %c0_75 = arith.constant 0 : index
    %240 = vector.load %arg28[%c0_74, %c0_75] : memref<1x64xf32, #tpu.memory_space<vmem>>, vector<1x64xf32>
    %241 = vector.broadcast %240 : vector<1x64xf32> to vector<16x64xf32>
    %242 = arith.addf %239, %241 : vector<16x64xf32>
    %243 = vector.shape_cast %242 : vector<16x64xf32> to vector<4x4x64xf32>
    %cst_76 = arith.constant 0.000000e+00 : f32
    %244 = vector.broadcast %cst_76 : f32 to vector<1x6x64xf32>
    %cst_77 = arith.constant 0.000000e+00 : f32
    %245 = vector.broadcast %cst_77 : f32 to vector<4x1x64xf32>
    %246 = tpu.concatenate %245, %222, %245 in 1 : vector<4x1x64xf32>, vector<4x4x64xf32>, vector<4x1x64xf32> -> vector<4x6x64xf32>
    %247 = tpu.concatenate %244, %246, %244 in 0 : vector<1x6x64xf32>, vector<4x6x64xf32>, vector<1x6x64xf32> -> vector<6x6x64xf32>
    %248 = vector.extract_strided_slice %247 {offsets = [0, 0, 0], sizes = [4, 4, 64], strides = [1, 1, 1]} : vector<6x6x64xf32> to vector<4x4x64xf32>
    %249 = vector.extract_strided_slice %247 {offsets = [0, 1, 0], sizes = [4, 4, 64], strides = [1, 1, 1]} : vector<6x6x64xf32> to vector<4x4x64xf32>
    %250 = vector.extract_strided_slice %247 {offsets = [0, 2, 0], sizes = [4, 4, 64], strides = [1, 1, 1]} : vector<6x6x64xf32> to vector<4x4x64xf32>
    %251 = vector.extract_strided_slice %247 {offsets = [1, 0, 0], sizes = [4, 4, 64], strides = [1, 1, 1]} : vector<6x6x64xf32> to vector<4x4x64xf32>
    %252 = vector.extract_strided_slice %247 {offsets = [1, 1, 0], sizes = [4, 4, 64], strides = [1, 1, 1]} : vector<6x6x64xf32> to vector<4x4x64xf32>
    %253 = vector.extract_strided_slice %247 {offsets = [1, 2, 0], sizes = [4, 4, 64], strides = [1, 1, 1]} : vector<6x6x64xf32> to vector<4x4x64xf32>
    %254 = vector.extract_strided_slice %247 {offsets = [2, 0, 0], sizes = [4, 4, 64], strides = [1, 1, 1]} : vector<6x6x64xf32> to vector<4x4x64xf32>
    %255 = vector.extract_strided_slice %247 {offsets = [2, 1, 0], sizes = [4, 4, 64], strides = [1, 1, 1]} : vector<6x6x64xf32> to vector<4x4x64xf32>
    %256 = vector.extract_strided_slice %247 {offsets = [2, 2, 0], sizes = [4, 4, 64], strides = [1, 1, 1]} : vector<6x6x64xf32> to vector<4x4x64xf32>
    %257 = tpu.concatenate %248, %249, %250, %251, %252, %253, %254, %255, %256 in 2 : vector<4x4x64xf32>, vector<4x4x64xf32>, vector<4x4x64xf32>, vector<4x4x64xf32>, vector<4x4x64xf32>, vector<4x4x64xf32>, vector<4x4x64xf32>, vector<4x4x64xf32>, vector<4x4x64xf32> -> vector<4x4x576xf32>
    %258 = vector.shape_cast %257 : vector<4x4x576xf32> to vector<16x576xf32>
    %259 = arith.truncf %258 : vector<16x576xf32> to vector<16x576xbf16>
    %c0_78 = arith.constant 0 : index
    %c0_79 = arith.constant 0 : index
    %260 = vector.load %arg23[%c0_78, %c0_79] : memref<576x64xbf16, #tpu.memory_space<vmem>>, vector<576x64xbf16>
    %cst_80 = arith.constant dense<0.000000e+00> : vector<16x64xf32>
    %261 = tpu.matmul %259, %260, %cst_80 {dimension_numbers = #tpu.dot_dimension_numbers<[1], [0], [0], [1], [0, 0, 1, 1], [], []>} : vector<16x576xbf16>, vector<576x64xbf16>, vector<16x64xf32> -> vector<16x64xf32>
    %c0_81 = arith.constant 0 : index
    %c0_82 = arith.constant 0 : index
    %262 = vector.load %arg24[%c0_81, %c0_82] : memref<1x64xf32, #tpu.memory_space<vmem>>, vector<1x64xf32>
    %263 = vector.broadcast %262 : vector<1x64xf32> to vector<16x64xf32>
    %264 = arith.mulf %261, %263 : vector<16x64xf32>
    %c0_83 = arith.constant 0 : index
    %c0_84 = arith.constant 0 : index
    %265 = vector.load %arg25[%c0_83, %c0_84] : memref<1x64xf32, #tpu.memory_space<vmem>>, vector<1x64xf32>
    %266 = vector.broadcast %265 : vector<1x64xf32> to vector<16x64xf32>
    %267 = arith.addf %264, %266 : vector<16x64xf32>
    %268 = vector.shape_cast %267 : vector<16x64xf32> to vector<4x4x64xf32>
    %269 = arith.addf %268, %243 : vector<4x4x64xf32>
    %cst_85 = arith.constant 0.000000e+00 : f32
    %270 = vector.broadcast %cst_85 : f32 to vector<4x4x64xf32>
    %271 = arith.maximumf %269, %270 : vector<4x4x64xf32>
    %272 = vector.shape_cast %271 : vector<4x4x64xf32> to vector<16x64xf32>
    %cst_86 = arith.constant dense<0.000000e+00> : vector<64xf32>
    %273 = vector.multi_reduction <add>, %272, %cst_86 [0] : vector<16x64xf32> to vector<64xf32>
    %274 = vector.shape_cast %273 : vector<64xf32> to vector<1x64xf32>
    %cst_87 = arith.constant 1.600000e+01 : f32
    %275 = vector.broadcast %cst_87 : f32 to vector<1x64xf32>
    %276 = arith.divf %274, %275 : vector<1x64xf32>
    %c0_88 = arith.constant 0 : index
    %c0_89 = arith.constant 0 : index
    %277 = vector.load %arg29[%c0_88, %c0_89] : memref<64x10xf32, #tpu.memory_space<vmem>>, vector<64x10xf32>
    %cst_90 = arith.constant dense<0.000000e+00> : vector<1x10xf32>
    %278 = tpu.matmul %276, %277, %cst_90 {dimension_numbers = #tpu.dot_dimension_numbers<[1], [0], [0], [1], [0, 0, 1, 1], [], []>} : vector<1x64xf32>, vector<64x10xf32>, vector<1x10xf32> -> vector<1x10xf32>
    %c0_91 = arith.constant 0 : index
    %c0_92 = arith.constant 0 : index
    %279 = vector.load %arg30[%c0_91, %c0_92] : memref<1x10xf32, #tpu.memory_space<vmem>>, vector<1x10xf32>
    %280 = arith.addf %278, %279 : vector<1x10xf32>
    %c0_93 = arith.constant 0 : index
    %c0_94 = arith.constant 0 : index
    %c0_95 = arith.constant 0 : index
    %281 = vector.load %arg31[%c0_93, %c0_94, %c0_95] : memref<1x1x10xf32, #tpu.memory_space<vmem>>, vector<1x1x10xf32>
    %282 = vector.shape_cast %281 : vector<1x1x10xf32> to vector<1x10xf32>
    %283 = vector.shape_cast %280 : vector<1x10xf32> to vector<1x1x10xf32>
    tpu.vector_store %arg31[%c0_93, %c0_94, %c0_95], %283 {strides = array<i32>} : memref<1x1x10xf32, #tpu.memory_space<vmem>>, vector<1x1x10xf32>,
    return
  }
  func.func @transform_0(%arg0: i32) -> (i32, i32, i32, i32) {
    %c0_i32 = arith.constant 0 : i32
    %c0_i32_0 = arith.constant 0 : i32
    %c0_i32_1 = arith.constant 0 : i32
    %c0_i32_2 = arith.constant 0 : i32
    return %arg0, %c0_i32, %c0_i32_0, %c0_i32_1 : i32, i32, i32, i32
  }
  func.func @transform_1(%arg0: i32) -> (i32, i32) {
    %c0_i32 = arith.constant 0 : i32
    %c0_i32_0 = arith.constant 0 : i32
    %c0_i32_1 = arith.constant 0 : i32
    return %c0_i32, %c0_i32_0 : i32, i32
  }
  func.func @transform_2(%arg0: i32) -> (i32, i32) {
    %c0_i32 = arith.constant 0 : i32
    %c0_i32_0 = arith.constant 0 : i32
    %c0_i32_1 = arith.constant 0 : i32
    return %c0_i32, %c0_i32_0 : i32, i32
  }
  func.func @transform_3(%arg0: i32) -> (i32, i32) {
    %c0_i32 = arith.constant 0 : i32
    %c0_i32_0 = arith.constant 0 : i32
    %c0_i32_1 = arith.constant 0 : i32
    return %c0_i32, %c0_i32_0 : i32, i32
  }
  func.func @transform_4(%arg0: i32) -> (i32, i32) {
    %c0_i32 = arith.constant 0 : i32
    %c0_i32_0 = arith.constant 0 : i32
    %c0_i32_1 = arith.constant 0 : i32
    return %c0_i32, %c0_i32_0 : i32, i32
  }
  func.func @transform_5(%arg0: i32) -> (i32, i32) {
    %c0_i32 = arith.constant 0 : i32
    %c0_i32_0 = arith.constant 0 : i32
    %c0_i32_1 = arith.constant 0 : i32
    return %c0_i32, %c0_i32_0 : i32, i32
  }
  func.func @transform_6(%arg0: i32) -> (i32, i32) {
    %c0_i32 = arith.constant 0 : i32
    %c0_i32_0 = arith.constant 0 : i32
    %c0_i32_1 = arith.constant 0 : i32
    return %c0_i32, %c0_i32_0 : i32, i32
  }
  func.func @transform_7(%arg0: i32) -> (i32, i32) {
    %c0_i32 = arith.constant 0 : i32
    %c0_i32_0 = arith.constant 0 : i32
    %c0_i32_1 = arith.constant 0 : i32
    return %c0_i32, %c0_i32_0 : i32, i32
  }
  func.func @transform_8(%arg0: i32) -> (i32, i32) {
    %c0_i32 = arith.constant 0 : i32
    %c0_i32_0 = arith.constant 0 : i32
    %c0_i32_1 = arith.constant 0 : i32
    return %c0_i32, %c0_i32_0 : i32, i32
  }
  func.func @transform_9(%arg0: i32) -> (i32, i32) {
    %c0_i32 = arith.constant 0 : i32
    %c0_i32_0 = arith.constant 0 : i32
    %c0_i32_1 = arith.constant 0 : i32
    return %c0_i32, %c0_i32_0 : i32, i32
  }
  func.func @transform_10(%arg0: i32) -> (i32, i32) {
    %c0_i32 = arith.constant 0 : i32
    %c0_i32_0 = arith.constant 0 : i32
    %c0_i32_1 = arith.constant 0 : i32
    return %c0_i32, %c0_i32_0 : i32, i32
  }
  func.func @transform_11(%arg0: i32) -> (i32, i32) {
    %c0_i32 = arith.constant 0 : i32
    %c0_i32_0 = arith.constant 0 : i32
    %c0_i32_1 = arith.constant 0 : i32
    return %c0_i32, %c0_i32_0 : i32, i32
  }
  func.func @transform_12(%arg0: i32) -> (i32, i32) {
    %c0_i32 = arith.constant 0 : i32
    %c0_i32_0 = arith.constant 0 : i32
    %c0_i32_1 = arith.constant 0 : i32
    return %c0_i32, %c0_i32_0 : i32, i32
  }
  func.func @transform_13(%arg0: i32) -> (i32, i32) {
    %c0_i32 = arith.constant 0 : i32
    %c0_i32_0 = arith.constant 0 : i32
    %c0_i32_1 = arith.constant 0 : i32
    return %c0_i32, %c0_i32_0 : i32, i32
  }
  func.func @transform_14(%arg0: i32) -> (i32, i32) {
    %c0_i32 = arith.constant 0 : i32
    %c0_i32_0 = arith.constant 0 : i32
    %c0_i32_1 = arith.constant 0 : i32
    return %c0_i32, %c0_i32_0 : i32, i32
  }
  func.func @transform_15(%arg0: i32) -> (i32, i32) {
    %c0_i32 = arith.constant 0 : i32
    %c0_i32_0 = arith.constant 0 : i32
    %c0_i32_1 = arith.constant 0 : i32
    return %c0_i32, %c0_i32_0 : i32, i32
  }
  func.func @transform_16(%arg0: i32) -> (i32, i32) {
    %c0_i32 = arith.constant 0 : i32
    %c0_i32_0 = arith.constant 0 : i32
    %c0_i32_1 = arith.constant 0 : i32
    return %c0_i32, %c0_i32_0 : i32, i32
  }
  func.func @transform_17(%arg0: i32) -> (i32, i32) {
    %c0_i32 = arith.constant 0 : i32
    %c0_i32_0 = arith.constant 0 : i32
    %c0_i32_1 = arith.constant 0 : i32
    return %c0_i32, %c0_i32_0 : i32, i32
  }
  func.func @transform_18(%arg0: i32) -> (i32, i32) {
    %c0_i32 = arith.constant 0 : i32
    %c0_i32_0 = arith.constant 0 : i32
    %c0_i32_1 = arith.constant 0 : i32
    return %c0_i32, %c0_i32_0 : i32, i32
  }
  func.func @transform_19(%arg0: i32) -> (i32, i32) {
    %c0_i32 = arith.constant 0 : i32
    %c0_i32_0 = arith.constant 0 : i32
    %c0_i32_1 = arith.constant 0 : i32
    return %c0_i32, %c0_i32_0 : i32, i32
  }
  func.func @transform_20(%arg0: i32) -> (i32, i32) {
    %c0_i32 = arith.constant 0 : i32
    %c0_i32_0 = arith.constant 0 : i32
    %c0_i32_1 = arith.constant 0 : i32
    return %c0_i32, %c0_i32_0 : i32, i32
  }
  func.func @transform_21(%arg0: i32) -> (i32, i32) {
    %c0_i32 = arith.constant 0 : i32
    %c0_i32_0 = arith.constant 0 : i32
    %c0_i32_1 = arith.constant 0 : i32
    return %c0_i32, %c0_i32_0 : i32, i32
  }
  func.func @transform_22(%arg0: i32) -> (i32, i32) {
    %c0_i32 = arith.constant 0 : i32
    %c0_i32_0 = arith.constant 0 : i32
    %c0_i32_1 = arith.constant 0 : i32
    return %c0_i32, %c0_i32_0 : i32, i32
  }
  func.func @transform_23(%arg0: i32) -> (i32, i32) {
    %c0_i32 = arith.constant 0 : i32
    %c0_i32_0 = arith.constant 0 : i32
    %c0_i32_1 = arith.constant 0 : i32
    return %c0_i32, %c0_i32_0 : i32, i32
  }
  func.func @transform_24(%arg0: i32) -> (i32, i32) {
    %c0_i32 = arith.constant 0 : i32
    %c0_i32_0 = arith.constant 0 : i32
    %c0_i32_1 = arith.constant 0 : i32
    return %c0_i32, %c0_i32_0 : i32, i32
  }
  func.func @transform_25(%arg0: i32) -> (i32, i32) {
    %c0_i32 = arith.constant 0 : i32
    %c0_i32_0 = arith.constant 0 : i32
    %c0_i32_1 = arith.constant 0 : i32
    return %c0_i32, %c0_i32_0 : i32, i32
  }
  func.func @transform_26(%arg0: i32) -> (i32, i32) {
    %c0_i32 = arith.constant 0 : i32
    %c0_i32_0 = arith.constant 0 : i32
    %c0_i32_1 = arith.constant 0 : i32
    return %c0_i32, %c0_i32_0 : i32, i32
  }
  func.func @transform_27(%arg0: i32) -> (i32, i32) {
    %c0_i32 = arith.constant 0 : i32
    %c0_i32_0 = arith.constant 0 : i32
    %c0_i32_1 = arith.constant 0 : i32
    return %c0_i32, %c0_i32_0 : i32, i32
  }
  func.func @transform_28(%arg0: i32) -> (i32, i32) {
    %c0_i32 = arith.constant 0 : i32
    %c0_i32_0 = arith.constant 0 : i32
    %c0_i32_1 = arith.constant 0 : i32
    return %c0_i32, %c0_i32_0 : i32, i32
  }
  func.func @transform_29(%arg0: i32) -> (i32, i32) {
    %c0_i32 = arith.constant 0 : i32
    %c0_i32_0 = arith.constant 0 : i32
    %c0_i32_1 = arith.constant 0 : i32
    return %c0_i32, %c0_i32_0 : i32, i32
  }
  func.func @transform_30(%arg0: i32) -> (i32, i32, i32) {
    %c0_i32 = arith.constant 0 : i32
    %c0_i32_0 = arith.constant 0 : i32
    %c0_i32_1 = arith.constant 0 : i32
    return %arg0, %c0_i32, %c0_i32_0 : i32, i32, i32
  }
}

</mosaic_0001>

<llo_original>
// kernel: tpu_custom_call.1
$region0: #{tpu_custom_call.1}
  #allocation0 [shape = 'u32[]', space=smem, size = 0x4, offset = 0x4, fixed_abs, tag = 'smem constant byte address 0x4 - core index']
  #allocation1 [shape = 'u32[144,128]{1,0:T(1,128)}', space=vmem, size = 0x12000, scoped, tag = 'internal scratch']
  %s0 = inlined_call_operand.smem [shape: u32[31], index: -1, kind: input, shape index: {}]
  %s1 = sld [smem:[%s0]]
  %s2 = scalar_lea.smem %s0, 1
  %s3 = sld [smem:[%s2]]
  %s4 = scalar_lea.smem %s0, 2
  %s5 = sld [smem:[%s4]]
  %s6 = scalar_lea.smem %s0, 3
  %s7 = sld [smem:[%s6]]
  %s8 = scalar_lea.smem %s0, 4
  %s9 = sld [smem:[%s8]]
  %s10 = scalar_lea.smem %s0, 5
  %s11 = sld [smem:[%s10]]
  %s12 = scalar_lea.smem %s0, 6
  %s13 = sld [smem:[%s12]]
  %s14 = scalar_lea.smem %s0, 7
  %s15 = sld [smem:[%s14]]
  %s16 = scalar_lea.smem %s0, 8
  %s17 = sld [smem:[%s16]]
  %s18 = scalar_lea.smem %s0, 9
  %s19 = sld [smem:[%s18]]
  %s20 = scalar_lea.smem %s0, 10
  %s21 = sld [smem:[%s20]]
  %s22 = scalar_lea.smem %s0, 11
  %s23 = sld [smem:[%s22]]
  %s24 = scalar_lea.smem %s0, 12
  %s25 = sld [smem:[%s24]]
  %s26 = scalar_lea.smem %s0, 13
  %s27 = sld [smem:[%s26]]
  %s28 = scalar_lea.smem %s0, 14
  %s29 = sld [smem:[%s28]]
  %s30 = scalar_lea.smem %s0, 15
  %s31 = sld [smem:[%s30]]
  %s32 = scalar_lea.smem %s0, 16
  %s33 = sld [smem:[%s32]]
  %s34 = scalar_lea.smem %s0, 17
  %s35 = sld [smem:[%s34]]
  %s36 = scalar_lea.smem %s0, 18
  %s37 = sld [smem:[%s36]]
  %s38 = scalar_lea.smem %s0, 19
  %s39 = sld [smem:[%s38]]
  %s40 = scalar_lea.smem %s0, 20
  %s41 = sld [smem:[%s40]]
  %s42 = scalar_lea.smem %s0, 21
  %s43 = sld [smem:[%s42]]
  %s44 = scalar_lea.smem %s0, 22
  %s45 = sld [smem:[%s44]]
  %s46 = scalar_lea.smem %s0, 23
  %s47 = sld [smem:[%s46]]
  %s48 = scalar_lea.smem %s0, 24
  %s49 = sld [smem:[%s48]]
  %s50 = scalar_lea.smem %s0, 25
  %s51 = sld [smem:[%s50]]
  %s52 = scalar_lea.smem %s0, 26
  %s53 = sld [smem:[%s52]]
  %s54 = scalar_lea.smem %s0, 27
  %s55 = sld [smem:[%s54]]
  %s56 = scalar_lea.smem %s0, 28
  %s57 = sld [smem:[%s56]]
  %s58 = scalar_lea.smem %s0, 29
  %s59 = sld [smem:[%s58]]
  %s60 = scalar_lea.smem %s0, 30
  %s61 = sld [smem:[%s60]]
  %s62 = sld [smem:[#allocation0]]
  $region153: #{tpu_custom_call.1} parent=0
    _
  %s64 = ssub.s32 1, %s62
  %s65 = scalar_select 0, %s64, %s62
  $region1: #{tpu_custom_call.1} parent=0
    #allocation2 [shape = 'u8[1024]{0}', space=vmem, size = 0x400, scoped, tag = 'output window, operand 0']
    #allocation3 [shape = 's32[2]{0}', space=sflag, size = 0x8, scoped, tag = 'scoped memory for tpu_custom_call.1']
    %66 = vsyncpa [#allocation3], 0
    %s67 = scalar_lea.sflag [#allocation3], 1
    %68 = vsyncpa %s67, 0
    loop: start=0, step=1, limit=4
    $region2: #{tpu_custom_call.1} parent=1 // loop_pre_header
      _
    $region3: #{tpu_custom_call.1} parent=1 // loop_header
      %s70 = sphi 0, %s74
      %p71 = scmp.ge.s32.totalorder %s70, 4
      %s80 = sphi 0, %s82
      %s83 = sphi 0, %s80
      %s84 = sphi 0, %s83
      %s100 = sphi 0, %s84
      %s104 = sphi 0, %s104
      %s106 = sphi 0, %s104
      %s107 = sphi 0, %s106
      %s121 = sphi 0, %s107
      %s125 = sphi 0, %s125
      %s127 = sphi 0, %s125
      %s128 = sphi 0, %s127
      %s142 = sphi 0, %s128
      %s146 = sphi 0, %s146
      %s148 = sphi 0, %s146
      %s149 = sphi 0, %s148
      %s163 = sphi 0, %s149
      %s167 = sphi 0, %s167
      %s169 = sphi 0, %s167
      %s170 = sphi 0, %s169
      %s184 = sphi 0, %s170
      %s188 = sphi 0, %s188
      %s190 = sphi 0, %s188
      %s191 = sphi 0, %s190
      %s205 = sphi 0, %s191
      %s209 = sphi 0, %s209
      %s211 = sphi 0, %s209
      %s212 = sphi 0, %s211
      %s226 = sphi 0, %s212
      %s230 = sphi 0, %s230
      %s232 = sphi 0, %s230
      %s233 = sphi 0, %s232
      %s247 = sphi 0, %s233
      %s251 = sphi 0, %s251
      %s253 = sphi 0, %s251
      %s254 = sphi 0, %s253
      %s268 = sphi 0, %s254
      %s272 = sphi 0, %s272
      %s274 = sphi 0, %s272
      %s275 = sphi 0, %s274
      %s289 = sphi 0, %s275
      %s293 = sphi 0, %s293
      %s295 = sphi 0, %s293
      %s296 = sphi 0, %s295
      %s310 = sphi 0, %s296
      %s314 = sphi 0, %s314
      %s316 = sphi 0, %s314
      %s317 = sphi 0, %s316
      %s331 = sphi 0, %s317
      %s335 = sphi 0, %s335
      %s337 = sphi 0, %s335
      %s338 = sphi 0, %s337
      %s352 = sphi 0, %s338
      %s356 = sphi 0, %s356
      %s358 = sphi 0, %s356
      %s359 = sphi 0, %s358
      %s373 = sphi 0, %s359
      %s377 = sphi 0, %s377
      %s379 = sphi 0, %s377
      %s380 = sphi 0, %s379
      %s394 = sphi 0, %s380
      %s398 = sphi 0, %s398
      %s400 = sphi 0, %s398
      %s401 = sphi 0, %s400
      %s415 = sphi 0, %s401
      %s419 = sphi 0, %s419
      %s421 = sphi 0, %s419
      %s422 = sphi 0, %s421
      %s436 = sphi 0, %s422
      %s440 = sphi 0, %s440
      %s442 = sphi 0, %s440
      %s443 = sphi 0, %s442
      %s457 = sphi 0, %s443
      %s461 = sphi 0, %s461
      %s463 = sphi 0, %s461
      %s464 = sphi 0, %s463
      %s478 = sphi 0, %s464
      %s482 = sphi 0, %s482
      %s484 = sphi 0, %s482
      %s485 = sphi 0, %s484
      %s499 = sphi 0, %s485
      %s503 = sphi 0, %s503
      %s505 = sphi 0, %s503
      %s506 = sphi 0, %s505
      %s520 = sphi 0, %s506
      %s524 = sphi 0, %s524
      %s526 = sphi 0, %s524
      %s527 = sphi 0, %s526
      %s541 = sphi 0, %s527
      %s545 = sphi 0, %s545
      %s547 = sphi 0, %s545
      %s548 = sphi 0, %s547
      %s562 = sphi 0, %s548
      %s566 = sphi 0, %s566
      %s568 = sphi 0, %s566
      %s569 = sphi 0, %s568
      %s583 = sphi 0, %s569
      %s587 = sphi 0, %s587
      %s589 = sphi 0, %s587
      %s590 = sphi 0, %s589
      %s604 = sphi 0, %s590
      %s608 = sphi 0, %s608
      %s610 = sphi 0, %s608
      %s611 = sphi 0, %s610
      %s625 = sphi 0, %s611
      %s629 = sphi 0, %s629
      %s631 = sphi 0, %s629
      %s632 = sphi 0, %s631
      %s646 = sphi 0, %s632
      %s650 = sphi 0, %s650
      %s652 = sphi 0, %s650
      %s653 = sphi 0, %s652
      %s667 = sphi 0, %s653
      %s671 = sphi 0, %s671
      %s673 = sphi 0, %s671
      %s674 = sphi 0, %s673
      %s688 = sphi 0, %s674
      %s692 = sphi 0, %s692
      %s694 = sphi 0, %s692
      %s695 = sphi 0, %s694
      %s709 = sphi 0, %s695
      %s715 = sphi 0, %s717
      %s718 = sphi 0, %s715
      %s719 = sphi 0, %s718
      %s735 = sphi 0, %s719
    $region4: #{tpu_custom_call.1} parent=1 // loop_header_branch
      %73 = sbr.rel (%p71) target = $region8
    $region5: #{tpu_custom_call.1} parent=1 // loop_body
      %s75 = ssub.s32 %s70, 1
      %s76 = ssub.s32 %s70, 2
      %s77 = sadd.s32 %s70, 1
      %s78 = ssub.s32 %s70, %s77
      %p79 = scmp.eq.s32.totalorder %s78, 0
      %s81 = sadd.s32 %s80, 1
      %s82 = scalar_select %p79, %s80, %s81
      %p85 = pneg %p79
      %p86 = scmp.eq.s32.totalorder %s70, 1
      %p87 = por %p85, %p86
      %p88 = scmp.ne.s32.totalorder %s80, %s83
      %p89 = scmp.eq.s32.totalorder %s70, 0
      %p90 = por %p88, %p89
      %p91 = scmp.ne.s32.totalorder %s80, %s83
      %p92 = scmp.eq.s32.totalorder %s75, 1
      %p93 = por %p91, %p92
      %p94 = scmp.ne.s32.totalorder %s83, %s84
      %p95 = scmp.eq.s32.totalorder %s75, 0
      %p96 = por %p94, %p95
      %p97 = scmp.ne.s32.totalorder %s83, %s84
      %p98 = scmp.eq.s32.totalorder %s76, 1
      %p99 = por %p97, %p98
      %p101 = scmp.ne.s32.totalorder %s84, %s100
      %p102 = scmp.eq.s32.totalorder %s76, 0
      %p103 = por %p101, %p102
      %s105 = sadd.s32 %s104, 1
      %p108 = scmp.eq.s32.totalorder %s70, 1
      %p109 = scmp.ne.s32.totalorder %s104, %s106
      %p110 = scmp.eq.s32.totalorder %s70, 0
      %p111 = por %p109, %p110
      %p112 = scmp.ne.s32.totalorder %s104, %s106
      %p113 = scmp.eq.s32.totalorder %s75, 1
      %p114 = por %p112, %p113
      %p115 = scmp.ne.s32.totalorder %s106, %s107
      %p116 = scmp.eq.s32.totalorder %s75, 0
      %p117 = por %p115, %p116
      %p118 = scmp.ne.s32.totalorder %s106, %s107
      %p119 = scmp.eq.s32.totalorder %s76, 1
      %p120 = por %p118, %p119
      %p122 = scmp.ne.s32.totalorder %s107, %s121
      %p123 = scmp.eq.s32.totalorder %s76, 0
      %p124 = por %p122, %p123
      %s126 = sadd.s32 %s125, 1
      %p129 = scmp.eq.s32.totalorder %s70, 1
      %p130 = scmp.ne.s32.totalorder %s125, %s127
      %p131 = scmp.eq.s32.totalorder %s70, 0
      %p132 = por %p130, %p131
      %p133 = scmp.ne.s32.totalorder %s125, %s127
      %p134 = scmp.eq.s32.totalorder %s75, 1
      %p135 = por %p133, %p134
      %p136 = scmp.ne.s32.totalorder %s127, %s128
      %p137 = scmp.eq.s32.totalorder %s75, 0
      %p138 = por %p136, %p137
      %p139 = scmp.ne.s32.totalorder %s127, %s128
      %p140 = scmp.eq.s32.totalorder %s76, 1
      %p141 = por %p139, %p140
      %p143 = scmp.ne.s32.totalorder %s128, %s142
      %p144 = scmp.eq.s32.totalorder %s76, 0
      %p145 = por %p143, %p144
      %s147 = sadd.s32 %s146, 1
      %p150 = scmp.eq.s32.totalorder %s70, 1
      %p151 = scmp.ne.s32.totalorder %s146, %s148
      %p152 = scmp.eq.s32.totalorder %s70, 0
      %p153 = por %p151, %p152
      %p154 = scmp.ne.s32.totalorder %s146, %s148
      %p155 = scmp.eq.s32.totalorder %s75, 1
      %p156 = por %p154, %p155
      %p157 = scmp.ne.s32.totalorder %s148, %s149
      %p158 = scmp.eq.s32.totalorder %s75, 0
      %p159 = por %p157, %p158
      %p160 = scmp.ne.s32.totalorder %s148, %s149
      %p161 = scmp.eq.s32.totalorder %s76, 1
      %p162 = por %p160, %p161
      %p164 = scmp.ne.s32.totalorder %s149, %s163
      %p165 = scmp.eq.s32.totalorder %s76, 0
      %p166 = por %p164, %p165
      %s168 = sadd.s32 %s167, 1
      %p171 = scmp.eq.s32.totalorder %s70, 1
      %p172 = scmp.ne.s32.totalorder %s167, %s169
      %p173 = scmp.eq.s32.totalorder %s70, 0
      %p174 = por %p172, %p173
      %p175 = scmp.ne.s32.totalorder %s167, %s169
      %p176 = scmp.eq.s32.totalorder %s75, 1
      %p177 = por %p175, %p176
      %p178 = scmp.ne.s32.totalorder %s169, %s170
      %p179 = scmp.eq.s32.totalorder %s75, 0
      %p180 = por %p178, %p179
      %p181 = scmp.ne.s32.totalorder %s169, %s170
      %p182 = scmp.eq.s32.totalorder %s76, 1
      %p183 = por %p181, %p182
      %p185 = scmp.ne.s32.totalorder %s170, %s184
      %p186 = scmp.eq.s32.totalorder %s76, 0
      %p187 = por %p185, %p186
      %s189 = sadd.s32 %s188, 1
      %p192 = scmp.eq.s32.totalorder %s70, 1
      %p193 = scmp.ne.s32.totalorder %s188, %s190
      %p194 = scmp.eq.s32.totalorder %s70, 0
      %p195 = por %p193, %p194
      %p196 = scmp.ne.s32.totalorder %s188, %s190
      %p197 = scmp.eq.s32.totalorder %s75, 1
      %p198 = por %p196, %p197
      %p199 = scmp.ne.s32.totalorder %s190, %s191
      %p200 = scmp.eq.s32.totalorder %s75, 0
      %p201 = por %p199, %p200
      %p202 = scmp.ne.s32.totalorder %s190, %s191
      %p203 = scmp.eq.s32.totalorder %s76, 1
      %p204 = por %p202, %p203
      %p206 = scmp.ne.s32.totalorder %s191, %s205
      %p207 = scmp.eq.s32.totalorder %s76, 0
      %p208 = por %p206, %p207
      %s210 = sadd.s32 %s209, 1
      %p213 = scmp.eq.s32.totalorder %s70, 1
      %p214 = scmp.ne.s32.totalorder %s209, %s211
      %p215 = scmp.eq.s32.totalorder %s70, 0
      %p216 = por %p214, %p215
      %p217 = scmp.ne.s32.totalorder %s209, %s211
      %p218 = scmp.eq.s32.totalorder %s75, 1
      %p219 = por %p217, %p218
      %p220 = scmp.ne.s32.totalorder %s211, %s212
      %p221 = scmp.eq.s32.totalorder %s75, 0
      %p222 = por %p220, %p221
      %p223 = scmp.ne.s32.totalorder %s211, %s212
      %p224 = scmp.eq.s32.totalorder %s76, 1
      %p225 = por %p223, %p224
      %p227 = scmp.ne.s32.totalorder %s212, %s226
      %p228 = scmp.eq.s32.totalorder %s76, 0
      %p229 = por %p227, %p228
      %s231 = sadd.s32 %s230, 1
      %p234 = scmp.eq.s32.totalorder %s70, 1
      %p235 = scmp.ne.s32.totalorder %s230, %s232
      %p236 = scmp.eq.s32.totalorder %s70, 0
      %p237 = por %p235, %p236
      %p238 = scmp.ne.s32.totalorder %s230, %s232
      %p239 = scmp.eq.s32.totalorder %s75, 1
      %p240 = por %p238, %p239
      %p241 = scmp.ne.s32.totalorder %s232, %s233
      %p242 = scmp.eq.s32.totalorder %s75, 0
      %p243 = por %p241, %p242
      %p244 = scmp.ne.s32.totalorder %s232, %s233
      %p245 = scmp.eq.s32.totalorder %s76, 1
      %p246 = por %p244, %p245
      %p248 = scmp.ne.s32.totalorder %s233, %s247
      %p249 = scmp.eq.s32.totalorder %s76, 0
      %p250 = por %p248, %p249
      %s252 = sadd.s32 %s251, 1
      %p255 = scmp.eq.s32.totalorder %s70, 1
      %p256 = scmp.ne.s32.totalorder %s251, %s253
      %p257 = scmp.eq.s32.totalorder %s70, 0
      %p258 = por %p256, %p257
      %p259 = scmp.ne.s32.totalorder %s251, %s253
      %p260 = scmp.eq.s32.totalorder %s75, 1
      %p261 = por %p259, %p260
      %p262 = scmp.ne.s32.totalorder %s253, %s254
      %p263 = scmp.eq.s32.totalorder %s75, 0
      %p264 = por %p262, %p263
      %p265 = scmp.ne.s32.totalorder %s253, %s254
      %p266 = scmp.eq.s32.totalorder %s76, 1
      %p267 = por %p265, %p266
      %p269 = scmp.ne.s32.totalorder %s254, %s268
      %p270 = scmp.eq.s32.totalorder %s76, 0
      %p271 = por %p269, %p270
      %s273 = sadd.s32 %s272, 1
      %p276 = scmp.eq.s32.totalorder %s70, 1
      %p277 = scmp.ne.s32.totalorder %s272, %s274
      %p278 = scmp.eq.s32.totalorder %s70, 0
      %p279 = por %p277, %p278
      %p280 = scmp.ne.s32.totalorder %s272, %s274
      %p281 = scmp.eq.s32.totalorder %s75, 1
      %p282 = por %p280, %p281
      %p283 = scmp.ne.s32.totalorder %s274, %s275
      %p284 = scmp.eq.s32.totalorder %s75, 0
      %p285 = por %p283, %p284
      %p286 = scmp.ne.s32.totalorder %s274, %s275
      %p287 = scmp.eq.s32.totalorder %s76, 1
      %p288 = por %p286, %p287
      %p290 = scmp.ne.s32.totalorder %s275, %s289
      %p291 = scmp.eq.s32.totalorder %s76, 0
      %p292 = por %p290, %p291
      %s294 = sadd.s32 %s293, 1
      %p297 = scmp.eq.s32.totalorder %s70, 1
      %p298 = scmp.ne.s32.totalorder %s293, %s295
      %p299 = scmp.eq.s32.totalorder %s70, 0
      %p300 = por %p298, %p299
      %p301 = scmp.ne.s32.totalorder %s293, %s295
      %p302 = scmp.eq.s32.totalorder %s75, 1
      %p303 = por %p301, %p302
      %p304 = scmp.ne.s32.totalorder %s295, %s296
      %p305 = scmp.eq.s32.totalorder %s75, 0
      %p306 = por %p304, %p305
      %p307 = scmp.ne.s32.totalorder %s295, %s296
      %p308 = scmp.eq.s32.totalorder %s76, 1
      %p309 = por %p307, %p308
      %p311 = scmp.ne.s32.totalorder %s296, %s310
      %p312 = scmp.eq.s32.totalorder %s76, 0
      %p313 = por %p311, %p312
      %s315 = sadd.s32 %s314, 1
      %p318 = scmp.eq.s32.totalorder %s70, 1
      %p319 = scmp.ne.s32.totalorder %s314, %s316
      %p320 = scmp.eq.s32.totalorder %s70, 0
      %p321 = por %p319, %p320
      %p322 = scmp.ne.s32.totalorder %s314, %s316
      %p323 = scmp.eq.s32.totalorder %s75, 1
      %p324 = por %p322, %p323
      %p325 = scmp.ne.s32.totalorder %s316, %s317
      %p326 = scmp.eq.s32.totalorder %s75, 0
      %p327 = por %p325, %p326
      %p328 = scmp.ne.s32.totalorder %s316, %s317
      %p329 = scmp.eq.s32.totalorder %s76, 1
      %p330 = por %p328, %p329
      %p332 = scmp.ne.s32.totalorder %s317, %s331
      %p333 = scmp.eq.s32.totalorder %s76, 0
      %p334 = por %p332, %p333
      %s336 = sadd.s32 %s335, 1
      %p339 = scmp.eq.s32.totalorder %s70, 1
      %p340 = scmp.ne.s32.totalorder %s335, %s337
      %p341 = scmp.eq.s32.totalorder %s70, 0
      %p342 = por %p340, %p341
      %p343 = scmp.ne.s32.totalorder %s335, %s337
      %p344 = scmp.eq.s32.totalorder %s75, 1
      %p345 = por %p343, %p344
      %p346 = scmp.ne.s32.totalorder %s337, %s338
      %p347 = scmp.eq.s32.totalorder %s75, 0
      %p348 = por %p346, %p347
      %p349 = scmp.ne.s32.totalorder %s337, %s338
      %p350 = scmp.eq.s32.totalorder %s76, 1
      %p351 = por %p349, %p350
      %p353 = scmp.ne.s32.totalorder %s338, %s352
      %p354 = scmp.eq.s32.totalorder %s76, 0
      %p355 = por %p353, %p354
      %s357 = sadd.s32 %s356, 1
      %p360 = scmp.eq.s32.totalorder %s70, 1
      %p361 = scmp.ne.s32.totalorder %s356, %s358
      %p362 = scmp.eq.s32.totalorder %s70, 0
      %p363 = por %p361, %p362
      %p364 = scmp.ne.s32.totalorder %s356, %s358
      %p365 = scmp.eq.s32.totalorder %s75, 1
      %p366 = por %p364, %p365
      %p367 = scmp.ne.s32.totalorder %s358, %s359
      %p368 = scmp.eq.s32.totalorder %s75, 0
      %p369 = por %p367, %p368
      %p370 = scmp.ne.s32.totalorder %s358, %s359
      %p371 = scmp.eq.s32.totalorder %s76, 1
      %p372 = por %p370, %p371
      %p374 = scmp.ne.s32.totalorder %s359, %s373
      %p375 = scmp.eq.s32.totalorder %s76, 0
      %p376 = por %p374, %p375
      %s378 = sadd.s32 %s377, 1
      %p381 = scmp.eq.s32.totalorder %s70, 1
      %p382 = scmp.ne.s32.totalorder %s377, %s379
      %p383 = scmp.eq.s32.totalorder %s70, 0
      %p384 = por %p382, %p383
      %p385 = scmp.ne.s32.totalorder %s377, %s379
      %p386 = scmp.eq.s32.totalorder %s75, 1
      %p387 = por %p385, %p386
      %p388 = scmp.ne.s32.totalorder %s379, %s380
      %p389 = scmp.eq.s32.totalorder %s75, 0
      %p390 = por %p388, %p389
      %p391 = scmp.ne.s32.totalorder %s379, %s380
      %p392 = scmp.eq.s32.totalorder %s76, 1
      %p393 = por %p391, %p392
      %p395 = scmp.ne.s32.totalorder %s380, %s394
      %p396 = scmp.eq.s32.totalorder %s76, 0
      %p397 = por %p395, %p396
      %s399 = sadd.s32 %s398, 1
      %p402 = scmp.eq.s32.totalorder %s70, 1
      %p403 = scmp.ne.s32.totalorder %s398, %s400
      %p404 = scmp.eq.s32.totalorder %s70, 0
      %p405 = por %p403, %p404
      %p406 = scmp.ne.s32.totalorder %s398, %s400
      %p407 = scmp.eq.s32.totalorder %s75, 1
      %p408 = por %p406, %p407
      %p409 = scmp.ne.s32.totalorder %s400, %s401
      %p410 = scmp.eq.s32.totalorder %s75, 0
      %p411 = por %p409, %p410
      %p412 = scmp.ne.s32.totalorder %s400, %s401
      %p413 = scmp.eq.s32.totalorder %s76, 1
      %p414 = por %p412, %p413
      %p416 = scmp.ne.s32.totalorder %s401, %s415
      %p417 = scmp.eq.s32.totalorder %s76, 0
      %p418 = por %p416, %p417
      %s420 = sadd.s32 %s419, 1
      %p423 = scmp.eq.s32.totalorder %s70, 1
      %p424 = scmp.ne.s32.totalorder %s419, %s421
      %p425 = scmp.eq.s32.totalorder %s70, 0
      %p426 = por %p424, %p425
      %p427 = scmp.ne.s32.totalorder %s419, %s421
      %p428 = scmp.eq.s32.totalorder %s75, 1
      %p429 = por %p427, %p428
      %p430 = scmp.ne.s32.totalorder %s421, %s422
      %p431 = scmp.eq.s32.totalorder %s75, 0
      %p432 = por %p430, %p431
      %p433 = scmp.ne.s32.totalorder %s421, %s422
      %p434 = scmp.eq.s32.totalorder %s76, 1
      %p435 = por %p433, %p434
      %p437 = scmp.ne.s32.totalorder %s422, %s436
      %p438 = scmp.eq.s32.totalorder %s76, 0
      %p439 = por %p437, %p438
      %s441 = sadd.s32 %s440, 1
      %p444 = scmp.eq.s32.totalorder %s70, 1
      %p445 = scmp.ne.s32.totalorder %s440, %s442
      %p446 = scmp.eq.s32.totalorder %s70, 0
      %p447 = por %p445, %p446
      %p448 = scmp.ne.s32.totalorder %s440, %s442
      %p449 = scmp.eq.s32.totalorder %s75, 1
      %p450 = por %p448, %p449
      %p451 = scmp.ne.s32.totalorder %s442, %s443
      %p452 = scmp.eq.s32.totalorder %s75, 0
      %p453 = por %p451, %p452
      %p454 = scmp.ne.s32.totalorder %s442, %s443
      %p455 = scmp.eq.s32.totalorder %s76, 1
      %p456 = por %p454, %p455
      %p458 = scmp.ne.s32.totalorder %s443, %s457
      %p459 = scmp.eq.s32.totalorder %s76, 0
      %p460 = por %p458, %p459
      %s462 = sadd.s32 %s461, 1
      %p465 = scmp.eq.s32.totalorder %s70, 1
      %p466 = scmp.ne.s32.totalorder %s461, %s463
      %p467 = scmp.eq.s32.totalorder %s70, 0
      %p468 = por %p466, %p467
      %p469 = scmp.ne.s32.totalorder %s461, %s463
      %p470 = scmp.eq.s32.totalorder %s75, 1
      %p471 = por %p469, %p470
      %p472 = scmp.ne.s32.totalorder %s463, %s464
      %p473 = scmp.eq.s32.totalorder %s75, 0
      %p474 = por %p472, %p473
      %p475 = scmp.ne.s32.totalorder %s463, %s464
      %p476 = scmp.eq.s32.totalorder %s76, 1
      %p477 = por %p475, %p476
      %p479 = scmp.ne.s32.totalorder %s464, %s478
      %p480 = scmp.eq.s32.totalorder %s76, 0
      %p481 = por %p479, %p480
      %s483 = sadd.s32 %s482, 1
      %p486 = scmp.eq.s32.totalorder %s70, 1
      %p487 = scmp.ne.s32.totalorder %s482, %s484
      %p488 = scmp.eq.s32.totalorder %s70, 0
      %p489 = por %p487, %p488
      %p490 = scmp.ne.s32.totalorder %s482, %s484
      %p491 = scmp.eq.s32.totalorder %s75, 1
      %p492 = por %p490, %p491
      %p493 = scmp.ne.s32.totalorder %s484, %s485
      %p494 = scmp.eq.s32.totalorder %s75, 0
      %p495 = por %p493, %p494
      %p496 = scmp.ne.s32.totalorder %s484, %s485
      %p497 = scmp.eq.s32.totalorder %s76, 1
      %p498 = por %p496, %p497
      %p500 = scmp.ne.s32.totalorder %s485, %s499
      %p501 = scmp.eq.s32.totalorder %s76, 0
      %p502 = por %p500, %p501
      %s504 = sadd.s32 %s503, 1
      %p507 = scmp.eq.s32.totalorder %s70, 1
      %p508 = scmp.ne.s32.totalorder %s503, %s505
      %p509 = scmp.eq.s32.totalorder %s70, 0
      %p510 = por %p508, %p509
      %p511 = scmp.ne.s32.totalorder %s503, %s505
      %p512 = scmp.eq.s32.totalorder %s75, 1
      %p513 = por %p511, %p512
      %p514 = scmp.ne.s32.totalorder %s505, %s506
      %p515 = scmp.eq.s32.totalorder %s75, 0
      %p516 = por %p514, %p515
      %p517 = scmp.ne.s32.totalorder %s505, %s506
      %p518 = scmp.eq.s32.totalorder %s76, 1
      %p519 = por %p517, %p518
      %p521 = scmp.ne.s32.totalorder %s506, %s520
      %p522 = scmp.eq.s32.totalorder %s76, 0
      %p523 = por %p521, %p522
      %s525 = sadd.s32 %s524, 1
      %p528 = scmp.eq.s32.totalorder %s70, 1
      %p529 = scmp.ne.s32.totalorder %s524, %s526
      %p530 = scmp.eq.s32.totalorder %s70, 0
      %p531 = por %p529, %p530
      %p532 = scmp.ne.s32.totalorder %s524, %s526
      %p533 = scmp.eq.s32.totalorder %s75, 1
      %p534 = por %p532, %p533
      %p535 = scmp.ne.s32.totalorder %s526, %s527
      %p536 = scmp.eq.s32.totalorder %s75, 0
      %p537 = por %p535, %p536
      %p538 = scmp.ne.s32.totalorder %s526, %s527
      %p539 = scmp.eq.s32.totalorder %s76, 1
      %p540 = por %p538, %p539
      %p542 = scmp.ne.s32.totalorder %s527, %s541
      %p543 = scmp.eq.s32.totalorder %s76, 0
      %p544 = por %p542, %p543
      %s546 = sadd.s32 %s545, 1
      %p549 = scmp.eq.s32.totalorder %s70, 1
      %p550 = scmp.ne.s32.totalorder %s545, %s547
      %p551 = scmp.eq.s32.totalorder %s70, 0
      %p552 = por %p550, %p551
      %p553 = scmp.ne.s32.totalorder %s545, %s547
      %p554 = scmp.eq.s32.totalorder %s75, 1
      %p555 = por %p553, %p554
      %p556 = scmp.ne.s32.totalorder %s547, %s548
      %p557 = scmp.eq.s32.totalorder %s75, 0
      %p558 = por %p556, %p557
      %p559 = scmp.ne.s32.totalorder %s547, %s548
      %p560 = scmp.eq.s32.totalorder %s76, 1
      %p561 = por %p559, %p560
      %p563 = scmp.ne.s32.totalorder %s548, %s562
      %p564 = scmp.eq.s32.totalorder %s76, 0
      %p565 = por %p563, %p564
      %s567 = sadd.s32 %s566, 1
      %p570 = scmp.eq.s32.totalorder %s70, 1
      %p571 = scmp.ne.s32.totalorder %s566, %s568
      %p572 = scmp.eq.s32.totalorder %s70, 0
      %p573 = por %p571, %p572
      %p574 = scmp.ne.s32.totalorder %s566, %s568
      %p575 = scmp.eq.s32.totalorder %s75, 1
      %p576 = por %p574, %p575
      %p577 = scmp.ne.s32.totalorder %s568, %s569
      %p578 = scmp.eq.s32.totalorder %s75, 0
      %p579 = por %p577, %p578
      %p580 = scmp.ne.s32.totalorder %s568, %s569
      %p581 = scmp.eq.s32.totalorder %s76, 1
      %p582 = por %p580, %p581
      %p584 = scmp.ne.s32.totalorder %s569, %s583
      %p585 = scmp.eq.s32.totalorder %s76, 0
      %p586 = por %p584, %p585
      %s588 = sadd.s32 %s587, 1
      %p591 = scmp.eq.s32.totalorder %s70, 1
      %p592 = scmp.ne.s32.totalorder %s587, %s589
      %p593 = scmp.eq.s32.totalorder %s70, 0
      %p594 = por %p592, %p593
      %p595 = scmp.ne.s32.totalorder %s587, %s589
      %p596 = scmp.eq.s32.totalorder %s75, 1
      %p597 = por %p595, %p596
      %p598 = scmp.ne.s32.totalorder %s589, %s590
      %p599 = scmp.eq.s32.totalorder %s75, 0
      %p600 = por %p598, %p599
      %p601 = scmp.ne.s32.totalorder %s589, %s590
      %p602 = scmp.eq.s32.totalorder %s76, 1
      %p603 = por %p601, %p602
      %p605 = scmp.ne.s32.totalorder %s590, %s604
      %p606 = scmp.eq.s32.totalorder %s76, 0
      %p607 = por %p605, %p606
      %s609 = sadd.s32 %s608, 1
      %p612 = scmp.eq.s32.totalorder %s70, 1
      %p613 = scmp.ne.s32.totalorder %s608, %s610
      %p614 = scmp.eq.s32.totalorder %s70, 0
      %p615 = por %p613, %p614
      %p616 = scmp.ne.s32.totalorder %s608, %s610
      %p617 = scmp.eq.s32.totalorder %s75, 1
      %p618 = por %p616, %p617
      %p619 = scmp.ne.s32.totalorder %s610, %s611
      %p620 = scmp.eq.s32.totalorder %s75, 0
      %p621 = por %p619, %p620
      %p622 = scmp.ne.s32.totalorder %s610, %s611
      %p623 = scmp.eq.s32.totalorder %s76, 1
      %p624 = por %p622, %p623
      %p626 = scmp.ne.s32.totalorder %s611, %s625
      %p627 = scmp.eq.s32.totalorder %s76, 0
      %p628 = por %p626, %p627
      %s630 = sadd.s32 %s629, 1
      %p633 = scmp.eq.s32.totalorder %s70, 1
      %p634 = scmp.ne.s32.totalorder %s629, %s631
      %p635 = scmp.eq.s32.totalorder %s70, 0
      %p636 = por %p634, %p635
      %p637 = scmp.ne.s32.totalorder %s629, %s631
      %p638 = scmp.eq.s32.totalorder %s75, 1
      %p639 = por %p637, %p638
      %p640 = scmp.ne.s32.totalorder %s631, %s632
      %p641 = scmp.eq.s32.totalorder %s75, 0
      %p642 = por %p640, %p641
      %p643 = scmp.ne.s32.totalorder %s631, %s632
      %p644 = scmp.eq.s32.totalorder %s76, 1
      %p645 = por %p643, %p644
      %p647 = scmp.ne.s32.totalorder %s632, %s646
      %p648 = scmp.eq.s32.totalorder %s76, 0
      %p649 = por %p647, %p648
      %s651 = sadd.s32 %s650, 1
      %p654 = scmp.eq.s32.totalorder %s70, 1
      %p655 = scmp.ne.s32.totalorder %s650, %s652
      %p656 = scmp.eq.s32.totalorder %s70, 0
      %p657 = por %p655, %p656
      %p658 = scmp.ne.s32.totalorder %s650, %s652
      %p659 = scmp.eq.s32.totalorder %s75, 1
      %p660 = por %p658, %p659
      %p661 = scmp.ne.s32.totalorder %s652, %s653
      %p662 = scmp.eq.s32.totalorder %s75, 0
      %p663 = por %p661, %p662
      %p664 = scmp.ne.s32.totalorder %s652, %s653
      %p665 = scmp.eq.s32.totalorder %s76, 1
      %p666 = por %p664, %p665
      %p668 = scmp.ne.s32.totalorder %s653, %s667
      %p669 = scmp.eq.s32.totalorder %s76, 0
      %p670 = por %p668, %p669
      %s672 = sadd.s32 %s671, 1
      %p675 = scmp.eq.s32.totalorder %s70, 1
      %p676 = scmp.ne.s32.totalorder %s671, %s673
      %p677 = scmp.eq.s32.totalorder %s70, 0
      %p678 = por %p676, %p677
      %p679 = scmp.ne.s32.totalorder %s671, %s673
      %p680 = scmp.eq.s32.totalorder %s75, 1
      %p681 = por %p679, %p680
      %p682 = scmp.ne.s32.totalorder %s673, %s674
      %p683 = scmp.eq.s32.totalorder %s75, 0
      %p684 = por %p682, %p683
      %p685 = scmp.ne.s32.totalorder %s673, %s674
      %p686 = scmp.eq.s32.totalorder %s76, 1
      %p687 = por %p685, %p686
      %p689 = scmp.ne.s32.totalorder %s674, %s688
      %p690 = scmp.eq.s32.totalorder %s76, 0
      %p691 = por %p689, %p690
      %s693 = sadd.s32 %s692, 1
      %p696 = scmp.eq.s32.totalorder %s70, 1
      %p697 = scmp.ne.s32.totalorder %s692, %s694
      %p698 = scmp.eq.s32.totalorder %s70, 0
      %p699 = por %p697, %p698
      %p700 = scmp.ne.s32.totalorder %s692, %s694
      %p701 = scmp.eq.s32.totalorder %s75, 1
      %p702 = por %p700, %p701
      %p703 = scmp.ne.s32.totalorder %s694, %s695
      %p704 = scmp.eq.s32.totalorder %s75, 0
      %p705 = por %p703, %p704
      %p706 = scmp.ne.s32.totalorder %s694, %s695
      %p707 = scmp.eq.s32.totalorder %s76, 1
      %p708 = por %p706, %p707
      %p710 = scmp.ne.s32.totalorder %s695, %s709
      %p711 = scmp.eq.s32.totalorder %s76, 0
      %p712 = por %p710, %p711
      %s713 = ssub.s32 %s70, %s77
      %p714 = scmp.eq.s32.totalorder %s713, 0
      %s716 = sadd.s32 %s715, 1
      %s717 = scalar_select %p714, %s715, %s716
      %p720 = pneg %p714
      %p721 = scmp.eq.s32.totalorder %s70, 1
      %p722 = por %p720, %p721
      %p723 = scmp.ne.s32.totalorder %s715, %s718
      %p724 = scmp.eq.s32.totalorder %s70, 0
      %p725 = por %p723, %p724
      %p726 = scmp.ne.s32.totalorder %s715, %s718
      %p727 = scmp.eq.s32.totalorder %s75, 1
      %p728 = por %p726, %p727
      %p729 = scmp.ne.s32.totalorder %s718, %s719
      %p730 = scmp.eq.s32.totalorder %s75, 0
      %p731 = por %p729, %p730
      %p732 = scmp.ne.s32.totalorder %s718, %s719
      %p733 = scmp.eq.s32.totalorder %s76, 1
      %p734 = por %p732, %p733
      %p736 = scmp.ne.s32.totalorder %s719, %s735
      %p737 = scmp.eq.s32.totalorder %s76, 0
      %p738 = por %p736, %p737
      %p739 = scmp.le.s32.totalorder 1, %s70
      %p740 = scmp.lt.s32.totalorder %s70, 3
      %p741 = pnand %p739, %p740
      %p742 = pneg %p741
      // Predicated region
      $region9: #{tpu_custom_call.1} parent=5 // pred_check
        _
      $region10: #{tpu_custom_call.1} parent=5 // pred_check_branch
        %744 = sbr.rel (%p741) target = $region12
      $region11: #{tpu_custom_call.1} parent=5 // pred_region
        %s745 = ssub.s32 %s70, 1
        // Predicated region
        $region13: #{tpu_custom_call.1} parent=11 // pred_check
          %p746 = pneg %p117
        $region14: #{tpu_custom_call.1} parent=11 // pred_check_branch
          %748 = sbr.rel (%p746) target = $region16
        $region15: #{tpu_custom_call.1} parent=11 // pred_region
          _
        $region16: #{tpu_custom_call.1} parent=11 // pred_fallthru
          _
        // Predicated region
        $region17: #{tpu_custom_call.1} parent=11 // pred_check
          %p749 = pneg %p138
        $region18: #{tpu_custom_call.1} parent=11 // pred_check_branch
          %751 = sbr.rel (%p749) target = $region20
        $region19: #{tpu_custom_call.1} parent=11 // pred_region
          _
        $region20: #{tpu_custom_call.1} parent=11 // pred_fallthru
          _
        // Predicated region
        $region21: #{tpu_custom_call.1} parent=11 // pred_check
          %p752 = pneg %p159
        $region22: #{tpu_custom_call.1} parent=11 // pred_check_branch
          %754 = sbr.rel (%p752) target = $region24
        $region23: #{tpu_custom_call.1} parent=11 // pred_region
          _
        $region24: #{tpu_custom_call.1} parent=11 // pred_fallthru
          _
        // Predicated region
        $region25: #{tpu_custom_call.1} parent=11 // pred_check
          %p755 = pneg %p180
        $region26: #{tpu_custom_call.1} parent=11 // pred_check_branch
          %757 = sbr.rel (%p755) target = $region28
        $region27: #{tpu_custom_call.1} parent=11 // pred_region
          _
        $region28: #{tpu_custom_call.1} parent=11 // pred_fallthru
          _
        // Predicated region
        $region29: #{tpu_custom_call.1} parent=11 // pred_check
          %p758 = pneg %p201
        $region30: #{tpu_custom_call.1} parent=11 // pred_check_branch
          %760 = sbr.rel (%p758) target = $region32
        $region31: #{tpu_custom_call.1} parent=11 // pred_region
          _
        $region32: #{tpu_custom_call.1} parent=11 // pred_fallthru
          _
        // Predicated region
        $region33: #{tpu_custom_call.1} parent=11 // pred_check
          %p761 = pneg %p222
        $region34: #{tpu_custom_call.1} parent=11 // pred_check_branch
          %763 = sbr.rel (%p761) target = $region36
        $region35: #{tpu_custom_call.1} parent=11 // pred_region
          _
        $region36: #{tpu_custom_call.1} parent=11 // pred_fallthru
          _
        // Predicated region
        $region37: #{tpu_custom_call.1} parent=11 // pred_check
          %p764 = pneg %p243
        $region38: #{tpu_custom_call.1} parent=11 // pred_check_branch
          %766 = sbr.rel (%p764) target = $region40
        $region39: #{tpu_custom_call.1} parent=11 // pred_region
          _
        $region40: #{tpu_custom_call.1} parent=11 // pred_fallthru
          _
        // Predicated region
        $region41: #{tpu_custom_call.1} parent=11 // pred_check
          %p767 = pneg %p264
        $region42: #{tpu_custom_call.1} parent=11 // pred_check_branch
          %769 = sbr.rel (%p767) target = $region44
        $region43: #{tpu_custom_call.1} parent=11 // pred_region
          _
        $region44: #{tpu_custom_call.1} parent=11 // pred_fallthru
          _
        // Predicated region
        $region45: #{tpu_custom_call.1} parent=11 // pred_check
          %p770 = pneg %p285
        $region46: #{tpu_custom_call.1} parent=11 // pred_check_branch
          %772 = sbr.rel (%p770) target = $region48
        $region47: #{tpu_custom_call.1} parent=11 // pred_region
          _
        $region48: #{tpu_custom_call.1} parent=11 // pred_fallthru
          _
        // Predicated region
        $region49: #{tpu_custom_call.1} parent=11 // pred_check
          %p773 = pneg %p306
        $region50: #{tpu_custom_call.1} parent=11 // pred_check_branch
          %775 = sbr.rel (%p773) target = $region52
        $region51: #{tpu_custom_call.1} parent=11 // pred_region
          _
        $region52: #{tpu_custom_call.1} parent=11 // pred_fallthru
          _
        // Predicated region
        $region53: #{tpu_custom_call.1} parent=11 // pred_check
          %p776 = pneg %p327
        $region54: #{tpu_custom_call.1} parent=11 // pred_check_branch
          %778 = sbr.rel (%p776) target = $region56
        $region55: #{tpu_custom_call.1} parent=11 // pred_region
          _
        $region56: #{tpu_custom_call.1} parent=11 // pred_fallthru
          _
        // Predicated region
        $region57: #{tpu_custom_call.1} parent=11 // pred_check
          %p779 = pneg %p348
        $region58: #{tpu_custom_call.1} parent=11 // pred_check_branch
          %781 = sbr.rel (%p779) target = $region60
        $region59: #{tpu_custom_call.1} parent=11 // pred_region
          _
        $region60: #{tpu_custom_call.1} parent=11 // pred_fallthru
          _
        // Predicated region
        $region61: #{tpu_custom_call.1} parent=11 // pred_check
          %p782 = pneg %p369
        $region62: #{tpu_custom_call.1} parent=11 // pred_check_branch
          %784 = sbr.rel (%p782) target = $region64
        $region63: #{tpu_custom_call.1} parent=11 // pred_region
          _
        $region64: #{tpu_custom_call.1} parent=11 // pred_fallthru
          _
        // Predicated region
        $region65: #{tpu_custom_call.1} parent=11 // pred_check
          %p785 = pneg %p390
        $region66: #{tpu_custom_call.1} parent=11 // pred_check_branch
          %787 = sbr.rel (%p785) target = $region68
        $region67: #{tpu_custom_call.1} parent=11 // pred_region
          _
        $region68: #{tpu_custom_call.1} parent=11 // pred_fallthru
          _
        // Predicated region
        $region69: #{tpu_custom_call.1} parent=11 // pred_check
          %p788 = pneg %p411
        $region70: #{tpu_custom_call.1} parent=11 // pred_check_branch
          %790 = sbr.rel (%p788) target = $region72
        $region71: #{tpu_custom_call.1} parent=11 // pred_region
          _
        $region72: #{tpu_custom_call.1} parent=11 // pred_fallthru
          _
        // Predicated region
        $region73: #{tpu_custom_call.1} parent=11 // pred_check
          %p791 = pneg %p432
        $region74: #{tpu_custom_call.1} parent=11 // pred_check_branch
          %793 = sbr.rel (%p791) target = $region76
        $region75: #{tpu_custom_call.1} parent=11 // pred_region
          _
        $region76: #{tpu_custom_call.1} parent=11 // pred_fallthru
          _
        // Predicated region
        $region77: #{tpu_custom_call.1} parent=11 // pred_check
          %p794 = pneg %p453
        $region78: #{tpu_custom_call.1} parent=11 // pred_check_branch
          %796 = sbr.rel (%p794) target = $region80
        $region79: #{tpu_custom_call.1} parent=11 // pred_region
          _
        $region80: #{tpu_custom_call.1} parent=11 // pred_fallthru
          _
        // Predicated region
        $region81: #{tpu_custom_call.1} parent=11 // pred_check
          %p797 = pneg %p474
        $region82: #{tpu_custom_call.1} parent=11 // pred_check_branch
          %799 = sbr.rel (%p797) target = $region84
        $region83: #{tpu_custom_call.1} parent=11 // pred_region
          _
        $region84: #{tpu_custom_call.1} parent=11 // pred_fallthru
          _
        // Predicated region
        $region85: #{tpu_custom_call.1} parent=11 // pred_check
          %p800 = pneg %p495
        $region86: #{tpu_custom_call.1} parent=11 // pred_check_branch
          %802 = sbr.rel (%p800) target = $region88
        $region87: #{tpu_custom_call.1} parent=11 // pred_region
          _
        $region88: #{tpu_custom_call.1} parent=11 // pred_fallthru
          _
        // Predicated region
        $region89: #{tpu_custom_call.1} parent=11 // pred_check
          %p803 = pneg %p516
        $region90: #{tpu_custom_call.1} parent=11 // pred_check_branch
          %805 = sbr.rel (%p803) target = $region92
        $region91: #{tpu_custom_call.1} parent=11 // pred_region
          _
        $region92: #{tpu_custom_call.1} parent=11 // pred_fallthru
          _
        // Predicated region
        $region93: #{tpu_custom_call.1} parent=11 // pred_check
          %p806 = pneg %p537
        $region94: #{tpu_custom_call.1} parent=11 // pred_check_branch
          %808 = sbr.rel (%p806) target = $region96
        $region95: #{tpu_custom_call.1} parent=11 // pred_region
          _
        $region96: #{tpu_custom_call.1} parent=11 // pred_fallthru
          _
        // Predicated region
        $region97: #{tpu_custom_call.1} parent=11 // pred_check
          %p809 = pneg %p558
        $region98: #{tpu_custom_call.1} parent=11 // pred_check_branch
          %811 = sbr.rel (%p809) target = $region100
        $region99: #{tpu_custom_call.1} parent=11 // pred_region
          _
        $region100: #{tpu_custom_call.1} parent=11 // pred_fallthru
          _
        // Predicated region
        $region101: #{tpu_custom_call.1} parent=11 // pred_check
          %p812 = pneg %p579
        $region102: #{tpu_custom_call.1} parent=11 // pred_check_branch
          %814 = sbr.rel (%p812) target = $region104
        $region103: #{tpu_custom_call.1} parent=11 // pred_region
          _
        $region104: #{tpu_custom_call.1} parent=11 // pred_fallthru
          _
        // Predicated region
        $region105: #{tpu_custom_call.1} parent=11 // pred_check
          %p815 = pneg %p600
        $region106: #{tpu_custom_call.1} parent=11 // pred_check_branch
          %817 = sbr.rel (%p815) target = $region108
        $region107: #{tpu_custom_call.1} parent=11 // pred_region
          _
        $region108: #{tpu_custom_call.1} parent=11 // pred_fallthru
          _
        // Predicated region
        $region109: #{tpu_custom_call.1} parent=11 // pred_check
          %p818 = pneg %p621
        $region110: #{tpu_custom_call.1} parent=11 // pred_check_branch
          %820 = sbr.rel (%p818) target = $region112
        $region111: #{tpu_custom_call.1} parent=11 // pred_region
          _
        $region112: #{tpu_custom_call.1} parent=11 // pred_fallthru
          _
        // Predicated region
        $region113: #{tpu_custom_call.1} parent=11 // pred_check
          %p821 = pneg %p642
        $region114: #{tpu_custom_call.1} parent=11 // pred_check_branch
          %823 = sbr.rel (%p821) target = $region116
        $region115: #{tpu_custom_call.1} parent=11 // pred_region
          _
        $region116: #{tpu_custom_call.1} parent=11 // pred_fallthru
          _
        // Predicated region
        $region117: #{tpu_custom_call.1} parent=11 // pred_check
          %p824 = pneg %p663
        $region118: #{tpu_custom_call.1} parent=11 // pred_check_branch
          %826 = sbr.rel (%p824) target = $region120
        $region119: #{tpu_custom_call.1} parent=11 // pred_region
          _
        $region120: #{tpu_custom_call.1} parent=11 // pred_fallthru
          _
        // Predicated region
        $region121: #{tpu_custom_call.1} parent=11 // pred_check
          %p827 = pneg %p684
        $region122: #{tpu_custom_call.1} parent=11 // pred_check_branch
          %829 = sbr.rel (%p827) target = $region124
        $region123: #{tpu_custom_call.1} parent=11 // pred_region
          _
        $region124: #{tpu_custom_call.1} parent=11 // pred_fallthru
          _
        // Predicated region
        $region125: #{tpu_custom_call.1} parent=11 // pred_check
          %p830 = pneg %p705
        $region126: #{tpu_custom_call.1} parent=11 // pred_check_branch
          %832 = sbr.rel (%p830) target = $region128
        $region127: #{tpu_custom_call.1} parent=11 // pred_region
          _
        $region128: #{tpu_custom_call.1} parent=11 // pred_fallthru
          _
      $region12: #{tpu_custom_call.1} parent=5 // pred_fallthru
        _
      %p833 = scmp.lt.s32.totalorder %s70, 2
      // Predicated region
      $region129: #{tpu_custom_call.1} parent=5 // pred_check
        %p834 = pneg %p833
      $region130: #{tpu_custom_call.1} parent=5 // pred_check_branch
        %836 = sbr.rel (%p834) target = $region132
      $region131: #{tpu_custom_call.1} parent=5 // pred_region
        // Predicated region
        $region133: #{tpu_custom_call.1} parent=131 // pred_check
          %p837 = pneg %p90
        $region134: #{tpu_custom_call.1} parent=131 // pred_check_branch
          %839 = sbr.rel (%p837) target = $region136
        $region135: #{tpu_custom_call.1} parent=131 // pred_region
          %p840 = scmp.lt.s32.totalorder %s70, 1
          %s841 = scalar_select %p840, %s70, 1
          %s842 = smul.addr %s841, 32
          %s843 = smul.addr %s842, 8
          %s844 = scalar_lea.vmem %s1, %s843
        $region136: #{tpu_custom_call.1} parent=131 // pred_fallthru
          _
      $region132: #{tpu_custom_call.1} parent=5 // pred_fallthru
        _
      %p845 = scmp.le.s32.totalorder 1, %s70
      %p846 = scmp.lt.s32.totalorder %s70, 3
      %p847 = pnand %p845, %p846
      %p848 = pneg %p847
      // Predicated region
      $region137: #{tpu_custom_call.1} parent=5 // pred_check
        _
      $region138: #{tpu_custom_call.1} parent=5 // pred_check_branch
        %850 = sbr.rel (%p847) target = $region140
      $region139: #{tpu_custom_call.1} parent=5 // pred_region
        %s851 = ssub.s32 %s70, 1
        %p852 = scmp.lt.s32.totalorder %s75, 1
        %s853 = scalar_select %p852, %s75, 1
        %s854 = smul.addr %s853, 32
        %s855 = smul.addr %s854, 8
        %s856 = scalar_lea.vmem %s1, %s855
        %p857 = pneg %p96
        %p858 = pneg %p93
        %p859 = pneg %p117
        %p860 = pneg %p114
        %p861 = pneg %p138
        %p862 = pneg %p135
        %p863 = pneg %p159
        %p864 = pneg %p156
        %p865 = pneg %p180
        %p866 = pneg %p177
        %p867 = pneg %p201
        %p868 = pneg %p198
        %p869 = pneg %p222
        %p870 = pneg %p219
        %p871 = pneg %p243
        %p872 = pneg %p240
        %p873 = pneg %p264
        %p874 = pneg %p261
        %p875 = pneg %p285
        %p876 = pneg %p282
        %p877 = pneg %p306
        %p878 = pneg %p303
        %p879 = pneg %p327
        %p880 = pneg %p324
        %p881 = pneg %p348
        %p882 = pneg %p345
        %p883 = pneg %p369
        %p884 = pneg %p366
        %p885 = pneg %p390
        %p886 = pneg %p387
        %p887 = pneg %p411
        %p888 = pneg %p408
        %p889 = pneg %p432
        %p890 = pneg %p429
        %p891 = pneg %p453
        %p892 = pneg %p450
        %p893 = pneg %p474
        %p894 = pneg %p471
        %p895 = pneg %p495
        %p896 = pneg %p492
        %p897 = pneg %p516
        %p898 = pneg %p513
        %p899 = pneg %p537
        %p900 = pneg %p534
        %p901 = pneg %p558
        %p902 = pneg %p555
        %p903 = pneg %p579
        %p904 = pneg %p576
        %p905 = pneg %p600
        %p906 = pneg %p597
        %p907 = pneg %p621
        %p908 = pneg %p618
        %p909 = pneg %p642
        %p910 = pneg %p639
        %p911 = pneg %p663
        %p912 = pneg %p660
        %p913 = pneg %p684
        %p914 = pneg %p681
        %p915 = pneg %p705
        %p916 = pneg %p702
        %p917 = pneg %p731
        %p918 = pneg %p728
        %s919 = sand.u32 %s718, 1
        %s920 = scalar_lea.sflag [#allocation3], %s919
        %s921 = sand.u32 %s718, 1
        %s922 = scalar_lea.vmem [#allocation2], %s921
        %p923 = scmp.lt.s32.totalorder %s75, 1
        %s924 = scalar_select %p923, %s75, 1
        %s925 = smul.addr %s924, 32
        %s926 = smul.addr %s925, 8
        %s927 = scalar_lea.vmem %s1, %s926
        %v929 = vld [vmem:[%s927] sm:$0xff]
        %v930 = vld [vmem:[%s927 + $0x8] sm:$0xff]
        %v931 = vld [vmem:[%s927 + $0x10] sm:$0xff]
        %v932 = vld [vmem:[%s927 + $0x18] sm:$0xff]
        %v933 = vld [vmem:[%s927 + $0x20] sm:$0xff]
        %v934 = vld [vmem:[%s927 + $0x28] sm:$0xff]
        %v935 = vld [vmem:[%s927 + $0x30] sm:$0xff]
        %v936 = vld [vmem:[%s927 + $0x38] sm:$0xff]
        %v937 = vld [vmem:[%s927 + $0x40] sm:$0xff]
        %v938 = vld [vmem:[%s927 + $0x48] sm:$0xff]
        %v939 = vld [vmem:[%s927 + $0x50] sm:$0xff]
        %v940 = vld [vmem:[%s927 + $0x58] sm:$0xff]
        %v941 = vld [vmem:[%s927 + $0x60] sm:$0xff]
        %v942 = vld [vmem:[%s927 + $0x68] sm:$0xff]
        %v943 = vld [vmem:[%s927 + $0x70] sm:$0xff]
        %v944 = vld [vmem:[%s927 + $0x78] sm:$0xff]
        %v945 = vld [vmem:[%s927 + $0x80] sm:$0xff]
        %v946 = vld [vmem:[%s927 + $0x88] sm:$0xff]
        %v947 = vld [vmem:[%s927 + $0x90] sm:$0xff]
        %v948 = vld [vmem:[%s927 + $0x98] sm:$0xff]
        %v949 = vld [vmem:[%s927 + $0xa0] sm:$0xff]
        %v950 = vld [vmem:[%s927 + $0xa8] sm:$0xff]
        %v951 = vld [vmem:[%s927 + $0xb0] sm:$0xff]
        %v952 = vld [vmem:[%s927 + $0xb8] sm:$0xff]
        %v953 = vld [vmem:[%s927 + $0xc0] sm:$0xff]
        %v954 = vld [vmem:[%s927 + $0xc8] sm:$0xff]
        %v955 = vld [vmem:[%s927 + $0xd0] sm:$0xff]
        %v956 = vld [vmem:[%s927 + $0xd8] sm:$0xff]
        %v957 = vld [vmem:[%s927 + $0xe0] sm:$0xff]
        %v958 = vld [vmem:[%s927 + $0xe8] sm:$0xff]
        %v959 = vld [vmem:[%s927 + $0xf0] sm:$0xff]
        %v960 = vld [vmem:[%s927 + $0xf8] sm:$0xff]
        %vm993 = vcmask 1040384
        %v994 = vrot.slane %v929, 7
        %v995 = vrot.slane %v930, 7
        %v996 = vsel %vm993, %v994, %v995
        %v997 = vrot.slane %v931, 7
        %v998 = vrot.slane %v932, 7
        %v999 = vsel %vm993, %v997, %v998
        %v1000 = vrot.slane %v933, 7
        %v1001 = vrot.slane %v934, 7
        %v1002 = vsel %vm993, %v1000, %v1001
        %v1003 = vrot.slane %v935, 7
        %v1004 = vrot.slane %v936, 7
        %v1005 = vsel %vm993, %v1003, %v1004
        %v1006 = vrot.slane %v937, 7
        %v1007 = vrot.slane %v938, 7
        %v1008 = vsel %vm993, %v1006, %v1007
        %v1009 = vrot.slane %v939, 7
        %v1010 = vrot.slane %v940, 7
        %v1011 = vsel %vm993, %v1009, %v1010
        %v1012 = vrot.slane %v941, 7
        %v1013 = vrot.slane %v942, 7
        %v1014 = vsel %vm993, %v1012, %v1013
        %v1015 = vrot.slane %v943, 7
        %v1016 = vrot.slane %v944, 7
        %v1017 = vsel %vm993, %v1015, %v1016
        %v1018 = vrot.slane %v945, 7
        %v1019 = vrot.slane %v946, 7
        %v1020 = vsel %vm993, %v1018, %v1019
        %v1021 = vrot.slane %v947, 7
        %v1022 = vrot.slane %v948, 7
        %v1023 = vsel %vm993, %v1021, %v1022
        %v1024 = vrot.slane %v949, 7
        %v1025 = vrot.slane %v950, 7
        %v1026 = vsel %vm993, %v1024, %v1025
        %v1027 = vrot.slane %v951, 7
        %v1028 = vrot.slane %v952, 7
        %v1029 = vsel %vm993, %v1027, %v1028
        %v1030 = vrot.slane %v953, 7
        %v1031 = vrot.slane %v954, 7
        %v1032 = vsel %vm993, %v1030, %v1031
        %v1033 = vrot.slane %v955, 7
        %v1034 = vrot.slane %v956, 7
        %v1035 = vsel %vm993, %v1033, %v1034
        %v1036 = vrot.slane %v957, 7
        %v1037 = vrot.slane %v958, 7
        %v1038 = vsel %vm993, %v1036, %v1037
        %v1039 = vrot.slane %v959, 7
        %v1040 = vrot.slane %v960, 7
        %v1041 = vsel %vm993, %v1039, %v1040
        %v1089 = vsel %vm993, 0.0, %v994
        %v1090 = vsel %vm993, 0.0, %v997
        %v1091 = vsel %vm993, 0.0, %v1000
        %v1092 = vsel %vm993, 0.0, %v1003
        %v1093 = vsel %vm993, 0.0, %v1006
        %v1094 = vsel %vm993, 0.0, %v1009
        %v1095 = vsel %vm993, 0.0, %v1012
        %v1096 = vsel %vm993, 0.0, %v1015
        %v1097 = vsel %vm993, 0.0, %v1018
        %v1098 = vsel %vm993, 0.0, %v1021
        %v1099 = vsel %vm993, 0.0, %v1024
        %v1100 = vsel %vm993, 0.0, %v1027
        %v1101 = vsel %vm993, 0.0, %v1030
        %v1102 = vsel %vm993, 0.0, %v1033
        %v1103 = vsel %vm993, 0.0, %v1036
        %v1104 = vsel %vm993, 0.0, %v1039
        %v1105 = vsel %vm993, %v995, 0.0
        %v1106 = vsel %vm993, %v998, 0.0
        %v1107 = vsel %vm993, %v1001, 0.0
        %v1108 = vsel %vm993, %v1004, 0.0
        %v1109 = vsel %vm993, %v1007, 0.0
        %v1110 = vsel %vm993, %v1010, 0.0
        %v1111 = vsel %vm993, %v1013, 0.0
        %v1112 = vsel %vm993, %v1016, 0.0
        %v1113 = vsel %vm993, %v1019, 0.0
        %v1114 = vsel %vm993, %v1022, 0.0
        %v1115 = vsel %vm993, %v1025, 0.0
        %v1116 = vsel %vm993, %v1028, 0.0
        %v1117 = vsel %vm993, %v1031, 0.0
        %v1118 = vsel %vm993, %v1034, 0.0
        %v1119 = vsel %vm993, %v1037, 0.0
        %v1120 = vsel %vm993, %v1040, 0.0
        %vm1152 = vcmask 1046528
        %v1153 = vrot.slane 0.0, 1
        %v1154 = vsel %vm1152, %v1153, %v1153
        %v1155 = vrot.slane %v1089, 1
        %v1156 = vrot.slane %v996, 1
        %v1157 = vsel %vm1152, %v1155, %v1156
        %v1158 = vrot.slane %v1105, 1
        %v1159 = vsel %vm1152, %v1156, %v1158
        %v1160 = vrot.slane %v1090, 1
        %v1161 = vrot.slane %v999, 1
        %v1162 = vsel %vm1152, %v1160, %v1161
        %v1163 = vrot.slane %v1106, 1
        %v1164 = vsel %vm1152, %v1161, %v1163
        %v1165 = vrot.slane %v1091, 1
        %v1166 = vrot.slane %v1002, 1
        %v1167 = vsel %vm1152, %v1165, %v1166
        %v1168 = vrot.slane %v1107, 1
        %v1169 = vsel %vm1152, %v1166, %v1168
        %v1170 = vrot.slane %v1092, 1
        %v1171 = vrot.slane %v1005, 1
        %v1172 = vsel %vm1152, %v1170, %v1171
        %v1173 = vrot.slane %v1108, 1
        %v1174 = vsel %vm1152, %v1171, %v1173
        %v1175 = vrot.slane %v1093, 1
        %v1176 = vrot.slane %v1008, 1
        %v1177 = vsel %vm1152, %v1175, %v1176
        %v1178 = vrot.slane %v1109, 1
        %v1179 = vsel %vm1152, %v1176, %v1178
        %v1180 = vrot.slane %v1094, 1
        %v1181 = vrot.slane %v1011, 1
        %v1182 = vsel %vm1152, %v1180, %v1181
        %v1183 = vrot.slane %v1110, 1
        %v1184 = vsel %vm1152, %v1181, %v1183
        %v1185 = vrot.slane %v1095, 1
        %v1186 = vrot.slane %v1014, 1
        %v1187 = vsel %vm1152, %v1185, %v1186
        %v1188 = vrot.slane %v1111, 1
        %v1189 = vsel %vm1152, %v1186, %v1188
        %v1190 = vrot.slane %v1096, 1
        %v1191 = vrot.slane %v1017, 1
        %v1192 = vsel %vm1152, %v1190, %v1191
        %v1193 = vrot.slane %v1112, 1
        %v1194 = vsel %vm1152, %v1191, %v1193
        %v1195 = vrot.slane %v1097, 1
        %v1196 = vrot.slane %v1020, 1
        %v1197 = vsel %vm1152, %v1195, %v1196
        %v1198 = vrot.slane %v1113, 1
        %v1199 = vsel %vm1152, %v1196, %v1198
        %v1200 = vrot.slane %v1098, 1
        %v1201 = vrot.slane %v1023, 1
        %v1202 = vsel %vm1152, %v1200, %v1201
        %v1203 = vrot.slane %v1114, 1
        %v1204 = vsel %vm1152, %v1201, %v1203
        %v1205 = vrot.slane %v1099, 1
        %v1206 = vrot.slane %v1026, 1
        %v1207 = vsel %vm1152, %v1205, %v1206
        %v1208 = vrot.slane %v1115, 1
        %v1209 = vsel %vm1152, %v1206, %v1208
        %v1210 = vrot.slane %v1100, 1
        %v1211 = vrot.slane %v1029, 1
        %v1212 = vsel %vm1152, %v1210, %v1211
        %v1213 = vrot.slane %v1116, 1
        %v1214 = vsel %vm1152, %v1211, %v1213
        %v1215 = vrot.slane %v1101, 1
        %v1216 = vrot.slane %v1032, 1
        %v1217 = vsel %vm1152, %v1215, %v1216
        %v1218 = vrot.slane %v1117, 1
        %v1219 = vsel %vm1152, %v1216, %v1218
        %v1220 = vrot.slane %v1102, 1
        %v1221 = vrot.slane %v1035, 1
        %v1222 = vsel %vm1152, %v1220, %v1221
        %v1223 = vrot.slane %v1118, 1
        %v1224 = vsel %vm1152, %v1221, %v1223
        %v1225 = vrot.slane %v1103, 1
        %v1226 = vrot.slane %v1038, 1
        %v1227 = vsel %vm1152, %v1225, %v1226
        %v1228 = vrot.slane %v1119, 1
        %v1229 = vsel %vm1152, %v1226, %v1228
        %1230 = vrot.lane.b32.xlu0 %v1154, 3
        %v1231 = vpop.permute.xlu0 %1230
        %1232 = vrot.lane.b32.xlu0 %v1157, 3
        %v1233 = vpop.permute.xlu0 %1232
        %1234 = vrot.lane.b32.xlu0 %v1159, 3
        %v1235 = vpop.permute.xlu0 %1234
        %1236 = vrot.lane.b32.xlu0 %v1162, 3
        %v1237 = vpop.permute.xlu0 %1236
        %1238 = vrot.lane.b32.xlu0 %v1164, 3
        %v1239 = vpop.permute.xlu0 %1238
        %1240 = vrot.lane.b32.xlu0 %v1167, 3
        %v1241 = vpop.permute.xlu0 %1240
        %1242 = vrot.lane.b32.xlu0 %v1169, 3
        %v1243 = vpop.permute.xlu0 %1242
        %1244 = vrot.lane.b32.xlu0 %v1172, 3
        %v1245 = vpop.permute.xlu0 %1244
        %1246 = vrot.lane.b32.xlu0 %v1174, 3
        %v1247 = vpop.permute.xlu0 %1246
        %1248 = vrot.lane.b32.xlu0 %v1177, 3
        %v1249 = vpop.permute.xlu0 %1248
        %1250 = vrot.lane.b32.xlu0 %v1179, 3
        %v1251 = vpop.permute.xlu0 %1250
        %1252 = vrot.lane.b32.xlu0 %v1182, 3
        %v1253 = vpop.permute.xlu0 %1252
        %1254 = vrot.lane.b32.xlu0 %v1184, 3
        %v1255 = vpop.permute.xlu0 %1254
        %1256 = vrot.lane.b32.xlu0 %v1187, 3
        %v1257 = vpop.permute.xlu0 %1256
        %1258 = vrot.lane.b32.xlu0 %v1189, 3
        %v1259 = vpop.permute.xlu0 %1258
        %1260 = vrot.lane.b32.xlu0 %v1192, 3
        %v1261 = vpop.permute.xlu0 %1260
        %1262 = vrot.lane.b32.xlu0 %v1194, 3
        %v1263 = vpop.permute.xlu0 %1262
        %1264 = vrot.lane.b32.xlu0 %v1197, 3
        %v1265 = vpop.permute.xlu0 %1264
        %1266 = vrot.lane.b32.xlu0 %v1199, 3
        %v1267 = vpop.permute.xlu0 %1266
        %1268 = vrot.lane.b32.xlu0 %v1202, 3
        %v1269 = vpop.permute.xlu0 %1268
        %1270 = vrot.lane.b32.xlu0 %v1204, 3
        %v1271 = vpop.permute.xlu0 %1270
        %1272 = vrot.lane.b32.xlu0 %v1207, 3
        %v1273 = vpop.permute.xlu0 %1272
        %1274 = vrot.lane.b32.xlu0 %v1209, 3
        %v1275 = vpop.permute.xlu0 %1274
        %1276 = vrot.lane.b32.xlu0 %v1212, 3
        %v1277 = vpop.permute.xlu0 %1276
        %1278 = vrot.lane.b32.xlu0 %v1214, 3
        %v1279 = vpop.permute.xlu0 %1278
        %1280 = vrot.lane.b32.xlu0 %v1217, 3
        %v1281 = vpop.permute.xlu0 %1280
        %1282 = vrot.lane.b32.xlu0 %v1219, 3
        %v1283 = vpop.permute.xlu0 %1282
        %1284 = vrot.lane.b32.xlu0 %v1222, 3
        %v1285 = vpop.permute.xlu0 %1284
        %1286 = vrot.lane.b32.xlu0 %v1224, 3
        %v1287 = vpop.permute.xlu0 %1286
        %1288 = vrot.lane.b32.xlu0 %v1227, 3
        %v1289 = vpop.permute.xlu0 %1288
        %1290 = vrot.lane.b32.xlu0 %v1229, 3
        %v1291 = vpop.permute.xlu0 %1290
        %vm1323 = vcmask 1045504
        %v1324 = vrot.slane 0.0, 2
        %v1325 = vsel %vm1323, %v1324, %v1324
        %v1326 = vrot.slane %v1089, 2
        %v1327 = vrot.slane %v996, 2
        %v1328 = vsel %vm1323, %v1326, %v1327
        %v1329 = vrot.slane %v1105, 2
        %v1330 = vsel %vm1323, %v1327, %v1329
        %v1331 = vrot.slane %v1090, 2
        %v1332 = vrot.slane %v999, 2
        %v1333 = vsel %vm1323, %v1331, %v1332
        %v1334 = vrot.slane %v1106, 2
        %v1335 = vsel %vm1323, %v1332, %v1334
        %v1336 = vrot.slane %v1091, 2
        %v1337 = vrot.slane %v1002, 2
        %v1338 = vsel %vm1323, %v1336, %v1337
        %v1339 = vrot.slane %v1107, 2
        %v1340 = vsel %vm1323, %v1337, %v1339
        %v1341 = vrot.slane %v1092, 2
        %v1342 = vrot.slane %v1005, 2
        %v1343 = vsel %vm1323, %v1341, %v1342
        %v1344 = vrot.slane %v1108, 2
        %v1345 = vsel %vm1323, %v1342, %v1344
        %v1346 = vrot.slane %v1093, 2
        %v1347 = vrot.slane %v1008, 2
        %v1348 = vsel %vm1323, %v1346, %v1347
        %v1349 = vrot.slane %v1109, 2
        %v1350 = vsel %vm1323, %v1347, %v1349
        %v1351 = vrot.slane %v1094, 2
        %v1352 = vrot.slane %v1011, 2
        %v1353 = vsel %vm1323, %v1351, %v1352
        %v1354 = vrot.slane %v1110, 2
        %v1355 = vsel %vm1323, %v1352, %v1354
        %v1356 = vrot.slane %v1095, 2
        %v1357 = vrot.slane %v1014, 2
        %v1358 = vsel %vm1323, %v1356, %v1357
        %v1359 = vrot.slane %v1111, 2
        %v1360 = vsel %vm1323, %v1357, %v1359
        %v1361 = vrot.slane %v1096, 2
        %v1362 = vrot.slane %v1017, 2
        %v1363 = vsel %vm1323, %v1361, %v1362
        %v1364 = vrot.slane %v1112, 2
        %v1365 = vsel %vm1323, %v1362, %v1364
        %v1366 = vrot.slane %v1097, 2
        %v1367 = vrot.slane %v1020, 2
        %v1368 = vsel %vm1323, %v1366, %v1367
        %v1369 = vrot.slane %v1113, 2
        %v1370 = vsel %vm1323, %v1367, %v1369
        %v1371 = vrot.slane %v1098, 2
        %v1372 = vrot.slane %v1023, 2
        %v1373 = vsel %vm1323, %v1371, %v1372
        %v1374 = vrot.slane %v1114, 2
        %v1375 = vsel %vm1323, %v1372, %v1374
        %v1376 = vrot.slane %v1099, 2
        %v1377 = vrot.slane %v1026, 2
        %v1378 = vsel %vm1323, %v1376, %v1377
        %v1379 = vrot.slane %v1115, 2
        %v1380 = vsel %vm1323, %v1377, %v1379
        %v1381 = vrot.slane %v1100, 2
        %v1382 = vrot.slane %v1029, 2
        %v1383 = vsel %vm1323, %v1381, %v1382
        %v1384 = vrot.slane %v1116, 2
        %v1385 = vsel %vm1323, %v1382, %v1384
        %v1386 = vrot.slane %v1101, 2
        %v1387 = vrot.slane %v1032, 2
        %v1388 = vsel %vm1323, %v1386, %v1387
        %v1389 = vrot.slane %v1117, 2
        %v1390 = vsel %vm1323, %v1387, %v1389
        %v1391 = vrot.slane %v1102, 2
        %v1392 = vrot.slane %v1035, 2
        %v1393 = vsel %vm1323, %v1391, %v1392
        %v1394 = vrot.slane %v1118, 2
        %v1395 = vsel %vm1323, %v1392, %v1394
        %v1396 = vrot.slane %v1103, 2
        %v1397 = vrot.slane %v1038, 2
        %v1398 = vsel %vm1323, %v1396, %v1397
        %v1399 = vrot.slane %v1119, 2
        %v1400 = vsel %vm1323, %v1397, %v1399
        %1401 = vrot.lane.b32.xlu0 %v1325, 6
        %v1402 = vpop.permute.xlu0 %1401
        %1403 = vrot.lane.b32.xlu0 %v1328, 6
        %v1404 = vpop.permute.xlu0 %1403
        %1405 = vrot.lane.b32.xlu0 %v1330, 6
        %v1406 = vpop.permute.xlu0 %1405
        %1407 = vrot.lane.b32.xlu0 %v1333, 6
        %v1408 = vpop.permute.xlu0 %1407
        %1409 = vrot.lane.b32.xlu0 %v1335, 6
        %v1410 = vpop.permute.xlu0 %1409
        %1411 = vrot.lane.b32.xlu0 %v1338, 6
        %v1412 = vpop.permute.xlu0 %1411
        %1413 = vrot.lane.b32.xlu0 %v1340, 6
        %v1414 = vpop.permute.xlu0 %1413
        %1415 = vrot.lane.b32.xlu0 %v1343, 6
        %v1416 = vpop.permute.xlu0 %1415
        %1417 = vrot.lane.b32.xlu0 %v1345, 6
        %v1418 = vpop.permute.xlu0 %1417
        %1419 = vrot.lane.b32.xlu0 %v1348, 6
        %v1420 = vpop.permute.xlu0 %1419
        %1421 = vrot.lane.b32.xlu0 %v1350, 6
        %v1422 = vpop.permute.xlu0 %1421
        %1423 = vrot.lane.b32.xlu0 %v1353, 6
        %v1424 = vpop.permute.xlu0 %1423
        %1425 = vrot.lane.b32.xlu0 %v1355, 6
        %v1426 = vpop.permute.xlu0 %1425
        %1427 = vrot.lane.b32.xlu0 %v1358, 6
        %v1428 = vpop.permute.xlu0 %1427
        %1429 = vrot.lane.b32.xlu0 %v1360, 6
        %v1430 = vpop.permute.xlu0 %1429
        %1431 = vrot.lane.b32.xlu0 %v1363, 6
        %v1432 = vpop.permute.xlu0 %1431
        %1433 = vrot.lane.b32.xlu0 %v1365, 6
        %v1434 = vpop.permute.xlu0 %1433
        %1435 = vrot.lane.b32.xlu0 %v1368, 6
        %v1436 = vpop.permute.xlu0 %1435
        %1437 = vrot.lane.b32.xlu0 %v1370, 6
        %v1438 = vpop.permute.xlu0 %1437
        %1439 = vrot.lane.b32.xlu0 %v1373, 6
        %v1440 = vpop.permute.xlu0 %1439
        %1441 = vrot.lane.b32.xlu0 %v1375, 6
        %v1442 = vpop.permute.xlu0 %1441
        %1443 = vrot.lane.b32.xlu0 %v1378, 6
        %v1444 = vpop.permute.xlu0 %1443
        %1445 = vrot.lane.b32.xlu0 %v1380, 6
        %v1446 = vpop.permute.xlu0 %1445
        %1447 = vrot.lane.b32.xlu0 %v1383, 6
        %v1448 = vpop.permute.xlu0 %1447
        %1449 = vrot.lane.b32.xlu0 %v1385, 6
        %v1450 = vpop.permute.xlu0 %1449
        %1451 = vrot.lane.b32.xlu0 %v1388, 6
        %v1452 = vpop.permute.xlu0 %1451
        %1453 = vrot.lane.b32.xlu0 %v1390, 6
        %v1454 = vpop.permute.xlu0 %1453
        %1455 = vrot.lane.b32.xlu0 %v1393, 6
        %v1456 = vpop.permute.xlu0 %1455
        %1457 = vrot.lane.b32.xlu0 %v1395, 6
        %v1458 = vpop.permute.xlu0 %1457
        %1459 = vrot.lane.b32.xlu0 %v1398, 6
        %v1460 = vpop.permute.xlu0 %1459
        %1461 = vrot.lane.b32.xlu0 %v1400, 6
        %v1462 = vpop.permute.xlu0 %1461
        %1495 = vrot.lane.b32.xlu0 %v1089, 9
        %v1496 = vpop.permute.xlu0 %1495
        %1497 = vrot.lane.b32.xlu0 %v996, 9
        %v1498 = vpop.permute.xlu0 %1497
        %1499 = vrot.lane.b32.xlu0 %v1090, 9
        %v1500 = vpop.permute.xlu0 %1499
        %1501 = vrot.lane.b32.xlu0 %v999, 9
        %v1502 = vpop.permute.xlu0 %1501
        %1503 = vrot.lane.b32.xlu0 %v1091, 9
        %v1504 = vpop.permute.xlu0 %1503
        %1505 = vrot.lane.b32.xlu0 %v1002, 9
        %v1506 = vpop.permute.xlu0 %1505
        %1507 = vrot.lane.b32.xlu0 %v1092, 9
        %v1508 = vpop.permute.xlu0 %1507
        %1509 = vrot.lane.b32.xlu0 %v1005, 9
        %v1510 = vpop.permute.xlu0 %1509
        %1511 = vrot.lane.b32.xlu0 %v1093, 9
        %v1512 = vpop.permute.xlu0 %1511
        %1513 = vrot.lane.b32.xlu0 %v1008, 9
        %v1514 = vpop.permute.xlu0 %1513
        %1515 = vrot.lane.b32.xlu0 %v1094, 9
        %v1516 = vpop.permute.xlu0 %1515
        %1517 = vrot.lane.b32.xlu0 %v1011, 9
        %v1518 = vpop.permute.xlu0 %1517
        %1519 = vrot.lane.b32.xlu0 %v1095, 9
        %v1520 = vpop.permute.xlu0 %1519
        %1521 = vrot.lane.b32.xlu0 %v1014, 9
        %v1522 = vpop.permute.xlu0 %1521
        %1523 = vrot.lane.b32.xlu0 %v1096, 9
        %v1524 = vpop.permute.xlu0 %1523
        %1525 = vrot.lane.b32.xlu0 %v1017, 9
        %v1526 = vpop.permute.xlu0 %1525
        %1527 = vrot.lane.b32.xlu0 %v1097, 9
        %v1528 = vpop.permute.xlu0 %1527
        %1529 = vrot.lane.b32.xlu0 %v1020, 9
        %v1530 = vpop.permute.xlu0 %1529
        %1531 = vrot.lane.b32.xlu0 %v1098, 9
        %v1532 = vpop.permute.xlu0 %1531
        %1533 = vrot.lane.b32.xlu0 %v1023, 9
        %v1534 = vpop.permute.xlu0 %1533
        %1535 = vrot.lane.b32.xlu0 %v1099, 9
        %v1536 = vpop.permute.xlu0 %1535
        %1537 = vrot.lane.b32.xlu0 %v1026, 9
        %v1538 = vpop.permute.xlu0 %1537
        %1539 = vrot.lane.b32.xlu0 %v1100, 9
        %v1540 = vpop.permute.xlu0 %1539
        %1541 = vrot.lane.b32.xlu0 %v1029, 9
        %v1542 = vpop.permute.xlu0 %1541
        %1543 = vrot.lane.b32.xlu0 %v1101, 9
        %v1544 = vpop.permute.xlu0 %1543
        %1545 = vrot.lane.b32.xlu0 %v1032, 9
        %v1546 = vpop.permute.xlu0 %1545
        %1547 = vrot.lane.b32.xlu0 %v1102, 9
        %v1548 = vpop.permute.xlu0 %1547
        %1549 = vrot.lane.b32.xlu0 %v1035, 9
        %v1550 = vpop.permute.xlu0 %1549
        %1551 = vrot.lane.b32.xlu0 %v1103, 9
        %v1552 = vpop.permute.xlu0 %1551
        %1553 = vrot.lane.b32.xlu0 %v1038, 9
        %v1554 = vpop.permute.xlu0 %1553
        %1555 = vrot.lane.b32.xlu0 %v1104, 9
        %v1556 = vpop.permute.xlu0 %1555
        %1557 = vrot.lane.b32.xlu0 %v1041, 9
        %v1558 = vpop.permute.xlu0 %1557
        %v1592 = vrot.slane %v1104, 1
        %v1593 = vrot.slane %v1041, 1
        %v1594 = vsel %vm1152, %v1592, %v1593
        %v1595 = vrot.slane %v1120, 1
        %v1596 = vsel %vm1152, %v1593, %v1595
        %1597 = vrot.lane.b32.xlu0 %v1157, 12
        %v1598 = vpop.permute.xlu0 %1597
        %1599 = vrot.lane.b32.xlu0 %v1159, 12
        %v1600 = vpop.permute.xlu0 %1599
        %1601 = vrot.lane.b32.xlu0 %v1162, 12
        %v1602 = vpop.permute.xlu0 %1601
        %1603 = vrot.lane.b32.xlu0 %v1164, 12
        %v1604 = vpop.permute.xlu0 %1603
        %1605 = vrot.lane.b32.xlu0 %v1167, 12
        %v1606 = vpop.permute.xlu0 %1605
        %1607 = vrot.lane.b32.xlu0 %v1169, 12
        %v1608 = vpop.permute.xlu0 %1607
        %1609 = vrot.lane.b32.xlu0 %v1172, 12
        %v1610 = vpop.permute.xlu0 %1609
        %1611 = vrot.lane.b32.xlu0 %v1174, 12
        %v1612 = vpop.permute.xlu0 %1611
        %1613 = vrot.lane.b32.xlu0 %v1177, 12
        %v1614 = vpop.permute.xlu0 %1613
        %1615 = vrot.lane.b32.xlu0 %v1179, 12
        %v1616 = vpop.permute.xlu0 %1615
        %1617 = vrot.lane.b32.xlu0 %v1182, 12
        %v1618 = vpop.permute.xlu0 %1617
        %1619 = vrot.lane.b32.xlu0 %v1184, 12
        %v1620 = vpop.permute.xlu0 %1619
        %1621 = vrot.lane.b32.xlu0 %v1187, 12
        %v1622 = vpop.permute.xlu0 %1621
        %1623 = vrot.lane.b32.xlu0 %v1189, 12
        %v1624 = vpop.permute.xlu0 %1623
        %1625 = vrot.lane.b32.xlu0 %v1192, 12
        %v1626 = vpop.permute.xlu0 %1625
        %1627 = vrot.lane.b32.xlu0 %v1194, 12
        %v1628 = vpop.permute.xlu0 %1627
        %1629 = vrot.lane.b32.xlu0 %v1197, 12
        %v1630 = vpop.permute.xlu0 %1629
        %1631 = vrot.lane.b32.xlu0 %v1199, 12
        %v1632 = vpop.permute.xlu0 %1631
        %1633 = vrot.lane.b32.xlu0 %v1202, 12
        %v1634 = vpop.permute.xlu0 %1633
        %1635 = vrot.lane.b32.xlu0 %v1204, 12
        %v1636 = vpop.permute.xlu0 %1635
        %1637 = vrot.lane.b32.xlu0 %v1207, 12
        %v1638 = vpop.permute.xlu0 %1637
        %1639 = vrot.lane.b32.xlu0 %v1209, 12
        %v1640 = vpop.permute.xlu0 %1639
        %1641 = vrot.lane.b32.xlu0 %v1212, 12
        %v1642 = vpop.permute.xlu0 %1641
        %1643 = vrot.lane.b32.xlu0 %v1214, 12
        %v1644 = vpop.permute.xlu0 %1643
        %1645 = vrot.lane.b32.xlu0 %v1217, 12
        %v1646 = vpop.permute.xlu0 %1645
        %1647 = vrot.lane.b32.xlu0 %v1219, 12
        %v1648 = vpop.permute.xlu0 %1647
        %1649 = vrot.lane.b32.xlu0 %v1222, 12
        %v1650 = vpop.permute.xlu0 %1649
        %1651 = vrot.lane.b32.xlu0 %v1224, 12
        %v1652 = vpop.permute.xlu0 %1651
        %1653 = vrot.lane.b32.xlu0 %v1227, 12
        %v1654 = vpop.permute.xlu0 %1653
        %1655 = vrot.lane.b32.xlu0 %v1229, 12
        %v1656 = vpop.permute.xlu0 %1655
        %1657 = vrot.lane.b32.xlu0 %v1594, 12
        %v1658 = vpop.permute.xlu0 %1657
        %1659 = vrot.lane.b32.xlu0 %v1596, 12
        %v1660 = vpop.permute.xlu0 %1659
        %v1693 = vrot.slane %v1104, 2
        %v1694 = vrot.slane %v1041, 2
        %v1695 = vsel %vm1323, %v1693, %v1694
        %v1696 = vrot.slane %v1120, 2
        %v1697 = vsel %vm1323, %v1694, %v1696
        %1698 = vrot.lane.b32.xlu0 %v1328, 15
        %v1699 = vpop.permute.xlu0 %1698
        %1700 = vrot.lane.b32.xlu0 %v1330, 15
        %v1701 = vpop.permute.xlu0 %1700
        %1702 = vrot.lane.b32.xlu0 %v1333, 15
        %v1703 = vpop.permute.xlu0 %1702
        %1704 = vrot.lane.b32.xlu0 %v1335, 15
        %v1705 = vpop.permute.xlu0 %1704
        %1706 = vrot.lane.b32.xlu0 %v1338, 15
        %v1707 = vpop.permute.xlu0 %1706
        %1708 = vrot.lane.b32.xlu0 %v1340, 15
        %v1709 = vpop.permute.xlu0 %1708
        %1710 = vrot.lane.b32.xlu0 %v1343, 15
        %v1711 = vpop.permute.xlu0 %1710
        %1712 = vrot.lane.b32.xlu0 %v1345, 15
        %v1713 = vpop.permute.xlu0 %1712
        %1714 = vrot.lane.b32.xlu0 %v1348, 15
        %v1715 = vpop.permute.xlu0 %1714
        %1716 = vrot.lane.b32.xlu0 %v1350, 15
        %v1717 = vpop.permute.xlu0 %1716
        %1718 = vrot.lane.b32.xlu0 %v1353, 15
        %v1719 = vpop.permute.xlu0 %1718
        %1720 = vrot.lane.b32.xlu0 %v1355, 15
        %v1721 = vpop.permute.xlu0 %1720
        %1722 = vrot.lane.b32.xlu0 %v1358, 15
        %v1723 = vpop.permute.xlu0 %1722
        %1724 = vrot.lane.b32.xlu0 %v1360, 15
        %v1725 = vpop.permute.xlu0 %1724
        %1726 = vrot.lane.b32.xlu0 %v1363, 15
        %v1727 = vpop.permute.xlu0 %1726
        %1728 = vrot.lane.b32.xlu0 %v1365, 15
        %v1729 = vpop.permute.xlu0 %1728
        %1730 = vrot.lane.b32.xlu0 %v1368, 15
        %v1731 = vpop.permute.xlu0 %1730
        %1732 = vrot.lane.b32.xlu0 %v1370, 15
        %v1733 = vpop.permute.xlu0 %1732
        %1734 = vrot.lane.b32.xlu0 %v1373, 15
        %v1735 = vpop.permute.xlu0 %1734
        %1736 = vrot.lane.b32.xlu0 %v1375, 15
        %v1737 = vpop.permute.xlu0 %1736
        %1738 = vrot.lane.b32.xlu0 %v1378, 15
        %v1739 = vpop.permute.xlu0 %1738
        %1740 = vrot.lane.b32.xlu0 %v1380, 15
        %v1741 = vpop.permute.xlu0 %1740
        %1742 = vrot.lane.b32.xlu0 %v1383, 15
        %v1743 = vpop.permute.xlu0 %1742
        %1744 = vrot.lane.b32.xlu0 %v1385, 15
        %v1745 = vpop.permute.xlu0 %1744
        %1746 = vrot.lane.b32.xlu0 %v1388, 15
        %v1747 = vpop.permute.xlu0 %1746
        %1748 = vrot.lane.b32.xlu0 %v1390, 15
        %v1749 = vpop.permute.xlu0 %1748
        %1750 = vrot.lane.b32.xlu0 %v1393, 15
        %v1751 = vpop.permute.xlu0 %1750
        %1752 = vrot.lane.b32.xlu0 %v1395, 15
        %v1753 = vpop.permute.xlu0 %1752
        %1754 = vrot.lane.b32.xlu0 %v1398, 15
        %v1755 = vpop.permute.xlu0 %1754
        %1756 = vrot.lane.b32.xlu0 %v1400, 15
        %v1757 = vpop.permute.xlu0 %1756
        %1758 = vrot.lane.b32.xlu0 %v1695, 15
        %v1759 = vpop.permute.xlu0 %1758
        %1760 = vrot.lane.b32.xlu0 %v1697, 15
        %v1761 = vpop.permute.xlu0 %1760
        %1794 = vrot.lane.b32.xlu0 %v1090, 18
        %v1795 = vpop.permute.xlu0 %1794
        %1796 = vrot.lane.b32.xlu0 %v999, 18
        %v1797 = vpop.permute.xlu0 %1796
        %1798 = vrot.lane.b32.xlu0 %v1091, 18
        %v1799 = vpop.permute.xlu0 %1798
        %1800 = vrot.lane.b32.xlu0 %v1002, 18
        %v1801 = vpop.permute.xlu0 %1800
        %1802 = vrot.lane.b32.xlu0 %v1092, 18
        %v1803 = vpop.permute.xlu0 %1802
        %1804 = vrot.lane.b32.xlu0 %v1005, 18
        %v1805 = vpop.permute.xlu0 %1804
        %1806 = vrot.lane.b32.xlu0 %v1093, 18
        %v1807 = vpop.permute.xlu0 %1806
        %1808 = vrot.lane.b32.xlu0 %v1008, 18
        %v1809 = vpop.permute.xlu0 %1808
        %1810 = vrot.lane.b32.xlu0 %v1094, 18
        %v1811 = vpop.permute.xlu0 %1810
        %1812 = vrot.lane.b32.xlu0 %v1011, 18
        %v1813 = vpop.permute.xlu0 %1812
        %1814 = vrot.lane.b32.xlu0 %v1095, 18
        %v1815 = vpop.permute.xlu0 %1814
        %1816 = vrot.lane.b32.xlu0 %v1014, 18
        %v1817 = vpop.permute.xlu0 %1816
        %1818 = vrot.lane.b32.xlu0 %v1096, 18
        %v1819 = vpop.permute.xlu0 %1818
        %1820 = vrot.lane.b32.xlu0 %v1017, 18
        %v1821 = vpop.permute.xlu0 %1820
        %1822 = vrot.lane.b32.xlu0 %v1097, 18
        %v1823 = vpop.permute.xlu0 %1822
        %1824 = vrot.lane.b32.xlu0 %v1020, 18
        %v1825 = vpop.permute.xlu0 %1824
        %1826 = vrot.lane.b32.xlu0 %v1098, 18
        %v1827 = vpop.permute.xlu0 %1826
        %1828 = vrot.lane.b32.xlu0 %v1023, 18
        %v1829 = vpop.permute.xlu0 %1828
        %1830 = vrot.lane.b32.xlu0 %v1099, 18
        %v1831 = vpop.permute.xlu0 %1830
        %1832 = vrot.lane.b32.xlu0 %v1026, 18
        %v1833 = vpop.permute.xlu0 %1832
        %1834 = vrot.lane.b32.xlu0 %v1100, 18
        %v1835 = vpop.permute.xlu0 %1834
        %1836 = vrot.lane.b32.xlu0 %v1029, 18
        %v1837 = vpop.permute.xlu0 %1836
        %1838 = vrot.lane.b32.xlu0 %v1101, 18
        %v1839 = vpop.permute.xlu0 %1838
        %1840 = vrot.lane.b32.xlu0 %v1032, 18
        %v1841 = vpop.permute.xlu0 %1840
        %1842 = vrot.lane.b32.xlu0 %v1102, 18
        %v1843 = vpop.permute.xlu0 %1842
        %1844 = vrot.lane.b32.xlu0 %v1035, 18
        %v1845 = vpop.permute.xlu0 %1844
        %1846 = vrot.lane.b32.xlu0 %v1103, 18
        %v1847 = vpop.permute.xlu0 %1846
        %1848 = vrot.lane.b32.xlu0 %v1038, 18
        %v1849 = vpop.permute.xlu0 %1848
        %1850 = vrot.lane.b32.xlu0 %v1104, 18
        %v1851 = vpop.permute.xlu0 %1850
        %1852 = vrot.lane.b32.xlu0 %v1041, 18
        %v1853 = vpop.permute.xlu0 %1852
        %1854 = vrot.lane.b32.xlu0 0.0, 18
        %v1855 = vpop.permute.xlu0 %1854
        %1887 = vrot.lane.b32.xlu0 %v1162, 21
        %v1888 = vpop.permute.xlu0 %1887
        %1889 = vrot.lane.b32.xlu0 %v1164, 21
        %v1890 = vpop.permute.xlu0 %1889
        %1891 = vrot.lane.b32.xlu0 %v1167, 21
        %v1892 = vpop.permute.xlu0 %1891
        %1893 = vrot.lane.b32.xlu0 %v1169, 21
        %v1894 = vpop.permute.xlu0 %1893
        %1895 = vrot.lane.b32.xlu0 %v1172, 21
        %v1896 = vpop.permute.xlu0 %1895
        %1897 = vrot.lane.b32.xlu0 %v1174, 21
        %v1898 = vpop.permute.xlu0 %1897
        %1899 = vrot.lane.b32.xlu0 %v1177, 21
        %v1900 = vpop.permute.xlu0 %1899
        %1901 = vrot.lane.b32.xlu0 %v1179, 21
        %v1902 = vpop.permute.xlu0 %1901
        %1903 = vrot.lane.b32.xlu0 %v1182, 21
        %v1904 = vpop.permute.xlu0 %1903
        %1905 = vrot.lane.b32.xlu0 %v1184, 21
        %v1906 = vpop.permute.xlu0 %1905
        %1907 = vrot.lane.b32.xlu0 %v1187, 21
        %v1908 = vpop.permute.xlu0 %1907
        %1909 = vrot.lane.b32.xlu0 %v1189, 21
        %v1910 = vpop.permute.xlu0 %1909
        %1911 = vrot.lane.b32.xlu0 %v1192, 21
        %v1912 = vpop.permute.xlu0 %1911
        %1913 = vrot.lane.b32.xlu0 %v1194, 21
        %v1914 = vpop.permute.xlu0 %1913
        %1915 = vrot.lane.b32.xlu0 %v1197, 21
        %v1916 = vpop.permute.xlu0 %1915
        %1917 = vrot.lane.b32.xlu0 %v1199, 21
        %v1918 = vpop.permute.xlu0 %1917
        %1919 = vrot.lane.b32.xlu0 %v1202, 21
        %v1920 = vpop.permute.xlu0 %1919
        %1921 = vrot.lane.b32.xlu0 %v1204, 21
        %v1922 = vpop.permute.xlu0 %1921
        %1923 = vrot.lane.b32.xlu0 %v1207, 21
        %v1924 = vpop.permute.xlu0 %1923
        %1925 = vrot.lane.b32.xlu0 %v1209, 21
        %v1926 = vpop.permute.xlu0 %1925
        %1927 = vrot.lane.b32.xlu0 %v1212, 21
        %v1928 = vpop.permute.xlu0 %1927
        %1929 = vrot.lane.b32.xlu0 %v1214, 21
        %v1930 = vpop.permute.xlu0 %1929
        %1931 = vrot.lane.b32.xlu0 %v1217, 21
        %v1932 = vpop.permute.xlu0 %1931
        %1933 = vrot.lane.b32.xlu0 %v1219, 21
        %v1934 = vpop.permute.xlu0 %1933
        %1935 = vrot.lane.b32.xlu0 %v1222, 21
        %v1936 = vpop.permute.xlu0 %1935
        %1937 = vrot.lane.b32.xlu0 %v1224, 21
        %v1938 = vpop.permute.xlu0 %1937
        %1939 = vrot.lane.b32.xlu0 %v1227, 21
        %v1940 = vpop.permute.xlu0 %1939
        %1941 = vrot.lane.b32.xlu0 %v1229, 21
        %v1942 = vpop.permute.xlu0 %1941
        %1943 = vrot.lane.b32.xlu0 %v1594, 21
        %v1944 = vpop.permute.xlu0 %1943
        %1945 = vrot.lane.b32.xlu0 %v1596, 21
        %v1946 = vpop.permute.xlu0 %1945
        %1947 = vrot.lane.b32.xlu0 %v1154, 21
        %v1948 = vpop.permute.xlu0 %1947
        %1980 = vrot.lane.b32.xlu0 %v1333, 24
        %v1981 = vpop.permute.xlu0 %1980
        %1982 = vrot.lane.b32.xlu0 %v1335, 24
        %v1983 = vpop.permute.xlu0 %1982
        %1984 = vrot.lane.b32.xlu0 %v1338, 24
        %v1985 = vpop.permute.xlu0 %1984
        %1986 = vrot.lane.b32.xlu0 %v1340, 24
        %v1987 = vpop.permute.xlu0 %1986
        %1988 = vrot.lane.b32.xlu0 %v1343, 24
        %v1989 = vpop.permute.xlu0 %1988
        %1990 = vrot.lane.b32.xlu0 %v1345, 24
        %v1991 = vpop.permute.xlu0 %1990
        %1992 = vrot.lane.b32.xlu0 %v1348, 24
        %v1993 = vpop.permute.xlu0 %1992
        %1994 = vrot.lane.b32.xlu0 %v1350, 24
        %v1995 = vpop.permute.xlu0 %1994
        %1996 = vrot.lane.b32.xlu0 %v1353, 24
        %v1997 = vpop.permute.xlu0 %1996
        %1998 = vrot.lane.b32.xlu0 %v1355, 24
        %v1999 = vpop.permute.xlu0 %1998
        %2000 = vrot.lane.b32.xlu0 %v1358, 24
        %v2001 = vpop.permute.xlu0 %2000
        %2002 = vrot.lane.b32.xlu0 %v1360, 24
        %v2003 = vpop.permute.xlu0 %2002
        %2004 = vrot.lane.b32.xlu0 %v1363, 24
        %v2005 = vpop.permute.xlu0 %2004
        %2006 = vrot.lane.b32.xlu0 %v1365, 24
        %v2007 = vpop.permute.xlu0 %2006
        %2008 = vrot.lane.b32.xlu0 %v1368, 24
        %v2009 = vpop.permute.xlu0 %2008
        %2010 = vrot.lane.b32.xlu0 %v1370, 24
        %v2011 = vpop.permute.xlu0 %2010
        %2012 = vrot.lane.b32.xlu0 %v1373, 24
        %v2013 = vpop.permute.xlu0 %2012
        %2014 = vrot.lane.b32.xlu0 %v1375, 24
        %v2015 = vpop.permute.xlu0 %2014
        %2016 = vrot.lane.b32.xlu0 %v1378, 24
        %v2017 = vpop.permute.xlu0 %2016
        %2018 = vrot.lane.b32.xlu0 %v1380, 24
        %v2019 = vpop.permute.xlu0 %2018
        %2020 = vrot.lane.b32.xlu0 %v1383, 24
        %v2021 = vpop.permute.xlu0 %2020
        %2022 = vrot.lane.b32.xlu0 %v1385, 24
        %v2023 = vpop.permute.xlu0 %2022
        %2024 = vrot.lane.b32.xlu0 %v1388, 24
        %v2025 = vpop.permute.xlu0 %2024
        %2026 = vrot.lane.b32.xlu0 %v1390, 24
        %v2027 = vpop.permute.xlu0 %2026
        %2028 = vrot.lane.b32.xlu0 %v1393, 24
        %v2029 = vpop.permute.xlu0 %2028
        %2030 = vrot.lane.b32.xlu0 %v1395, 24
        %v2031 = vpop.permute.xlu0 %2030
        %2032 = vrot.lane.b32.xlu0 %v1398, 24
        %v2033 = vpop.permute.xlu0 %2032
        %2034 = vrot.lane.b32.xlu0 %v1400, 24
        %v2035 = vpop.permute.xlu0 %2034
        %2036 = vrot.lane.b32.xlu0 %v1695, 24
        %v2037 = vpop.permute.xlu0 %2036
        %2038 = vrot.lane.b32.xlu0 %v1697, 24
        %v2039 = vpop.permute.xlu0 %2038
        %2040 = vrot.lane.b32.xlu0 %v1325, 24
        %v2041 = vpop.permute.xlu0 %2040
        %vm2073 = vcmask 23552
        %v2074 = vsel %vm2073, 0.0, %v1231
        %v2075 = vsel %vm2073, %v1089, %v1233
        %v2076 = vsel %vm2073, %v996, %v1235
        %v2077 = vsel %vm2073, %v1090, %v1237
        %v2078 = vsel %vm2073, %v999, %v1239
        %v2079 = vsel %vm2073, %v1091, %v1241
        %v2080 = vsel %vm2073, %v1002, %v1243
        %v2081 = vsel %vm2073, %v1092, %v1245
        %v2082 = vsel %vm2073, %v1005, %v1247
        %v2083 = vsel %vm2073, %v1093, %v1249
        %v2084 = vsel %vm2073, %v1008, %v1251
        %v2085 = vsel %vm2073, %v1094, %v1253
        %v2086 = vsel %vm2073, %v1011, %v1255
        %v2087 = vsel %vm2073, %v1095, %v1257
        %v2088 = vsel %vm2073, %v1014, %v1259
        %v2089 = vsel %vm2073, %v1096, %v1261
        %v2090 = vsel %vm2073, %v1017, %v1263
        %v2091 = vsel %vm2073, %v1097, %v1265
        %v2092 = vsel %vm2073, %v1020, %v1267
        %v2093 = vsel %vm2073, %v1098, %v1269
        %v2094 = vsel %vm2073, %v1023, %v1271
        %v2095 = vsel %vm2073, %v1099, %v1273
        %v2096 = vsel %vm2073, %v1026, %v1275
        %v2097 = vsel %vm2073, %v1100, %v1277
        %v2098 = vsel %vm2073, %v1029, %v1279
        %v2099 = vsel %vm2073, %v1101, %v1281
        %v2100 = vsel %vm2073, %v1032, %v1283
        %v2101 = vsel %vm2073, %v1102, %v1285
        %v2102 = vsel %vm2073, %v1035, %v1287
        %v2103 = vsel %vm2073, %v1103, %v1289
        %v2104 = vsel %vm2073, %v1038, %v1291
        %vm2105 = vcmask 48128
        %v2106 = vsel %vm2105, %v2074, %v1402
        %v2107 = vsel %vm2105, %v2075, %v1404
        %v2108 = vsel %vm2105, %v2076, %v1406
        %v2109 = vsel %vm2105, %v2077, %v1408
        %v2110 = vsel %vm2105, %v2078, %v1410
        %v2111 = vsel %vm2105, %v2079, %v1412
        %v2112 = vsel %vm2105, %v2080, %v1414
        %v2113 = vsel %vm2105, %v2081, %v1416
        %v2114 = vsel %vm2105, %v2082, %v1418
        %v2115 = vsel %vm2105, %v2083, %v1420
        %v2116 = vsel %vm2105, %v2084, %v1422
        %v2117 = vsel %vm2105, %v2085, %v1424
        %v2118 = vsel %vm2105, %v2086, %v1426
        %v2119 = vsel %vm2105, %v2087, %v1428
        %v2120 = vsel %vm2105, %v2088, %v1430
        %v2121 = vsel %vm2105, %v2089, %v1432
        %v2122 = vsel %vm2105, %v2090, %v1434
        %v2123 = vsel %vm2105, %v2091, %v1436
        %v2124 = vsel %vm2105, %v2092, %v1438
        %v2125 = vsel %vm2105, %v2093, %v1440
        %v2126 = vsel %vm2105, %v2094, %v1442
        %v2127 = vsel %vm2105, %v2095, %v1444
        %v2128 = vsel %vm2105, %v2096, %v1446
        %v2129 = vsel %vm2105, %v2097, %v1448
        %v2130 = vsel %vm2105, %v2098, %v1450
        %v2131 = vsel %vm2105, %v2099, %v1452
        %v2132 = vsel %vm2105, %v2100, %v1454
        %v2133 = vsel %vm2105, %v2101, %v1456
        %v2134 = vsel %vm2105, %v2102, %v1458
        %v2135 = vsel %vm2105, %v2103, %v1460
        %v2136 = vsel %vm2105, %v2104, %v1462
        %vm2137 = vcmask 72704
        %v2138 = vsel %vm2137, %v2106, %v1496
        %v2139 = vsel %vm2137, %v2106, %v1498
        %v2140 = vsel %vm2137, %v2107, %v1500
        %v2141 = vsel %vm2137, %v2108, %v1502
        %v2142 = vsel %vm2137, %v2109, %v1504
        %v2143 = vsel %vm2137, %v2110, %v1506
        %v2144 = vsel %vm2137, %v2111, %v1508
        %v2145 = vsel %vm2137, %v2112, %v1510
        %v2146 = vsel %vm2137, %v2113, %v1512
        %v2147 = vsel %vm2137, %v2114, %v1514
        %v2148 = vsel %vm2137, %v2115, %v1516
        %v2149 = vsel %vm2137, %v2116, %v1518
        %v2150 = vsel %vm2137, %v2117, %v1520
        %v2151 = vsel %vm2137, %v2118, %v1522
        %v2152 = vsel %vm2137, %v2119, %v1524
        %v2153 = vsel %vm2137, %v2120, %v1526
        %v2154 = vsel %vm2137, %v2121, %v1528
        %v2155 = vsel %vm2137, %v2122, %v1530
        %v2156 = vsel %vm2137, %v2123, %v1532
        %v2157 = vsel %vm2137, %v2124, %v1534
        %v2158 = vsel %vm2137, %v2125, %v1536
        %v2159 = vsel %vm2137, %v2126, %v1538
        %v2160 = vsel %vm2137, %v2127, %v1540
        %v2161 = vsel %vm2137, %v2128, %v1542
        %v2162 = vsel %vm2137, %v2129, %v1544
        %v2163 = vsel %vm2137, %v2130, %v1546
        %v2164 = vsel %vm2137, %v2131, %v1548
        %v2165 = vsel %vm2137, %v2132, %v1550
        %v2166 = vsel %vm2137, %v2133, %v1552
        %v2167 = vsel %vm2137, %v2134, %v1554
        %v2168 = vsel %vm2137, %v2135, %v1556
        %v2169 = vsel %vm2137, %v2136, %v1558
        %vm2170 = vcmask 97280
        %v2171 = vsel %vm2170, %v2138, %v1598
        %v2172 = vsel %vm2170, %v2139, %v1600
        %v2173 = vsel %vm2170, %v2140, %v1602
        %v2174 = vsel %vm2170, %v2141, %v1604
        %v2175 = vsel %vm2170, %v2142, %v1606
        %v2176 = vsel %vm2170, %v2143, %v1608
        %v2177 = vsel %vm2170, %v2144, %v1610
        %v2178 = vsel %vm2170, %v2145, %v1612
        %v2179 = vsel %vm2170, %v2146, %v1614
        %v2180 = vsel %vm2170, %v2147, %v1616
        %v2181 = vsel %vm2170, %v2148, %v1618
        %v2182 = vsel %vm2170, %v2149, %v1620
        %v2183 = vsel %vm2170, %v2150, %v1622
        %v2184 = vsel %vm2170, %v2151, %v1624
        %v2185 = vsel %vm2170, %v2152, %v1626
        %v2186 = vsel %vm2170, %v2153, %v1628
        %v2187 = vsel %vm2170, %v2154, %v1630
        %v2188 = vsel %vm2170, %v2155, %v1632
        %v2189 = vsel %vm2170, %v2156, %v1634
        %v2190 = vsel %vm2170, %v2157, %v1636
        %v2191 = vsel %vm2170, %v2158, %v1638
        %v2192 = vsel %vm2170, %v2159, %v1640
        %v2193 = vsel %vm2170, %v2160, %v1642
        %v2194 = vsel %vm2170, %v2161, %v1644
        %v2195 = vsel %vm2170, %v2162, %v1646
        %v2196 = vsel %vm2170, %v2163, %v1648
        %v2197 = vsel %vm2170, %v2164, %v1650
        %v2198 = vsel %vm2170, %v2165, %v1652
        %v2199 = vsel %vm2170, %v2166, %v1654
        %v2200 = vsel %vm2170, %v2167, %v1656
        %v2201 = vsel %vm2170, %v2168, %v1658
        %v2202 = vsel %vm2170, %v2169, %v1660
        %vm2203 = vcmask 121856
        %v2204 = vsel %vm2203, %v2171, %v1699
        %v2205 = vsel %vm2203, %v2172, %v1701
        %v2206 = vsel %vm2203, %v2173, %v1703
        %v2207 = vsel %vm2203, %v2174, %v1705
        %v2208 = vsel %vm2203, %v2175, %v1707
        %v2209 = vsel %vm2203, %v2176, %v1709
        %v2210 = vsel %vm2203, %v2177, %v1711
        %v2211 = vsel %vm2203, %v2178, %v1713
        %v2212 = vsel %vm2203, %v2179, %v1715
        %v2213 = vsel %vm2203, %v2180, %v1717
        %v2214 = vsel %vm2203, %v2181, %v1719
        %v2215 = vsel %vm2203, %v2182, %v1721
        %v2216 = vsel %vm2203, %v2183, %v1723
        %v2217 = vsel %vm2203, %v2184, %v1725
        %v2218 = vsel %vm2203, %v2185, %v1727
        %v2219 = vsel %vm2203, %v2186, %v1729
        %v2220 = vsel %vm2203, %v2187, %v1731
        %v2221 = vsel %vm2203, %v2188, %v1733
        %v2222 = vsel %vm2203, %v2189, %v1735
        %v2223 = vsel %vm2203, %v2190, %v1737
        %v2224 = vsel %vm2203, %v2191, %v1739
        %v2225 = vsel %vm2203, %v2192, %v1741
        %v2226 = vsel %vm2203, %v2193, %v1743
        %v2227 = vsel %vm2203, %v2194, %v1745
        %v2228 = vsel %vm2203, %v2195, %v1747
        %v2229 = vsel %vm2203, %v2196, %v1749
        %v2230 = vsel %vm2203, %v2197, %v1751
        %v2231 = vsel %vm2203, %v2198, %v1753
        %v2232 = vsel %vm2203, %v2199, %v1755
        %v2233 = vsel %vm2203, %v2200, %v1757
        %v2234 = vsel %vm2203, %v2201, %v1759
        %v2235 = vsel %vm2203, %v2202, %v1761
        %vm2236 = vcmask 146432
        %v2237 = vsel %vm2236, %v2204, %v1795
        %v2238 = vsel %vm2236, %v2205, %v1797
        %v2239 = vsel %vm2236, %v2206, %v1799
        %v2240 = vsel %vm2236, %v2207, %v1801
        %v2241 = vsel %vm2236, %v2208, %v1803
        %v2242 = vsel %vm2236, %v2209, %v1805
        %v2243 = vsel %vm2236, %v2210, %v1807
        %v2244 = vsel %vm2236, %v2211, %v1809
        %v2245 = vsel %vm2236, %v2212, %v1811
        %v2246 = vsel %vm2236, %v2213, %v1813
        %v2247 = vsel %vm2236, %v2214, %v1815
        %v2248 = vsel %vm2236, %v2215, %v1817
        %v2249 = vsel %vm2236, %v2216, %v1819
        %v2250 = vsel %vm2236, %v2217, %v1821
        %v2251 = vsel %vm2236, %v2218, %v1823
        %v2252 = vsel %vm2236, %v2219, %v1825
        %v2253 = vsel %vm2236, %v2220, %v1827
        %v2254 = vsel %vm2236, %v2221, %v1829
        %v2255 = vsel %vm2236, %v2222, %v1831
        %v2256 = vsel %vm2236, %v2223, %v1833
        %v2257 = vsel %vm2236, %v2224, %v1835
        %v2258 = vsel %vm2236, %v2225, %v1837
        %v2259 = vsel %vm2236, %v2226, %v1839
        %v2260 = vsel %vm2236, %v2227, %v1841
        %v2261 = vsel %vm2236, %v2228, %v1843
        %v2262 = vsel %vm2236, %v2229, %v1845
        %v2263 = vsel %vm2236, %v2230, %v1847
        %v2264 = vsel %vm2236, %v2231, %v1849
        %v2265 = vsel %vm2236, %v2232, %v1851
        %v2266 = vsel %vm2236, %v2233, %v1853
        %v2267 = vsel %vm2236, %v2234, %v1855
        %v2268 = vsel %vm2236, %v2235, %v1855
        %vm2269 = vcmask 171008
        %v2270 = vsel %vm2269, %v2237, %v1888
        %v2271 = vsel %vm2269, %v2238, %v1890
        %v2272 = vsel %vm2269, %v2239, %v1892
        %v2273 = vsel %vm2269, %v2240, %v1894
        %v2274 = vsel %vm2269, %v2241, %v1896
        %v2275 = vsel %vm2269, %v2242, %v1898
        %v2276 = vsel %vm2269, %v2243, %v1900
        %v2277 = vsel %vm2269, %v2244, %v1902
        %v2278 = vsel %vm2269, %v2245, %v1904
        %v2279 = vsel %vm2269, %v2246, %v1906
        %v2280 = vsel %vm2269, %v2247, %v1908
        %v2281 = vsel %vm2269, %v2248, %v1910
        %v2282 = vsel %vm2269, %v2249, %v1912
        %v2283 = vsel %vm2269, %v2250, %v1914
        %v2284 = vsel %vm2269, %v2251, %v1916
        %v2285 = vsel %vm2269, %v2252, %v1918
        %v2286 = vsel %vm2269, %v2253, %v1920
        %v2287 = vsel %vm2269, %v2254, %v1922
        %v2288 = vsel %vm2269, %v2255, %v1924
        %v2289 = vsel %vm2269, %v2256, %v1926
        %v2290 = vsel %vm2269, %v2257, %v1928
        %v2291 = vsel %vm2269, %v2258, %v1930
        %v2292 = vsel %vm2269, %v2259, %v1932
        %v2293 = vsel %vm2269, %v2260, %v1934
        %v2294 = vsel %vm2269, %v2261, %v1936
        %v2295 = vsel %vm2269, %v2262, %v1938
        %v2296 = vsel %vm2269, %v2263, %v1940
        %v2297 = vsel %vm2269, %v2264, %v1942
        %v2298 = vsel %vm2269, %v2265, %v1944
        %v2299 = vsel %vm2269, %v2266, %v1946
        %v2300 = vsel %vm2269, %v2267, %v1948
        %v2301 = vsel %vm2269, %v2268, %v1948
        %vm2302 = vcmask 195584
        %v2303 = vsel %vm2302, %v2270, %v1981
        %v2304 = vsel %vm2302, %v2271, %v1983
        %v2305 = vsel %vm2302, %v2272, %v1985
        %v2306 = vsel %vm2302, %v2273, %v1987
        %v2307 = vsel %vm2302, %v2274, %v1989
        %v2308 = vsel %vm2302, %v2275, %v1991
        %v2309 = vsel %vm2302, %v2276, %v1993
        %v2310 = vsel %vm2302, %v2277, %v1995
        %v2311 = vsel %vm2302, %v2278, %v1997
        %v2312 = vsel %vm2302, %v2279, %v1999
        %v2313 = vsel %vm2302, %v2280, %v2001
        %v2314 = vsel %vm2302, %v2281, %v2003
        %v2315 = vsel %vm2302, %v2282, %v2005
        %v2316 = vsel %vm2302, %v2283, %v2007
        %v2317 = vsel %vm2302, %v2284, %v2009
        %v2318 = vsel %vm2302, %v2285, %v2011
        %v2319 = vsel %vm2302, %v2286, %v2013
        %v2320 = vsel %vm2302, %v2287, %v2015
        %v2321 = vsel %vm2302, %v2288, %v2017
        %v2322 = vsel %vm2302, %v2289, %v2019
        %v2323 = vsel %vm2302, %v2290, %v2021
        %v2324 = vsel %vm2302, %v2291, %v2023
        %v2325 = vsel %vm2302, %v2292, %v2025
        %v2326 = vsel %vm2302, %v2293, %v2027
        %v2327 = vsel %vm2302, %v2294, %v2029
        %v2328 = vsel %vm2302, %v2295, %v2031
        %v2329 = vsel %vm2302, %v2296, %v2033
        %v2330 = vsel %vm2302, %v2297, %v2035
        %v2331 = vsel %vm2302, %v2298, %v2037
        %v2332 = vsel %vm2302, %v2299, %v2039
        %v2333 = vsel %vm2302, %v2300, %v2041
        %v2334 = vsel %vm2302, %v2301, %v2041
        %v2335 = vpack.c.bf16 %v2304, %v2303
        %v2336 = vpack.c.bf16 %v2306, %v2305
        %v2337 = vpack.c.bf16 %v2308, %v2307
        %v2338 = vpack.c.bf16 %v2310, %v2309
        %v2339 = vpack.c.bf16 %v2312, %v2311
        %v2340 = vpack.c.bf16 %v2314, %v2313
        %v2341 = vpack.c.bf16 %v2316, %v2315
        %v2342 = vpack.c.bf16 %v2318, %v2317
        %v2343 = vpack.c.bf16 %v2320, %v2319
        %v2344 = vpack.c.bf16 %v2322, %v2321
        %v2345 = vpack.c.bf16 %v2324, %v2323
        %v2346 = vpack.c.bf16 %v2326, %v2325
        %v2347 = vpack.c.bf16 %v2328, %v2327
        %v2348 = vpack.c.bf16 %v2330, %v2329
        %v2349 = vpack.c.bf16 %v2332, %v2331
        %v2350 = vpack.c.bf16 %v2334, %v2333
        %v2351 = vld [vmem:[%s3] sm:$0xf]
        %v2352 = vld [vmem:[%s3 + $0x4] sm:$0xf]
        %v2353 = vld [vmem:[%s3 + $0x8] sm:$0xf]
        %v2354 = vld [vmem:[%s3 + $0xc] sm:$0x3]
        %v2359 = vunpack.c.l.b16 %v2351
        %v2360 = vunpack.c.l.b16 %v2352
        %v2361 = vunpack.c.l.b16 %v2353
        %v2362 = vunpack.c.l.b16 %v2354
        %v2363 = vpack.c.b16 %v2360, %v2359
        %v2364 = vpack.c.b16 %v2362, %v2361
        %vm2366 = vcmask 220160
        %v2368 = vsel %vm2366, %v2335, 0
        %v2371 = vsel %vm2366, %v2336, 0
        %v2374 = vsel %vm2366, %v2337, 0
        %v2377 = vsel %vm2366, %v2338, 0
        %v2380 = vsel %vm2366, %v2339, 0
        %v2383 = vsel %vm2366, %v2340, 0
        %v2386 = vsel %vm2366, %v2341, 0
        %v2389 = vsel %vm2366, %v2342, 0
        %v2392 = vsel %vm2366, %v2343, 0
        %v2395 = vsel %vm2366, %v2344, 0
        %v2398 = vsel %vm2366, %v2345, 0
        %v2401 = vsel %vm2366, %v2346, 0
        %v2404 = vsel %vm2366, %v2347, 0
        %v2407 = vsel %vm2366, %v2348, 0
        %v2410 = vsel %vm2366, %v2349, 0
        %v2413 = vsel %vm2366, %v2350, 0
        %vm2415 = vcmask 1044480
        %v2416 = vsel %vm2415, 4294967295, 65535
        %v2417 = vsel %vm1323, %v2416, 0
        %v2419 = vand.u32 %v2364, %v2417
        %2421 = vmatprep.subr.bf16.mxu0 0
        %2422 = vmatpush1.bf16.msra.mxu0 %v2363
        %2423 = vmatprep.subr.bf16.mxu0 0
        %2424 = vmatpush1.bf16.msra.mxu0 %v2419
        %2425 = vmatprep.subr.bf16.mxu0 0
        %2426 = vmatpush1.bf16.msra.mxu0 0
        %2427 = vmatprep.subr.bf16.mxu0 0
        %2428 = vmatpush1.bf16.msra.mxu0 0
        %2429 = vmatprep.subr.bf16.mxu0 0
        %2430 = vmatpush1.bf16.msra.mxu0 0
        %2431 = vmatprep.subr.bf16.mxu0 0
        %2432 = vmatpush1.bf16.msra.mxu0 0
        %2433 = vmatprep.subr.bf16.mxu0 0
        %2434 = vmatpush1.bf16.msra.mxu0 0
        %2435 = vmatprep.subr.bf16.mxu0 0
        %2436 = vmatpush1.bf16.msra.mxu0 0
        %2437 = vmatprep.subr.bf16.mxu0 0
        %2438 = vmatpush1.bf16.msra.mxu0 0
        %2439 = vmatprep.subr.bf16.mxu0 0
        %2440 = vmatpush1.bf16.msra.mxu0 0
        %2441 = vmatprep.subr.bf16.mxu0 0
        %2442 = vmatpush1.bf16.msra.mxu0 0
        %2443 = vmatprep.subr.bf16.mxu0 0
        %2444 = vmatpush1.bf16.msra.mxu0 0
        %2445 = vmatprep.subr.bf16.mxu0 0
        %2446 = vmatpush1.bf16.msra.mxu0 0
        %2447 = vmatprep.subr.bf16.mxu0 0
        %2448 = vmatpush1.bf16.msra.mxu0 0
        %2449 = vmatprep.subr.bf16.mxu0 0
        %2450 = vmatpush1.bf16.msra.mxu0 0
        %2451 = vmatprep.subr.bf16.mxu0 0
        %2452 = vmatpush1.bf16.msra.mxu0 0
        %2453 = vmatprep.mubr.bf16.mxu0 0
        %2454 = vmatmul.mubr.bf16.gmra.mrb[0].mxu0 %v2368
        %v2455 = vpop.f32.mrb[0].mxu0
        %v2456 = vadd.f32 0.0, %v2455
        %v2457 = vpop.f32.mrb[0].mxu0
        %v2458 = vpop.f32.mrb[0].mxu0
        %v2459 = vadd.f32 0.0, %v2458
        %v2460 = vpop.f32.mrb[0].mxu0
        %2461 = vmatprep.mubr.bf16.mxu0 0
        %2462 = vmatmul.mubr.bf16.gmra.mrb[0].mxu0 %v2371
        %v2463 = vpop.f32.mrb[0].mxu0
        %v2464 = vadd.f32 0.0, %v2463
        %v2465 = vpop.f32.mrb[0].mxu0
        %v2466 = vpop.f32.mrb[0].mxu0
        %v2467 = vadd.f32 0.0, %v2466
        %v2468 = vpop.f32.mrb[0].mxu0
        %2469 = vmatprep.mubr.bf16.mxu0 0
        %2470 = vmatmul.mubr.bf16.gmra.mrb[0].mxu0 %v2374
        %v2471 = vpop.f32.mrb[0].mxu0
        %v2472 = vadd.f32 0.0, %v2471
        %v2473 = vpop.f32.mrb[0].mxu0
        %v2474 = vpop.f32.mrb[0].mxu0
        %v2475 = vadd.f32 0.0, %v2474
        %v2476 = vpop.f32.mrb[0].mxu0
        %2477 = vmatprep.mubr.bf16.mxu0 0
        %2478 = vmatmul.mubr.bf16.gmra.mrb[0].mxu0 %v2377
        %v2479 = vpop.f32.mrb[0].mxu0
        %v2480 = vadd.f32 0.0, %v2479
        %v2481 = vpop.f32.mrb[0].mxu0
        %v2482 = vpop.f32.mrb[0].mxu0
        %v2483 = vadd.f32 0.0, %v2482
        %v2484 = vpop.f32.mrb[0].mxu0
        %2485 = vmatprep.mubr.bf16.mxu0 0
        %2486 = vmatmul.mubr.bf16.gmra.mrb[0].mxu0 %v2380
        %v2487 = vpop.f32.mrb[0].mxu0
        %v2488 = vadd.f32 0.0, %v2487
        %v2489 = vpop.f32.mrb[0].mxu0
        %v2490 = vpop.f32.mrb[0].mxu0
        %v2491 = vadd.f32 0.0, %v2490
        %v2492 = vpop.f32.mrb[0].mxu0
        %2493 = vmatprep.mubr.bf16.mxu0 0
        %2494 = vmatmul.mubr.bf16.gmra.mrb[0].mxu0 %v2383
        %v2495 = vpop.f32.mrb[0].mxu0
        %v2496 = vadd.f32 0.0, %v2495
        %v2497 = vpop.f32.mrb[0].mxu0
        %v2498 = vpop.f32.mrb[0].mxu0
        %v2499 = vadd.f32 0.0, %v2498
        %v2500 = vpop.f32.mrb[0].mxu0
        %2501 = vmatprep.mubr.bf16.mxu0 0
        %2502 = vmatmul.mubr.bf16.gmra.mrb[0].mxu0 %v2386
        %v2503 = vpop.f32.mrb[0].mxu0
        %v2504 = vadd.f32 0.0, %v2503
        %v2505 = vpop.f32.mrb[0].mxu0
        %v2506 = vpop.f32.mrb[0].mxu0
        %v2507 = vadd.f32 0.0, %v2506
        %v2508 = vpop.f32.mrb[0].mxu0
        %2509 = vmatprep.mubr.bf16.mxu0 0
        %2510 = vmatmul.mubr.bf16.gmra.mrb[0].mxu0 %v2389
        %v2511 = vpop.f32.mrb[0].mxu0
        %v2512 = vadd.f32 0.0, %v2511
        %v2513 = vpop.f32.mrb[0].mxu0
        %v2514 = vpop.f32.mrb[0].mxu0
        %v2515 = vadd.f32 0.0, %v2514
        %v2516 = vpop.f32.mrb[0].mxu0
        %2517 = vmatprep.mubr.bf16.mxu0 0
        %2518 = vmatmul.mubr.bf16.gmra.mrb[0].mxu0 %v2392
        %v2519 = vpop.f32.mrb[0].mxu0
        %v2520 = vadd.f32 0.0, %v2519
        %v2521 = vpop.f32.mrb[0].mxu0
        %v2522 = vpop.f32.mrb[0].mxu0
        %v2523 = vadd.f32 0.0, %v2522
        %v2524 = vpop.f32.mrb[0].mxu0
        %2525 = vmatprep.mubr.bf16.mxu0 0
        %2526 = vmatmul.mubr.bf16.gmra.mrb[0].mxu0 %v2395
        %v2527 = vpop.f32.mrb[0].mxu0
        %v2528 = vadd.f32 0.0, %v2527
        %v2529 = vpop.f32.mrb[0].mxu0
        %v2530 = vpop.f32.mrb[0].mxu0
        %v2531 = vadd.f32 0.0, %v2530
        %v2532 = vpop.f32.mrb[0].mxu0
        %2533 = vmatprep.mubr.bf16.mxu0 0
        %2534 = vmatmul.mubr.bf16.gmra.mrb[0].mxu0 %v2398
        %v2535 = vpop.f32.mrb[0].mxu0
        %v2536 = vadd.f32 0.0, %v2535
        %v2537 = vpop.f32.mrb[0].mxu0
        %v2538 = vpop.f32.mrb[0].mxu0
        %v2539 = vadd.f32 0.0, %v2538
        %v2540 = vpop.f32.mrb[0].mxu0
        %2541 = vmatprep.mubr.bf16.mxu0 0
        %2542 = vmatmul.mubr.bf16.gmra.mrb[0].mxu0 %v2401
        %v2543 = vpop.f32.mrb[0].mxu0
        %v2544 = vadd.f32 0.0, %v2543
        %v2545 = vpop.f32.mrb[0].mxu0
        %v2546 = vpop.f32.mrb[0].mxu0
        %v2547 = vadd.f32 0.0, %v2546
        %v2548 = vpop.f32.mrb[0].mxu0
        %2549 = vmatprep.mubr.bf16.mxu0 0
        %2550 = vmatmul.mubr.bf16.gmra.mrb[0].mxu0 %v2404
        %v2551 = vpop.f32.mrb[0].mxu0
        %v2552 = vadd.f32 0.0, %v2551
        %v2553 = vpop.f32.mrb[0].mxu0
        %v2554 = vpop.f32.mrb[0].mxu0
        %v2555 = vadd.f32 0.0, %v2554
        %v2556 = vpop.f32.mrb[0].mxu0
        %2557 = vmatprep.mubr.bf16.mxu0 0
        %2558 = vmatmul.mubr.bf16.gmra.mrb[0].mxu0 %v2407
        %v2559 = vpop.f32.mrb[0].mxu0
        %v2560 = vadd.f32 0.0, %v2559
        %v2561 = vpop.f32.mrb[0].mxu0
        %v2562 = vpop.f32.mrb[0].mxu0
        %v2563 = vadd.f32 0.0, %v2562
        %v2564 = vpop.f32.mrb[0].mxu0
        %2565 = vmatprep.mubr.bf16.mxu0 0
        %2566 = vmatmul.mubr.bf16.gmra.mrb[0].mxu0 %v2410
        %v2567 = vpop.f32.mrb[0].mxu0
        %v2568 = vadd.f32 0.0, %v2567
        %v2569 = vpop.f32.mrb[0].mxu0
        %v2570 = vpop.f32.mrb[0].mxu0
        %v2571 = vadd.f32 0.0, %v2570
        %v2572 = vpop.f32.mrb[0].mxu0
        %2573 = vmatprep.mubr.bf16.mxu0 0
        %2574 = vmatmul.mubr.bf16.gmra.mrb[0].mxu0 %v2413
        %v2575 = vpop.f32.mrb[0].mxu0
        %v2576 = vadd.f32 0.0, %v2575
        %v2577 = vpop.f32.mrb[0].mxu0
        %v2578 = vpop.f32.mrb[0].mxu0
        %v2579 = vadd.f32 0.0, %v2578
        %v2580 = vpop.f32.mrb[0].mxu0
        %2581 = vdwg.mxu0
        %v2582 = vld [vmem:[%s5] sm:$0x1]
        %v2584 = vlaneseq
        %v2585 = vshrl.u32 %v2584, 7
        %v2586 = vsub.s32 0, %v2585
        %v2587 = vrot.slane %v2582, %v2586
        %v2589 = vmul.f32 %v2456, %v2587
        %v2590 = vmul.f32 %v2459, %v2587
        %v2591 = vmul.f32 %v2464, %v2587
        %v2592 = vmul.f32 %v2467, %v2587
        %v2593 = vmul.f32 %v2472, %v2587
        %v2594 = vmul.f32 %v2475, %v2587
        %v2595 = vmul.f32 %v2480, %v2587
        %v2596 = vmul.f32 %v2483, %v2587
        %v2597 = vmul.f32 %v2488, %v2587
        %v2598 = vmul.f32 %v2491, %v2587
        %v2599 = vmul.f32 %v2496, %v2587
        %v2600 = vmul.f32 %v2499, %v2587
        %v2601 = vmul.f32 %v2504, %v2587
        %v2602 = vmul.f32 %v2507, %v2587
        %v2603 = vmul.f32 %v2512, %v2587
        %v2604 = vmul.f32 %v2515, %v2587
        %v2605 = vmul.f32 %v2520, %v2587
        %v2606 = vmul.f32 %v2523, %v2587
        %v2607 = vmul.f32 %v2528, %v2587
        %v2608 = vmul.f32 %v2531, %v2587
        %v2609 = vmul.f32 %v2536, %v2587
        %v2610 = vmul.f32 %v2539, %v2587
        %v2611 = vmul.f32 %v2544, %v2587
        %v2612 = vmul.f32 %v2547, %v2587
        %v2613 = vmul.f32 %v2552, %v2587
        %v2614 = vmul.f32 %v2555, %v2587
        %v2615 = vmul.f32 %v2560, %v2587
        %v2616 = vmul.f32 %v2563, %v2587
        %v2617 = vmul.f32 %v2568, %v2587
        %v2618 = vmul.f32 %v2571, %v2587
        %v2619 = vmul.f32 %v2576, %v2587
        %v2620 = vmul.f32 %v2579, %v2587
        %v2621 = vld [vmem:[%s7] sm:$0x1]
        %v2623 = vlaneseq
        %v2624 = vshrl.u32 %v2623, 7
        %v2625 = vsub.s32 0, %v2624
        %v2626 = vrot.slane %v2621, %v2625
        %v2628 = vadd.f32 %v2589, %v2626
        %v2629 = vadd.f32 %v2590, %v2626
        %v2630 = vadd.f32 %v2591, %v2626
        %v2631 = vadd.f32 %v2592, %v2626
        %v2632 = vadd.f32 %v2593, %v2626
        %v2633 = vadd.f32 %v2594, %v2626
        %v2634 = vadd.f32 %v2595, %v2626
        %v2635 = vadd.f32 %v2596, %v2626
        %v2636 = vadd.f32 %v2597, %v2626
        %v2637 = vadd.f32 %v2598, %v2626
        %v2638 = vadd.f32 %v2599, %v2626
        %v2639 = vadd.f32 %v2600, %v2626
        %v2640 = vadd.f32 %v2601, %v2626
        %v2641 = vadd.f32 %v2602, %v2626
        %v2642 = vadd.f32 %v2603, %v2626
        %v2643 = vadd.f32 %v2604, %v2626
        %v2644 = vadd.f32 %v2605, %v2626
        %v2645 = vadd.f32 %v2606, %v2626
        %v2646 = vadd.f32 %v2607, %v2626
        %v2647 = vadd.f32 %v2608, %v2626
        %v2648 = vadd.f32 %v2609, %v2626
        %v2649 = vadd.f32 %v2610, %v2626
        %v2650 = vadd.f32 %v2611, %v2626
        %v2651 = vadd.f32 %v2612, %v2626
        %v2652 = vadd.f32 %v2613, %v2626
        %v2653 = vadd.f32 %v2614, %v2626
        %v2654 = vadd.f32 %v2615, %v2626
        %v2655 = vadd.f32 %v2616, %v2626
        %v2656 = vadd.f32 %v2617, %v2626
        %v2657 = vadd.f32 %v2618, %v2626
        %v2658 = vadd.f32 %v2619, %v2626
        %v2659 = vadd.f32 %v2620, %v2626
        %v2660 = vmax.f32 %v2628, 0.0
        %v2661 = vmax.f32 %v2629, 0.0
        %v2662 = vmax.f32 %v2630, 0.0
        %v2663 = vmax.f32 %v2631, 0.0
        %v2664 = vmax.f32 %v2632, 0.0
        %v2665 = vmax.f32 %v2633, 0.0
        %v2666 = vmax.f32 %v2634, 0.0
        %v2667 = vmax.f32 %v2635, 0.0
        %v2668 = vmax.f32 %v2636, 0.0
        %v2669 = vmax.f32 %v2637, 0.0
        %v2670 = vmax.f32 %v2638, 0.0
        %v2671 = vmax.f32 %v2639, 0.0
        %v2672 = vmax.f32 %v2640, 0.0
        %v2673 = vmax.f32 %v2641, 0.0
        %v2674 = vmax.f32 %v2642, 0.0
        %v2675 = vmax.f32 %v2643, 0.0
        %v2676 = vmax.f32 %v2644, 0.0
        %v2677 = vmax.f32 %v2645, 0.0
        %v2678 = vmax.f32 %v2646, 0.0
        %v2679 = vmax.f32 %v2647, 0.0
        %v2680 = vmax.f32 %v2648, 0.0
        %v2681 = vmax.f32 %v2649, 0.0
        %v2682 = vmax.f32 %v2650, 0.0
        %v2683 = vmax.f32 %v2651, 0.0
        %v2684 = vmax.f32 %v2652, 0.0
        %v2685 = vmax.f32 %v2653, 0.0
        %v2686 = vmax.f32 %v2654, 0.0
        %v2687 = vmax.f32 %v2655, 0.0
        %v2688 = vmax.f32 %v2656, 0.0
        %v2689 = vmax.f32 %v2657, 0.0
        %v2690 = vmax.f32 %v2658, 0.0
        %v2691 = vmax.f32 %v2659, 0.0
        %v2724 = vrot.slane %v2660, 7
        %v2725 = vrot.slane %v2661, 7
        %v2726 = vsel %vm993, %v2724, %v2725
        %v2727 = vrot.slane %v2662, 7
        %v2728 = vrot.slane %v2663, 7
        %v2729 = vsel %vm993, %v2727, %v2728
        %v2730 = vrot.slane %v2664, 7
        %v2731 = vrot.slane %v2665, 7
        %v2732 = vsel %vm993, %v2730, %v2731
        %v2733 = vrot.slane %v2666, 7
        %v2734 = vrot.slane %v2667, 7
        %v2735 = vsel %vm993, %v2733, %v2734
        %v2736 = vrot.slane %v2668, 7
        %v2737 = vrot.slane %v2669, 7
        %v2738 = vsel %vm993, %v2736, %v2737
        %v2739 = vrot.slane %v2670, 7
        %v2740 = vrot.slane %v2671, 7
        %v2741 = vsel %vm993, %v2739, %v2740
        %v2742 = vrot.slane %v2672, 7
        %v2743 = vrot.slane %v2673, 7
        %v2744 = vsel %vm993, %v2742, %v2743
        %v2745 = vrot.slane %v2674, 7
        %v2746 = vrot.slane %v2675, 7
        %v2747 = vsel %vm993, %v2745, %v2746
        %v2748 = vrot.slane %v2676, 7
        %v2749 = vrot.slane %v2677, 7
        %v2750 = vsel %vm993, %v2748, %v2749
        %v2751 = vrot.slane %v2678, 7
        %v2752 = vrot.slane %v2679, 7
        %v2753 = vsel %vm993, %v2751, %v2752
        %v2754 = vrot.slane %v2680, 7
        %v2755 = vrot.slane %v2681, 7
        %v2756 = vsel %vm993, %v2754, %v2755
        %v2757 = vrot.slane %v2682, 7
        %v2758 = vrot.slane %v2683, 7
        %v2759 = vsel %vm993, %v2757, %v2758
        %v2760 = vrot.slane %v2684, 7
        %v2761 = vrot.slane %v2685, 7
        %v2762 = vsel %vm993, %v2760, %v2761
        %v2763 = vrot.slane %v2686, 7
        %v2764 = vrot.slane %v2687, 7
        %v2765 = vsel %vm993, %v2763, %v2764
        %v2766 = vrot.slane %v2688, 7
        %v2767 = vrot.slane %v2689, 7
        %v2768 = vsel %vm993, %v2766, %v2767
        %v2769 = vrot.slane %v2690, 7
        %v2770 = vrot.slane %v2691, 7
        %v2771 = vsel %vm993, %v2769, %v2770
        %v2819 = vsel %vm993, 0.0, %v2724
        %v2820 = vsel %vm993, 0.0, %v2727
        %v2821 = vsel %vm993, 0.0, %v2730
        %v2822 = vsel %vm993, 0.0, %v2733
        %v2823 = vsel %vm993, 0.0, %v2736
        %v2824 = vsel %vm993, 0.0, %v2739
        %v2825 = vsel %vm993, 0.0, %v2742
        %v2826 = vsel %vm993, 0.0, %v2745
        %v2827 = vsel %vm993, 0.0, %v2748
        %v2828 = vsel %vm993, 0.0, %v2751
        %v2829 = vsel %vm993, 0.0, %v2754
        %v2830 = vsel %vm993, 0.0, %v2757
        %v2831 = vsel %vm993, 0.0, %v2760
        %v2832 = vsel %vm993, 0.0, %v2763
        %v2833 = vsel %vm993, 0.0, %v2766
        %v2834 = vsel %vm993, 0.0, %v2769
        %v2835 = vsel %vm993, %v2725, 0.0
        %v2836 = vsel %vm993, %v2728, 0.0
        %v2837 = vsel %vm993, %v2731, 0.0
        %v2838 = vsel %vm993, %v2734, 0.0
        %v2839 = vsel %vm993, %v2737, 0.0
        %v2840 = vsel %vm993, %v2740, 0.0
        %v2841 = vsel %vm993, %v2743, 0.0
        %v2842 = vsel %vm993, %v2746, 0.0
        %v2843 = vsel %vm993, %v2749, 0.0
        %v2844 = vsel %vm993, %v2752, 0.0
        %v2845 = vsel %vm993, %v2755, 0.0
        %v2846 = vsel %vm993, %v2758, 0.0
        %v2847 = vsel %vm993, %v2761, 0.0
        %v2848 = vsel %vm993, %v2764, 0.0
        %v2849 = vsel %vm993, %v2767, 0.0
        %v2850 = vsel %vm993, %v2770, 0.0
        %v2881 = vrot.slane %v2819, 1
        %v2882 = vrot.slane %v2726, 1
        %v2883 = vsel %vm1152, %v2881, %v2882
        %v2884 = vrot.slane %v2835, 1
        %v2885 = vsel %vm1152, %v2882, %v2884
        %v2886 = vrot.slane %v2820, 1
        %v2887 = vrot.slane %v2729, 1
        %v2888 = vsel %vm1152, %v2886, %v2887
        %v2889 = vrot.slane %v2836, 1
        %v2890 = vsel %vm1152, %v2887, %v2889
        %v2891 = vrot.slane %v2821, 1
        %v2892 = vrot.slane %v2732, 1
        %v2893 = vsel %vm1152, %v2891, %v2892
        %v2894 = vrot.slane %v2837, 1
        %v2895 = vsel %vm1152, %v2892, %v2894
        %v2896 = vrot.slane %v2822, 1
        %v2897 = vrot.slane %v2735, 1
        %v2898 = vsel %vm1152, %v2896, %v2897
        %v2899 = vrot.slane %v2838, 1
        %v2900 = vsel %vm1152, %v2897, %v2899
        %v2901 = vrot.slane %v2823, 1
        %v2902 = vrot.slane %v2738, 1
        %v2903 = vsel %vm1152, %v2901, %v2902
        %v2904 = vrot.slane %v2839, 1
        %v2905 = vsel %vm1152, %v2902, %v2904
        %v2906 = vrot.slane %v2824, 1
        %v2907 = vrot.slane %v2741, 1
        %v2908 = vsel %vm1152, %v2906, %v2907
        %v2909 = vrot.slane %v2840, 1
        %v2910 = vsel %vm1152, %v2907, %v2909
        %v2911 = vrot.slane %v2825, 1
        %v2912 = vrot.slane %v2744, 1
        %v2913 = vsel %vm1152, %v2911, %v2912
        %v2914 = vrot.slane %v2841, 1
        %v2915 = vsel %vm1152, %v2912, %v2914
        %v2916 = vrot.slane %v2826, 1
        %v2917 = vrot.slane %v2747, 1
        %v2918 = vsel %vm1152, %v2916, %v2917
        %v2919 = vrot.slane %v2842, 1
        %v2920 = vsel %vm1152, %v2917, %v2919
        %v2921 = vrot.slane %v2827, 1
        %v2922 = vrot.slane %v2750, 1
        %v2923 = vsel %vm1152, %v2921, %v2922
        %v2924 = vrot.slane %v2843, 1
        %v2925 = vsel %vm1152, %v2922, %v2924
        %v2926 = vrot.slane %v2828, 1
        %v2927 = vrot.slane %v2753, 1
        %v2928 = vsel %vm1152, %v2926, %v2927
        %v2929 = vrot.slane %v2844, 1
        %v2930 = vsel %vm1152, %v2927, %v2929
        %v2931 = vrot.slane %v2829, 1
        %v2932 = vrot.slane %v2756, 1
        %v2933 = vsel %vm1152, %v2931, %v2932
        %v2934 = vrot.slane %v2845, 1
        %v2935 = vsel %vm1152, %v2932, %v2934
        %v2936 = vrot.slane %v2830, 1
        %v2937 = vrot.slane %v2759, 1
        %v2938 = vsel %vm1152, %v2936, %v2937
        %v2939 = vrot.slane %v2846, 1
        %v2940 = vsel %vm1152, %v2937, %v2939
        %v2941 = vrot.slane %v2831, 1
        %v2942 = vrot.slane %v2762, 1
        %v2943 = vsel %vm1152, %v2941, %v2942
        %v2944 = vrot.slane %v2847, 1
        %v2945 = vsel %vm1152, %v2942, %v2944
        %v2946 = vrot.slane %v2832, 1
        %v2947 = vrot.slane %v2765, 1
        %v2948 = vsel %vm1152, %v2946, %v2947
        %v2949 = vrot.slane %v2848, 1
        %v2950 = vsel %vm1152, %v2947, %v2949
        %v2951 = vrot.slane %v2833, 1
        %v2952 = vrot.slane %v2768, 1
        %v2953 = vsel %vm1152, %v2951, %v2952
        %v2954 = vrot.slane %v2849, 1
        %v2955 = vsel %vm1152, %v2952, %v2954
        %2956 = vrot.lane.b32.xlu0 %v1154, 16
        %v2957 = vpop.permute.xlu0 %2956
        %2958 = vrot.lane.b32.xlu0 %v2883, 16
        %v2959 = vpop.permute.xlu0 %2958
        %2960 = vrot.lane.b32.xlu0 %v2885, 16
        %v2961 = vpop.permute.xlu0 %2960
        %2962 = vrot.lane.b32.xlu0 %v2888, 16
        %v2963 = vpop.permute.xlu0 %2962
        %2964 = vrot.lane.b32.xlu0 %v2890, 16
        %v2965 = vpop.permute.xlu0 %2964
        %2966 = vrot.lane.b32.xlu0 %v2893, 16
        %v2967 = vpop.permute.xlu0 %2966
        %2968 = vrot.lane.b32.xlu0 %v2895, 16
        %v2969 = vpop.permute.xlu0 %2968
        %2970 = vrot.lane.b32.xlu0 %v2898, 16
        %v2971 = vpop.permute.xlu0 %2970
        %2972 = vrot.lane.b32.xlu0 %v2900, 16
        %v2973 = vpop.permute.xlu0 %2972
        %2974 = vrot.lane.b32.xlu0 %v2903, 16
        %v2975 = vpop.permute.xlu0 %2974
        %2976 = vrot.lane.b32.xlu0 %v2905, 16
        %v2977 = vpop.permute.xlu0 %2976
        %2978 = vrot.lane.b32.xlu0 %v2908, 16
        %v2979 = vpop.permute.xlu0 %2978
        %2980 = vrot.lane.b32.xlu0 %v2910, 16
        %v2981 = vpop.permute.xlu0 %2980
        %2982 = vrot.lane.b32.xlu0 %v2913, 16
        %v2983 = vpop.permute.xlu0 %2982
        %2984 = vrot.lane.b32.xlu0 %v2915, 16
        %v2985 = vpop.permute.xlu0 %2984
        %2986 = vrot.lane.b32.xlu0 %v2918, 16
        %v2987 = vpop.permute.xlu0 %2986
        %2988 = vrot.lane.b32.xlu0 %v2920, 16
        %v2989 = vpop.permute.xlu0 %2988
        %2990 = vrot.lane.b32.xlu0 %v2923, 16
        %v2991 = vpop.permute.xlu0 %2990
        %2992 = vrot.lane.b32.xlu0 %v2925, 16
        %v2993 = vpop.permute.xlu0 %2992
        %2994 = vrot.lane.b32.xlu0 %v2928, 16
        %v2995 = vpop.permute.xlu0 %2994
        %2996 = vrot.lane.b32.xlu0 %v2930, 16
        %v2997 = vpop.permute.xlu0 %2996
        %2998 = vrot.lane.b32.xlu0 %v2933, 16
        %v2999 = vpop.permute.xlu0 %2998
        %3000 = vrot.lane.b32.xlu0 %v2935, 16
        %v3001 = vpop.permute.xlu0 %3000
        %3002 = vrot.lane.b32.xlu0 %v2938, 16
        %v3003 = vpop.permute.xlu0 %3002
        %3004 = vrot.lane.b32.xlu0 %v2940, 16
        %v3005 = vpop.permute.xlu0 %3004
        %3006 = vrot.lane.b32.xlu0 %v2943, 16
        %v3007 = vpop.permute.xlu0 %3006
        %3008 = vrot.lane.b32.xlu0 %v2945, 16
        %v3009 = vpop.permute.xlu0 %3008
        %3010 = vrot.lane.b32.xlu0 %v2948, 16
        %v3011 = vpop.permute.xlu0 %3010
        %3012 = vrot.lane.b32.xlu0 %v2950, 16
        %v3013 = vpop.permute.xlu0 %3012
        %3014 = vrot.lane.b32.xlu0 %v2953, 16
        %v3015 = vpop.permute.xlu0 %3014
        %3016 = vrot.lane.b32.xlu0 %v2955, 16
        %v3017 = vpop.permute.xlu0 %3016
        %v3049 = vrot.slane %v2819, 2
        %v3050 = vrot.slane %v2726, 2
        %v3051 = vsel %vm1323, %v3049, %v3050
        %v3052 = vrot.slane %v2835, 2
        %v3053 = vsel %vm1323, %v3050, %v3052
        %v3054 = vrot.slane %v2820, 2
        %v3055 = vrot.slane %v2729, 2
        %v3056 = vsel %vm1323, %v3054, %v3055
        %v3057 = vrot.slane %v2836, 2
        %v3058 = vsel %vm1323, %v3055, %v3057
        %v3059 = vrot.slane %v2821, 2
        %v3060 = vrot.slane %v2732, 2
        %v3061 = vsel %vm1323, %v3059, %v3060
        %v3062 = vrot.slane %v2837, 2
        %v3063 = vsel %vm1323, %v3060, %v3062
        %v3064 = vrot.slane %v2822, 2
        %v3065 = vrot.slane %v2735, 2
        %v3066 = vsel %vm1323, %v3064, %v3065
        %v3067 = vrot.slane %v2838, 2
        %v3068 = vsel %vm1323, %v3065, %v3067
        %v3069 = vrot.slane %v2823, 2
        %v3070 = vrot.slane %v2738, 2
        %v3071 = vsel %vm1323, %v3069, %v3070
        %v3072 = vrot.slane %v2839, 2
        %v3073 = vsel %vm1323, %v3070, %v3072
        %v3074 = vrot.slane %v2824, 2
        %v3075 = vrot.slane %v2741, 2
        %v3076 = vsel %vm1323, %v3074, %v3075
        %v3077 = vrot.slane %v2840, 2
        %v3078 = vsel %vm1323, %v3075, %v3077
        %v3079 = vrot.slane %v2825, 2
        %v3080 = vrot.slane %v2744, 2
        %v3081 = vsel %vm1323, %v3079, %v3080
        %v3082 = vrot.slane %v2841, 2
        %v3083 = vsel %vm1323, %v3080, %v3082
        %v3084 = vrot.slane %v2826, 2
        %v3085 = vrot.slane %v2747, 2
        %v3086 = vsel %vm1323, %v3084, %v3085
        %v3087 = vrot.slane %v2842, 2
        %v3088 = vsel %vm1323, %v3085, %v3087
        %v3089 = vrot.slane %v2827, 2
        %v3090 = vrot.slane %v2750, 2
        %v3091 = vsel %vm1323, %v3089, %v3090
        %v3092 = vrot.slane %v2843, 2
        %v3093 = vsel %vm1323, %v3090, %v3092
        %v3094 = vrot.slane %v2828, 2
        %v3095 = vrot.slane %v2753, 2
        %v3096 = vsel %vm1323, %v3094, %v3095
        %v3097 = vrot.slane %v2844, 2
        %v3098 = vsel %vm1323, %v3095, %v3097
        %v3099 = vrot.slane %v2829, 2
        %v3100 = vrot.slane %v2756, 2
        %v3101 = vsel %vm1323, %v3099, %v3100
        %v3102 = vrot.slane %v2845, 2
        %v3103 = vsel %vm1323, %v3100, %v3102
        %v3104 = vrot.slane %v2830, 2
        %v3105 = vrot.slane %v2759, 2
        %v3106 = vsel %vm1323, %v3104, %v3105
        %v3107 = vrot.slane %v2846, 2
        %v3108 = vsel %vm1323, %v3105, %v3107
        %v3109 = vrot.slane %v2831, 2
        %v3110 = vrot.slane %v2762, 2
        %v3111 = vsel %vm1323, %v3109, %v3110
        %v3112 = vrot.slane %v2847, 2
        %v3113 = vsel %vm1323, %v3110, %v3112
        %v3114 = vrot.slane %v2832, 2
        %v3115 = vrot.slane %v2765, 2
        %v3116 = vsel %vm1323, %v3114, %v3115
        %v3117 = vrot.slane %v2848, 2
        %v3118 = vsel %vm1323, %v3115, %v3117
        %v3119 = vrot.slane %v2833, 2
        %v3120 = vrot.slane %v2768, 2
        %v3121 = vsel %vm1323, %v3119, %v3120
        %v3122 = vrot.slane %v2849, 2
        %v3123 = vsel %vm1323, %v3120, %v3122
        %3124 = vrot.lane.b32.xlu0 %v1325, 32
        %v3125 = vpop.permute.xlu0 %3124
        %3126 = vrot.lane.b32.xlu0 %v3051, 32
        %v3127 = vpop.permute.xlu0 %3126
        %3128 = vrot.lane.b32.xlu0 %v3053, 32
        %v3129 = vpop.permute.xlu0 %3128
        %3130 = vrot.lane.b32.xlu0 %v3056, 32
        %v3131 = vpop.permute.xlu0 %3130
        %3132 = vrot.lane.b32.xlu0 %v3058, 32
        %v3133 = vpop.permute.xlu0 %3132
        %3134 = vrot.lane.b32.xlu0 %v3061, 32
        %v3135 = vpop.permute.xlu0 %3134
        %3136 = vrot.lane.b32.xlu0 %v3063, 32
        %v3137 = vpop.permute.xlu0 %3136
        %3138 = vrot.lane.b32.xlu0 %v3066, 32
        %v3139 = vpop.permute.xlu0 %3138
        %3140 = vrot.lane.b32.xlu0 %v3068, 32
        %v3141 = vpop.permute.xlu0 %3140
        %3142 = vrot.lane.b32.xlu0 %v3071, 32
        %v3143 = vpop.permute.xlu0 %3142
        %3144 = vrot.lane.b32.xlu0 %v3073, 32
        %v3145 = vpop.permute.xlu0 %3144
        %3146 = vrot.lane.b32.xlu0 %v3076, 32
        %v3147 = vpop.permute.xlu0 %3146
        %3148 = vrot.lane.b32.xlu0 %v3078, 32
        %v3149 = vpop.permute.xlu0 %3148
        %3150 = vrot.lane.b32.xlu0 %v3081, 32
        %v3151 = vpop.permute.xlu0 %3150
        %3152 = vrot.lane.b32.xlu0 %v3083, 32
        %v3153 = vpop.permute.xlu0 %3152
        %3154 = vrot.lane.b32.xlu0 %v3086, 32
        %v3155 = vpop.permute.xlu0 %3154
        %3156 = vrot.lane.b32.xlu0 %v3088, 32
        %v3157 = vpop.permute.xlu0 %3156
        %3158 = vrot.lane.b32.xlu0 %v3091, 32
        %v3159 = vpop.permute.xlu0 %3158
        %3160 = vrot.lane.b32.xlu0 %v3093, 32
        %v3161 = vpop.permute.xlu0 %3160
        %3162 = vrot.lane.b32.xlu0 %v3096, 32
        %v3163 = vpop.permute.xlu0 %3162
        %3164 = vrot.lane.b32.xlu0 %v3098, 32
        %v3165 = vpop.permute.xlu0 %3164
        %3166 = vrot.lane.b32.xlu0 %v3101, 32
        %v3167 = vpop.permute.xlu0 %3166
        %3168 = vrot.lane.b32.xlu0 %v3103, 32
        %v3169 = vpop.permute.xlu0 %3168
        %3170 = vrot.lane.b32.xlu0 %v3106, 32
        %v3171 = vpop.permute.xlu0 %3170
        %3172 = vrot.lane.b32.xlu0 %v3108, 32
        %v3173 = vpop.permute.xlu0 %3172
        %3174 = vrot.lane.b32.xlu0 %v3111, 32
        %v3175 = vpop.permute.xlu0 %3174
        %3176 = vrot.lane.b32.xlu0 %v3113, 32
        %v3177 = vpop.permute.xlu0 %3176
        %3178 = vrot.lane.b32.xlu0 %v3116, 32
        %v3179 = vpop.permute.xlu0 %3178
        %3180 = vrot.lane.b32.xlu0 %v3118, 32
        %v3181 = vpop.permute.xlu0 %3180
        %3182 = vrot.lane.b32.xlu0 %v3121, 32
        %v3183 = vpop.permute.xlu0 %3182
        %3184 = vrot.lane.b32.xlu0 %v3123, 32
        %v3185 = vpop.permute.xlu0 %3184
        %3218 = vrot.lane.b32.xlu0 %v2819, 48
        %v3219 = vpop.permute.xlu0 %3218
        %3220 = vrot.lane.b32.xlu0 %v2726, 48
        %v3221 = vpop.permute.xlu0 %3220
        %3222 = vrot.lane.b32.xlu0 %v2820, 48
        %v3223 = vpop.permute.xlu0 %3222
        %3224 = vrot.lane.b32.xlu0 %v2729, 48
        %v3225 = vpop.permute.xlu0 %3224
        %3226 = vrot.lane.b32.xlu0 %v2821, 48
        %v3227 = vpop.permute.xlu0 %3226
        %3228 = vrot.lane.b32.xlu0 %v2732, 48
        %v3229 = vpop.permute.xlu0 %3228
        %3230 = vrot.lane.b32.xlu0 %v2822, 48
        %v3231 = vpop.permute.xlu0 %3230
        %3232 = vrot.lane.b32.xlu0 %v2735, 48
        %v3233 = vpop.permute.xlu0 %3232
        %3234 = vrot.lane.b32.xlu0 %v2823, 48
        %v3235 = vpop.permute.xlu0 %3234
        %3236 = vrot.lane.b32.xlu0 %v2738, 48
        %v3237 = vpop.permute.xlu0 %3236
        %3238 = vrot.lane.b32.xlu0 %v2824, 48
        %v3239 = vpop.permute.xlu0 %3238
        %3240 = vrot.lane.b32.xlu0 %v2741, 48
        %v3241 = vpop.permute.xlu0 %3240
        %3242 = vrot.lane.b32.xlu0 %v2825, 48
        %v3243 = vpop.permute.xlu0 %3242
        %3244 = vrot.lane.b32.xlu0 %v2744, 48
        %v3245 = vpop.permute.xlu0 %3244
        %3246 = vrot.lane.b32.xlu0 %v2826, 48
        %v3247 = vpop.permute.xlu0 %3246
        %3248 = vrot.lane.b32.xlu0 %v2747, 48
        %v3249 = vpop.permute.xlu0 %3248
        %3250 = vrot.lane.b32.xlu0 %v2827, 48
        %v3251 = vpop.permute.xlu0 %3250
        %3252 = vrot.lane.b32.xlu0 %v2750, 48
        %v3253 = vpop.permute.xlu0 %3252
        %3254 = vrot.lane.b32.xlu0 %v2828, 48
        %v3255 = vpop.permute.xlu0 %3254
        %3256 = vrot.lane.b32.xlu0 %v2753, 48
        %v3257 = vpop.permute.xlu0 %3256
        %3258 = vrot.lane.b32.xlu0 %v2829, 48
        %v3259 = vpop.permute.xlu0 %3258
        %3260 = vrot.lane.b32.xlu0 %v2756, 48
        %v3261 = vpop.permute.xlu0 %3260
        %3262 = vrot.lane.b32.xlu0 %v2830, 48
        %v3263 = vpop.permute.xlu0 %3262
        %3264 = vrot.lane.b32.xlu0 %v2759, 48
        %v3265 = vpop.permute.xlu0 %3264
        %3266 = vrot.lane.b32.xlu0 %v2831, 48
        %v3267 = vpop.permute.xlu0 %3266
        %3268 = vrot.lane.b32.xlu0 %v2762, 48
        %v3269 = vpop.permute.xlu0 %3268
        %3270 = vrot.lane.b32.xlu0 %v2832, 48
        %v3271 = vpop.permute.xlu0 %3270
        %3272 = vrot.lane.b32.xlu0 %v2765, 48
        %v3273 = vpop.permute.xlu0 %3272
        %3274 = vrot.lane.b32.xlu0 %v2833, 48
        %v3275 = vpop.permute.xlu0 %3274
        %3276 = vrot.lane.b32.xlu0 %v2768, 48
        %v3277 = vpop.permute.xlu0 %3276
        %3278 = vrot.lane.b32.xlu0 %v2834, 48
        %v3279 = vpop.permute.xlu0 %3278
        %3280 = vrot.lane.b32.xlu0 %v2771, 48
        %v3281 = vpop.permute.xlu0 %3280
        %v3315 = vrot.slane %v2834, 1
        %v3316 = vrot.slane %v2771, 1
        %v3317 = vsel %vm1152, %v3315, %v3316
        %v3318 = vrot.slane %v2850, 1
        %v3319 = vsel %vm1152, %v3316, %v3318
        %3320 = vrot.lane.b32.xlu0 %v2883, 64
        %v3321 = vpop.permute.xlu0 %3320
        %3322 = vrot.lane.b32.xlu0 %v2885, 64
        %v3323 = vpop.permute.xlu0 %3322
        %3324 = vrot.lane.b32.xlu0 %v2888, 64
        %v3325 = vpop.permute.xlu0 %3324
        %3326 = vrot.lane.b32.xlu0 %v2890, 64
        %v3327 = vpop.permute.xlu0 %3326
        %3328 = vrot.lane.b32.xlu0 %v2893, 64
        %v3329 = vpop.permute.xlu0 %3328
        %3330 = vrot.lane.b32.xlu0 %v2895, 64
        %v3331 = vpop.permute.xlu0 %3330
        %3332 = vrot.lane.b32.xlu0 %v2898, 64
        %v3333 = vpop.permute.xlu0 %3332
        %3334 = vrot.lane.b32.xlu0 %v2900, 64
        %v3335 = vpop.permute.xlu0 %3334
        %3336 = vrot.lane.b32.xlu0 %v2903, 64
        %v3337 = vpop.permute.xlu0 %3336
        %3338 = vrot.lane.b32.xlu0 %v2905, 64
        %v3339 = vpop.permute.xlu0 %3338
        %3340 = vrot.lane.b32.xlu0 %v2908, 64
        %v3341 = vpop.permute.xlu0 %3340
        %3342 = vrot.lane.b32.xlu0 %v2910, 64
        %v3343 = vpop.permute.xlu0 %3342
        %3344 = vrot.lane.b32.xlu0 %v2913, 64
        %v3345 = vpop.permute.xlu0 %3344
        %3346 = vrot.lane.b32.xlu0 %v2915, 64
        %v3347 = vpop.permute.xlu0 %3346
        %3348 = vrot.lane.b32.xlu0 %v2918, 64
        %v3349 = vpop.permute.xlu0 %3348
        %3350 = vrot.lane.b32.xlu0 %v2920, 64
        %v3351 = vpop.permute.xlu0 %3350
        %3352 = vrot.lane.b32.xlu0 %v2923, 64
        %v3353 = vpop.permute.xlu0 %3352
        %3354 = vrot.lane.b32.xlu0 %v2925, 64
        %v3355 = vpop.permute.xlu0 %3354
        %3356 = vrot.lane.b32.xlu0 %v2928, 64
        %v3357 = vpop.permute.xlu0 %3356
        %3358 = vrot.lane.b32.xlu0 %v2930, 64
        %v3359 = vpop.permute.xlu0 %3358
        %3360 = vrot.lane.b32.xlu0 %v2933, 64
        %v3361 = vpop.permute.xlu0 %3360
        %3362 = vrot.lane.b32.xlu0 %v2935, 64
        %v3363 = vpop.permute.xlu0 %3362
        %3364 = vrot.lane.b32.xlu0 %v2938, 64
        %v3365 = vpop.permute.xlu0 %3364
        %3366 = vrot.lane.b32.xlu0 %v2940, 64
        %v3367 = vpop.permute.xlu0 %3366
        %3368 = vrot.lane.b32.xlu0 %v2943, 64
        %v3369 = vpop.permute.xlu0 %3368
        %3370 = vrot.lane.b32.xlu0 %v2945, 64
        %v3371 = vpop.permute.xlu0 %3370
        %3372 = vrot.lane.b32.xlu0 %v2948, 64
        %v3373 = vpop.permute.xlu0 %3372
        %3374 = vrot.lane.b32.xlu0 %v2950, 64
        %v3375 = vpop.permute.xlu0 %3374
        %3376 = vrot.lane.b32.xlu0 %v2953, 64
        %v3377 = vpop.permute.xlu0 %3376
        %3378 = vrot.lane.b32.xlu0 %v2955, 64
        %v3379 = vpop.permute.xlu0 %3378
        %3380 = vrot.lane.b32.xlu0 %v3317, 64
        %v3381 = vpop.permute.xlu0 %3380
        %3382 = vrot.lane.b32.xlu0 %v3319, 64
        %v3383 = vpop.permute.xlu0 %3382
        %v3416 = vrot.slane %v2834, 2
        %v3417 = vrot.slane %v2771, 2
        %v3418 = vsel %vm1323, %v3416, %v3417
        %v3419 = vrot.slane %v2850, 2
        %v3420 = vsel %vm1323, %v3417, %v3419
        %3421 = vrot.lane.b32.xlu0 %v3051, 80
        %v3422 = vpop.permute.xlu0 %3421
        %3423 = vrot.lane.b32.xlu0 %v3053, 80
        %v3424 = vpop.permute.xlu0 %3423
        %3425 = vrot.lane.b32.xlu0 %v3056, 80
        %v3426 = vpop.permute.xlu0 %3425
        %3427 = vrot.lane.b32.xlu0 %v3058, 80
        %v3428 = vpop.permute.xlu0 %3427
        %3429 = vrot.lane.b32.xlu0 %v3061, 80
        %v3430 = vpop.permute.xlu0 %3429
        %3431 = vrot.lane.b32.xlu0 %v3063, 80
        %v3432 = vpop.permute.xlu0 %3431
        %3433 = vrot.lane.b32.xlu0 %v3066, 80
        %v3434 = vpop.permute.xlu0 %3433
        %3435 = vrot.lane.b32.xlu0 %v3068, 80
        %v3436 = vpop.permute.xlu0 %3435
        %3437 = vrot.lane.b32.xlu0 %v3071, 80
        %v3438 = vpop.permute.xlu0 %3437
        %3439 = vrot.lane.b32.xlu0 %v3073, 80
        %v3440 = vpop.permute.xlu0 %3439
        %3441 = vrot.lane.b32.xlu0 %v3076, 80
        %v3442 = vpop.permute.xlu0 %3441
        %3443 = vrot.lane.b32.xlu0 %v3078, 80
        %v3444 = vpop.permute.xlu0 %3443
        %3445 = vrot.lane.b32.xlu0 %v3081, 80
        %v3446 = vpop.permute.xlu0 %3445
        %3447 = vrot.lane.b32.xlu0 %v3083, 80
        %v3448 = vpop.permute.xlu0 %3447
        %3449 = vrot.lane.b32.xlu0 %v3086, 80
        %v3450 = vpop.permute.xlu0 %3449
        %3451 = vrot.lane.b32.xlu0 %v3088, 80
        %v3452 = vpop.permute.xlu0 %3451
        %3453 = vrot.lane.b32.xlu0 %v3091, 80
        %v3454 = vpop.permute.xlu0 %3453
        %3455 = vrot.lane.b32.xlu0 %v3093, 80
        %v3456 = vpop.permute.xlu0 %3455
        %3457 = vrot.lane.b32.xlu0 %v3096, 80
        %v3458 = vpop.permute.xlu0 %3457
        %3459 = vrot.lane.b32.xlu0 %v3098, 80
        %v3460 = vpop.permute.xlu0 %3459
        %3461 = vrot.lane.b32.xlu0 %v3101, 80
        %v3462 = vpop.permute.xlu0 %3461
        %3463 = vrot.lane.b32.xlu0 %v3103, 80
        %v3464 = vpop.permute.xlu0 %3463
        %3465 = vrot.lane.b32.xlu0 %v3106, 80
        %v3466 = vpop.permute.xlu0 %3465
        %3467 = vrot.lane.b32.xlu0 %v3108, 80
        %v3468 = vpop.permute.xlu0 %3467
        %3469 = vrot.lane.b32.xlu0 %v3111, 80
        %v3470 = vpop.permute.xlu0 %3469
        %3471 = vrot.lane.b32.xlu0 %v3113, 80
        %v3472 = vpop.permute.xlu0 %3471
        %3473 = vrot.lane.b32.xlu0 %v3116, 80
        %v3474 = vpop.permute.xlu0 %3473
        %3475 = vrot.lane.b32.xlu0 %v3118, 80
        %v3476 = vpop.permute.xlu0 %3475
        %3477 = vrot.lane.b32.xlu0 %v3121, 80
        %v3478 = vpop.permute.xlu0 %3477
        %3479 = vrot.lane.b32.xlu0 %v3123, 80
        %v3480 = vpop.permute.xlu0 %3479
        %3481 = vrot.lane.b32.xlu0 %v3418, 80
        %v3482 = vpop.permute.xlu0 %3481
        %3483 = vrot.lane.b32.xlu0 %v3420, 80
        %v3484 = vpop.permute.xlu0 %3483
        %3517 = vrot.lane.b32.xlu0 %v2820, 96
        %v3518 = vpop.permute.xlu0 %3517
        %3519 = vrot.lane.b32.xlu0 %v2729, 96
        %v3520 = vpop.permute.xlu0 %3519
        %3521 = vrot.lane.b32.xlu0 %v2821, 96
        %v3522 = vpop.permute.xlu0 %3521
        %3523 = vrot.lane.b32.xlu0 %v2732, 96
        %v3524 = vpop.permute.xlu0 %3523
        %3525 = vrot.lane.b32.xlu0 %v2822, 96
        %v3526 = vpop.permute.xlu0 %3525
        %3527 = vrot.lane.b32.xlu0 %v2735, 96
        %v3528 = vpop.permute.xlu0 %3527
        %3529 = vrot.lane.b32.xlu0 %v2823, 96
        %v3530 = vpop.permute.xlu0 %3529
        %3531 = vrot.lane.b32.xlu0 %v2738, 96
        %v3532 = vpop.permute.xlu0 %3531
        %3533 = vrot.lane.b32.xlu0 %v2824, 96
        %v3534 = vpop.permute.xlu0 %3533
        %3535 = vrot.lane.b32.xlu0 %v2741, 96
        %v3536 = vpop.permute.xlu0 %3535
        %3537 = vrot.lane.b32.xlu0 %v2825, 96
        %v3538 = vpop.permute.xlu0 %3537
        %3539 = vrot.lane.b32.xlu0 %v2744, 96
        %v3540 = vpop.permute.xlu0 %3539
        %3541 = vrot.lane.b32.xlu0 %v2826, 96
        %v3542 = vpop.permute.xlu0 %3541
        %3543 = vrot.lane.b32.xlu0 %v2747, 96
        %v3544 = vpop.permute.xlu0 %3543
        %3545 = vrot.lane.b32.xlu0 %v2827, 96
        %v3546 = vpop.permute.xlu0 %3545
        %3547 = vrot.lane.b32.xlu0 %v2750, 96
        %v3548 = vpop.permute.xlu0 %3547
        %3549 = vrot.lane.b32.xlu0 %v2828, 96
        %v3550 = vpop.permute.xlu0 %3549
        %3551 = vrot.lane.b32.xlu0 %v2753, 96
        %v3552 = vpop.permute.xlu0 %3551
        %3553 = vrot.lane.b32.xlu0 %v2829, 96
        %v3554 = vpop.permute.xlu0 %3553
        %3555 = vrot.lane.b32.xlu0 %v2756, 96
        %v3556 = vpop.permute.xlu0 %3555
        %3557 = vrot.lane.b32.xlu0 %v2830, 96
        %v3558 = vpop.permute.xlu0 %3557
        %3559 = vrot.lane.b32.xlu0 %v2759, 96
        %v3560 = vpop.permute.xlu0 %3559
        %3561 = vrot.lane.b32.xlu0 %v2831, 96
        %v3562 = vpop.permute.xlu0 %3561
        %3563 = vrot.lane.b32.xlu0 %v2762, 96
        %v3564 = vpop.permute.xlu0 %3563
        %3565 = vrot.lane.b32.xlu0 %v2832, 96
        %v3566 = vpop.permute.xlu0 %3565
        %3567 = vrot.lane.b32.xlu0 %v2765, 96
        %v3568 = vpop.permute.xlu0 %3567
        %3569 = vrot.lane.b32.xlu0 %v2833, 96
        %v3570 = vpop.permute.xlu0 %3569
        %3571 = vrot.lane.b32.xlu0 %v2768, 96
        %v3572 = vpop.permute.xlu0 %3571
        %3573 = vrot.lane.b32.xlu0 %v2834, 96
        %v3574 = vpop.permute.xlu0 %3573
        %3575 = vrot.lane.b32.xlu0 %v2771, 96
        %v3576 = vpop.permute.xlu0 %3575
        %3577 = vrot.lane.b32.xlu0 0.0, 96
        %v3578 = vpop.permute.xlu0 %3577
        %3610 = vrot.lane.b32.xlu0 %v2888, 112
        %v3611 = vpop.permute.xlu0 %3610
        %3612 = vrot.lane.b32.xlu0 %v2890, 112
        %v3613 = vpop.permute.xlu0 %3612
        %3614 = vrot.lane.b32.xlu0 %v2893, 112
        %v3615 = vpop.permute.xlu0 %3614
        %3616 = vrot.lane.b32.xlu0 %v2895, 112
        %v3617 = vpop.permute.xlu0 %3616
        %3618 = vrot.lane.b32.xlu0 %v2898, 112
        %v3619 = vpop.permute.xlu0 %3618
        %3620 = vrot.lane.b32.xlu0 %v2900, 112
        %v3621 = vpop.permute.xlu0 %3620
        %3622 = vrot.lane.b32.xlu0 %v2903, 112
        %v3623 = vpop.permute.xlu0 %3622
        %3624 = vrot.lane.b32.xlu0 %v2905, 112
        %v3625 = vpop.permute.xlu0 %3624
        %3626 = vrot.lane.b32.xlu0 %v2908, 112
        %v3627 = vpop.permute.xlu0 %3626
        %3628 = vrot.lane.b32.xlu0 %v2910, 112
        %v3629 = vpop.permute.xlu0 %3628
        %3630 = vrot.lane.b32.xlu0 %v2913, 112
        %v3631 = vpop.permute.xlu0 %3630
        %3632 = vrot.lane.b32.xlu0 %v2915, 112
        %v3633 = vpop.permute.xlu0 %3632
        %3634 = vrot.lane.b32.xlu0 %v2918, 112
        %v3635 = vpop.permute.xlu0 %3634
        %3636 = vrot.lane.b32.xlu0 %v2920, 112
        %v3637 = vpop.permute.xlu0 %3636
        %3638 = vrot.lane.b32.xlu0 %v2923, 112
        %v3639 = vpop.permute.xlu0 %3638
        %3640 = vrot.lane.b32.xlu0 %v2925, 112
        %v3641 = vpop.permute.xlu0 %3640
        %3642 = vrot.lane.b32.xlu0 %v2928, 112
        %v3643 = vpop.permute.xlu0 %3642
        %3644 = vrot.lane.b32.xlu0 %v2930, 112
        %v3645 = vpop.permute.xlu0 %3644
        %3646 = vrot.lane.b32.xlu0 %v2933, 112
        %v3647 = vpop.permute.xlu0 %3646
        %3648 = vrot.lane.b32.xlu0 %v2935, 112
        %v3649 = vpop.permute.xlu0 %3648
        %3650 = vrot.lane.b32.xlu0 %v2938, 112
        %v3651 = vpop.permute.xlu0 %3650
        %3652 = vrot.lane.b32.xlu0 %v2940, 112
        %v3653 = vpop.permute.xlu0 %3652
        %3654 = vrot.lane.b32.xlu0 %v2943, 112
        %v3655 = vpop.permute.xlu0 %3654
        %3656 = vrot.lane.b32.xlu0 %v2945, 112
        %v3657 = vpop.permute.xlu0 %3656
        %3658 = vrot.lane.b32.xlu0 %v2948, 112
        %v3659 = vpop.permute.xlu0 %3658
        %3660 = vrot.lane.b32.xlu0 %v2950, 112
        %v3661 = vpop.permute.xlu0 %3660
        %3662 = vrot.lane.b32.xlu0 %v2953, 112
        %v3663 = vpop.permute.xlu0 %3662
        %3664 = vrot.lane.b32.xlu0 %v2955, 112
        %v3665 = vpop.permute.xlu0 %3664
        %3666 = vrot.lane.b32.xlu0 %v3317, 112
        %v3667 = vpop.permute.xlu0 %3666
        %3668 = vrot.lane.b32.xlu0 %v3319, 112
        %v3669 = vpop.permute.xlu0 %3668
        %3670 = vrot.lane.b32.xlu0 %v1154, 112
        %v3671 = vpop.permute.xlu0 %3670
        %vm3734 = vcmask 130048
        %v3735 = vsel %vm3734, 0.0, %v2957
        %v3736 = vsel %vm3734, %v2819, %v2959
        %v3737 = vsel %vm3734, %v2726, %v2961
        %v3738 = vsel %vm3734, %v2820, %v2963
        %v3739 = vsel %vm3734, %v2729, %v2965
        %v3740 = vsel %vm3734, %v2821, %v2967
        %v3741 = vsel %vm3734, %v2732, %v2969
        %v3742 = vsel %vm3734, %v2822, %v2971
        %v3743 = vsel %vm3734, %v2735, %v2973
        %v3744 = vsel %vm3734, %v2823, %v2975
        %v3745 = vsel %vm3734, %v2738, %v2977
        %v3746 = vsel %vm3734, %v2824, %v2979
        %v3747 = vsel %vm3734, %v2741, %v2981
        %v3748 = vsel %vm3734, %v2825, %v2983
        %v3749 = vsel %vm3734, %v2744, %v2985
        %v3750 = vsel %vm3734, %v2826, %v2987
        %v3751 = vsel %vm3734, %v2747, %v2989
        %v3752 = vsel %vm3734, %v2827, %v2991
        %v3753 = vsel %vm3734, %v2750, %v2993
        %v3754 = vsel %vm3734, %v2828, %v2995
        %v3755 = vsel %vm3734, %v2753, %v2997
        %v3756 = vsel %vm3734, %v2829, %v2999
        %v3757 = vsel %vm3734, %v2756, %v3001
        %v3758 = vsel %vm3734, %v2830, %v3003
        %v3759 = vsel %vm3734, %v2759, %v3005
        %v3760 = vsel %vm3734, %v2831, %v3007
        %v3761 = vsel %vm3734, %v2762, %v3009
        %v3762 = vsel %vm3734, %v2832, %v3011
        %v3763 = vsel %vm3734, %v2765, %v3013
        %v3764 = vsel %vm3734, %v2833, %v3015
        %v3765 = vsel %vm3734, %v2768, %v3017
        %vm3766 = vcmask 261120
        %v3767 = vsel %vm3766, %v3735, %v3125
        %v3768 = vsel %vm3766, %v3736, %v3127
        %v3769 = vsel %vm3766, %v3737, %v3129
        %v3770 = vsel %vm3766, %v3738, %v3131
        %v3771 = vsel %vm3766, %v3739, %v3133
        %v3772 = vsel %vm3766, %v3740, %v3135
        %v3773 = vsel %vm3766, %v3741, %v3137
        %v3774 = vsel %vm3766, %v3742, %v3139
        %v3775 = vsel %vm3766, %v3743, %v3141
        %v3776 = vsel %vm3766, %v3744, %v3143
        %v3777 = vsel %vm3766, %v3745, %v3145
        %v3778 = vsel %vm3766, %v3746, %v3147
        %v3779 = vsel %vm3766, %v3747, %v3149
        %v3780 = vsel %vm3766, %v3748, %v3151
        %v3781 = vsel %vm3766, %v3749, %v3153
        %v3782 = vsel %vm3766, %v3750, %v3155
        %v3783 = vsel %vm3766, %v3751, %v3157
        %v3784 = vsel %vm3766, %v3752, %v3159
        %v3785 = vsel %vm3766, %v3753, %v3161
        %v3786 = vsel %vm3766, %v3754, %v3163
        %v3787 = vsel %vm3766, %v3755, %v3165
        %v3788 = vsel %vm3766, %v3756, %v3167
        %v3789 = vsel %vm3766, %v3757, %v3169
        %v3790 = vsel %vm3766, %v3758, %v3171
        %v3791 = vsel %vm3766, %v3759, %v3173
        %v3792 = vsel %vm3766, %v3760, %v3175
        %v3793 = vsel %vm3766, %v3761, %v3177
        %v3794 = vsel %vm3766, %v3762, %v3179
        %v3795 = vsel %vm3766, %v3763, %v3181
        %v3796 = vsel %vm3766, %v3764, %v3183
        %v3797 = vsel %vm3766, %v3765, %v3185
        %vm3798 = vcmask 392192
        %v3799 = vsel %vm3798, %v3767, %v3219
        %v3800 = vsel %vm3798, %v3767, %v3221
        %v3801 = vsel %vm3798, %v3768, %v3223
        %v3802 = vsel %vm3798, %v3769, %v3225
        %v3803 = vsel %vm3798, %v3770, %v3227
        %v3804 = vsel %vm3798, %v3771, %v3229
        %v3805 = vsel %vm3798, %v3772, %v3231
        %v3806 = vsel %vm3798, %v3773, %v3233
        %v3807 = vsel %vm3798, %v3774, %v3235
        %v3808 = vsel %vm3798, %v3775, %v3237
        %v3809 = vsel %vm3798, %v3776, %v3239
        %v3810 = vsel %vm3798, %v3777, %v3241
        %v3811 = vsel %vm3798, %v3778, %v3243
        %v3812 = vsel %vm3798, %v3779, %v3245
        %v3813 = vsel %vm3798, %v3780, %v3247
        %v3814 = vsel %vm3798, %v3781, %v3249
        %v3815 = vsel %vm3798, %v3782, %v3251
        %v3816 = vsel %vm3798, %v3783, %v3253
        %v3817 = vsel %vm3798, %v3784, %v3255
        %v3818 = vsel %vm3798, %v3785, %v3257
        %v3819 = vsel %vm3798, %v3786, %v3259
        %v3820 = vsel %vm3798, %v3787, %v3261
        %v3821 = vsel %vm3798, %v3788, %v3263
        %v3822 = vsel %vm3798, %v3789, %v3265
        %v3823 = vsel %vm3798, %v3790, %v3267
        %v3824 = vsel %vm3798, %v3791, %v3269
        %v3825 = vsel %vm3798, %v3792, %v3271
        %v3826 = vsel %vm3798, %v3793, %v3273
        %v3827 = vsel %vm3798, %v3794, %v3275
        %v3828 = vsel %vm3798, %v3795, %v3277
        %v3829 = vsel %vm3798, %v3796, %v3279
        %v3830 = vsel %vm3798, %v3797, %v3281
        %vm3831 = vcmask 523264
        %v3832 = vsel %vm3831, %v3799, %v3321
        %v3833 = vsel %vm3831, %v3800, %v3323
        %v3834 = vsel %vm3831, %v3801, %v3325
        %v3835 = vsel %vm3831, %v3802, %v3327
        %v3836 = vsel %vm3831, %v3803, %v3329
        %v3837 = vsel %vm3831, %v3804, %v3331
        %v3838 = vsel %vm3831, %v3805, %v3333
        %v3839 = vsel %vm3831, %v3806, %v3335
        %v3840 = vsel %vm3831, %v3807, %v3337
        %v3841 = vsel %vm3831, %v3808, %v3339
        %v3842 = vsel %vm3831, %v3809, %v3341
        %v3843 = vsel %vm3831, %v3810, %v3343
        %v3844 = vsel %vm3831, %v3811, %v3345
        %v3845 = vsel %vm3831, %v3812, %v3347
        %v3846 = vsel %vm3831, %v3813, %v3349
        %v3847 = vsel %vm3831, %v3814, %v3351
        %v3848 = vsel %vm3831, %v3815, %v3353
        %v3849 = vsel %vm3831, %v3816, %v3355
        %v3850 = vsel %vm3831, %v3817, %v3357
        %v3851 = vsel %vm3831, %v3818, %v3359
        %v3852 = vsel %vm3831, %v3819, %v3361
        %v3853 = vsel %vm3831, %v3820, %v3363
        %v3854 = vsel %vm3831, %v3821, %v3365
        %v3855 = vsel %vm3831, %v3822, %v3367
        %v3856 = vsel %vm3831, %v3823, %v3369
        %v3857 = vsel %vm3831, %v3824, %v3371
        %v3858 = vsel %vm3831, %v3825, %v3373
        %v3859 = vsel %vm3831, %v3826, %v3375
        %v3860 = vsel %vm3831, %v3827, %v3377
        %v3861 = vsel %vm3831, %v3828, %v3379
        %v3862 = vsel %vm3831, %v3829, %v3381
        %v3863 = vsel %vm3831, %v3830, %v3383
        %vm3864 = vcmask 654336
        %v3865 = vsel %vm3864, %v3832, %v3422
        %v3866 = vsel %vm3864, %v3833, %v3424
        %v3867 = vsel %vm3864, %v3834, %v3426
        %v3868 = vsel %vm3864, %v3835, %v3428
        %v3869 = vsel %vm3864, %v3836, %v3430
        %v3870 = vsel %vm3864, %v3837, %v3432
        %v3871 = vsel %vm3864, %v3838, %v3434
        %v3872 = vsel %vm3864, %v3839, %v3436
        %v3873 = vsel %vm3864, %v3840, %v3438
        %v3874 = vsel %vm3864, %v3841, %v3440
        %v3875 = vsel %vm3864, %v3842, %v3442
        %v3876 = vsel %vm3864, %v3843, %v3444
        %v3877 = vsel %vm3864, %v3844, %v3446
        %v3878 = vsel %vm3864, %v3845, %v3448
        %v3879 = vsel %vm3864, %v3846, %v3450
        %v3880 = vsel %vm3864, %v3847, %v3452
        %v3881 = vsel %vm3864, %v3848, %v3454
        %v3882 = vsel %vm3864, %v3849, %v3456
        %v3883 = vsel %vm3864, %v3850, %v3458
        %v3884 = vsel %vm3864, %v3851, %v3460
        %v3885 = vsel %vm3864, %v3852, %v3462
        %v3886 = vsel %vm3864, %v3853, %v3464
        %v3887 = vsel %vm3864, %v3854, %v3466
        %v3888 = vsel %vm3864, %v3855, %v3468
        %v3889 = vsel %vm3864, %v3856, %v3470
        %v3890 = vsel %vm3864, %v3857, %v3472
        %v3891 = vsel %vm3864, %v3858, %v3474
        %v3892 = vsel %vm3864, %v3859, %v3476
        %v3893 = vsel %vm3864, %v3860, %v3478
        %v3894 = vsel %vm3864, %v3861, %v3480
        %v3895 = vsel %vm3864, %v3862, %v3482
        %v3896 = vsel %vm3864, %v3863, %v3484
        %vm3897 = vcmask 785408
        %v3898 = vsel %vm3897, %v3865, %v3518
        %v3899 = vsel %vm3897, %v3866, %v3520
        %v3900 = vsel %vm3897, %v3867, %v3522
        %v3901 = vsel %vm3897, %v3868, %v3524
        %v3902 = vsel %vm3897, %v3869, %v3526
        %v3903 = vsel %vm3897, %v3870, %v3528
        %v3904 = vsel %vm3897, %v3871, %v3530
        %v3905 = vsel %vm3897, %v3872, %v3532
        %v3906 = vsel %vm3897, %v3873, %v3534
        %v3907 = vsel %vm3897, %v3874, %v3536
        %v3908 = vsel %vm3897, %v3875, %v3538
        %v3909 = vsel %vm3897, %v3876, %v3540
        %v3910 = vsel %vm3897, %v3877, %v3542
        %v3911 = vsel %vm3897, %v3878, %v3544
        %v3912 = vsel %vm3897, %v3879, %v3546
        %v3913 = vsel %vm3897, %v3880, %v3548
        %v3914 = vsel %vm3897, %v3881, %v3550
        %v3915 = vsel %vm3897, %v3882, %v3552
        %v3916 = vsel %vm3897, %v3883, %v3554
        %v3917 = vsel %vm3897, %v3884, %v3556
        %v3918 = vsel %vm3897, %v3885, %v3558
        %v3919 = vsel %vm3897, %v3886, %v3560
        %v3920 = vsel %vm3897, %v3887, %v3562
        %v3921 = vsel %vm3897, %v3888, %v3564
        %v3922 = vsel %vm3897, %v3889, %v3566
        %v3923 = vsel %vm3897, %v3890, %v3568
        %v3924 = vsel %vm3897, %v3891, %v3570
        %v3925 = vsel %vm3897, %v3892, %v3572
        %v3926 = vsel %vm3897, %v3893, %v3574
        %v3927 = vsel %vm3897, %v3894, %v3576
        %v3928 = vsel %vm3897, %v3895, %v3578
        %v3929 = vsel %vm3897, %v3896, %v3578
        %vm3930 = vcmask 916480
        %v3931 = vsel %vm3930, %v3898, %v3611
        %v3932 = vsel %vm3930, %v3899, %v3613
        %v3933 = vsel %vm3930, %v3900, %v3615
        %v3934 = vsel %vm3930, %v3901, %v3617
        %v3935 = vsel %vm3930, %v3902, %v3619
        %v3936 = vsel %vm3930, %v3903, %v3621
        %v3937 = vsel %vm3930, %v3904, %v3623
        %v3938 = vsel %vm3930, %v3905, %v3625
        %v3939 = vsel %vm3930, %v3906, %v3627
        %v3940 = vsel %vm3930, %v3907, %v3629
        %v3941 = vsel %vm3930, %v3908, %v3631
        %v3942 = vsel %vm3930, %v3909, %v3633
        %v3943 = vsel %vm3930, %v3910, %v3635
        %v3944 = vsel %vm3930, %v3911, %v3637
        %v3945 = vsel %vm3930, %v3912, %v3639
        %v3946 = vsel %vm3930, %v3913, %v3641
        %v3947 = vsel %vm3930, %v3914, %v3643
        %v3948 = vsel %vm3930, %v3915, %v3645
        %v3949 = vsel %vm3930, %v3916, %v3647
        %v3950 = vsel %vm3930, %v3917, %v3649
        %v3951 = vsel %vm3930, %v3918, %v3651
        %v3952 = vsel %vm3930, %v3919, %v3653
        %v3953 = vsel %vm3930, %v3920, %v3655
        %v3954 = vsel %vm3930, %v3921, %v3657
        %v3955 = vsel %vm3930, %v3922, %v3659
        %v3956 = vsel %vm3930, %v3923, %v3661
        %v3957 = vsel %vm3930, %v3924, %v3663
        %v3958 = vsel %vm3930, %v3925, %v3665
        %v3959 = vsel %vm3930, %v3926, %v3667
        %v3960 = vsel %vm3930, %v3927, %v3669
        %v3961 = vsel %vm3930, %v3928, %v3671
        %v3962 = vsel %vm3930, %v3929, %v3671
        %v3963 = vpack.c.bf16 %v3932, %v3931
        %v3964 = vpack.c.bf16 %v3058, %v3056
        %v3965 = vpack.c.bf16 %v3934, %v3933
        %v3966 = vpack.c.bf16 %v3063, %v3061
        %v3967 = vpack.c.bf16 %v3936, %v3935
        %v3968 = vpack.c.bf16 %v3068, %v3066
        %v3969 = vpack.c.bf16 %v3938, %v3937
        %v3970 = vpack.c.bf16 %v3073, %v3071
        %v3971 = vpack.c.bf16 %v3940, %v3939
        %v3972 = vpack.c.bf16 %v3078, %v3076
        %v3973 = vpack.c.bf16 %v3942, %v3941
        %v3974 = vpack.c.bf16 %v3083, %v3081
        %v3975 = vpack.c.bf16 %v3944, %v3943
        %v3976 = vpack.c.bf16 %v3088, %v3086
        %v3977 = vpack.c.bf16 %v3946, %v3945
        %v3978 = vpack.c.bf16 %v3093, %v3091
        %v3979 = vpack.c.bf16 %v3948, %v3947
        %v3980 = vpack.c.bf16 %v3098, %v3096
        %v3981 = vpack.c.bf16 %v3950, %v3949
        %v3982 = vpack.c.bf16 %v3103, %v3101
        %v3983 = vpack.c.bf16 %v3952, %v3951
        %v3984 = vpack.c.bf16 %v3108, %v3106
        %v3985 = vpack.c.bf16 %v3954, %v3953
        %v3986 = vpack.c.bf16 %v3113, %v3111
        %v3987 = vpack.c.bf16 %v3956, %v3955
        %v3988 = vpack.c.bf16 %v3118, %v3116
        %v3989 = vpack.c.bf16 %v3958, %v3957
        %v3990 = vpack.c.bf16 %v3123, %v3121
        %v3991 = vpack.c.bf16 %v3960, %v3959
        %v3992 = vpack.c.bf16 %v3420, %v3418
        %v3993 = vpack.c.bf16 %v3962, %v3961
        %v3994 = vpack.c.bf16 %v1325, %v1325
        %v3995 = vld [vmem:[%s9] sm:$0xf]
        %v3996 = vld [vmem:[%s9 + $0x4] sm:$0xf]
        %v3997 = vld [vmem:[%s9 + $0x8] sm:$0xf]
        %v3998 = vld [vmem:[%s9 + $0xc] sm:$0xf]
        %v3999 = vld [vmem:[%s9 + $0x10] sm:$0xf]
        %v4000 = vld [vmem:[%s9 + $0x14] sm:$0xf]
        %v4001 = vld [vmem:[%s9 + $0x18] sm:$0xf]
        %v4002 = vld [vmem:[%s9 + $0x1c] sm:$0xf]
        %v4003 = vld [vmem:[%s9 + $0x20] sm:$0xf]
        %v4004 = vld [vmem:[%s9 + $0x24] sm:$0xf]
        %v4005 = vld [vmem:[%s9 + $0x28] sm:$0xf]
        %v4006 = vld [vmem:[%s9 + $0x2c] sm:$0xf]
        %v4007 = vld [vmem:[%s9 + $0x30] sm:$0xf]
        %v4008 = vld [vmem:[%s9 + $0x34] sm:$0xf]
        %v4009 = vld [vmem:[%s9 + $0x38] sm:$0xf]
        %v4010 = vld [vmem:[%s9 + $0x3c] sm:$0xf]
        %v4011 = vld [vmem:[%s9 + $0x40] sm:$0xf]
        %v4012 = vld [vmem:[%s9 + $0x44] sm:$0xf]
        %v4031 = vunpack.c.l.b16 %v3995
        %v4032 = vunpack.c.l.b16 %v3996
        %v4033 = vunpack.c.l.b16 %v3997
        %v4034 = vunpack.c.l.b16 %v3998
        %v4035 = vunpack.c.l.b16 %v3999
        %v4036 = vunpack.c.l.b16 %v4000
        %v4037 = vunpack.c.l.b16 %v4001
        %v4038 = vunpack.c.l.b16 %v4002
        %v4039 = vunpack.c.l.b16 %v4003
        %v4040 = vunpack.c.l.b16 %v4004
        %v4041 = vunpack.c.l.b16 %v4005
        %v4042 = vunpack.c.l.b16 %v4006
        %v4043 = vunpack.c.l.b16 %v4007
        %v4044 = vunpack.c.l.b16 %v4008
        %v4045 = vunpack.c.l.b16 %v4009
        %v4046 = vunpack.c.l.b16 %v4010
        %v4047 = vunpack.c.l.b16 %v4011
        %v4048 = vunpack.c.l.b16 %v4012
        %v4049 = vpack.c.b16 %v4032, %v4031
        %v4050 = vpack.c.b16 %v4034, %v4033
        %v4051 = vpack.c.b16 %v4036, %v4035
        %v4052 = vpack.c.b16 %v4038, %v4037
        %v4053 = vpack.c.b16 %v4040, %v4039
        %v4054 = vpack.c.b16 %v4042, %v4041
        %v4055 = vpack.c.b16 %v4044, %v4043
        %v4056 = vpack.c.b16 %v4046, %v4045
        %v4057 = vpack.c.b16 %v4048, %v4047
        %v4068 = vsel %vm3734, %v3964, 0
        %v4071 = vsel %vm3734, %v3966, 0
        %v4074 = vsel %vm3734, %v3968, 0
        %v4077 = vsel %vm3734, %v3970, 0
        %v4080 = vsel %vm3734, %v3972, 0
        %v4083 = vsel %vm3734, %v3974, 0
        %v4086 = vsel %vm3734, %v3976, 0
        %v4089 = vsel %vm3734, %v3978, 0
        %v4092 = vsel %vm3734, %v3980, 0
        %v4095 = vsel %vm3734, %v3982, 0
        %v4098 = vsel %vm3734, %v3984, 0
        %v4101 = vsel %vm3734, %v3986, 0
        %v4104 = vsel %vm3734, %v3988, 0
        %v4107 = vsel %vm3734, %v3990, 0
        %v4110 = vsel %vm3734, %v3992, 0
        %v4113 = vsel %vm3734, %v3994, 0
        %4115 = vmatprep.subr.bf16.mxu0 0
        %4116 = vmatpush1.bf16.msra.mxu0 %v4049
        %4117 = vmatprep.subr.bf16.mxu0 0
        %4118 = vmatpush1.bf16.msra.mxu0 %v4050
        %4119 = vmatprep.subr.bf16.mxu0 0
        %4120 = vmatpush1.bf16.msra.mxu0 %v4051
        %4121 = vmatprep.subr.bf16.mxu0 0
        %4122 = vmatpush1.bf16.msra.mxu0 %v4052
        %4123 = vmatprep.subr.bf16.mxu0 0
        %4124 = vmatpush1.bf16.msra.mxu0 %v4053
        %4125 = vmatprep.subr.bf16.mxu0 0
        %4126 = vmatpush1.bf16.msra.mxu0 %v4054
        %4127 = vmatprep.subr.bf16.mxu0 0
        %4128 = vmatpush1.bf16.msra.mxu0 %v4055
        %4129 = vmatprep.subr.bf16.mxu0 0
        %4130 = vmatpush1.bf16.msra.mxu0 %v4056
        %4131 = vmatprep.subr.bf16.mxu0 0
        %4132 = vmatpush1.bf16.msra.mxu0 %v4057
        %4133 = vmatprep.subr.bf16.mxu0 0
        %4134 = vmatpush1.bf16.msra.mxu0 0
        %4135 = vmatprep.subr.bf16.mxu0 0
        %4136 = vmatpush1.bf16.msra.mxu0 0
        %4137 = vmatprep.subr.bf16.mxu0 0
        %4138 = vmatpush1.bf16.msra.mxu0 0
        %4139 = vmatprep.subr.bf16.mxu0 0
        %4140 = vmatpush1.bf16.msra.mxu0 0
        %4141 = vmatprep.subr.bf16.mxu0 0
        %4142 = vmatpush1.bf16.msra.mxu0 0
        %4143 = vmatprep.subr.bf16.mxu0 0
        %4144 = vmatpush1.bf16.msra.mxu0 0
        %4145 = vmatprep.subr.bf16.mxu0 0
        %4146 = vmatpush1.bf16.msra.mxu0 0
        %4147 = vmatprep.mubr.bf16.mxu0 %v4068
        %4148 = vmatmul.mubr.bf16.gmra.mrb[0].mxu0 %v3963
        %v4149 = vpop.f32.mrb[0].mxu0
        %v4150 = vadd.f32 0.0, %v4149
        %v4151 = vpop.f32.mrb[0].mxu0
        %v4152 = vpop.f32.mrb[0].mxu0
        %v4153 = vadd.f32 0.0, %v4152
        %v4154 = vpop.f32.mrb[0].mxu0
        %4155 = vmatprep.mubr.bf16.mxu0 %v4071
        %4156 = vmatmul.mubr.bf16.gmra.mrb[0].mxu0 %v3965
        %v4157 = vpop.f32.mrb[0].mxu0
        %v4158 = vadd.f32 0.0, %v4157
        %v4159 = vpop.f32.mrb[0].mxu0
        %v4160 = vpop.f32.mrb[0].mxu0
        %v4161 = vadd.f32 0.0, %v4160
        %v4162 = vpop.f32.mrb[0].mxu0
        %4163 = vmatprep.mubr.bf16.mxu0 %v4074
        %4164 = vmatmul.mubr.bf16.gmra.mrb[0].mxu0 %v3967
        %v4165 = vpop.f32.mrb[0].mxu0
        %v4166 = vadd.f32 0.0, %v4165
        %v4167 = vpop.f32.mrb[0].mxu0
        %v4168 = vpop.f32.mrb[0].mxu0
        %v4169 = vadd.f32 0.0, %v4168
        %v4170 = vpop.f32.mrb[0].mxu0
        %4171 = vmatprep.mubr.bf16.mxu0 %v4077
        %4172 = vmatmul.mubr.bf16.gmra.mrb[0].mxu0 %v3969
        %v4173 = vpop.f32.mrb[0].mxu0
        %v4174 = vadd.f32 0.0, %v4173
        %v4175 = vpop.f32.mrb[0].mxu0
        %v4176 = vpop.f32.mrb[0].mxu0
        %v4177 = vadd.f32 0.0, %v4176
        %v4178 = vpop.f32.mrb[0].mxu0
        %4179 = vmatprep.mubr.bf16.mxu0 %v4080
        %4180 = vmatmul.mubr.bf16.gmra.mrb[0].mxu0 %v3971
        %v4181 = vpop.f32.mrb[0].mxu0
        %v4182 = vadd.f32 0.0, %v4181
        %v4183 = vpop.f32.mrb[0].mxu0
        %v4184 = vpop.f32.mrb[0].mxu0
        %v4185 = vadd.f32 0.0, %v4184
        %v4186 = vpop.f32.mrb[0].mxu0
        %4187 = vmatprep.mubr.bf16.mxu0 %v4083
        %4188 = vmatmul.mubr.bf16.gmra.mrb[0].mxu0 %v3973
        %v4189 = vpop.f32.mrb[0].mxu0
        %v4190 = vadd.f32 0.0, %v4189
        %v4191 = vpop.f32.mrb[0].mxu0
        %v4192 = vpop.f32.mrb[0].mxu0
        %v4193 = vadd.f32 0.0, %v4192
        %v4194 = vpop.f32.mrb[0].mxu0
        %4195 = vmatprep.mubr.bf16.mxu0 %v4086
        %4196 = vmatmul.mubr.bf16.gmra.mrb[0].mxu0 %v3975
        %v4197 = vpop.f32.mrb[0].mxu0
        %v4198 = vadd.f32 0.0, %v4197
        %v4199 = vpop.f32.mrb[0].mxu0
        %v4200 = vpop.f32.mrb[0].mxu0
        %v4201 = vadd.f32 0.0, %v4200
        %v4202 = vpop.f32.mrb[0].mxu0
        %4203 = vmatprep.mubr.bf16.mxu0 %v4089
        %4204 = vmatmul.mubr.bf16.gmra.mrb[0].mxu0 %v3977
        %v4205 = vpop.f32.mrb[0].mxu0
        %v4206 = vadd.f32 0.0, %v4205
        %v4207 = vpop.f32.mrb[0].mxu0
        %v4208 = vpop.f32.mrb[0].mxu0
        %v4209 = vadd.f32 0.0, %v4208
        %v4210 = vpop.f32.mrb[0].mxu0
        %4211 = vmatprep.mubr.bf16.mxu0 %v4092
        %4212 = vmatmul.mubr.bf16.gmra.mrb[0].mxu0 %v3979
        %v4213 = vpop.f32.mrb[0].mxu0
        %v4214 = vadd.f32 0.0, %v4213
        %v4215 = vpop.f32.mrb[0].mxu0
        %v4216 = vpop.f32.mrb[0].mxu0
        %v4217 = vadd.f32 0.0, %v4216
        %v4218 = vpop.f32.mrb[0].mxu0
        %4219 = vmatprep.mubr.bf16.mxu0 %v4095
        %4220 = vmatmul.mubr.bf16.gmra.mrb[0].mxu0 %v3981
        %v4221 = vpop.f32.mrb[0].mxu0
        %v4222 = vadd.f32 0.0, %v4221
        %v4223 = vpop.f32.mrb[0].mxu0
        %v4224 = vpop.f32.mrb[0].mxu0
        %v4225 = vadd.f32 0.0, %v4224
        %v4226 = vpop.f32.mrb[0].mxu0
        %4227 = vmatprep.mubr.bf16.mxu0 %v4098
        %4228 = vmatmul.mubr.bf16.gmra.mrb[0].mxu0 %v3983
        %v4229 = vpop.f32.mrb[0].mxu0
        %v4230 = vadd.f32 0.0, %v4229
        %v4231 = vpop.f32.mrb[0].mxu0
        %v4232 = vpop.f32.mrb[0].mxu0
        %v4233 = vadd.f32 0.0, %v4232
        %v4234 = vpop.f32.mrb[0].mxu0
        %4235 = vmatprep.mubr.bf16.mxu0 %v4101
        %4236 = vmatmul.mubr.bf16.gmra.mrb[0].mxu0 %v3985
        %v4237 = vpop.f32.mrb[0].mxu0
        %v4238 = vadd.f32 0.0, %v4237
        %v4239 = vpop.f32.mrb[0].mxu0
        %v4240 = vpop.f32.mrb[0].mxu0
        %v4241 = vadd.f32 0.0, %v4240
        %v4242 = vpop.f32.mrb[0].mxu0
        %4243 = vmatprep.mubr.bf16.mxu0 %v4104
        %4244 = vmatmul.mubr.bf16.gmra.mrb[0].mxu0 %v3987
        %v4245 = vpop.f32.mrb[0].mxu0
        %v4246 = vadd.f32 0.0, %v4245
        %v4247 = vpop.f32.mrb[0].mxu0
        %v4248 = vpop.f32.mrb[0].mxu0
        %v4249 = vadd.f32 0.0, %v4248
        %v4250 = vpop.f32.mrb[0].mxu0
        %4251 = vmatprep.mubr.bf16.mxu0 %v4107
        %4252 = vmatmul.mubr.bf16.gmra.mrb[0].mxu0 %v3989
        %v4253 = vpop.f32.mrb[0].mxu0
        %v4254 = vadd.f32 0.0, %v4253
        %v4255 = vpop.f32.mrb[0].mxu0
        %v4256 = vpop.f32.mrb[0].mxu0
        %v4257 = vadd.f32 0.0, %v4256
        %v4258 = vpop.f32.mrb[0].mxu0
        %4259 = vmatprep.mubr.bf16.mxu0 %v4110
        %4260 = vmatmul.mubr.bf16.gmra.mrb[0].mxu0 %v3991
        %v4261 = vpop.f32.mrb[0].mxu0
        %v4262 = vadd.f32 0.0, %v4261
        %v4263 = vpop.f32.mrb[0].mxu0
        %v4264 = vpop.f32.mrb[0].mxu0
        %v4265 = vadd.f32 0.0, %v4264
        %v4266 = vpop.f32.mrb[0].mxu0
        %4267 = vmatprep.mubr.bf16.mxu0 %v4113
        %4268 = vmatmul.mubr.bf16.gmra.mrb[0].mxu0 %v3993
        %v4269 = vpop.f32.mrb[0].mxu0
        %v4270 = vadd.f32 0.0, %v4269
        %v4271 = vpop.f32.mrb[0].mxu0
        %v4272 = vpop.f32.mrb[0].mxu0
        %v4273 = vadd.f32 0.0, %v4272
        %v4274 = vpop.f32.mrb[0].mxu0
        %4275 = vdwg.mxu0
        %v4276 = vld [vmem:[%s11] sm:$0x1]
        %v4278 = vlaneseq
        %v4279 = vshrl.u32 %v4278, 7
        %v4280 = vsub.s32 0, %v4279
        %v4281 = vrot.slane %v4276, %v4280
        %v4283 = vmul.f32 %v4150, %v4281
        %v4284 = vmul.f32 %v4153, %v4281
        %v4285 = vmul.f32 %v4158, %v4281
        %v4286 = vmul.f32 %v4161, %v4281
        %v4287 = vmul.f32 %v4166, %v4281
        %v4288 = vmul.f32 %v4169, %v4281
        %v4289 = vmul.f32 %v4174, %v4281
        %v4290 = vmul.f32 %v4177, %v4281
        %v4291 = vmul.f32 %v4182, %v4281
        %v4292 = vmul.f32 %v4185, %v4281
        %v4293 = vmul.f32 %v4190, %v4281
        %v4294 = vmul.f32 %v4193, %v4281
        %v4295 = vmul.f32 %v4198, %v4281
        %v4296 = vmul.f32 %v4201, %v4281
        %v4297 = vmul.f32 %v4206, %v4281
        %v4298 = vmul.f32 %v4209, %v4281
        %v4299 = vmul.f32 %v4214, %v4281
        %v4300 = vmul.f32 %v4217, %v4281
        %v4301 = vmul.f32 %v4222, %v4281
        %v4302 = vmul.f32 %v4225, %v4281
        %v4303 = vmul.f32 %v4230, %v4281
        %v4304 = vmul.f32 %v4233, %v4281
        %v4305 = vmul.f32 %v4238, %v4281
        %v4306 = vmul.f32 %v4241, %v4281
        %v4307 = vmul.f32 %v4246, %v4281
        %v4308 = vmul.f32 %v4249, %v4281
        %v4309 = vmul.f32 %v4254, %v4281
        %v4310 = vmul.f32 %v4257, %v4281
        %v4311 = vmul.f32 %v4262, %v4281
        %v4312 = vmul.f32 %v4265, %v4281
        %v4313 = vmul.f32 %v4270, %v4281
        %v4314 = vmul.f32 %v4273, %v4281
        %v4315 = vld [vmem:[%s13] sm:$0x1]
        %v4317 = vlaneseq
        %v4318 = vshrl.u32 %v4317, 7
        %v4319 = vsub.s32 0, %v4318
        %v4320 = vrot.slane %v4315, %v4319
        %v4322 = vadd.f32 %v4283, %v4320
        %v4323 = vadd.f32 %v4284, %v4320
        %v4324 = vadd.f32 %v4285, %v4320
        %v4325 = vadd.f32 %v4286, %v4320
        %v4326 = vadd.f32 %v4287, %v4320
        %v4327 = vadd.f32 %v4288, %v4320
        %v4328 = vadd.f32 %v4289, %v4320
        %v4329 = vadd.f32 %v4290, %v4320
        %v4330 = vadd.f32 %v4291, %v4320
        %v4331 = vadd.f32 %v4292, %v4320
        %v4332 = vadd.f32 %v4293, %v4320
        %v4333 = vadd.f32 %v4294, %v4320
        %v4334 = vadd.f32 %v4295, %v4320
        %v4335 = vadd.f32 %v4296, %v4320
        %v4336 = vadd.f32 %v4297, %v4320
        %v4337 = vadd.f32 %v4298, %v4320
        %v4338 = vadd.f32 %v4299, %v4320
        %v4339 = vadd.f32 %v4300, %v4320
        %v4340 = vadd.f32 %v4301, %v4320
        %v4341 = vadd.f32 %v4302, %v4320
        %v4342 = vadd.f32 %v4303, %v4320
        %v4343 = vadd.f32 %v4304, %v4320
        %v4344 = vadd.f32 %v4305, %v4320
        %v4345 = vadd.f32 %v4306, %v4320
        %v4346 = vadd.f32 %v4307, %v4320
        %v4347 = vadd.f32 %v4308, %v4320
        %v4348 = vadd.f32 %v4309, %v4320
        %v4349 = vadd.f32 %v4310, %v4320
        %v4350 = vadd.f32 %v4311, %v4320
        %v4351 = vadd.f32 %v4312, %v4320
        %v4352 = vadd.f32 %v4313, %v4320
        %v4353 = vadd.f32 %v4314, %v4320
        %v4354 = vmax.f32 %v4322, 0.0
        %v4355 = vmax.f32 %v4323, 0.0
        %v4356 = vmax.f32 %v4324, 0.0
        %v4357 = vmax.f32 %v4325, 0.0
        %v4358 = vmax.f32 %v4326, 0.0
        %v4359 = vmax.f32 %v4327, 0.0
        %v4360 = vmax.f32 %v4328, 0.0
        %v4361 = vmax.f32 %v4329, 0.0
        %v4362 = vmax.f32 %v4330, 0.0
        %v4363 = vmax.f32 %v4331, 0.0
        %v4364 = vmax.f32 %v4332, 0.0
        %v4365 = vmax.f32 %v4333, 0.0
        %v4366 = vmax.f32 %v4334, 0.0
        %v4367 = vmax.f32 %v4335, 0.0
        %v4368 = vmax.f32 %v4336, 0.0
        %v4369 = vmax.f32 %v4337, 0.0
        %v4370 = vmax.f32 %v4338, 0.0
        %v4371 = vmax.f32 %v4339, 0.0
        %v4372 = vmax.f32 %v4340, 0.0
        %v4373 = vmax.f32 %v4341, 0.0
        %v4374 = vmax.f32 %v4342, 0.0
        %v4375 = vmax.f32 %v4343, 0.0
        %v4376 = vmax.f32 %v4344, 0.0
        %v4377 = vmax.f32 %v4345, 0.0
        %v4378 = vmax.f32 %v4346, 0.0
        %v4379 = vmax.f32 %v4347, 0.0
        %v4380 = vmax.f32 %v4348, 0.0
        %v4381 = vmax.f32 %v4349, 0.0
        %v4382 = vmax.f32 %v4350, 0.0
        %v4383 = vmax.f32 %v4351, 0.0
        %v4384 = vmax.f32 %v4352, 0.0
        %v4385 = vmax.f32 %v4353, 0.0
        %v4418 = vrot.slane %v4354, 7
        %v4419 = vrot.slane %v4355, 7
        %v4420 = vsel %vm993, %v4418, %v4419
        %v4421 = vrot.slane %v4356, 7
        %v4422 = vrot.slane %v4357, 7
        %v4423 = vsel %vm993, %v4421, %v4422
        %v4424 = vrot.slane %v4358, 7
        %v4425 = vrot.slane %v4359, 7
        %v4426 = vsel %vm993, %v4424, %v4425
        %v4427 = vrot.slane %v4360, 7
        %v4428 = vrot.slane %v4361, 7
        %v4429 = vsel %vm993, %v4427, %v4428
        %v4430 = vrot.slane %v4362, 7
        %v4431 = vrot.slane %v4363, 7
        %v4432 = vsel %vm993, %v4430, %v4431
        %v4433 = vrot.slane %v4364, 7
        %v4434 = vrot.slane %v4365, 7
        %v4435 = vsel %vm993, %v4433, %v4434
        %v4436 = vrot.slane %v4366, 7
        %v4437 = vrot.slane %v4367, 7
        %v4438 = vsel %vm993, %v4436, %v4437
        %v4439 = vrot.slane %v4368, 7
        %v4440 = vrot.slane %v4369, 7
        %v4441 = vsel %vm993, %v4439, %v4440
        %v4442 = vrot.slane %v4370, 7
        %v4443 = vrot.slane %v4371, 7
        %v4444 = vsel %vm993, %v4442, %v4443
        %v4445 = vrot.slane %v4372, 7
        %v4446 = vrot.slane %v4373, 7
        %v4447 = vsel %vm993, %v4445, %v4446
        %v4448 = vrot.slane %v4374, 7
        %v4449 = vrot.slane %v4375, 7
        %v4450 = vsel %vm993, %v4448, %v4449
        %v4451 = vrot.slane %v4376, 7
        %v4452 = vrot.slane %v4377, 7
        %v4453 = vsel %vm993, %v4451, %v4452
        %v4454 = vrot.slane %v4378, 7
        %v4455 = vrot.slane %v4379, 7
        %v4456 = vsel %vm993, %v4454, %v4455
        %v4457 = vrot.slane %v4380, 7
        %v4458 = vrot.slane %v4381, 7
        %v4459 = vsel %vm993, %v4457, %v4458
        %v4460 = vrot.slane %v4382, 7
        %v4461 = vrot.slane %v4383, 7
        %v4462 = vsel %vm993, %v4460, %v4461
        %v4463 = vrot.slane %v4384, 7
        %v4464 = vrot.slane %v4385, 7
        %v4465 = vsel %vm993, %v4463, %v4464
        %v4513 = vsel %vm993, 0.0, %v4418
        %v4514 = vsel %vm993, 0.0, %v4421
        %v4515 = vsel %vm993, 0.0, %v4424
        %v4516 = vsel %vm993, 0.0, %v4427
        %v4517 = vsel %vm993, 0.0, %v4430
        %v4518 = vsel %vm993, 0.0, %v4433
        %v4519 = vsel %vm993, 0.0, %v4436
        %v4520 = vsel %vm993, 0.0, %v4439
        %v4521 = vsel %vm993, 0.0, %v4442
        %v4522 = vsel %vm993, 0.0, %v4445
        %v4523 = vsel %vm993, 0.0, %v4448
        %v4524 = vsel %vm993, 0.0, %v4451
        %v4525 = vsel %vm993, 0.0, %v4454
        %v4526 = vsel %vm993, 0.0, %v4457
        %v4527 = vsel %vm993, 0.0, %v4460
        %v4528 = vsel %vm993, 0.0, %v4463
        %v4529 = vsel %vm993, %v4419, 0.0
        %v4530 = vsel %vm993, %v4422, 0.0
        %v4531 = vsel %vm993, %v4425, 0.0
        %v4532 = vsel %vm993, %v4428, 0.0
        %v4533 = vsel %vm993, %v4431, 0.0
        %v4534 = vsel %vm993, %v4434, 0.0
        %v4535 = vsel %vm993, %v4437, 0.0
        %v4536 = vsel %vm993, %v4440, 0.0
        %v4537 = vsel %vm993, %v4443, 0.0
        %v4538 = vsel %vm993, %v4446, 0.0
        %v4539 = vsel %vm993, %v4449, 0.0
        %v4540 = vsel %vm993, %v4452, 0.0
        %v4541 = vsel %vm993, %v4455, 0.0
        %v4542 = vsel %vm993, %v4458, 0.0
        %v4543 = vsel %vm993, %v4461, 0.0
        %v4544 = vsel %vm993, %v4464, 0.0
        %v4575 = vrot.slane %v4513, 1
        %v4576 = vrot.slane %v4420, 1
        %v4577 = vsel %vm1152, %v4575, %v4576
        %v4578 = vrot.slane %v4529, 1
        %v4579 = vsel %vm1152, %v4576, %v4578
        %v4580 = vrot.slane %v4514, 1
        %v4581 = vrot.slane %v4423, 1
        %v4582 = vsel %vm1152, %v4580, %v4581
        %v4583 = vrot.slane %v4530, 1
        %v4584 = vsel %vm1152, %v4581, %v4583
        %v4585 = vrot.slane %v4515, 1
        %v4586 = vrot.slane %v4426, 1
        %v4587 = vsel %vm1152, %v4585, %v4586
        %v4588 = vrot.slane %v4531, 1
        %v4589 = vsel %vm1152, %v4586, %v4588
        %v4590 = vrot.slane %v4516, 1
        %v4591 = vrot.slane %v4429, 1
        %v4592 = vsel %vm1152, %v4590, %v4591
        %v4593 = vrot.slane %v4532, 1
        %v4594 = vsel %vm1152, %v4591, %v4593
        %v4595 = vrot.slane %v4517, 1
        %v4596 = vrot.slane %v4432, 1
        %v4597 = vsel %vm1152, %v4595, %v4596
        %v4598 = vrot.slane %v4533, 1
        %v4599 = vsel %vm1152, %v4596, %v4598
        %v4600 = vrot.slane %v4518, 1
        %v4601 = vrot.slane %v4435, 1
        %v4602 = vsel %vm1152, %v4600, %v4601
        %v4603 = vrot.slane %v4534, 1
        %v4604 = vsel %vm1152, %v4601, %v4603
        %v4605 = vrot.slane %v4519, 1
        %v4606 = vrot.slane %v4438, 1
        %v4607 = vsel %vm1152, %v4605, %v4606
        %v4608 = vrot.slane %v4535, 1
        %v4609 = vsel %vm1152, %v4606, %v4608
        %v4610 = vrot.slane %v4520, 1
        %v4611 = vrot.slane %v4441, 1
        %v4612 = vsel %vm1152, %v4610, %v4611
        %v4613 = vrot.slane %v4536, 1
        %v4614 = vsel %vm1152, %v4611, %v4613
        %v4615 = vrot.slane %v4521, 1
        %v4616 = vrot.slane %v4444, 1
        %v4617 = vsel %vm1152, %v4615, %v4616
        %v4618 = vrot.slane %v4537, 1
        %v4619 = vsel %vm1152, %v4616, %v4618
        %v4620 = vrot.slane %v4522, 1
        %v4621 = vrot.slane %v4447, 1
        %v4622 = vsel %vm1152, %v4620, %v4621
        %v4623 = vrot.slane %v4538, 1
        %v4624 = vsel %vm1152, %v4621, %v4623
        %v4625 = vrot.slane %v4523, 1
        %v4626 = vrot.slane %v4450, 1
        %v4627 = vsel %vm1152, %v4625, %v4626
        %v4628 = vrot.slane %v4539, 1
        %v4629 = vsel %vm1152, %v4626, %v4628
        %v4630 = vrot.slane %v4524, 1
        %v4631 = vrot.slane %v4453, 1
        %v4632 = vsel %vm1152, %v4630, %v4631
        %v4633 = vrot.slane %v4540, 1
        %v4634 = vsel %vm1152, %v4631, %v4633
        %v4635 = vrot.slane %v4525, 1
        %v4636 = vrot.slane %v4456, 1
        %v4637 = vsel %vm1152, %v4635, %v4636
        %v4638 = vrot.slane %v4541, 1
        %v4639 = vsel %vm1152, %v4636, %v4638
        %v4640 = vrot.slane %v4526, 1
        %v4641 = vrot.slane %v4459, 1
        %v4642 = vsel %vm1152, %v4640, %v4641
        %v4643 = vrot.slane %v4542, 1
        %v4644 = vsel %vm1152, %v4641, %v4643
        %v4645 = vrot.slane %v4527, 1
        %v4646 = vrot.slane %v4462, 1
        %v4647 = vsel %vm1152, %v4645, %v4646
        %v4648 = vrot.slane %v4543, 1
        %v4649 = vsel %vm1152, %v4646, %v4648
        %4650 = vrot.lane.b32.xlu0 %v4577, 16
        %v4651 = vpop.permute.xlu0 %4650
        %4652 = vrot.lane.b32.xlu0 %v4579, 16
        %v4653 = vpop.permute.xlu0 %4652
        %4654 = vrot.lane.b32.xlu0 %v4582, 16
        %v4655 = vpop.permute.xlu0 %4654
        %4656 = vrot.lane.b32.xlu0 %v4584, 16
        %v4657 = vpop.permute.xlu0 %4656
        %4658 = vrot.lane.b32.xlu0 %v4587, 16
        %v4659 = vpop.permute.xlu0 %4658
        %4660 = vrot.lane.b32.xlu0 %v4589, 16
        %v4661 = vpop.permute.xlu0 %4660
        %4662 = vrot.lane.b32.xlu0 %v4592, 16
        %v4663 = vpop.permute.xlu0 %4662
        %4664 = vrot.lane.b32.xlu0 %v4594, 16
        %v4665 = vpop.permute.xlu0 %4664
        %4666 = vrot.lane.b32.xlu0 %v4597, 16
        %v4667 = vpop.permute.xlu0 %4666
        %4668 = vrot.lane.b32.xlu0 %v4599, 16
        %v4669 = vpop.permute.xlu0 %4668
        %4670 = vrot.lane.b32.xlu0 %v4602, 16
        %v4671 = vpop.permute.xlu0 %4670
        %4672 = vrot.lane.b32.xlu0 %v4604, 16
        %v4673 = vpop.permute.xlu0 %4672
        %4674 = vrot.lane.b32.xlu0 %v4607, 16
        %v4675 = vpop.permute.xlu0 %4674
        %4676 = vrot.lane.b32.xlu0 %v4609, 16
        %v4677 = vpop.permute.xlu0 %4676
        %4678 = vrot.lane.b32.xlu0 %v4612, 16
        %v4679 = vpop.permute.xlu0 %4678
        %4680 = vrot.lane.b32.xlu0 %v4614, 16
        %v4681 = vpop.permute.xlu0 %4680
        %4682 = vrot.lane.b32.xlu0 %v4617, 16
        %v4683 = vpop.permute.xlu0 %4682
        %4684 = vrot.lane.b32.xlu0 %v4619, 16
        %v4685 = vpop.permute.xlu0 %4684
        %4686 = vrot.lane.b32.xlu0 %v4622, 16
        %v4687 = vpop.permute.xlu0 %4686
        %4688 = vrot.lane.b32.xlu0 %v4624, 16
        %v4689 = vpop.permute.xlu0 %4688
        %4690 = vrot.lane.b32.xlu0 %v4627, 16
        %v4691 = vpop.permute.xlu0 %4690
        %4692 = vrot.lane.b32.xlu0 %v4629, 16
        %v4693 = vpop.permute.xlu0 %4692
        %4694 = vrot.lane.b32.xlu0 %v4632, 16
        %v4695 = vpop.permute.xlu0 %4694
        %4696 = vrot.lane.b32.xlu0 %v4634, 16
        %v4697 = vpop.permute.xlu0 %4696
        %4698 = vrot.lane.b32.xlu0 %v4637, 16
        %v4699 = vpop.permute.xlu0 %4698
        %4700 = vrot.lane.b32.xlu0 %v4639, 16
        %v4701 = vpop.permute.xlu0 %4700
        %4702 = vrot.lane.b32.xlu0 %v4642, 16
        %v4703 = vpop.permute.xlu0 %4702
        %4704 = vrot.lane.b32.xlu0 %v4644, 16
        %v4705 = vpop.permute.xlu0 %4704
        %4706 = vrot.lane.b32.xlu0 %v4647, 16
        %v4707 = vpop.permute.xlu0 %4706
        %4708 = vrot.lane.b32.xlu0 %v4649, 16
        %v4709 = vpop.permute.xlu0 %4708
        %v4740 = vrot.slane %v4513, 2
        %v4741 = vrot.slane %v4420, 2
        %v4742 = vsel %vm1323, %v4740, %v4741
        %v4743 = vrot.slane %v4529, 2
        %v4744 = vsel %vm1323, %v4741, %v4743
        %v4745 = vrot.slane %v4514, 2
        %v4746 = vrot.slane %v4423, 2
        %v4747 = vsel %vm1323, %v4745, %v4746
        %v4748 = vrot.slane %v4530, 2
        %v4749 = vsel %vm1323, %v4746, %v4748
        %v4750 = vrot.slane %v4515, 2
        %v4751 = vrot.slane %v4426, 2
        %v4752 = vsel %vm1323, %v4750, %v4751
        %v4753 = vrot.slane %v4531, 2
        %v4754 = vsel %vm1323, %v4751, %v4753
        %v4755 = vrot.slane %v4516, 2
        %v4756 = vrot.slane %v4429, 2
        %v4757 = vsel %vm1323, %v4755, %v4756
        %v4758 = vrot.slane %v4532, 2
        %v4759 = vsel %vm1323, %v4756, %v4758
        %v4760 = vrot.slane %v4517, 2
        %v4761 = vrot.slane %v4432, 2
        %v4762 = vsel %vm1323, %v4760, %v4761
        %v4763 = vrot.slane %v4533, 2
        %v4764 = vsel %vm1323, %v4761, %v4763
        %v4765 = vrot.slane %v4518, 2
        %v4766 = vrot.slane %v4435, 2
        %v4767 = vsel %vm1323, %v4765, %v4766
        %v4768 = vrot.slane %v4534, 2
        %v4769 = vsel %vm1323, %v4766, %v4768
        %v4770 = vrot.slane %v4519, 2
        %v4771 = vrot.slane %v4438, 2
        %v4772 = vsel %vm1323, %v4770, %v4771
        %v4773 = vrot.slane %v4535, 2
        %v4774 = vsel %vm1323, %v4771, %v4773
        %v4775 = vrot.slane %v4520, 2
        %v4776 = vrot.slane %v4441, 2
        %v4777 = vsel %vm1323, %v4775, %v4776
        %v4778 = vrot.slane %v4536, 2
        %v4779 = vsel %vm1323, %v4776, %v4778
        %v4780 = vrot.slane %v4521, 2
        %v4781 = vrot.slane %v4444, 2
        %v4782 = vsel %vm1323, %v4780, %v4781
        %v4783 = vrot.slane %v4537, 2
        %v4784 = vsel %vm1323, %v4781, %v4783
        %v4785 = vrot.slane %v4522, 2
        %v4786 = vrot.slane %v4447, 2
        %v4787 = vsel %vm1323, %v4785, %v4786
        %v4788 = vrot.slane %v4538, 2
        %v4789 = vsel %vm1323, %v4786, %v4788
        %v4790 = vrot.slane %v4523, 2
        %v4791 = vrot.slane %v4450, 2
        %v4792 = vsel %vm1323, %v4790, %v4791
        %v4793 = vrot.slane %v4539, 2
        %v4794 = vsel %vm1323, %v4791, %v4793
        %v4795 = vrot.slane %v4524, 2
        %v4796 = vrot.slane %v4453, 2
        %v4797 = vsel %vm1323, %v4795, %v4796
        %v4798 = vrot.slane %v4540, 2
        %v4799 = vsel %vm1323, %v4796, %v4798
        %v4800 = vrot.slane %v4525, 2
        %v4801 = vrot.slane %v4456, 2
        %v4802 = vsel %vm1323, %v4800, %v4801
        %v4803 = vrot.slane %v4541, 2
        %v4804 = vsel %vm1323, %v4801, %v4803
        %v4805 = vrot.slane %v4526, 2
        %v4806 = vrot.slane %v4459, 2
        %v4807 = vsel %vm1323, %v4805, %v4806
        %v4808 = vrot.slane %v4542, 2
        %v4809 = vsel %vm1323, %v4806, %v4808
        %v4810 = vrot.slane %v4527, 2
        %v4811 = vrot.slane %v4462, 2
        %v4812 = vsel %vm1323, %v4810, %v4811
        %v4813 = vrot.slane %v4543, 2
        %v4814 = vsel %vm1323, %v4811, %v4813
        %4815 = vrot.lane.b32.xlu0 %v4742, 32
        %v4816 = vpop.permute.xlu0 %4815
        %4817 = vrot.lane.b32.xlu0 %v4744, 32
        %v4818 = vpop.permute.xlu0 %4817
        %4819 = vrot.lane.b32.xlu0 %v4747, 32
        %v4820 = vpop.permute.xlu0 %4819
        %4821 = vrot.lane.b32.xlu0 %v4749, 32
        %v4822 = vpop.permute.xlu0 %4821
        %4823 = vrot.lane.b32.xlu0 %v4752, 32
        %v4824 = vpop.permute.xlu0 %4823
        %4825 = vrot.lane.b32.xlu0 %v4754, 32
        %v4826 = vpop.permute.xlu0 %4825
        %4827 = vrot.lane.b32.xlu0 %v4757, 32
        %v4828 = vpop.permute.xlu0 %4827
        %4829 = vrot.lane.b32.xlu0 %v4759, 32
        %v4830 = vpop.permute.xlu0 %4829
        %4831 = vrot.lane.b32.xlu0 %v4762, 32
        %v4832 = vpop.permute.xlu0 %4831
        %4833 = vrot.lane.b32.xlu0 %v4764, 32
        %v4834 = vpop.permute.xlu0 %4833
        %4835 = vrot.lane.b32.xlu0 %v4767, 32
        %v4836 = vpop.permute.xlu0 %4835
        %4837 = vrot.lane.b32.xlu0 %v4769, 32
        %v4838 = vpop.permute.xlu0 %4837
        %4839 = vrot.lane.b32.xlu0 %v4772, 32
        %v4840 = vpop.permute.xlu0 %4839
        %4841 = vrot.lane.b32.xlu0 %v4774, 32
        %v4842 = vpop.permute.xlu0 %4841
        %4843 = vrot.lane.b32.xlu0 %v4777, 32
        %v4844 = vpop.permute.xlu0 %4843
        %4845 = vrot.lane.b32.xlu0 %v4779, 32
        %v4846 = vpop.permute.xlu0 %4845
        %4847 = vrot.lane.b32.xlu0 %v4782, 32
        %v4848 = vpop.permute.xlu0 %4847
        %4849 = vrot.lane.b32.xlu0 %v4784, 32
        %v4850 = vpop.permute.xlu0 %4849
        %4851 = vrot.lane.b32.xlu0 %v4787, 32
        %v4852 = vpop.permute.xlu0 %4851
        %4853 = vrot.lane.b32.xlu0 %v4789, 32
        %v4854 = vpop.permute.xlu0 %4853
        %4855 = vrot.lane.b32.xlu0 %v4792, 32
        %v4856 = vpop.permute.xlu0 %4855
        %4857 = vrot.lane.b32.xlu0 %v4794, 32
        %v4858 = vpop.permute.xlu0 %4857
        %4859 = vrot.lane.b32.xlu0 %v4797, 32
        %v4860 = vpop.permute.xlu0 %4859
        %4861 = vrot.lane.b32.xlu0 %v4799, 32
        %v4862 = vpop.permute.xlu0 %4861
        %4863 = vrot.lane.b32.xlu0 %v4802, 32
        %v4864 = vpop.permute.xlu0 %4863
        %4865 = vrot.lane.b32.xlu0 %v4804, 32
        %v4866 = vpop.permute.xlu0 %4865
        %4867 = vrot.lane.b32.xlu0 %v4807, 32
        %v4868 = vpop.permute.xlu0 %4867
        %4869 = vrot.lane.b32.xlu0 %v4809, 32
        %v4870 = vpop.permute.xlu0 %4869
        %4871 = vrot.lane.b32.xlu0 %v4812, 32
        %v4872 = vpop.permute.xlu0 %4871
        %4873 = vrot.lane.b32.xlu0 %v4814, 32
        %v4874 = vpop.permute.xlu0 %4873
        %4906 = vrot.lane.b32.xlu0 %v4513, 48
        %v4907 = vpop.permute.xlu0 %4906
        %4908 = vrot.lane.b32.xlu0 %v4420, 48
        %v4909 = vpop.permute.xlu0 %4908
        %4910 = vrot.lane.b32.xlu0 %v4514, 48
        %v4911 = vpop.permute.xlu0 %4910
        %4912 = vrot.lane.b32.xlu0 %v4423, 48
        %v4913 = vpop.permute.xlu0 %4912
        %4914 = vrot.lane.b32.xlu0 %v4515, 48
        %v4915 = vpop.permute.xlu0 %4914
        %4916 = vrot.lane.b32.xlu0 %v4426, 48
        %v4917 = vpop.permute.xlu0 %4916
        %4918 = vrot.lane.b32.xlu0 %v4516, 48
        %v4919 = vpop.permute.xlu0 %4918
        %4920 = vrot.lane.b32.xlu0 %v4429, 48
        %v4921 = vpop.permute.xlu0 %4920
        %4922 = vrot.lane.b32.xlu0 %v4517, 48
        %v4923 = vpop.permute.xlu0 %4922
        %4924 = vrot.lane.b32.xlu0 %v4432, 48
        %v4925 = vpop.permute.xlu0 %4924
        %4926 = vrot.lane.b32.xlu0 %v4518, 48
        %v4927 = vpop.permute.xlu0 %4926
        %4928 = vrot.lane.b32.xlu0 %v4435, 48
        %v4929 = vpop.permute.xlu0 %4928
        %4930 = vrot.lane.b32.xlu0 %v4519, 48
        %v4931 = vpop.permute.xlu0 %4930
        %4932 = vrot.lane.b32.xlu0 %v4438, 48
        %v4933 = vpop.permute.xlu0 %4932
        %4934 = vrot.lane.b32.xlu0 %v4520, 48
        %v4935 = vpop.permute.xlu0 %4934
        %4936 = vrot.lane.b32.xlu0 %v4441, 48
        %v4937 = vpop.permute.xlu0 %4936
        %4938 = vrot.lane.b32.xlu0 %v4521, 48
        %v4939 = vpop.permute.xlu0 %4938
        %4940 = vrot.lane.b32.xlu0 %v4444, 48
        %v4941 = vpop.permute.xlu0 %4940
        %4942 = vrot.lane.b32.xlu0 %v4522, 48
        %v4943 = vpop.permute.xlu0 %4942
        %4944 = vrot.lane.b32.xlu0 %v4447, 48
        %v4945 = vpop.permute.xlu0 %4944
        %4946 = vrot.lane.b32.xlu0 %v4523, 48
        %v4947 = vpop.permute.xlu0 %4946
        %4948 = vrot.lane.b32.xlu0 %v4450, 48
        %v4949 = vpop.permute.xlu0 %4948
        %4950 = vrot.lane.b32.xlu0 %v4524, 48
        %v4951 = vpop.permute.xlu0 %4950
        %4952 = vrot.lane.b32.xlu0 %v4453, 48
        %v4953 = vpop.permute.xlu0 %4952
        %4954 = vrot.lane.b32.xlu0 %v4525, 48
        %v4955 = vpop.permute.xlu0 %4954
        %4956 = vrot.lane.b32.xlu0 %v4456, 48
        %v4957 = vpop.permute.xlu0 %4956
        %4958 = vrot.lane.b32.xlu0 %v4526, 48
        %v4959 = vpop.permute.xlu0 %4958
        %4960 = vrot.lane.b32.xlu0 %v4459, 48
        %v4961 = vpop.permute.xlu0 %4960
        %4962 = vrot.lane.b32.xlu0 %v4527, 48
        %v4963 = vpop.permute.xlu0 %4962
        %4964 = vrot.lane.b32.xlu0 %v4462, 48
        %v4965 = vpop.permute.xlu0 %4964
        %4966 = vrot.lane.b32.xlu0 %v4528, 48
        %v4967 = vpop.permute.xlu0 %4966
        %4968 = vrot.lane.b32.xlu0 %v4465, 48
        %v4969 = vpop.permute.xlu0 %4968
        %v5003 = vrot.slane %v4528, 1
        %v5004 = vrot.slane %v4465, 1
        %v5005 = vsel %vm1152, %v5003, %v5004
        %v5006 = vrot.slane %v4544, 1
        %v5007 = vsel %vm1152, %v5004, %v5006
        %5008 = vrot.lane.b32.xlu0 %v4577, 64
        %v5009 = vpop.permute.xlu0 %5008
        %5010 = vrot.lane.b32.xlu0 %v4579, 64
        %v5011 = vpop.permute.xlu0 %5010
        %5012 = vrot.lane.b32.xlu0 %v4582, 64
        %v5013 = vpop.permute.xlu0 %5012
        %5014 = vrot.lane.b32.xlu0 %v4584, 64
        %v5015 = vpop.permute.xlu0 %5014
        %5016 = vrot.lane.b32.xlu0 %v4587, 64
        %v5017 = vpop.permute.xlu0 %5016
        %5018 = vrot.lane.b32.xlu0 %v4589, 64
        %v5019 = vpop.permute.xlu0 %5018
        %5020 = vrot.lane.b32.xlu0 %v4592, 64
        %v5021 = vpop.permute.xlu0 %5020
        %5022 = vrot.lane.b32.xlu0 %v4594, 64
        %v5023 = vpop.permute.xlu0 %5022
        %5024 = vrot.lane.b32.xlu0 %v4597, 64
        %v5025 = vpop.permute.xlu0 %5024
        %5026 = vrot.lane.b32.xlu0 %v4599, 64
        %v5027 = vpop.permute.xlu0 %5026
        %5028 = vrot.lane.b32.xlu0 %v4602, 64
        %v5029 = vpop.permute.xlu0 %5028
        %5030 = vrot.lane.b32.xlu0 %v4604, 64
        %v5031 = vpop.permute.xlu0 %5030
        %5032 = vrot.lane.b32.xlu0 %v4607, 64
        %v5033 = vpop.permute.xlu0 %5032
        %5034 = vrot.lane.b32.xlu0 %v4609, 64
        %v5035 = vpop.permute.xlu0 %5034
        %5036 = vrot.lane.b32.xlu0 %v4612, 64
        %v5037 = vpop.permute.xlu0 %5036
        %5038 = vrot.lane.b32.xlu0 %v4614, 64
        %v5039 = vpop.permute.xlu0 %5038
        %5040 = vrot.lane.b32.xlu0 %v4617, 64
        %v5041 = vpop.permute.xlu0 %5040
        %5042 = vrot.lane.b32.xlu0 %v4619, 64
        %v5043 = vpop.permute.xlu0 %5042
        %5044 = vrot.lane.b32.xlu0 %v4622, 64
        %v5045 = vpop.permute.xlu0 %5044
        %5046 = vrot.lane.b32.xlu0 %v4624, 64
        %v5047 = vpop.permute.xlu0 %5046
        %5048 = vrot.lane.b32.xlu0 %v4627, 64
        %v5049 = vpop.permute.xlu0 %5048
        %5050 = vrot.lane.b32.xlu0 %v4629, 64
        %v5051 = vpop.permute.xlu0 %5050
        %5052 = vrot.lane.b32.xlu0 %v4632, 64
        %v5053 = vpop.permute.xlu0 %5052
        %5054 = vrot.lane.b32.xlu0 %v4634, 64
        %v5055 = vpop.permute.xlu0 %5054
        %5056 = vrot.lane.b32.xlu0 %v4637, 64
        %v5057 = vpop.permute.xlu0 %5056
        %5058 = vrot.lane.b32.xlu0 %v4639, 64
        %v5059 = vpop.permute.xlu0 %5058
        %5060 = vrot.lane.b32.xlu0 %v4642, 64
        %v5061 = vpop.permute.xlu0 %5060
        %5062 = vrot.lane.b32.xlu0 %v4644, 64
        %v5063 = vpop.permute.xlu0 %5062
        %5064 = vrot.lane.b32.xlu0 %v4647, 64
        %v5065 = vpop.permute.xlu0 %5064
        %5066 = vrot.lane.b32.xlu0 %v4649, 64
        %v5067 = vpop.permute.xlu0 %5066
        %5068 = vrot.lane.b32.xlu0 %v5005, 64
        %v5069 = vpop.permute.xlu0 %5068
        %5070 = vrot.lane.b32.xlu0 %v5007, 64
        %v5071 = vpop.permute.xlu0 %5070
        %v5104 = vrot.slane %v4528, 2
        %v5105 = vrot.slane %v4465, 2
        %v5106 = vsel %vm1323, %v5104, %v5105
        %v5107 = vrot.slane %v4544, 2
        %v5108 = vsel %vm1323, %v5105, %v5107
        %5109 = vrot.lane.b32.xlu0 %v4742, 80
        %v5110 = vpop.permute.xlu0 %5109
        %5111 = vrot.lane.b32.xlu0 %v4744, 80
        %v5112 = vpop.permute.xlu0 %5111
        %5113 = vrot.lane.b32.xlu0 %v4747, 80
        %v5114 = vpop.permute.xlu0 %5113
        %5115 = vrot.lane.b32.xlu0 %v4749, 80
        %v5116 = vpop.permute.xlu0 %5115
        %5117 = vrot.lane.b32.xlu0 %v4752, 80
        %v5118 = vpop.permute.xlu0 %5117
        %5119 = vrot.lane.b32.xlu0 %v4754, 80
        %v5120 = vpop.permute.xlu0 %5119
        %5121 = vrot.lane.b32.xlu0 %v4757, 80
        %v5122 = vpop.permute.xlu0 %5121
        %5123 = vrot.lane.b32.xlu0 %v4759, 80
        %v5124 = vpop.permute.xlu0 %5123
        %5125 = vrot.lane.b32.xlu0 %v4762, 80
        %v5126 = vpop.permute.xlu0 %5125
        %5127 = vrot.lane.b32.xlu0 %v4764, 80
        %v5128 = vpop.permute.xlu0 %5127
        %5129 = vrot.lane.b32.xlu0 %v4767, 80
        %v5130 = vpop.permute.xlu0 %5129
        %5131 = vrot.lane.b32.xlu0 %v4769, 80
        %v5132 = vpop.permute.xlu0 %5131
        %5133 = vrot.lane.b32.xlu0 %v4772, 80
        %v5134 = vpop.permute.xlu0 %5133
        %5135 = vrot.lane.b32.xlu0 %v4774, 80
        %v5136 = vpop.permute.xlu0 %5135
        %5137 = vrot.lane.b32.xlu0 %v4777, 80
        %v5138 = vpop.permute.xlu0 %5137
        %5139 = vrot.lane.b32.xlu0 %v4779, 80
        %v5140 = vpop.permute.xlu0 %5139
        %5141 = vrot.lane.b32.xlu0 %v4782, 80
        %v5142 = vpop.permute.xlu0 %5141
        %5143 = vrot.lane.b32.xlu0 %v4784, 80
        %v5144 = vpop.permute.xlu0 %5143
        %5145 = vrot.lane.b32.xlu0 %v4787, 80
        %v5146 = vpop.permute.xlu0 %5145
        %5147 = vrot.lane.b32.xlu0 %v4789, 80
        %v5148 = vpop.permute.xlu0 %5147
        %5149 = vrot.lane.b32.xlu0 %v4792, 80
        %v5150 = vpop.permute.xlu0 %5149
        %5151 = vrot.lane.b32.xlu0 %v4794, 80
        %v5152 = vpop.permute.xlu0 %5151
        %5153 = vrot.lane.b32.xlu0 %v4797, 80
        %v5154 = vpop.permute.xlu0 %5153
        %5155 = vrot.lane.b32.xlu0 %v4799, 80
        %v5156 = vpop.permute.xlu0 %5155
        %5157 = vrot.lane.b32.xlu0 %v4802, 80
        %v5158 = vpop.permute.xlu0 %5157
        %5159 = vrot.lane.b32.xlu0 %v4804, 80
        %v5160 = vpop.permute.xlu0 %5159
        %5161 = vrot.lane.b32.xlu0 %v4807, 80
        %v5162 = vpop.permute.xlu0 %5161
        %5163 = vrot.lane.b32.xlu0 %v4809, 80
        %v5164 = vpop.permute.xlu0 %5163
        %5165 = vrot.lane.b32.xlu0 %v4812, 80
        %v5166 = vpop.permute.xlu0 %5165
        %5167 = vrot.lane.b32.xlu0 %v4814, 80
        %v5168 = vpop.permute.xlu0 %5167
        %5169 = vrot.lane.b32.xlu0 %v5106, 80
        %v5170 = vpop.permute.xlu0 %5169
        %5171 = vrot.lane.b32.xlu0 %v5108, 80
        %v5172 = vpop.permute.xlu0 %5171
        %5205 = vrot.lane.b32.xlu0 %v4514, 96
        %v5206 = vpop.permute.xlu0 %5205
        %5207 = vrot.lane.b32.xlu0 %v4423, 96
        %v5208 = vpop.permute.xlu0 %5207
        %5209 = vrot.lane.b32.xlu0 %v4515, 96
        %v5210 = vpop.permute.xlu0 %5209
        %5211 = vrot.lane.b32.xlu0 %v4426, 96
        %v5212 = vpop.permute.xlu0 %5211
        %5213 = vrot.lane.b32.xlu0 %v4516, 96
        %v5214 = vpop.permute.xlu0 %5213
        %5215 = vrot.lane.b32.xlu0 %v4429, 96
        %v5216 = vpop.permute.xlu0 %5215
        %5217 = vrot.lane.b32.xlu0 %v4517, 96
        %v5218 = vpop.permute.xlu0 %5217
        %5219 = vrot.lane.b32.xlu0 %v4432, 96
        %v5220 = vpop.permute.xlu0 %5219
        %5221 = vrot.lane.b32.xlu0 %v4518, 96
        %v5222 = vpop.permute.xlu0 %5221
        %5223 = vrot.lane.b32.xlu0 %v4435, 96
        %v5224 = vpop.permute.xlu0 %5223
        %5225 = vrot.lane.b32.xlu0 %v4519, 96
        %v5226 = vpop.permute.xlu0 %5225
        %5227 = vrot.lane.b32.xlu0 %v4438, 96
        %v5228 = vpop.permute.xlu0 %5227
        %5229 = vrot.lane.b32.xlu0 %v4520, 96
        %v5230 = vpop.permute.xlu0 %5229
        %5231 = vrot.lane.b32.xlu0 %v4441, 96
        %v5232 = vpop.permute.xlu0 %5231
        %5233 = vrot.lane.b32.xlu0 %v4521, 96
        %v5234 = vpop.permute.xlu0 %5233
        %5235 = vrot.lane.b32.xlu0 %v4444, 96
        %v5236 = vpop.permute.xlu0 %5235
        %5237 = vrot.lane.b32.xlu0 %v4522, 96
        %v5238 = vpop.permute.xlu0 %5237
        %5239 = vrot.lane.b32.xlu0 %v4447, 96
        %v5240 = vpop.permute.xlu0 %5239
        %5241 = vrot.lane.b32.xlu0 %v4523, 96
        %v5242 = vpop.permute.xlu0 %5241
        %5243 = vrot.lane.b32.xlu0 %v4450, 96
        %v5244 = vpop.permute.xlu0 %5243
        %5245 = vrot.lane.b32.xlu0 %v4524, 96
        %v5246 = vpop.permute.xlu0 %5245
        %5247 = vrot.lane.b32.xlu0 %v4453, 96
        %v5248 = vpop.permute.xlu0 %5247
        %5249 = vrot.lane.b32.xlu0 %v4525, 96
        %v5250 = vpop.permute.xlu0 %5249
        %5251 = vrot.lane.b32.xlu0 %v4456, 96
        %v5252 = vpop.permute.xlu0 %5251
        %5253 = vrot.lane.b32.xlu0 %v4526, 96
        %v5254 = vpop.permute.xlu0 %5253
        %5255 = vrot.lane.b32.xlu0 %v4459, 96
        %v5256 = vpop.permute.xlu0 %5255
        %5257 = vrot.lane.b32.xlu0 %v4527, 96
        %v5258 = vpop.permute.xlu0 %5257
        %5259 = vrot.lane.b32.xlu0 %v4462, 96
        %v5260 = vpop.permute.xlu0 %5259
        %5261 = vrot.lane.b32.xlu0 %v4528, 96
        %v5262 = vpop.permute.xlu0 %5261
        %5263 = vrot.lane.b32.xlu0 %v4465, 96
        %v5264 = vpop.permute.xlu0 %5263
        %5295 = vrot.lane.b32.xlu0 %v4582, 112
        %v5296 = vpop.permute.xlu0 %5295
        %5297 = vrot.lane.b32.xlu0 %v4584, 112
        %v5298 = vpop.permute.xlu0 %5297
        %5299 = vrot.lane.b32.xlu0 %v4587, 112
        %v5300 = vpop.permute.xlu0 %5299
        %5301 = vrot.lane.b32.xlu0 %v4589, 112
        %v5302 = vpop.permute.xlu0 %5301
        %5303 = vrot.lane.b32.xlu0 %v4592, 112
        %v5304 = vpop.permute.xlu0 %5303
        %5305 = vrot.lane.b32.xlu0 %v4594, 112
        %v5306 = vpop.permute.xlu0 %5305
        %5307 = vrot.lane.b32.xlu0 %v4597, 112
        %v5308 = vpop.permute.xlu0 %5307
        %5309 = vrot.lane.b32.xlu0 %v4599, 112
        %v5310 = vpop.permute.xlu0 %5309
        %5311 = vrot.lane.b32.xlu0 %v4602, 112
        %v5312 = vpop.permute.xlu0 %5311
        %5313 = vrot.lane.b32.xlu0 %v4604, 112
        %v5314 = vpop.permute.xlu0 %5313
        %5315 = vrot.lane.b32.xlu0 %v4607, 112
        %v5316 = vpop.permute.xlu0 %5315
        %5317 = vrot.lane.b32.xlu0 %v4609, 112
        %v5318 = vpop.permute.xlu0 %5317
        %5319 = vrot.lane.b32.xlu0 %v4612, 112
        %v5320 = vpop.permute.xlu0 %5319
        %5321 = vrot.lane.b32.xlu0 %v4614, 112
        %v5322 = vpop.permute.xlu0 %5321
        %5323 = vrot.lane.b32.xlu0 %v4617, 112
        %v5324 = vpop.permute.xlu0 %5323
        %5325 = vrot.lane.b32.xlu0 %v4619, 112
        %v5326 = vpop.permute.xlu0 %5325
        %5327 = vrot.lane.b32.xlu0 %v4622, 112
        %v5328 = vpop.permute.xlu0 %5327
        %5329 = vrot.lane.b32.xlu0 %v4624, 112
        %v5330 = vpop.permute.xlu0 %5329
        %5331 = vrot.lane.b32.xlu0 %v4627, 112
        %v5332 = vpop.permute.xlu0 %5331
        %5333 = vrot.lane.b32.xlu0 %v4629, 112
        %v5334 = vpop.permute.xlu0 %5333
        %5335 = vrot.lane.b32.xlu0 %v4632, 112
        %v5336 = vpop.permute.xlu0 %5335
        %5337 = vrot.lane.b32.xlu0 %v4634, 112
        %v5338 = vpop.permute.xlu0 %5337
        %5339 = vrot.lane.b32.xlu0 %v4637, 112
        %v5340 = vpop.permute.xlu0 %5339
        %5341 = vrot.lane.b32.xlu0 %v4639, 112
        %v5342 = vpop.permute.xlu0 %5341
        %5343 = vrot.lane.b32.xlu0 %v4642, 112
        %v5344 = vpop.permute.xlu0 %5343
        %5345 = vrot.lane.b32.xlu0 %v4644, 112
        %v5346 = vpop.permute.xlu0 %5345
        %5347 = vrot.lane.b32.xlu0 %v4647, 112
        %v5348 = vpop.permute.xlu0 %5347
        %5349 = vrot.lane.b32.xlu0 %v4649, 112
        %v5350 = vpop.permute.xlu0 %5349
        %5351 = vrot.lane.b32.xlu0 %v5005, 112
        %v5352 = vpop.permute.xlu0 %5351
        %5353 = vrot.lane.b32.xlu0 %v5007, 112
        %v5354 = vpop.permute.xlu0 %5353
        %v5415 = vsel %vm3734, %v4513, %v4651
        %v5416 = vsel %vm3734, %v4420, %v4653
        %v5417 = vsel %vm3734, %v4514, %v4655
        %v5418 = vsel %vm3734, %v4423, %v4657
        %v5419 = vsel %vm3734, %v4515, %v4659
        %v5420 = vsel %vm3734, %v4426, %v4661
        %v5421 = vsel %vm3734, %v4516, %v4663
        %v5422 = vsel %vm3734, %v4429, %v4665
        %v5423 = vsel %vm3734, %v4517, %v4667
        %v5424 = vsel %vm3734, %v4432, %v4669
        %v5425 = vsel %vm3734, %v4518, %v4671
        %v5426 = vsel %vm3734, %v4435, %v4673
        %v5427 = vsel %vm3734, %v4519, %v4675
        %v5428 = vsel %vm3734, %v4438, %v4677
        %v5429 = vsel %vm3734, %v4520, %v4679
        %v5430 = vsel %vm3734, %v4441, %v4681
        %v5431 = vsel %vm3734, %v4521, %v4683
        %v5432 = vsel %vm3734, %v4444, %v4685
        %v5433 = vsel %vm3734, %v4522, %v4687
        %v5434 = vsel %vm3734, %v4447, %v4689
        %v5435 = vsel %vm3734, %v4523, %v4691
        %v5436 = vsel %vm3734, %v4450, %v4693
        %v5437 = vsel %vm3734, %v4524, %v4695
        %v5438 = vsel %vm3734, %v4453, %v4697
        %v5439 = vsel %vm3734, %v4525, %v4699
        %v5440 = vsel %vm3734, %v4456, %v4701
        %v5441 = vsel %vm3734, %v4526, %v4703
        %v5442 = vsel %vm3734, %v4459, %v4705
        %v5443 = vsel %vm3734, %v4527, %v4707
        %v5444 = vsel %vm3734, %v4462, %v4709
        %v5445 = vsel %vm3766, %v5415, %v4816
        %v5446 = vsel %vm3766, %v5416, %v4818
        %v5447 = vsel %vm3766, %v5417, %v4820
        %v5448 = vsel %vm3766, %v5418, %v4822
        %v5449 = vsel %vm3766, %v5419, %v4824
        %v5450 = vsel %vm3766, %v5420, %v4826
        %v5451 = vsel %vm3766, %v5421, %v4828
        %v5452 = vsel %vm3766, %v5422, %v4830
        %v5453 = vsel %vm3766, %v5423, %v4832
        %v5454 = vsel %vm3766, %v5424, %v4834
        %v5455 = vsel %vm3766, %v5425, %v4836
        %v5456 = vsel %vm3766, %v5426, %v4838
        %v5457 = vsel %vm3766, %v5427, %v4840
        %v5458 = vsel %vm3766, %v5428, %v4842
        %v5459 = vsel %vm3766, %v5429, %v4844
        %v5460 = vsel %vm3766, %v5430, %v4846
        %v5461 = vsel %vm3766, %v5431, %v4848
        %v5462 = vsel %vm3766, %v5432, %v4850
        %v5463 = vsel %vm3766, %v5433, %v4852
        %v5464 = vsel %vm3766, %v5434, %v4854
        %v5465 = vsel %vm3766, %v5435, %v4856
        %v5466 = vsel %vm3766, %v5436, %v4858
        %v5467 = vsel %vm3766, %v5437, %v4860
        %v5468 = vsel %vm3766, %v5438, %v4862
        %v5469 = vsel %vm3766, %v5439, %v4864
        %v5470 = vsel %vm3766, %v5440, %v4866
        %v5471 = vsel %vm3766, %v5441, %v4868
        %v5472 = vsel %vm3766, %v5442, %v4870
        %v5473 = vsel %vm3766, %v5443, %v4872
        %v5474 = vsel %vm3766, %v5444, %v4874
        %v5475 = vsel %vm3798, %v3767, %v4907
        %v5476 = vsel %vm3798, %v3767, %v4909
        %v5477 = vsel %vm3798, %v5445, %v4911
        %v5478 = vsel %vm3798, %v5446, %v4913
        %v5479 = vsel %vm3798, %v5447, %v4915
        %v5480 = vsel %vm3798, %v5448, %v4917
        %v5481 = vsel %vm3798, %v5449, %v4919
        %v5482 = vsel %vm3798, %v5450, %v4921
        %v5483 = vsel %vm3798, %v5451, %v4923
        %v5484 = vsel %vm3798, %v5452, %v4925
        %v5485 = vsel %vm3798, %v5453, %v4927
        %v5486 = vsel %vm3798, %v5454, %v4929
        %v5487 = vsel %vm3798, %v5455, %v4931
        %v5488 = vsel %vm3798, %v5456, %v4933
        %v5489 = vsel %vm3798, %v5457, %v4935
        %v5490 = vsel %vm3798, %v5458, %v4937
        %v5491 = vsel %vm3798, %v5459, %v4939
        %v5492 = vsel %vm3798, %v5460, %v4941
        %v5493 = vsel %vm3798, %v5461, %v4943
        %v5494 = vsel %vm3798, %v5462, %v4945
        %v5495 = vsel %vm3798, %v5463, %v4947
        %v5496 = vsel %vm3798, %v5464, %v4949
        %v5497 = vsel %vm3798, %v5465, %v4951
        %v5498 = vsel %vm3798, %v5466, %v4953
        %v5499 = vsel %vm3798, %v5467, %v4955
        %v5500 = vsel %vm3798, %v5468, %v4957
        %v5501 = vsel %vm3798, %v5469, %v4959
        %v5502 = vsel %vm3798, %v5470, %v4961
        %v5503 = vsel %vm3798, %v5471, %v4963
        %v5504 = vsel %vm3798, %v5472, %v4965
        %v5505 = vsel %vm3798, %v5473, %v4967
        %v5506 = vsel %vm3798, %v5474, %v4969
        %v5507 = vsel %vm3831, %v5475, %v5009
        %v5508 = vsel %vm3831, %v5476, %v5011
        %v5509 = vsel %vm3831, %v5477, %v5013
        %v5510 = vsel %vm3831, %v5478, %v5015
        %v5511 = vsel %vm3831, %v5479, %v5017
        %v5512 = vsel %vm3831, %v5480, %v5019
        %v5513 = vsel %vm3831, %v5481, %v5021
        %v5514 = vsel %vm3831, %v5482, %v5023
        %v5515 = vsel %vm3831, %v5483, %v5025
        %v5516 = vsel %vm3831, %v5484, %v5027
        %v5517 = vsel %vm3831, %v5485, %v5029
        %v5518 = vsel %vm3831, %v5486, %v5031
        %v5519 = vsel %vm3831, %v5487, %v5033
        %v5520 = vsel %vm3831, %v5488, %v5035
        %v5521 = vsel %vm3831, %v5489, %v5037
        %v5522 = vsel %vm3831, %v5490, %v5039
        %v5523 = vsel %vm3831, %v5491, %v5041
        %v5524 = vsel %vm3831, %v5492, %v5043
        %v5525 = vsel %vm3831, %v5493, %v5045
        %v5526 = vsel %vm3831, %v5494, %v5047
        %v5527 = vsel %vm3831, %v5495, %v5049
        %v5528 = vsel %vm3831, %v5496, %v5051
        %v5529 = vsel %vm3831, %v5497, %v5053
        %v5530 = vsel %vm3831, %v5498, %v5055
        %v5531 = vsel %vm3831, %v5499, %v5057
        %v5532 = vsel %vm3831, %v5500, %v5059
        %v5533 = vsel %vm3831, %v5501, %v5061
        %v5534 = vsel %vm3831, %v5502, %v5063
        %v5535 = vsel %vm3831, %v5503, %v5065
        %v5536 = vsel %vm3831, %v5504, %v5067
        %v5537 = vsel %vm3831, %v5505, %v5069
        %v5538 = vsel %vm3831, %v5506, %v5071
        %v5539 = vsel %vm3864, %v5507, %v5110
        %v5540 = vsel %vm3864, %v5508, %v5112
        %v5541 = vsel %vm3864, %v5509, %v5114
        %v5542 = vsel %vm3864, %v5510, %v5116
        %v5543 = vsel %vm3864, %v5511, %v5118
        %v5544 = vsel %vm3864, %v5512, %v5120
        %v5545 = vsel %vm3864, %v5513, %v5122
        %v5546 = vsel %vm3864, %v5514, %v5124
        %v5547 = vsel %vm3864, %v5515, %v5126
        %v5548 = vsel %vm3864, %v5516, %v5128
        %v5549 = vsel %vm3864, %v5517, %v5130
        %v5550 = vsel %vm3864, %v5518, %v5132
        %v5551 = vsel %vm3864, %v5519, %v5134
        %v5552 = vsel %vm3864, %v5520, %v5136
        %v5553 = vsel %vm3864, %v5521, %v5138
        %v5554 = vsel %vm3864, %v5522, %v5140
        %v5555 = vsel %vm3864, %v5523, %v5142
        %v5556 = vsel %vm3864, %v5524, %v5144
        %v5557 = vsel %vm3864, %v5525, %v5146
        %v5558 = vsel %vm3864, %v5526, %v5148
        %v5559 = vsel %vm3864, %v5527, %v5150
        %v5560 = vsel %vm3864, %v5528, %v5152
        %v5561 = vsel %vm3864, %v5529, %v5154
        %v5562 = vsel %vm3864, %v5530, %v5156
        %v5563 = vsel %vm3864, %v5531, %v5158
        %v5564 = vsel %vm3864, %v5532, %v5160
        %v5565 = vsel %vm3864, %v5533, %v5162
        %v5566 = vsel %vm3864, %v5534, %v5164
        %v5567 = vsel %vm3864, %v5535, %v5166
        %v5568 = vsel %vm3864, %v5536, %v5168
        %v5569 = vsel %vm3864, %v5537, %v5170
        %v5570 = vsel %vm3864, %v5538, %v5172
        %v5571 = vsel %vm3897, %v5539, %v5206
        %v5572 = vsel %vm3897, %v5540, %v5208
        %v5573 = vsel %vm3897, %v5541, %v5210
        %v5574 = vsel %vm3897, %v5542, %v5212
        %v5575 = vsel %vm3897, %v5543, %v5214
        %v5576 = vsel %vm3897, %v5544, %v5216
        %v5577 = vsel %vm3897, %v5545, %v5218
        %v5578 = vsel %vm3897, %v5546, %v5220
        %v5579 = vsel %vm3897, %v5547, %v5222
        %v5580 = vsel %vm3897, %v5548, %v5224
        %v5581 = vsel %vm3897, %v5549, %v5226
        %v5582 = vsel %vm3897, %v5550, %v5228
        %v5583 = vsel %vm3897, %v5551, %v5230
        %v5584 = vsel %vm3897, %v5552, %v5232
        %v5585 = vsel %vm3897, %v5553, %v5234
        %v5586 = vsel %vm3897, %v5554, %v5236
        %v5587 = vsel %vm3897, %v5555, %v5238
        %v5588 = vsel %vm3897, %v5556, %v5240
        %v5589 = vsel %vm3897, %v5557, %v5242
        %v5590 = vsel %vm3897, %v5558, %v5244
        %v5591 = vsel %vm3897, %v5559, %v5246
        %v5592 = vsel %vm3897, %v5560, %v5248
        %v5593 = vsel %vm3897, %v5561, %v5250
        %v5594 = vsel %vm3897, %v5562, %v5252
        %v5595 = vsel %vm3897, %v5563, %v5254
        %v5596 = vsel %vm3897, %v5564, %v5256
        %v5597 = vsel %vm3897, %v5565, %v5258
        %v5598 = vsel %vm3897, %v5566, %v5260
        %v5599 = vsel %vm3897, %v5567, %v5262
        %v5600 = vsel %vm3897, %v5568, %v5264
        %v5601 = vsel %vm3897, %v5569, %v3578
        %v5602 = vsel %vm3897, %v5570, %v3578
        %v5603 = vsel %vm3930, %v5571, %v5296
        %v5604 = vsel %vm3930, %v5572, %v5298
        %v5605 = vsel %vm3930, %v5573, %v5300
        %v5606 = vsel %vm3930, %v5574, %v5302
        %v5607 = vsel %vm3930, %v5575, %v5304
        %v5608 = vsel %vm3930, %v5576, %v5306
        %v5609 = vsel %vm3930, %v5577, %v5308
        %v5610 = vsel %vm3930, %v5578, %v5310
        %v5611 = vsel %vm3930, %v5579, %v5312
        %v5612 = vsel %vm3930, %v5580, %v5314
        %v5613 = vsel %vm3930, %v5581, %v5316
        %v5614 = vsel %vm3930, %v5582, %v5318
        %v5615 = vsel %vm3930, %v5583, %v5320
        %v5616 = vsel %vm3930, %v5584, %v5322
        %v5617 = vsel %vm3930, %v5585, %v5324
        %v5618 = vsel %vm3930, %v5586, %v5326
        %v5619 = vsel %vm3930, %v5587, %v5328
        %v5620 = vsel %vm3930, %v5588, %v5330
        %v5621 = vsel %vm3930, %v5589, %v5332
        %v5622 = vsel %vm3930, %v5590, %v5334
        %v5623 = vsel %vm3930, %v5591, %v5336
        %v5624 = vsel %vm3930, %v5592, %v5338
        %v5625 = vsel %vm3930, %v5593, %v5340
        %v5626 = vsel %vm3930, %v5594, %v5342
        %v5627 = vsel %vm3930, %v5595, %v5344
        %v5628 = vsel %vm3930, %v5596, %v5346
        %v5629 = vsel %vm3930, %v5597, %v5348
        %v5630 = vsel %vm3930, %v5598, %v5350
        %v5631 = vsel %vm3930, %v5599, %v5352
        %v5632 = vsel %vm3930, %v5600, %v5354
        %v5633 = vsel %vm3930, %v5601, %v3671
        %v5634 = vsel %vm3930, %v5602, %v3671
        %v5635 = vpack.c.bf16 %v5604, %v5603
        %v5636 = vpack.c.bf16 %v4749, %v4747
        %v5637 = vpack.c.bf16 %v5606, %v5605
        %v5638 = vpack.c.bf16 %v4754, %v4752
        %v5639 = vpack.c.bf16 %v5608, %v5607
        %v5640 = vpack.c.bf16 %v4759, %v4757
        %v5641 = vpack.c.bf16 %v5610, %v5609
        %v5642 = vpack.c.bf16 %v4764, %v4762
        %v5643 = vpack.c.bf16 %v5612, %v5611
        %v5644 = vpack.c.bf16 %v4769, %v4767
        %v5645 = vpack.c.bf16 %v5614, %v5613
        %v5646 = vpack.c.bf16 %v4774, %v4772
        %v5647 = vpack.c.bf16 %v5616, %v5615
        %v5648 = vpack.c.bf16 %v4779, %v4777
        %v5649 = vpack.c.bf16 %v5618, %v5617
        %v5650 = vpack.c.bf16 %v4784, %v4782
        %v5651 = vpack.c.bf16 %v5620, %v5619
        %v5652 = vpack.c.bf16 %v4789, %v4787
        %v5653 = vpack.c.bf16 %v5622, %v5621
        %v5654 = vpack.c.bf16 %v4794, %v4792
        %v5655 = vpack.c.bf16 %v5624, %v5623
        %v5656 = vpack.c.bf16 %v4799, %v4797
        %v5657 = vpack.c.bf16 %v5626, %v5625
        %v5658 = vpack.c.bf16 %v4804, %v4802
        %v5659 = vpack.c.bf16 %v5628, %v5627
        %v5660 = vpack.c.bf16 %v4809, %v4807
        %v5661 = vpack.c.bf16 %v5630, %v5629
        %v5662 = vpack.c.bf16 %v4814, %v4812
        %v5663 = vpack.c.bf16 %v5632, %v5631
        %v5664 = vpack.c.bf16 %v5108, %v5106
        %v5665 = vpack.c.bf16 %v5634, %v5633
        %v5666 = vld [vmem:[%s15] sm:$0xf]
        %v5667 = vld [vmem:[%s15 + $0x4] sm:$0xf]
        %v5668 = vld [vmem:[%s15 + $0x8] sm:$0xf]
        %v5669 = vld [vmem:[%s15 + $0xc] sm:$0xf]
        %v5670 = vld [vmem:[%s15 + $0x10] sm:$0xf]
        %v5671 = vld [vmem:[%s15 + $0x14] sm:$0xf]
        %v5672 = vld [vmem:[%s15 + $0x18] sm:$0xf]
        %v5673 = vld [vmem:[%s15 + $0x1c] sm:$0xf]
        %v5674 = vld [vmem:[%s15 + $0x20] sm:$0xf]
        %v5675 = vld [vmem:[%s15 + $0x24] sm:$0xf]
        %v5676 = vld [vmem:[%s15 + $0x28] sm:$0xf]
        %v5677 = vld [vmem:[%s15 + $0x2c] sm:$0xf]
        %v5678 = vld [vmem:[%s15 + $0x30] sm:$0xf]
        %v5679 = vld [vmem:[%s15 + $0x34] sm:$0xf]
        %v5680 = vld [vmem:[%s15 + $0x38] sm:$0xf]
        %v5681 = vld [vmem:[%s15 + $0x3c] sm:$0xf]
        %v5682 = vld [vmem:[%s15 + $0x40] sm:$0xf]
        %v5683 = vld [vmem:[%s15 + $0x44] sm:$0xf]
        %v5702 = vunpack.c.l.b16 %v5666
        %v5703 = vunpack.c.l.b16 %v5667
        %v5704 = vunpack.c.l.b16 %v5668
        %v5705 = vunpack.c.l.b16 %v5669
        %v5706 = vunpack.c.l.b16 %v5670
        %v5707 = vunpack.c.l.b16 %v5671
        %v5708 = vunpack.c.l.b16 %v5672
        %v5709 = vunpack.c.l.b16 %v5673
        %v5710 = vunpack.c.l.b16 %v5674
        %v5711 = vunpack.c.l.b16 %v5675
        %v5712 = vunpack.c.l.b16 %v5676
        %v5713 = vunpack.c.l.b16 %v5677
        %v5714 = vunpack.c.l.b16 %v5678
        %v5715 = vunpack.c.l.b16 %v5679
        %v5716 = vunpack.c.l.b16 %v5680
        %v5717 = vunpack.c.l.b16 %v5681
        %v5718 = vunpack.c.l.b16 %v5682
        %v5719 = vunpack.c.l.b16 %v5683
        %v5720 = vpack.c.b16 %v5703, %v5702
        %v5721 = vpack.c.b16 %v5705, %v5704
        %v5722 = vpack.c.b16 %v5707, %v5706
        %v5723 = vpack.c.b16 %v5709, %v5708
        %v5724 = vpack.c.b16 %v5711, %v5710
        %v5725 = vpack.c.b16 %v5713, %v5712
        %v5726 = vpack.c.b16 %v5715, %v5714
        %v5727 = vpack.c.b16 %v5717, %v5716
        %v5728 = vpack.c.b16 %v5719, %v5718
        %v5739 = vsel %vm3734, %v5636, 0
        %v5742 = vsel %vm3734, %v5638, 0
        %v5745 = vsel %vm3734, %v5640, 0
        %v5748 = vsel %vm3734, %v5642, 0
        %v5751 = vsel %vm3734, %v5644, 0
        %v5754 = vsel %vm3734, %v5646, 0
        %v5757 = vsel %vm3734, %v5648, 0
        %v5760 = vsel %vm3734, %v5650, 0
        %v5763 = vsel %vm3734, %v5652, 0
        %v5766 = vsel %vm3734, %v5654, 0
        %v5769 = vsel %vm3734, %v5656, 0
        %v5772 = vsel %vm3734, %v5658, 0
        %v5775 = vsel %vm3734, %v5660, 0
        %v5778 = vsel %vm3734, %v5662, 0
        %v5781 = vsel %vm3734, %v5664, 0
        %5783 = vmatprep.subr.bf16.mxu0 0
        %5784 = vmatpush1.bf16.msra.mxu0 %v5720
        %5785 = vmatprep.subr.bf16.mxu0 0
        %5786 = vmatpush1.bf16.msra.mxu0 %v5721
        %5787 = vmatprep.subr.bf16.mxu0 0
        %5788 = vmatpush1.bf16.msra.mxu0 %v5722
        %5789 = vmatprep.subr.bf16.mxu0 0
        %5790 = vmatpush1.bf16.msra.mxu0 %v5723
        %5791 = vmatprep.subr.bf16.mxu0 0
        %5792 = vmatpush1.bf16.msra.mxu0 %v5724
        %5793 = vmatprep.subr.bf16.mxu0 0
        %5794 = vmatpush1.bf16.msra.mxu0 %v5725
        %5795 = vmatprep.subr.bf16.mxu0 0
        %5796 = vmatpush1.bf16.msra.mxu0 %v5726
        %5797 = vmatprep.subr.bf16.mxu0 0
        %5798 = vmatpush1.bf16.msra.mxu0 %v5727
        %5799 = vmatprep.subr.bf16.mxu0 0
        %5800 = vmatpush1.bf16.msra.mxu0 %v5728
        %5801 = vmatprep.subr.bf16.mxu0 0
        %5802 = vmatpush1.bf16.msra.mxu0 0
        %5803 = vmatprep.subr.bf16.mxu0 0
        %5804 = vmatpush1.bf16.msra.mxu0 0
        %5805 = vmatprep.subr.bf16.mxu0 0
        %5806 = vmatpush1.bf16.msra.mxu0 0
        %5807 = vmatprep.subr.bf16.mxu0 0
        %5808 = vmatpush1.bf16.msra.mxu0 0
        %5809 = vmatprep.subr.bf16.mxu0 0
        %5810 = vmatpush1.bf16.msra.mxu0 0
        %5811 = vmatprep.subr.bf16.mxu0 0
        %5812 = vmatpush1.bf16.msra.mxu0 0
        %5813 = vmatprep.subr.bf16.mxu0 0
        %5814 = vmatpush1.bf16.msra.mxu0 0
        %5815 = vmatprep.mubr.bf16.mxu0 %v5739
        %5816 = vmatmul.mubr.bf16.gmra.mrb[0].mxu0 %v5635
        %v5817 = vpop.f32.mrb[0].mxu0
        %v5818 = vadd.f32 0.0, %v5817
        %v5819 = vpop.f32.mrb[0].mxu0
        %v5820 = vpop.f32.mrb[0].mxu0
        %v5821 = vadd.f32 0.0, %v5820
        %v5822 = vpop.f32.mrb[0].mxu0
        %5823 = vmatprep.mubr.bf16.mxu0 %v5742
        %5824 = vmatmul.mubr.bf16.gmra.mrb[0].mxu0 %v5637
        %v5825 = vpop.f32.mrb[0].mxu0
        %v5826 = vadd.f32 0.0, %v5825
        %v5827 = vpop.f32.mrb[0].mxu0
        %v5828 = vpop.f32.mrb[0].mxu0
        %v5829 = vadd.f32 0.0, %v5828
        %v5830 = vpop.f32.mrb[0].mxu0
        %5831 = vmatprep.mubr.bf16.mxu0 %v5745
        %5832 = vmatmul.mubr.bf16.gmra.mrb[0].mxu0 %v5639
        %v5833 = vpop.f32.mrb[0].mxu0
        %v5834 = vadd.f32 0.0, %v5833
        %v5835 = vpop.f32.mrb[0].mxu0
        %v5836 = vpop.f32.mrb[0].mxu0
        %v5837 = vadd.f32 0.0, %v5836
        %v5838 = vpop.f32.mrb[0].mxu0
        %5839 = vmatprep.mubr.bf16.mxu0 %v5748
        %5840 = vmatmul.mubr.bf16.gmra.mrb[0].mxu0 %v5641
        %v5841 = vpop.f32.mrb[0].mxu0
        %v5842 = vadd.f32 0.0, %v5841
        %v5843 = vpop.f32.mrb[0].mxu0
        %v5844 = vpop.f32.mrb[0].mxu0
        %v5845 = vadd.f32 0.0, %v5844
        %v5846 = vpop.f32.mrb[0].mxu0
        %5847 = vmatprep.mubr.bf16.mxu0 %v5751
        %5848 = vmatmul.mubr.bf16.gmra.mrb[0].mxu0 %v5643
        %v5849 = vpop.f32.mrb[0].mxu0
        %v5850 = vadd.f32 0.0, %v5849
        %v5851 = vpop.f32.mrb[0].mxu0
        %v5852 = vpop.f32.mrb[0].mxu0
        %v5853 = vadd.f32 0.0, %v5852
        %v5854 = vpop.f32.mrb[0].mxu0
        %5855 = vmatprep.mubr.bf16.mxu0 %v5754
        %5856 = vmatmul.mubr.bf16.gmra.mrb[0].mxu0 %v5645
        %v5857 = vpop.f32.mrb[0].mxu0
        %v5858 = vadd.f32 0.0, %v5857
        %v5859 = vpop.f32.mrb[0].mxu0
        %v5860 = vpop.f32.mrb[0].mxu0
        %v5861 = vadd.f32 0.0, %v5860
        %v5862 = vpop.f32.mrb[0].mxu0
        %5863 = vmatprep.mubr.bf16.mxu0 %v5757
        %5864 = vmatmul.mubr.bf16.gmra.mrb[0].mxu0 %v5647
        %v5865 = vpop.f32.mrb[0].mxu0
        %v5866 = vadd.f32 0.0, %v5865
        %v5867 = vpop.f32.mrb[0].mxu0
        %v5868 = vpop.f32.mrb[0].mxu0
        %v5869 = vadd.f32 0.0, %v5868
        %v5870 = vpop.f32.mrb[0].mxu0
        %5871 = vmatprep.mubr.bf16.mxu0 %v5760
        %5872 = vmatmul.mubr.bf16.gmra.mrb[0].mxu0 %v5649
        %v5873 = vpop.f32.mrb[0].mxu0
        %v5874 = vadd.f32 0.0, %v5873
        %v5875 = vpop.f32.mrb[0].mxu0
        %v5876 = vpop.f32.mrb[0].mxu0
        %v5877 = vadd.f32 0.0, %v5876
        %v5878 = vpop.f32.mrb[0].mxu0
        %5879 = vmatprep.mubr.bf16.mxu0 %v5763
        %5880 = vmatmul.mubr.bf16.gmra.mrb[0].mxu0 %v5651
        %v5881 = vpop.f32.mrb[0].mxu0
        %v5882 = vadd.f32 0.0, %v5881
        %v5883 = vpop.f32.mrb[0].mxu0
        %v5884 = vpop.f32.mrb[0].mxu0
        %v5885 = vadd.f32 0.0, %v5884
        %v5886 = vpop.f32.mrb[0].mxu0
        %5887 = vmatprep.mubr.bf16.mxu0 %v5766
        %5888 = vmatmul.mubr.bf16.gmra.mrb[0].mxu0 %v5653
        %v5889 = vpop.f32.mrb[0].mxu0
        %v5890 = vadd.f32 0.0, %v5889
        %v5891 = vpop.f32.mrb[0].mxu0
        %v5892 = vpop.f32.mrb[0].mxu0
        %v5893 = vadd.f32 0.0, %v5892
        %v5894 = vpop.f32.mrb[0].mxu0
        %5895 = vmatprep.mubr.bf16.mxu0 %v5769
        %5896 = vmatmul.mubr.bf16.gmra.mrb[0].mxu0 %v5655
        %v5897 = vpop.f32.mrb[0].mxu0
        %v5898 = vadd.f32 0.0, %v5897
        %v5899 = vpop.f32.mrb[0].mxu0
        %v5900 = vpop.f32.mrb[0].mxu0
        %v5901 = vadd.f32 0.0, %v5900
        %v5902 = vpop.f32.mrb[0].mxu0
        %5903 = vmatprep.mubr.bf16.mxu0 %v5772
        %5904 = vmatmul.mubr.bf16.gmra.mrb[0].mxu0 %v5657
        %v5905 = vpop.f32.mrb[0].mxu0
        %v5906 = vadd.f32 0.0, %v5905
        %v5907 = vpop.f32.mrb[0].mxu0
        %v5908 = vpop.f32.mrb[0].mxu0
        %v5909 = vadd.f32 0.0, %v5908
        %v5910 = vpop.f32.mrb[0].mxu0
        %5911 = vmatprep.mubr.bf16.mxu0 %v5775
        %5912 = vmatmul.mubr.bf16.gmra.mrb[0].mxu0 %v5659
        %v5913 = vpop.f32.mrb[0].mxu0
        %v5914 = vadd.f32 0.0, %v5913
        %v5915 = vpop.f32.mrb[0].mxu0
        %v5916 = vpop.f32.mrb[0].mxu0
        %v5917 = vadd.f32 0.0, %v5916
        %v5918 = vpop.f32.mrb[0].mxu0
        %5919 = vmatprep.mubr.bf16.mxu0 %v5778
        %5920 = vmatmul.mubr.bf16.gmra.mrb[0].mxu0 %v5661
        %v5921 = vpop.f32.mrb[0].mxu0
        %v5922 = vadd.f32 0.0, %v5921
        %v5923 = vpop.f32.mrb[0].mxu0
        %v5924 = vpop.f32.mrb[0].mxu0
        %v5925 = vadd.f32 0.0, %v5924
        %v5926 = vpop.f32.mrb[0].mxu0
        %5927 = vmatprep.mubr.bf16.mxu0 %v5781
        %5928 = vmatmul.mubr.bf16.gmra.mrb[0].mxu0 %v5663
        %v5929 = vpop.f32.mrb[0].mxu0
        %v5930 = vadd.f32 0.0, %v5929
        %v5931 = vpop.f32.mrb[0].mxu0
        %v5932 = vpop.f32.mrb[0].mxu0
        %v5933 = vadd.f32 0.0, %v5932
        %v5934 = vpop.f32.mrb[0].mxu0
        %5935 = vmatprep.mubr.bf16.mxu0 %v4113
        %5936 = vmatmul.mubr.bf16.gmra.mrb[0].mxu0 %v5665
        %v5937 = vpop.f32.mrb[0].mxu0
        %v5938 = vadd.f32 0.0, %v5937
        %v5939 = vpop.f32.mrb[0].mxu0
        %v5940 = vpop.f32.mrb[0].mxu0
        %v5941 = vadd.f32 0.0, %v5940
        %v5942 = vpop.f32.mrb[0].mxu0
        %5943 = vdwg.mxu0
        %v5944 = vld [vmem:[%s17] sm:$0x1]
        %v5946 = vlaneseq
        %v5947 = vshrl.u32 %v5946, 7
        %v5948 = vsub.s32 0, %v5947
        %v5949 = vrot.slane %v5944, %v5948
        %v5951 = vmul.f32 %v5818, %v5949
        %v5952 = vmul.f32 %v5821, %v5949
        %v5953 = vmul.f32 %v5826, %v5949
        %v5954 = vmul.f32 %v5829, %v5949
        %v5955 = vmul.f32 %v5834, %v5949
        %v5956 = vmul.f32 %v5837, %v5949
        %v5957 = vmul.f32 %v5842, %v5949
        %v5958 = vmul.f32 %v5845, %v5949
        %v5959 = vmul.f32 %v5850, %v5949
        %v5960 = vmul.f32 %v5853, %v5949
        %v5961 = vmul.f32 %v5858, %v5949
        %v5962 = vmul.f32 %v5861, %v5949
        %v5963 = vmul.f32 %v5866, %v5949
        %v5964 = vmul.f32 %v5869, %v5949
        %v5965 = vmul.f32 %v5874, %v5949
        %v5966 = vmul.f32 %v5877, %v5949
        %v5967 = vmul.f32 %v5882, %v5949
        %v5968 = vmul.f32 %v5885, %v5949
        %v5969 = vmul.f32 %v5890, %v5949
        %v5970 = vmul.f32 %v5893, %v5949
        %v5971 = vmul.f32 %v5898, %v5949
        %v5972 = vmul.f32 %v5901, %v5949
        %v5973 = vmul.f32 %v5906, %v5949
        %v5974 = vmul.f32 %v5909, %v5949
        %v5975 = vmul.f32 %v5914, %v5949
        %v5976 = vmul.f32 %v5917, %v5949
        %v5977 = vmul.f32 %v5922, %v5949
        %v5978 = vmul.f32 %v5925, %v5949
        %v5979 = vmul.f32 %v5930, %v5949
        %v5980 = vmul.f32 %v5933, %v5949
        %v5981 = vmul.f32 %v5938, %v5949
        %v5982 = vmul.f32 %v5941, %v5949
        %v5983 = vld [vmem:[%s19] sm:$0x1]
        %v5985 = vlaneseq
        %v5986 = vshrl.u32 %v5985, 7
        %v5987 = vsub.s32 0, %v5986
        %v5988 = vrot.slane %v5983, %v5987
        %v5990 = vadd.f32 %v5951, %v5988
        %v5991 = vadd.f32 %v5952, %v5988
        %v5992 = vadd.f32 %v5953, %v5988
        %v5993 = vadd.f32 %v5954, %v5988
        %v5994 = vadd.f32 %v5955, %v5988
        %v5995 = vadd.f32 %v5956, %v5988
        %v5996 = vadd.f32 %v5957, %v5988
        %v5997 = vadd.f32 %v5958, %v5988
        %v5998 = vadd.f32 %v5959, %v5988
        %v5999 = vadd.f32 %v5960, %v5988
        %v6000 = vadd.f32 %v5961, %v5988
        %v6001 = vadd.f32 %v5962, %v5988
        %v6002 = vadd.f32 %v5963, %v5988
        %v6003 = vadd.f32 %v5964, %v5988
        %v6004 = vadd.f32 %v5965, %v5988
        %v6005 = vadd.f32 %v5966, %v5988
        %v6006 = vadd.f32 %v5967, %v5988
        %v6007 = vadd.f32 %v5968, %v5988
        %v6008 = vadd.f32 %v5969, %v5988
        %v6009 = vadd.f32 %v5970, %v5988
        %v6010 = vadd.f32 %v5971, %v5988
        %v6011 = vadd.f32 %v5972, %v5988
        %v6012 = vadd.f32 %v5973, %v5988
        %v6013 = vadd.f32 %v5974, %v5988
        %v6014 = vadd.f32 %v5975, %v5988
        %v6015 = vadd.f32 %v5976, %v5988
        %v6016 = vadd.f32 %v5977, %v5988
        %v6017 = vadd.f32 %v5978, %v5988
        %v6018 = vadd.f32 %v5979, %v5988
        %v6019 = vadd.f32 %v5980, %v5988
        %v6020 = vadd.f32 %v5981, %v5988
        %v6021 = vadd.f32 %v5982, %v5988
        %v6022 = vadd.f32 %v5990, %v2660
        %v6023 = vadd.f32 %v5991, %v2661
        %v6024 = vadd.f32 %v5992, %v2662
        %v6025 = vadd.f32 %v5993, %v2663
        %v6026 = vadd.f32 %v5994, %v2664
        %v6027 = vadd.f32 %v5995, %v2665
        %v6028 = vadd.f32 %v5996, %v2666
        %v6029 = vadd.f32 %v5997, %v2667
        %v6030 = vadd.f32 %v5998, %v2668
        %v6031 = vadd.f32 %v5999, %v2669
        %v6032 = vadd.f32 %v6000, %v2670
        %v6033 = vadd.f32 %v6001, %v2671
        %v6034 = vadd.f32 %v6002, %v2672
        %v6035 = vadd.f32 %v6003, %v2673
        %v6036 = vadd.f32 %v6004, %v2674
        %v6037 = vadd.f32 %v6005, %v2675
        %v6038 = vadd.f32 %v6006, %v2676
        %v6039 = vadd.f32 %v6007, %v2677
        %v6040 = vadd.f32 %v6008, %v2678
        %v6041 = vadd.f32 %v6009, %v2679
        %v6042 = vadd.f32 %v6010, %v2680
        %v6043 = vadd.f32 %v6011, %v2681
        %v6044 = vadd.f32 %v6012, %v2682
        %v6045 = vadd.f32 %v6013, %v2683
        %v6046 = vadd.f32 %v6014, %v2684
        %v6047 = vadd.f32 %v6015, %v2685
        %v6048 = vadd.f32 %v6016, %v2686
        %v6049 = vadd.f32 %v6017, %v2687
        %v6050 = vadd.f32 %v6018, %v2688
        %v6051 = vadd.f32 %v6019, %v2689
        %v6052 = vadd.f32 %v6020, %v2690
        %v6053 = vadd.f32 %v6021, %v2691
        %v6054 = vmax.f32 %v6022, 0.0
        %v6055 = vmax.f32 %v6023, 0.0
        %v6056 = vmax.f32 %v6024, 0.0
        %v6057 = vmax.f32 %v6025, 0.0
        %v6058 = vmax.f32 %v6026, 0.0
        %v6059 = vmax.f32 %v6027, 0.0
        %v6060 = vmax.f32 %v6028, 0.0
        %v6061 = vmax.f32 %v6029, 0.0
        %v6062 = vmax.f32 %v6030, 0.0
        %v6063 = vmax.f32 %v6031, 0.0
        %v6064 = vmax.f32 %v6032, 0.0
        %v6065 = vmax.f32 %v6033, 0.0
        %v6066 = vmax.f32 %v6034, 0.0
        %v6067 = vmax.f32 %v6035, 0.0
        %v6068 = vmax.f32 %v6036, 0.0
        %v6069 = vmax.f32 %v6037, 0.0
        %v6070 = vmax.f32 %v6038, 0.0
        %v6071 = vmax.f32 %v6039, 0.0
        %v6072 = vmax.f32 %v6040, 0.0
        %v6073 = vmax.f32 %v6041, 0.0
        %v6074 = vmax.f32 %v6042, 0.0
        %v6075 = vmax.f32 %v6043, 0.0
        %v6076 = vmax.f32 %v6044, 0.0
        %v6077 = vmax.f32 %v6045, 0.0
        %v6078 = vmax.f32 %v6046, 0.0
        %v6079 = vmax.f32 %v6047, 0.0
        %v6080 = vmax.f32 %v6048, 0.0
        %v6081 = vmax.f32 %v6049, 0.0
        %v6082 = vmax.f32 %v6050, 0.0
        %v6083 = vmax.f32 %v6051, 0.0
        %v6084 = vmax.f32 %v6052, 0.0
        %v6085 = vmax.f32 %v6053, 0.0
        %v6118 = vrot.slane %v6054, 7
        %v6119 = vrot.slane %v6055, 7
        %v6120 = vsel %vm993, %v6118, %v6119
        %v6121 = vrot.slane %v6056, 7
        %v6122 = vrot.slane %v6057, 7
        %v6123 = vsel %vm993, %v6121, %v6122
        %v6124 = vrot.slane %v6058, 7
        %v6125 = vrot.slane %v6059, 7
        %v6126 = vsel %vm993, %v6124, %v6125
        %v6127 = vrot.slane %v6060, 7
        %v6128 = vrot.slane %v6061, 7
        %v6129 = vsel %vm993, %v6127, %v6128
        %v6130 = vrot.slane %v6062, 7
        %v6131 = vrot.slane %v6063, 7
        %v6132 = vsel %vm993, %v6130, %v6131
        %v6133 = vrot.slane %v6064, 7
        %v6134 = vrot.slane %v6065, 7
        %v6135 = vsel %vm993, %v6133, %v6134
        %v6136 = vrot.slane %v6066, 7
        %v6137 = vrot.slane %v6067, 7
        %v6138 = vsel %vm993, %v6136, %v6137
        %v6139 = vrot.slane %v6068, 7
        %v6140 = vrot.slane %v6069, 7
        %v6141 = vsel %vm993, %v6139, %v6140
        %v6142 = vrot.slane %v6070, 7
        %v6143 = vrot.slane %v6071, 7
        %v6144 = vsel %vm993, %v6142, %v6143
        %v6145 = vrot.slane %v6072, 7
        %v6146 = vrot.slane %v6073, 7
        %v6147 = vsel %vm993, %v6145, %v6146
        %v6148 = vrot.slane %v6074, 7
        %v6149 = vrot.slane %v6075, 7
        %v6150 = vsel %vm993, %v6148, %v6149
        %v6151 = vrot.slane %v6076, 7
        %v6152 = vrot.slane %v6077, 7
        %v6153 = vsel %vm993, %v6151, %v6152
        %v6154 = vrot.slane %v6078, 7
        %v6155 = vrot.slane %v6079, 7
        %v6156 = vsel %vm993, %v6154, %v6155
        %v6157 = vrot.slane %v6080, 7
        %v6158 = vrot.slane %v6081, 7
        %v6159 = vsel %vm993, %v6157, %v6158
        %v6160 = vrot.slane %v6082, 7
        %v6161 = vrot.slane %v6083, 7
        %v6162 = vsel %vm993, %v6160, %v6161
        %v6163 = vrot.slane %v6084, 7
        %v6164 = vrot.slane %v6085, 7
        %v6165 = vsel %vm993, %v6163, %v6164
        %v6213 = vsel %vm993, 0.0, %v6118
        %v6214 = vsel %vm993, 0.0, %v6121
        %v6215 = vsel %vm993, 0.0, %v6124
        %v6216 = vsel %vm993, 0.0, %v6127
        %v6217 = vsel %vm993, 0.0, %v6130
        %v6218 = vsel %vm993, 0.0, %v6133
        %v6219 = vsel %vm993, 0.0, %v6136
        %v6220 = vsel %vm993, 0.0, %v6139
        %v6221 = vsel %vm993, 0.0, %v6142
        %v6222 = vsel %vm993, 0.0, %v6145
        %v6223 = vsel %vm993, 0.0, %v6148
        %v6224 = vsel %vm993, 0.0, %v6151
        %v6225 = vsel %vm993, 0.0, %v6154
        %v6226 = vsel %vm993, 0.0, %v6157
        %v6227 = vsel %vm993, 0.0, %v6160
        %v6228 = vsel %vm993, 0.0, %v6163
        %v6229 = vsel %vm993, %v6119, 0.0
        %v6230 = vsel %vm993, %v6122, 0.0
        %v6231 = vsel %vm993, %v6125, 0.0
        %v6232 = vsel %vm993, %v6128, 0.0
        %v6233 = vsel %vm993, %v6131, 0.0
        %v6234 = vsel %vm993, %v6134, 0.0
        %v6235 = vsel %vm993, %v6137, 0.0
        %v6236 = vsel %vm993, %v6140, 0.0
        %v6237 = vsel %vm993, %v6143, 0.0
        %v6238 = vsel %vm993, %v6146, 0.0
        %v6239 = vsel %vm993, %v6149, 0.0
        %v6240 = vsel %vm993, %v6152, 0.0
        %v6241 = vsel %vm993, %v6155, 0.0
        %v6242 = vsel %vm993, %v6158, 0.0
        %v6243 = vsel %vm993, %v6161, 0.0
        %v6244 = vsel %vm993, %v6164, 0.0
        %v6275 = vrot.slane %v6213, 1
        %v6276 = vrot.slane %v6120, 1
        %v6277 = vsel %vm1152, %v6275, %v6276
        %v6278 = vrot.slane %v6229, 1
        %v6279 = vsel %vm1152, %v6276, %v6278
        %v6280 = vrot.slane %v6214, 1
        %v6281 = vrot.slane %v6123, 1
        %v6282 = vsel %vm1152, %v6280, %v6281
        %v6283 = vrot.slane %v6230, 1
        %v6284 = vsel %vm1152, %v6281, %v6283
        %v6285 = vrot.slane %v6215, 1
        %v6286 = vrot.slane %v6126, 1
        %v6287 = vsel %vm1152, %v6285, %v6286
        %v6288 = vrot.slane %v6231, 1
        %v6289 = vsel %vm1152, %v6286, %v6288
        %v6290 = vrot.slane %v6216, 1
        %v6291 = vrot.slane %v6129, 1
        %v6292 = vsel %vm1152, %v6290, %v6291
        %v6293 = vrot.slane %v6232, 1
        %v6294 = vsel %vm1152, %v6291, %v6293
        %v6295 = vrot.slane %v6217, 1
        %v6296 = vrot.slane %v6132, 1
        %v6297 = vsel %vm1152, %v6295, %v6296
        %v6298 = vrot.slane %v6233, 1
        %v6299 = vsel %vm1152, %v6296, %v6298
        %v6300 = vrot.slane %v6218, 1
        %v6301 = vrot.slane %v6135, 1
        %v6302 = vsel %vm1152, %v6300, %v6301
        %v6303 = vrot.slane %v6234, 1
        %v6304 = vsel %vm1152, %v6301, %v6303
        %v6305 = vrot.slane %v6219, 1
        %v6306 = vrot.slane %v6138, 1
        %v6307 = vsel %vm1152, %v6305, %v6306
        %v6308 = vrot.slane %v6235, 1
        %v6309 = vsel %vm1152, %v6306, %v6308
        %v6310 = vrot.slane %v6220, 1
        %v6311 = vrot.slane %v6141, 1
        %v6312 = vsel %vm1152, %v6310, %v6311
        %v6313 = vrot.slane %v6236, 1
        %v6314 = vsel %vm1152, %v6311, %v6313
        %v6315 = vrot.slane %v6221, 1
        %v6316 = vrot.slane %v6144, 1
        %v6317 = vsel %vm1152, %v6315, %v6316
        %v6318 = vrot.slane %v6237, 1
        %v6319 = vsel %vm1152, %v6316, %v6318
        %v6320 = vrot.slane %v6222, 1
        %v6321 = vrot.slane %v6147, 1
        %v6322 = vsel %vm1152, %v6320, %v6321
        %v6323 = vrot.slane %v6238, 1
        %v6324 = vsel %vm1152, %v6321, %v6323
        %v6325 = vrot.slane %v6223, 1
        %v6326 = vrot.slane %v6150, 1
        %v6327 = vsel %vm1152, %v6325, %v6326
        %v6328 = vrot.slane %v6239, 1
        %v6329 = vsel %vm1152, %v6326, %v6328
        %v6330 = vrot.slane %v6224, 1
        %v6331 = vrot.slane %v6153, 1
        %v6332 = vsel %vm1152, %v6330, %v6331
        %v6333 = vrot.slane %v6240, 1
        %v6334 = vsel %vm1152, %v6331, %v6333
        %v6335 = vrot.slane %v6225, 1
        %v6336 = vrot.slane %v6156, 1
        %v6337 = vsel %vm1152, %v6335, %v6336
        %v6338 = vrot.slane %v6241, 1
        %v6339 = vsel %vm1152, %v6336, %v6338
        %v6340 = vrot.slane %v6226, 1
        %v6341 = vrot.slane %v6159, 1
        %v6342 = vsel %vm1152, %v6340, %v6341
        %v6343 = vrot.slane %v6242, 1
        %v6344 = vsel %vm1152, %v6341, %v6343
        %v6345 = vrot.slane %v6227, 1
        %v6346 = vrot.slane %v6162, 1
        %v6347 = vsel %vm1152, %v6345, %v6346
        %v6348 = vrot.slane %v6243, 1
        %v6349 = vsel %vm1152, %v6346, %v6348
        %6350 = vrot.lane.b32.xlu0 %v6277, 16
        %v6351 = vpop.permute.xlu0 %6350
        %6352 = vrot.lane.b32.xlu0 %v6279, 16
        %v6353 = vpop.permute.xlu0 %6352
        %6354 = vrot.lane.b32.xlu0 %v6282, 16
        %v6355 = vpop.permute.xlu0 %6354
        %6356 = vrot.lane.b32.xlu0 %v6284, 16
        %v6357 = vpop.permute.xlu0 %6356
        %6358 = vrot.lane.b32.xlu0 %v6287, 16
        %v6359 = vpop.permute.xlu0 %6358
        %6360 = vrot.lane.b32.xlu0 %v6289, 16
        %v6361 = vpop.permute.xlu0 %6360
        %6362 = vrot.lane.b32.xlu0 %v6292, 16
        %v6363 = vpop.permute.xlu0 %6362
        %6364 = vrot.lane.b32.xlu0 %v6294, 16
        %v6365 = vpop.permute.xlu0 %6364
        %6366 = vrot.lane.b32.xlu0 %v6297, 16
        %v6367 = vpop.permute.xlu0 %6366
        %6368 = vrot.lane.b32.xlu0 %v6299, 16
        %v6369 = vpop.permute.xlu0 %6368
        %6370 = vrot.lane.b32.xlu0 %v6302, 16
        %v6371 = vpop.permute.xlu0 %6370
        %6372 = vrot.lane.b32.xlu0 %v6304, 16
        %v6373 = vpop.permute.xlu0 %6372
        %6374 = vrot.lane.b32.xlu0 %v6307, 16
        %v6375 = vpop.permute.xlu0 %6374
        %6376 = vrot.lane.b32.xlu0 %v6309, 16
        %v6377 = vpop.permute.xlu0 %6376
        %6378 = vrot.lane.b32.xlu0 %v6312, 16
        %v6379 = vpop.permute.xlu0 %6378
        %6380 = vrot.lane.b32.xlu0 %v6314, 16
        %v6381 = vpop.permute.xlu0 %6380
        %6382 = vrot.lane.b32.xlu0 %v6317, 16
        %v6383 = vpop.permute.xlu0 %6382
        %6384 = vrot.lane.b32.xlu0 %v6319, 16
        %v6385 = vpop.permute.xlu0 %6384
        %6386 = vrot.lane.b32.xlu0 %v6322, 16
        %v6387 = vpop.permute.xlu0 %6386
        %6388 = vrot.lane.b32.xlu0 %v6324, 16
        %v6389 = vpop.permute.xlu0 %6388
        %6390 = vrot.lane.b32.xlu0 %v6327, 16
        %v6391 = vpop.permute.xlu0 %6390
        %6392 = vrot.lane.b32.xlu0 %v6329, 16
        %v6393 = vpop.permute.xlu0 %6392
        %6394 = vrot.lane.b32.xlu0 %v6332, 16
        %v6395 = vpop.permute.xlu0 %6394
        %6396 = vrot.lane.b32.xlu0 %v6334, 16
        %v6397 = vpop.permute.xlu0 %6396
        %6398 = vrot.lane.b32.xlu0 %v6337, 16
        %v6399 = vpop.permute.xlu0 %6398
        %6400 = vrot.lane.b32.xlu0 %v6339, 16
        %v6401 = vpop.permute.xlu0 %6400
        %6402 = vrot.lane.b32.xlu0 %v6342, 16
        %v6403 = vpop.permute.xlu0 %6402
        %6404 = vrot.lane.b32.xlu0 %v6344, 16
        %v6405 = vpop.permute.xlu0 %6404
        %6406 = vrot.lane.b32.xlu0 %v6347, 16
        %v6407 = vpop.permute.xlu0 %6406
        %6408 = vrot.lane.b32.xlu0 %v6349, 16
        %v6409 = vpop.permute.xlu0 %6408
        %v6440 = vrot.slane %v6213, 2
        %v6441 = vrot.slane %v6120, 2
        %v6442 = vsel %vm1323, %v6440, %v6441
        %v6443 = vrot.slane %v6229, 2
        %v6444 = vsel %vm1323, %v6441, %v6443
        %v6445 = vrot.slane %v6214, 2
        %v6446 = vrot.slane %v6123, 2
        %v6447 = vsel %vm1323, %v6445, %v6446
        %v6448 = vrot.slane %v6230, 2
        %v6449 = vsel %vm1323, %v6446, %v6448
        %v6450 = vrot.slane %v6215, 2
        %v6451 = vrot.slane %v6126, 2
        %v6452 = vsel %vm1323, %v6450, %v6451
        %v6453 = vrot.slane %v6231, 2
        %v6454 = vsel %vm1323, %v6451, %v6453
        %v6455 = vrot.slane %v6216, 2
        %v6456 = vrot.slane %v6129, 2
        %v6457 = vsel %vm1323, %v6455, %v6456
        %v6458 = vrot.slane %v6232, 2
        %v6459 = vsel %vm1323, %v6456, %v6458
        %v6460 = vrot.slane %v6217, 2
        %v6461 = vrot.slane %v6132, 2
        %v6462 = vsel %vm1323, %v6460, %v6461
        %v6463 = vrot.slane %v6233, 2
        %v6464 = vsel %vm1323, %v6461, %v6463
        %v6465 = vrot.slane %v6218, 2
        %v6466 = vrot.slane %v6135, 2
        %v6467 = vsel %vm1323, %v6465, %v6466
        %v6468 = vrot.slane %v6234, 2
        %v6469 = vsel %vm1323, %v6466, %v6468
        %v6470 = vrot.slane %v6219, 2
        %v6471 = vrot.slane %v6138, 2
        %v6472 = vsel %vm1323, %v6470, %v6471
        %v6473 = vrot.slane %v6235, 2
        %v6474 = vsel %vm1323, %v6471, %v6473
        %v6475 = vrot.slane %v6220, 2
        %v6476 = vrot.slane %v6141, 2
        %v6477 = vsel %vm1323, %v6475, %v6476
        %v6478 = vrot.slane %v6236, 2
        %v6479 = vsel %vm1323, %v6476, %v6478
        %v6480 = vrot.slane %v6221, 2
        %v6481 = vrot.slane %v6144, 2
        %v6482 = vsel %vm1323, %v6480, %v6481
        %v6483 = vrot.slane %v6237, 2
        %v6484 = vsel %vm1323, %v6481, %v6483
        %v6485 = vrot.slane %v6222, 2
        %v6486 = vrot.slane %v6147, 2
        %v6487 = vsel %vm1323, %v6485, %v6486
        %v6488 = vrot.slane %v6238, 2
        %v6489 = vsel %vm1323, %v6486, %v6488
        %v6490 = vrot.slane %v6223, 2
        %v6491 = vrot.slane %v6150, 2
        %v6492 = vsel %vm1323, %v6490, %v6491
        %v6493 = vrot.slane %v6239, 2
        %v6494 = vsel %vm1323, %v6491, %v6493
        %v6495 = vrot.slane %v6224, 2
        %v6496 = vrot.slane %v6153, 2
        %v6497 = vsel %vm1323, %v6495, %v6496
        %v6498 = vrot.slane %v6240, 2
        %v6499 = vsel %vm1323, %v6496, %v6498
        %v6500 = vrot.slane %v6225, 2
        %v6501 = vrot.slane %v6156, 2
        %v6502 = vsel %vm1323, %v6500, %v6501
        %v6503 = vrot.slane %v6241, 2
        %v6504 = vsel %vm1323, %v6501, %v6503
        %v6505 = vrot.slane %v6226, 2
        %v6506 = vrot.slane %v6159, 2
        %v6507 = vsel %vm1323, %v6505, %v6506
        %v6508 = vrot.slane %v6242, 2
        %v6509 = vsel %vm1323, %v6506, %v6508
        %v6510 = vrot.slane %v6227, 2
        %v6511 = vrot.slane %v6162, 2
        %v6512 = vsel %vm1323, %v6510, %v6511
        %v6513 = vrot.slane %v6243, 2
        %v6514 = vsel %vm1323, %v6511, %v6513
        %6515 = vrot.lane.b32.xlu0 %v6442, 32
        %v6516 = vpop.permute.xlu0 %6515
        %6517 = vrot.lane.b32.xlu0 %v6444, 32
        %v6518 = vpop.permute.xlu0 %6517
        %6519 = vrot.lane.b32.xlu0 %v6447, 32
        %v6520 = vpop.permute.xlu0 %6519
        %6521 = vrot.lane.b32.xlu0 %v6449, 32
        %v6522 = vpop.permute.xlu0 %6521
        %6523 = vrot.lane.b32.xlu0 %v6452, 32
        %v6524 = vpop.permute.xlu0 %6523
        %6525 = vrot.lane.b32.xlu0 %v6454, 32
        %v6526 = vpop.permute.xlu0 %6525
        %6527 = vrot.lane.b32.xlu0 %v6457, 32
        %v6528 = vpop.permute.xlu0 %6527
        %6529 = vrot.lane.b32.xlu0 %v6459, 32
        %v6530 = vpop.permute.xlu0 %6529
        %6531 = vrot.lane.b32.xlu0 %v6462, 32
        %v6532 = vpop.permute.xlu0 %6531
        %6533 = vrot.lane.b32.xlu0 %v6464, 32
        %v6534 = vpop.permute.xlu0 %6533
        %6535 = vrot.lane.b32.xlu0 %v6467, 32
        %v6536 = vpop.permute.xlu0 %6535
        %6537 = vrot.lane.b32.xlu0 %v6469, 32
        %v6538 = vpop.permute.xlu0 %6537
        %6539 = vrot.lane.b32.xlu0 %v6472, 32
        %v6540 = vpop.permute.xlu0 %6539
        %6541 = vrot.lane.b32.xlu0 %v6474, 32
        %v6542 = vpop.permute.xlu0 %6541
        %6543 = vrot.lane.b32.xlu0 %v6477, 32
        %v6544 = vpop.permute.xlu0 %6543
        %6545 = vrot.lane.b32.xlu0 %v6479, 32
        %v6546 = vpop.permute.xlu0 %6545
        %6547 = vrot.lane.b32.xlu0 %v6482, 32
        %v6548 = vpop.permute.xlu0 %6547
        %6549 = vrot.lane.b32.xlu0 %v6484, 32
        %v6550 = vpop.permute.xlu0 %6549
        %6551 = vrot.lane.b32.xlu0 %v6487, 32
        %v6552 = vpop.permute.xlu0 %6551
        %6553 = vrot.lane.b32.xlu0 %v6489, 32
        %v6554 = vpop.permute.xlu0 %6553
        %6555 = vrot.lane.b32.xlu0 %v6492, 32
        %v6556 = vpop.permute.xlu0 %6555
        %6557 = vrot.lane.b32.xlu0 %v6494, 32
        %v6558 = vpop.permute.xlu0 %6557
        %6559 = vrot.lane.b32.xlu0 %v6497, 32
        %v6560 = vpop.permute.xlu0 %6559
        %6561 = vrot.lane.b32.xlu0 %v6499, 32
        %v6562 = vpop.permute.xlu0 %6561
        %6563 = vrot.lane.b32.xlu0 %v6502, 32
        %v6564 = vpop.permute.xlu0 %6563
        %6565 = vrot.lane.b32.xlu0 %v6504, 32
        %v6566 = vpop.permute.xlu0 %6565
        %6567 = vrot.lane.b32.xlu0 %v6507, 32
        %v6568 = vpop.permute.xlu0 %6567
        %6569 = vrot.lane.b32.xlu0 %v6509, 32
        %v6570 = vpop.permute.xlu0 %6569
        %6571 = vrot.lane.b32.xlu0 %v6512, 32
        %v6572 = vpop.permute.xlu0 %6571
        %6573 = vrot.lane.b32.xlu0 %v6514, 32
        %v6574 = vpop.permute.xlu0 %6573
        %6606 = vrot.lane.b32.xlu0 %v6213, 48
        %v6607 = vpop.permute.xlu0 %6606
        %6608 = vrot.lane.b32.xlu0 %v6120, 48
        %v6609 = vpop.permute.xlu0 %6608
        %6610 = vrot.lane.b32.xlu0 %v6214, 48
        %v6611 = vpop.permute.xlu0 %6610
        %6612 = vrot.lane.b32.xlu0 %v6123, 48
        %v6613 = vpop.permute.xlu0 %6612
        %6614 = vrot.lane.b32.xlu0 %v6215, 48
        %v6615 = vpop.permute.xlu0 %6614
        %6616 = vrot.lane.b32.xlu0 %v6126, 48
        %v6617 = vpop.permute.xlu0 %6616
        %6618 = vrot.lane.b32.xlu0 %v6216, 48
        %v6619 = vpop.permute.xlu0 %6618
        %6620 = vrot.lane.b32.xlu0 %v6129, 48
        %v6621 = vpop.permute.xlu0 %6620
        %6622 = vrot.lane.b32.xlu0 %v6217, 48
        %v6623 = vpop.permute.xlu0 %6622
        %6624 = vrot.lane.b32.xlu0 %v6132, 48
        %v6625 = vpop.permute.xlu0 %6624
        %6626 = vrot.lane.b32.xlu0 %v6218, 48
        %v6627 = vpop.permute.xlu0 %6626
        %6628 = vrot.lane.b32.xlu0 %v6135, 48
        %v6629 = vpop.permute.xlu0 %6628
        %6630 = vrot.lane.b32.xlu0 %v6219, 48
        %v6631 = vpop.permute.xlu0 %6630
        %6632 = vrot.lane.b32.xlu0 %v6138, 48
        %v6633 = vpop.permute.xlu0 %6632
        %6634 = vrot.lane.b32.xlu0 %v6220, 48
        %v6635 = vpop.permute.xlu0 %6634
        %6636 = vrot.lane.b32.xlu0 %v6141, 48
        %v6637 = vpop.permute.xlu0 %6636
        %6638 = vrot.lane.b32.xlu0 %v6221, 48
        %v6639 = vpop.permute.xlu0 %6638
        %6640 = vrot.lane.b32.xlu0 %v6144, 48
        %v6641 = vpop.permute.xlu0 %6640
        %6642 = vrot.lane.b32.xlu0 %v6222, 48
        %v6643 = vpop.permute.xlu0 %6642
        %6644 = vrot.lane.b32.xlu0 %v6147, 48
        %v6645 = vpop.permute.xlu0 %6644
        %6646 = vrot.lane.b32.xlu0 %v6223, 48
        %v6647 = vpop.permute.xlu0 %6646
        %6648 = vrot.lane.b32.xlu0 %v6150, 48
        %v6649 = vpop.permute.xlu0 %6648
        %6650 = vrot.lane.b32.xlu0 %v6224, 48
        %v6651 = vpop.permute.xlu0 %6650
        %6652 = vrot.lane.b32.xlu0 %v6153, 48
        %v6653 = vpop.permute.xlu0 %6652
        %6654 = vrot.lane.b32.xlu0 %v6225, 48
        %v6655 = vpop.permute.xlu0 %6654
        %6656 = vrot.lane.b32.xlu0 %v6156, 48
        %v6657 = vpop.permute.xlu0 %6656
        %6658 = vrot.lane.b32.xlu0 %v6226, 48
        %v6659 = vpop.permute.xlu0 %6658
        %6660 = vrot.lane.b32.xlu0 %v6159, 48
        %v6661 = vpop.permute.xlu0 %6660
        %6662 = vrot.lane.b32.xlu0 %v6227, 48
        %v6663 = vpop.permute.xlu0 %6662
        %6664 = vrot.lane.b32.xlu0 %v6162, 48
        %v6665 = vpop.permute.xlu0 %6664
        %6666 = vrot.lane.b32.xlu0 %v6228, 48
        %v6667 = vpop.permute.xlu0 %6666
        %6668 = vrot.lane.b32.xlu0 %v6165, 48
        %v6669 = vpop.permute.xlu0 %6668
        %v6703 = vrot.slane %v6228, 1
        %v6704 = vrot.slane %v6165, 1
        %v6705 = vsel %vm1152, %v6703, %v6704
        %v6706 = vrot.slane %v6244, 1
        %v6707 = vsel %vm1152, %v6704, %v6706
        %6708 = vrot.lane.b32.xlu0 %v6277, 64
        %v6709 = vpop.permute.xlu0 %6708
        %6710 = vrot.lane.b32.xlu0 %v6279, 64
        %v6711 = vpop.permute.xlu0 %6710
        %6712 = vrot.lane.b32.xlu0 %v6282, 64
        %v6713 = vpop.permute.xlu0 %6712
        %6714 = vrot.lane.b32.xlu0 %v6284, 64
        %v6715 = vpop.permute.xlu0 %6714
        %6716 = vrot.lane.b32.xlu0 %v6287, 64
        %v6717 = vpop.permute.xlu0 %6716
        %6718 = vrot.lane.b32.xlu0 %v6289, 64
        %v6719 = vpop.permute.xlu0 %6718
        %6720 = vrot.lane.b32.xlu0 %v6292, 64
        %v6721 = vpop.permute.xlu0 %6720
        %6722 = vrot.lane.b32.xlu0 %v6294, 64
        %v6723 = vpop.permute.xlu0 %6722
        %6724 = vrot.lane.b32.xlu0 %v6297, 64
        %v6725 = vpop.permute.xlu0 %6724
        %6726 = vrot.lane.b32.xlu0 %v6299, 64
        %v6727 = vpop.permute.xlu0 %6726
        %6728 = vrot.lane.b32.xlu0 %v6302, 64
        %v6729 = vpop.permute.xlu0 %6728
        %6730 = vrot.lane.b32.xlu0 %v6304, 64
        %v6731 = vpop.permute.xlu0 %6730
        %6732 = vrot.lane.b32.xlu0 %v6307, 64
        %v6733 = vpop.permute.xlu0 %6732
        %6734 = vrot.lane.b32.xlu0 %v6309, 64
        %v6735 = vpop.permute.xlu0 %6734
        %6736 = vrot.lane.b32.xlu0 %v6312, 64
        %v6737 = vpop.permute.xlu0 %6736
        %6738 = vrot.lane.b32.xlu0 %v6314, 64
        %v6739 = vpop.permute.xlu0 %6738
        %6740 = vrot.lane.b32.xlu0 %v6317, 64
        %v6741 = vpop.permute.xlu0 %6740
        %6742 = vrot.lane.b32.xlu0 %v6319, 64
        %v6743 = vpop.permute.xlu0 %6742
        %6744 = vrot.lane.b32.xlu0 %v6322, 64
        %v6745 = vpop.permute.xlu0 %6744
        %6746 = vrot.lane.b32.xlu0 %v6324, 64
        %v6747 = vpop.permute.xlu0 %6746
        %6748 = vrot.lane.b32.xlu0 %v6327, 64
        %v6749 = vpop.permute.xlu0 %6748
        %6750 = vrot.lane.b32.xlu0 %v6329, 64
        %v6751 = vpop.permute.xlu0 %6750
        %6752 = vrot.lane.b32.xlu0 %v6332, 64
        %v6753 = vpop.permute.xlu0 %6752
        %6754 = vrot.lane.b32.xlu0 %v6334, 64
        %v6755 = vpop.permute.xlu0 %6754
        %6756 = vrot.lane.b32.xlu0 %v6337, 64
        %v6757 = vpop.permute.xlu0 %6756
        %6758 = vrot.lane.b32.xlu0 %v6339, 64
        %v6759 = vpop.permute.xlu0 %6758
        %6760 = vrot.lane.b32.xlu0 %v6342, 64
        %v6761 = vpop.permute.xlu0 %6760
        %6762 = vrot.lane.b32.xlu0 %v6344, 64
        %v6763 = vpop.permute.xlu0 %6762
        %6764 = vrot.lane.b32.xlu0 %v6347, 64
        %v6765 = vpop.permute.xlu0 %6764
        %6766 = vrot.lane.b32.xlu0 %v6349, 64
        %v6767 = vpop.permute.xlu0 %6766
        %6768 = vrot.lane.b32.xlu0 %v6705, 64
        %v6769 = vpop.permute.xlu0 %6768
        %6770 = vrot.lane.b32.xlu0 %v6707, 64
        %v6771 = vpop.permute.xlu0 %6770
        %v6804 = vrot.slane %v6228, 2
        %v6805 = vrot.slane %v6165, 2
        %v6806 = vsel %vm1323, %v6804, %v6805
        %v6807 = vrot.slane %v6244, 2
        %v6808 = vsel %vm1323, %v6805, %v6807
        %6809 = vrot.lane.b32.xlu0 %v6442, 80
        %v6810 = vpop.permute.xlu0 %6809
        %6811 = vrot.lane.b32.xlu0 %v6444, 80
        %v6812 = vpop.permute.xlu0 %6811
        %6813 = vrot.lane.b32.xlu0 %v6447, 80
        %v6814 = vpop.permute.xlu0 %6813
        %6815 = vrot.lane.b32.xlu0 %v6449, 80
        %v6816 = vpop.permute.xlu0 %6815
        %6817 = vrot.lane.b32.xlu0 %v6452, 80
        %v6818 = vpop.permute.xlu0 %6817
        %6819 = vrot.lane.b32.xlu0 %v6454, 80
        %v6820 = vpop.permute.xlu0 %6819
        %6821 = vrot.lane.b32.xlu0 %v6457, 80
        %v6822 = vpop.permute.xlu0 %6821
        %6823 = vrot.lane.b32.xlu0 %v6459, 80
        %v6824 = vpop.permute.xlu0 %6823
        %6825 = vrot.lane.b32.xlu0 %v6462, 80
        %v6826 = vpop.permute.xlu0 %6825
        %6827 = vrot.lane.b32.xlu0 %v6464, 80
        %v6828 = vpop.permute.xlu0 %6827
        %6829 = vrot.lane.b32.xlu0 %v6467, 80
        %v6830 = vpop.permute.xlu0 %6829
        %6831 = vrot.lane.b32.xlu0 %v6469, 80
        %v6832 = vpop.permute.xlu0 %6831
        %6833 = vrot.lane.b32.xlu0 %v6472, 80
        %v6834 = vpop.permute.xlu0 %6833
        %6835 = vrot.lane.b32.xlu0 %v6474, 80
        %v6836 = vpop.permute.xlu0 %6835
        %6837 = vrot.lane.b32.xlu0 %v6477, 80
        %v6838 = vpop.permute.xlu0 %6837
        %6839 = vrot.lane.b32.xlu0 %v6479, 80
        %v6840 = vpop.permute.xlu0 %6839
        %6841 = vrot.lane.b32.xlu0 %v6482, 80
        %v6842 = vpop.permute.xlu0 %6841
        %6843 = vrot.lane.b32.xlu0 %v6484, 80
        %v6844 = vpop.permute.xlu0 %6843
        %6845 = vrot.lane.b32.xlu0 %v6487, 80
        %v6846 = vpop.permute.xlu0 %6845
        %6847 = vrot.lane.b32.xlu0 %v6489, 80
        %v6848 = vpop.permute.xlu0 %6847
        %6849 = vrot.lane.b32.xlu0 %v6492, 80
        %v6850 = vpop.permute.xlu0 %6849
        %6851 = vrot.lane.b32.xlu0 %v6494, 80
        %v6852 = vpop.permute.xlu0 %6851
        %6853 = vrot.lane.b32.xlu0 %v6497, 80
        %v6854 = vpop.permute.xlu0 %6853
        %6855 = vrot.lane.b32.xlu0 %v6499, 80
        %v6856 = vpop.permute.xlu0 %6855
        %6857 = vrot.lane.b32.xlu0 %v6502, 80
        %v6858 = vpop.permute.xlu0 %6857
        %6859 = vrot.lane.b32.xlu0 %v6504, 80
        %v6860 = vpop.permute.xlu0 %6859
        %6861 = vrot.lane.b32.xlu0 %v6507, 80
        %v6862 = vpop.permute.xlu0 %6861
        %6863 = vrot.lane.b32.xlu0 %v6509, 80
        %v6864 = vpop.permute.xlu0 %6863
        %6865 = vrot.lane.b32.xlu0 %v6512, 80
        %v6866 = vpop.permute.xlu0 %6865
        %6867 = vrot.lane.b32.xlu0 %v6514, 80
        %v6868 = vpop.permute.xlu0 %6867
        %6869 = vrot.lane.b32.xlu0 %v6806, 80
        %v6870 = vpop.permute.xlu0 %6869
        %6871 = vrot.lane.b32.xlu0 %v6808, 80
        %v6872 = vpop.permute.xlu0 %6871
        %6905 = vrot.lane.b32.xlu0 %v6214, 96
        %v6906 = vpop.permute.xlu0 %6905
        %6907 = vrot.lane.b32.xlu0 %v6123, 96
        %v6908 = vpop.permute.xlu0 %6907
        %6909 = vrot.lane.b32.xlu0 %v6215, 96
        %v6910 = vpop.permute.xlu0 %6909
        %6911 = vrot.lane.b32.xlu0 %v6126, 96
        %v6912 = vpop.permute.xlu0 %6911
        %6913 = vrot.lane.b32.xlu0 %v6216, 96
        %v6914 = vpop.permute.xlu0 %6913
        %6915 = vrot.lane.b32.xlu0 %v6129, 96
        %v6916 = vpop.permute.xlu0 %6915
        %6917 = vrot.lane.b32.xlu0 %v6217, 96
        %v6918 = vpop.permute.xlu0 %6917
        %6919 = vrot.lane.b32.xlu0 %v6132, 96
        %v6920 = vpop.permute.xlu0 %6919
        %6921 = vrot.lane.b32.xlu0 %v6218, 96
        %v6922 = vpop.permute.xlu0 %6921
        %6923 = vrot.lane.b32.xlu0 %v6135, 96
        %v6924 = vpop.permute.xlu0 %6923
        %6925 = vrot.lane.b32.xlu0 %v6219, 96
        %v6926 = vpop.permute.xlu0 %6925
        %6927 = vrot.lane.b32.xlu0 %v6138, 96
        %v6928 = vpop.permute.xlu0 %6927
        %6929 = vrot.lane.b32.xlu0 %v6220, 96
        %v6930 = vpop.permute.xlu0 %6929
        %6931 = vrot.lane.b32.xlu0 %v6141, 96
        %v6932 = vpop.permute.xlu0 %6931
        %6933 = vrot.lane.b32.xlu0 %v6221, 96
        %v6934 = vpop.permute.xlu0 %6933
        %6935 = vrot.lane.b32.xlu0 %v6144, 96
        %v6936 = vpop.permute.xlu0 %6935
        %6937 = vrot.lane.b32.xlu0 %v6222, 96
        %v6938 = vpop.permute.xlu0 %6937
        %6939 = vrot.lane.b32.xlu0 %v6147, 96
        %v6940 = vpop.permute.xlu0 %6939
        %6941 = vrot.lane.b32.xlu0 %v6223, 96
        %v6942 = vpop.permute.xlu0 %6941
        %6943 = vrot.lane.b32.xlu0 %v6150, 96
        %v6944 = vpop.permute.xlu0 %6943
        %6945 = vrot.lane.b32.xlu0 %v6224, 96
        %v6946 = vpop.permute.xlu0 %6945
        %6947 = vrot.lane.b32.xlu0 %v6153, 96
        %v6948 = vpop.permute.xlu0 %6947
        %6949 = vrot.lane.b32.xlu0 %v6225, 96
        %v6950 = vpop.permute.xlu0 %6949
        %6951 = vrot.lane.b32.xlu0 %v6156, 96
        %v6952 = vpop.permute.xlu0 %6951
        %6953 = vrot.lane.b32.xlu0 %v6226, 96
        %v6954 = vpop.permute.xlu0 %6953
        %6955 = vrot.lane.b32.xlu0 %v6159, 96
        %v6956 = vpop.permute.xlu0 %6955
        %6957 = vrot.lane.b32.xlu0 %v6227, 96
        %v6958 = vpop.permute.xlu0 %6957
        %6959 = vrot.lane.b32.xlu0 %v6162, 96
        %v6960 = vpop.permute.xlu0 %6959
        %6961 = vrot.lane.b32.xlu0 %v6228, 96
        %v6962 = vpop.permute.xlu0 %6961
        %6963 = vrot.lane.b32.xlu0 %v6165, 96
        %v6964 = vpop.permute.xlu0 %6963
        %6995 = vrot.lane.b32.xlu0 %v6282, 112
        %v6996 = vpop.permute.xlu0 %6995
        %6997 = vrot.lane.b32.xlu0 %v6284, 112
        %v6998 = vpop.permute.xlu0 %6997
        %6999 = vrot.lane.b32.xlu0 %v6287, 112
        %v7000 = vpop.permute.xlu0 %6999
        %7001 = vrot.lane.b32.xlu0 %v6289, 112
        %v7002 = vpop.permute.xlu0 %7001
        %7003 = vrot.lane.b32.xlu0 %v6292, 112
        %v7004 = vpop.permute.xlu0 %7003
        %7005 = vrot.lane.b32.xlu0 %v6294, 112
        %v7006 = vpop.permute.xlu0 %7005
        %7007 = vrot.lane.b32.xlu0 %v6297, 112
        %v7008 = vpop.permute.xlu0 %7007
        %7009 = vrot.lane.b32.xlu0 %v6299, 112
        %v7010 = vpop.permute.xlu0 %7009
        %7011 = vrot.lane.b32.xlu0 %v6302, 112
        %v7012 = vpop.permute.xlu0 %7011
        %7013 = vrot.lane.b32.xlu0 %v6304, 112
        %v7014 = vpop.permute.xlu0 %7013
        %7015 = vrot.lane.b32.xlu0 %v6307, 112
        %v7016 = vpop.permute.xlu0 %7015
        %7017 = vrot.lane.b32.xlu0 %v6309, 112
        %v7018 = vpop.permute.xlu0 %7017
        %7019 = vrot.lane.b32.xlu0 %v6312, 112
        %v7020 = vpop.permute.xlu0 %7019
        %7021 = vrot.lane.b32.xlu0 %v6314, 112
        %v7022 = vpop.permute.xlu0 %7021
        %7023 = vrot.lane.b32.xlu0 %v6317, 112
        %v7024 = vpop.permute.xlu0 %7023
        %7025 = vrot.lane.b32.xlu0 %v6319, 112
        %v7026 = vpop.permute.xlu0 %7025
        %7027 = vrot.lane.b32.xlu0 %v6322, 112
        %v7028 = vpop.permute.xlu0 %7027
        %7029 = vrot.lane.b32.xlu0 %v6324, 112
        %v7030 = vpop.permute.xlu0 %7029
        %7031 = vrot.lane.b32.xlu0 %v6327, 112
        %v7032 = vpop.permute.xlu0 %7031
        %7033 = vrot.lane.b32.xlu0 %v6329, 112
        %v7034 = vpop.permute.xlu0 %7033
        %7035 = vrot.lane.b32.xlu0 %v6332, 112
        %v7036 = vpop.permute.xlu0 %7035
        %7037 = vrot.lane.b32.xlu0 %v6334, 112
        %v7038 = vpop.permute.xlu0 %7037
        %7039 = vrot.lane.b32.xlu0 %v6337, 112
        %v7040 = vpop.permute.xlu0 %7039
        %7041 = vrot.lane.b32.xlu0 %v6339, 112
        %v7042 = vpop.permute.xlu0 %7041
        %7043 = vrot.lane.b32.xlu0 %v6342, 112
        %v7044 = vpop.permute.xlu0 %7043
        %7045 = vrot.lane.b32.xlu0 %v6344, 112
        %v7046 = vpop.permute.xlu0 %7045
        %7047 = vrot.lane.b32.xlu0 %v6347, 112
        %v7048 = vpop.permute.xlu0 %7047
        %7049 = vrot.lane.b32.xlu0 %v6349, 112
        %v7050 = vpop.permute.xlu0 %7049
        %7051 = vrot.lane.b32.xlu0 %v6705, 112
        %v7052 = vpop.permute.xlu0 %7051
        %7053 = vrot.lane.b32.xlu0 %v6707, 112
        %v7054 = vpop.permute.xlu0 %7053
        %v7115 = vsel %vm3734, %v6213, %v6351
        %v7116 = vsel %vm3734, %v6120, %v6353
        %v7117 = vsel %vm3734, %v6214, %v6355
        %v7118 = vsel %vm3734, %v6123, %v6357
        %v7119 = vsel %vm3734, %v6215, %v6359
        %v7120 = vsel %vm3734, %v6126, %v6361
        %v7121 = vsel %vm3734, %v6216, %v6363
        %v7122 = vsel %vm3734, %v6129, %v6365
        %v7123 = vsel %vm3734, %v6217, %v6367
        %v7124 = vsel %vm3734, %v6132, %v6369
        %v7125 = vsel %vm3734, %v6218, %v6371
        %v7126 = vsel %vm3734, %v6135, %v6373
        %v7127 = vsel %vm3734, %v6219, %v6375
        %v7128 = vsel %vm3734, %v6138, %v6377
        %v7129 = vsel %vm3734, %v6220, %v6379
        %v7130 = vsel %vm3734, %v6141, %v6381
        %v7131 = vsel %vm3734, %v6221, %v6383
        %v7132 = vsel %vm3734, %v6144, %v6385
        %v7133 = vsel %vm3734, %v6222, %v6387
        %v7134 = vsel %vm3734, %v6147, %v6389
        %v7135 = vsel %vm3734, %v6223, %v6391
        %v7136 = vsel %vm3734, %v6150, %v6393
        %v7137 = vsel %vm3734, %v6224, %v6395
        %v7138 = vsel %vm3734, %v6153, %v6397
        %v7139 = vsel %vm3734, %v6225, %v6399
        %v7140 = vsel %vm3734, %v6156, %v6401
        %v7141 = vsel %vm3734, %v6226, %v6403
        %v7142 = vsel %vm3734, %v6159, %v6405
        %v7143 = vsel %vm3734, %v6227, %v6407
        %v7144 = vsel %vm3734, %v6162, %v6409
        %v7145 = vsel %vm3766, %v7115, %v6516
        %v7146 = vsel %vm3766, %v7116, %v6518
        %v7147 = vsel %vm3766, %v7117, %v6520
        %v7148 = vsel %vm3766, %v7118, %v6522
        %v7149 = vsel %vm3766, %v7119, %v6524
        %v7150 = vsel %vm3766, %v7120, %v6526
        %v7151 = vsel %vm3766, %v7121, %v6528
        %v7152 = vsel %vm3766, %v7122, %v6530
        %v7153 = vsel %vm3766, %v7123, %v6532
        %v7154 = vsel %vm3766, %v7124, %v6534
        %v7155 = vsel %vm3766, %v7125, %v6536
        %v7156 = vsel %vm3766, %v7126, %v6538
        %v7157 = vsel %vm3766, %v7127, %v6540
        %v7158 = vsel %vm3766, %v7128, %v6542
        %v7159 = vsel %vm3766, %v7129, %v6544
        %v7160 = vsel %vm3766, %v7130, %v6546
        %v7161 = vsel %vm3766, %v7131, %v6548
        %v7162 = vsel %vm3766, %v7132, %v6550
        %v7163 = vsel %vm3766, %v7133, %v6552
        %v7164 = vsel %vm3766, %v7134, %v6554
        %v7165 = vsel %vm3766, %v7135, %v6556
        %v7166 = vsel %vm3766, %v7136, %v6558
        %v7167 = vsel %vm3766, %v7137, %v6560
        %v7168 = vsel %vm3766, %v7138, %v6562
        %v7169 = vsel %vm3766, %v7139, %v6564
        %v7170 = vsel %vm3766, %v7140, %v6566
        %v7171 = vsel %vm3766, %v7141, %v6568
        %v7172 = vsel %vm3766, %v7142, %v6570
        %v7173 = vsel %vm3766, %v7143, %v6572
        %v7174 = vsel %vm3766, %v7144, %v6574
        %v7175 = vsel %vm3798, %v3767, %v6607
        %v7176 = vsel %vm3798, %v3767, %v6609
        %v7177 = vsel %vm3798, %v7145, %v6611
        %v7178 = vsel %vm3798, %v7146, %v6613
        %v7179 = vsel %vm3798, %v7147, %v6615
        %v7180 = vsel %vm3798, %v7148, %v6617
        %v7181 = vsel %vm3798, %v7149, %v6619
        %v7182 = vsel %vm3798, %v7150, %v6621
        %v7183 = vsel %vm3798, %v7151, %v6623
        %v7184 = vsel %vm3798, %v7152, %v6625
        %v7185 = vsel %vm3798, %v7153, %v6627
        %v7186 = vsel %vm3798, %v7154, %v6629
        %v7187 = vsel %vm3798, %v7155, %v6631
        %v7188 = vsel %vm3798, %v7156, %v6633
        %v7189 = vsel %vm3798, %v7157, %v6635
        %v7190 = vsel %vm3798, %v7158, %v6637
        %v7191 = vsel %vm3798, %v7159, %v6639
        %v7192 = vsel %vm3798, %v7160, %v6641
        %v7193 = vsel %vm3798, %v7161, %v6643
        %v7194 = vsel %vm3798, %v7162, %v6645
        %v7195 = vsel %vm3798, %v7163, %v6647
        %v7196 = vsel %vm3798, %v7164, %v6649
        %v7197 = vsel %vm3798, %v7165, %v6651
        %v7198 = vsel %vm3798, %v7166, %v6653
        %v7199 = vsel %vm3798, %v7167, %v6655
        %v7200 = vsel %vm3798, %v7168, %v6657
        %v7201 = vsel %vm3798, %v7169, %v6659
        %v7202 = vsel %vm3798, %v7170, %v6661
        %v7203 = vsel %vm3798, %v7171, %v6663
        %v7204 = vsel %vm3798, %v7172, %v6665
        %v7205 = vsel %vm3798, %v7173, %v6667
        %v7206 = vsel %vm3798, %v7174, %v6669
        %v7207 = vsel %vm3831, %v7175, %v6709
        %v7208 = vsel %vm3831, %v7176, %v6711
        %v7209 = vsel %vm3831, %v7177, %v6713
        %v7210 = vsel %vm3831, %v7178, %v6715
        %v7211 = vsel %vm3831, %v7179, %v6717
        %v7212 = vsel %vm3831, %v7180, %v6719
        %v7213 = vsel %vm3831, %v7181, %v6721
        %v7214 = vsel %vm3831, %v7182, %v6723
        %v7215 = vsel %vm3831, %v7183, %v6725
        %v7216 = vsel %vm3831, %v7184, %v6727
        %v7217 = vsel %vm3831, %v7185, %v6729
        %v7218 = vsel %vm3831, %v7186, %v6731
        %v7219 = vsel %vm3831, %v7187, %v6733
        %v7220 = vsel %vm3831, %v7188, %v6735
        %v7221 = vsel %vm3831, %v7189, %v6737
        %v7222 = vsel %vm3831, %v7190, %v6739
        %v7223 = vsel %vm3831, %v7191, %v6741
        %v7224 = vsel %vm3831, %v7192, %v6743
        %v7225 = vsel %vm3831, %v7193, %v6745
        %v7226 = vsel %vm3831, %v7194, %v6747
        %v7227 = vsel %vm3831, %v7195, %v6749
        %v7228 = vsel %vm3831, %v7196, %v6751
        %v7229 = vsel %vm3831, %v7197, %v6753
        %v7230 = vsel %vm3831, %v7198, %v6755
        %v7231 = vsel %vm3831, %v7199, %v6757
        %v7232 = vsel %vm3831, %v7200, %v6759
        %v7233 = vsel %vm3831, %v7201, %v6761
        %v7234 = vsel %vm3831, %v7202, %v6763
        %v7235 = vsel %vm3831, %v7203, %v6765
        %v7236 = vsel %vm3831, %v7204, %v6767
        %v7237 = vsel %vm3831, %v7205, %v6769
        %v7238 = vsel %vm3831, %v7206, %v6771
        %v7239 = vsel %vm3864, %v7207, %v6810
        %v7240 = vsel %vm3864, %v7208, %v6812
        %v7241 = vsel %vm3864, %v7209, %v6814
        %v7242 = vsel %vm3864, %v7210, %v6816
        %v7243 = vsel %vm3864, %v7211, %v6818
        %v7244 = vsel %vm3864, %v7212, %v6820
        %v7245 = vsel %vm3864, %v7213, %v6822
        %v7246 = vsel %vm3864, %v7214, %v6824
        %v7247 = vsel %vm3864, %v7215, %v6826
        %v7248 = vsel %vm3864, %v7216, %v6828
        %v7249 = vsel %vm3864, %v7217, %v6830
        %v7250 = vsel %vm3864, %v7218, %v6832
        %v7251 = vsel %vm3864, %v7219, %v6834
        %v7252 = vsel %vm3864, %v7220, %v6836
        %v7253 = vsel %vm3864, %v7221, %v6838
        %v7254 = vsel %vm3864, %v7222, %v6840
        %v7255 = vsel %vm3864, %v7223, %v6842
        %v7256 = vsel %vm3864, %v7224, %v6844
        %v7257 = vsel %vm3864, %v7225, %v6846
        %v7258 = vsel %vm3864, %v7226, %v6848
        %v7259 = vsel %vm3864, %v7227, %v6850
        %v7260 = vsel %vm3864, %v7228, %v6852
        %v7261 = vsel %vm3864, %v7229, %v6854
        %v7262 = vsel %vm3864, %v7230, %v6856
        %v7263 = vsel %vm3864, %v7231, %v6858
        %v7264 = vsel %vm3864, %v7232, %v6860
        %v7265 = vsel %vm3864, %v7233, %v6862
        %v7266 = vsel %vm3864, %v7234, %v6864
        %v7267 = vsel %vm3864, %v7235, %v6866
        %v7268 = vsel %vm3864, %v7236, %v6868
        %v7269 = vsel %vm3864, %v7237, %v6870
        %v7270 = vsel %vm3864, %v7238, %v6872
        %v7271 = vsel %vm3897, %v7239, %v6906
        %v7272 = vsel %vm3897, %v7240, %v6908
        %v7273 = vsel %vm3897, %v7241, %v6910
        %v7274 = vsel %vm3897, %v7242, %v6912
        %v7275 = vsel %vm3897, %v7243, %v6914
        %v7276 = vsel %vm3897, %v7244, %v6916
        %v7277 = vsel %vm3897, %v7245, %v6918
        %v7278 = vsel %vm3897, %v7246, %v6920
        %v7279 = vsel %vm3897, %v7247, %v6922
        %v7280 = vsel %vm3897, %v7248, %v6924
        %v7281 = vsel %vm3897, %v7249, %v6926
        %v7282 = vsel %vm3897, %v7250, %v6928
        %v7283 = vsel %vm3897, %v7251, %v6930
        %v7284 = vsel %vm3897, %v7252, %v6932
        %v7285 = vsel %vm3897, %v7253, %v6934
        %v7286 = vsel %vm3897, %v7254, %v6936
        %v7287 = vsel %vm3897, %v7255, %v6938
        %v7288 = vsel %vm3897, %v7256, %v6940
        %v7289 = vsel %vm3897, %v7257, %v6942
        %v7290 = vsel %vm3897, %v7258, %v6944
        %v7291 = vsel %vm3897, %v7259, %v6946
        %v7292 = vsel %vm3897, %v7260, %v6948
        %v7293 = vsel %vm3897, %v7261, %v6950
        %v7294 = vsel %vm3897, %v7262, %v6952
        %v7295 = vsel %vm3897, %v7263, %v6954
        %v7296 = vsel %vm3897, %v7264, %v6956
        %v7297 = vsel %vm3897, %v7265, %v6958
        %v7298 = vsel %vm3897, %v7266, %v6960
        %v7299 = vsel %vm3897, %v7267, %v6962
        %v7300 = vsel %vm3897, %v7268, %v6964
        %v7301 = vsel %vm3897, %v7269, %v3578
        %v7302 = vsel %vm3897, %v7270, %v3578
        %v7303 = vsel %vm3930, %v7271, %v6996
        %v7304 = vsel %vm3930, %v7272, %v6998
        %v7305 = vsel %vm3930, %v7273, %v7000
        %v7306 = vsel %vm3930, %v7274, %v7002
        %v7307 = vsel %vm3930, %v7275, %v7004
        %v7308 = vsel %vm3930, %v7276, %v7006
        %v7309 = vsel %vm3930, %v7277, %v7008
        %v7310 = vsel %vm3930, %v7278, %v7010
        %v7311 = vsel %vm3930, %v7279, %v7012
        %v7312 = vsel %vm3930, %v7280, %v7014
        %v7313 = vsel %vm3930, %v7281, %v7016
        %v7314 = vsel %vm3930, %v7282, %v7018
        %v7315 = vsel %vm3930, %v7283, %v7020
        %v7316 = vsel %vm3930, %v7284, %v7022
        %v7317 = vsel %vm3930, %v7285, %v7024
        %v7318 = vsel %vm3930, %v7286, %v7026
        %v7319 = vsel %vm3930, %v7287, %v7028
        %v7320 = vsel %vm3930, %v7288, %v7030
        %v7321 = vsel %vm3930, %v7289, %v7032
        %v7322 = vsel %vm3930, %v7290, %v7034
        %v7323 = vsel %vm3930, %v7291, %v7036
        %v7324 = vsel %vm3930, %v7292, %v7038
        %v7325 = vsel %vm3930, %v7293, %v7040
        %v7326 = vsel %vm3930, %v7294, %v7042
        %v7327 = vsel %vm3930, %v7295, %v7044
        %v7328 = vsel %vm3930, %v7296, %v7046
        %v7329 = vsel %vm3930, %v7297, %v7048
        %v7330 = vsel %vm3930, %v7298, %v7050
        %v7331 = vsel %vm3930, %v7299, %v7052
        %v7332 = vsel %vm3930, %v7300, %v7054
        %v7333 = vsel %vm3930, %v7301, %v3671
        %v7334 = vsel %vm3930, %v7302, %v3671
        %v7335 = vpack.c.bf16 %v7304, %v7303
        %v7336 = vpack.c.bf16 %v6449, %v6447
        %v7337 = vpack.c.bf16 %v7306, %v7305
        %v7338 = vpack.c.bf16 %v6454, %v6452
        %v7339 = vpack.c.bf16 %v7308, %v7307
        %v7340 = vpack.c.bf16 %v6459, %v6457
        %v7341 = vpack.c.bf16 %v7310, %v7309
        %v7342 = vpack.c.bf16 %v6464, %v6462
        %v7343 = vpack.c.bf16 %v7312, %v7311
        %v7344 = vpack.c.bf16 %v6469, %v6467
        %v7345 = vpack.c.bf16 %v7314, %v7313
        %v7346 = vpack.c.bf16 %v6474, %v6472
        %v7347 = vpack.c.bf16 %v7316, %v7315
        %v7348 = vpack.c.bf16 %v6479, %v6477
        %v7349 = vpack.c.bf16 %v7318, %v7317
        %v7350 = vpack.c.bf16 %v6484, %v6482
        %v7351 = vpack.c.bf16 %v7320, %v7319
        %v7352 = vpack.c.bf16 %v6489, %v6487
        %v7353 = vpack.c.bf16 %v7322, %v7321
        %v7354 = vpack.c.bf16 %v6494, %v6492
        %v7355 = vpack.c.bf16 %v7324, %v7323
        %v7356 = vpack.c.bf16 %v6499, %v6497
        %v7357 = vpack.c.bf16 %v7326, %v7325
        %v7358 = vpack.c.bf16 %v6504, %v6502
        %v7359 = vpack.c.bf16 %v7328, %v7327
        %v7360 = vpack.c.bf16 %v6509, %v6507
        %v7361 = vpack.c.bf16 %v7330, %v7329
        %v7362 = vpack.c.bf16 %v6514, %v6512
        %v7363 = vpack.c.bf16 %v7332, %v7331
        %v7364 = vpack.c.bf16 %v6808, %v6806
        %v7365 = vpack.c.bf16 %v7334, %v7333
        %v7366 = vld [vmem:[%s21] sm:$0xf]
        %v7367 = vld [vmem:[%s21 + $0x4] sm:$0xf]
        %v7368 = vld [vmem:[%s21 + $0x8] sm:$0xf]
        %v7369 = vld [vmem:[%s21 + $0xc] sm:$0xf]
        %v7370 = vld [vmem:[%s21 + $0x10] sm:$0xf]
        %v7371 = vld [vmem:[%s21 + $0x14] sm:$0xf]
        %v7372 = vld [vmem:[%s21 + $0x18] sm:$0xf]
        %v7373 = vld [vmem:[%s21 + $0x1c] sm:$0xf]
        %v7374 = vld [vmem:[%s21 + $0x20] sm:$0xf]
        %v7375 = vld [vmem:[%s21 + $0x24] sm:$0xf]
        %v7376 = vld [vmem:[%s21 + $0x28] sm:$0xf]
        %v7377 = vld [vmem:[%s21 + $0x2c] sm:$0xf]
        %v7378 = vld [vmem:[%s21 + $0x30] sm:$0xf]
        %v7379 = vld [vmem:[%s21 + $0x34] sm:$0xf]
        %v7380 = vld [vmem:[%s21 + $0x38] sm:$0xf]
        %v7381 = vld [vmem:[%s21 + $0x3c] sm:$0xf]
        %v7382 = vld [vmem:[%s21 + $0x40] sm:$0xf]
        %v7383 = vld [vmem:[%s21 + $0x44] sm:$0xf]
        %v7402 = vunpack.c.l.b16 %v7366
        %v7403 = vunpack.c.l.b16 %v7367
        %v7404 = vunpack.c.l.b16 %v7368
        %v7405 = vunpack.c.l.b16 %v7369
        %v7406 = vunpack.c.l.b16 %v7370
        %v7407 = vunpack.c.l.b16 %v7371
        %v7408 = vunpack.c.l.b16 %v7372
        %v7409 = vunpack.c.l.b16 %v7373
        %v7410 = vunpack.c.l.b16 %v7374
        %v7411 = vunpack.c.l.b16 %v7375
        %v7412 = vunpack.c.l.b16 %v7376
        %v7413 = vunpack.c.l.b16 %v7377
        %v7414 = vunpack.c.l.b16 %v7378
        %v7415 = vunpack.c.l.b16 %v7379
        %v7416 = vunpack.c.l.b16 %v7380
        %v7417 = vunpack.c.l.b16 %v7381
        %v7418 = vunpack.c.l.b16 %v7382
        %v7419 = vunpack.c.l.b16 %v7383
        %v7420 = vpack.c.b16 %v7403, %v7402
        %v7421 = vpack.c.b16 %v7405, %v7404
        %v7422 = vpack.c.b16 %v7407, %v7406
        %v7423 = vpack.c.b16 %v7409, %v7408
        %v7424 = vpack.c.b16 %v7411, %v7410
        %v7425 = vpack.c.b16 %v7413, %v7412
        %v7426 = vpack.c.b16 %v7415, %v7414
        %v7427 = vpack.c.b16 %v7417, %v7416
        %v7428 = vpack.c.b16 %v7419, %v7418
        %v7439 = vsel %vm3734, %v7336, 0
        %v7442 = vsel %vm3734, %v7338, 0
        %v7445 = vsel %vm3734, %v7340, 0
        %v7448 = vsel %vm3734, %v7342, 0
        %v7451 = vsel %vm3734, %v7344, 0
        %v7454 = vsel %vm3734, %v7346, 0
        %v7457 = vsel %vm3734, %v7348, 0
        %v7460 = vsel %vm3734, %v7350, 0
        %v7463 = vsel %vm3734, %v7352, 0
        %v7466 = vsel %vm3734, %v7354, 0
        %v7469 = vsel %vm3734, %v7356, 0
        %v7472 = vsel %vm3734, %v7358, 0
        %v7475 = vsel %vm3734, %v7360, 0
        %v7478 = vsel %vm3734, %v7362, 0
        %v7481 = vsel %vm3734, %v7364, 0
        %7483 = vmatprep.subr.bf16.mxu0 0
        %7484 = vmatpush1.bf16.msra.mxu0 %v7420
        %7485 = vmatprep.subr.bf16.mxu0 0
        %7486 = vmatpush1.bf16.msra.mxu0 %v7421
        %7487 = vmatprep.subr.bf16.mxu0 0
        %7488 = vmatpush1.bf16.msra.mxu0 %v7422
        %7489 = vmatprep.subr.bf16.mxu0 0
        %7490 = vmatpush1.bf16.msra.mxu0 %v7423
        %7491 = vmatprep.subr.bf16.mxu0 0
        %7492 = vmatpush1.bf16.msra.mxu0 %v7424
        %7493 = vmatprep.subr.bf16.mxu0 0
        %7494 = vmatpush1.bf16.msra.mxu0 %v7425
        %7495 = vmatprep.subr.bf16.mxu0 0
        %7496 = vmatpush1.bf16.msra.mxu0 %v7426
        %7497 = vmatprep.subr.bf16.mxu0 0
        %7498 = vmatpush1.bf16.msra.mxu0 %v7427
        %7499 = vmatprep.subr.bf16.mxu0 0
        %7500 = vmatpush1.bf16.msra.mxu0 %v7428
        %7501 = vmatprep.subr.bf16.mxu0 0
        %7502 = vmatpush1.bf16.msra.mxu0 0
        %7503 = vmatprep.subr.bf16.mxu0 0
        %7504 = vmatpush1.bf16.msra.mxu0 0
        %7505 = vmatprep.subr.bf16.mxu0 0
        %7506 = vmatpush1.bf16.msra.mxu0 0
        %7507 = vmatprep.subr.bf16.mxu0 0
        %7508 = vmatpush1.bf16.msra.mxu0 0
        %7509 = vmatprep.subr.bf16.mxu0 0
        %7510 = vmatpush1.bf16.msra.mxu0 0
        %7511 = vmatprep.subr.bf16.mxu0 0
        %7512 = vmatpush1.bf16.msra.mxu0 0
        %7513 = vmatprep.subr.bf16.mxu0 0
        %7514 = vmatpush1.bf16.msra.mxu0 0
        %7515 = vmatprep.mubr.bf16.mxu0 %v7439
        %7516 = vmatmul.mubr.bf16.gmra.mrb[0].mxu0 %v7335
        %v7517 = vpop.f32.mrb[0].mxu0
        %v7518 = vadd.f32 0.0, %v7517
        %v7519 = vpop.f32.mrb[0].mxu0
        %v7520 = vpop.f32.mrb[0].mxu0
        %v7521 = vadd.f32 0.0, %v7520
        %v7522 = vpop.f32.mrb[0].mxu0
        %7523 = vmatprep.mubr.bf16.mxu0 %v7442
        %7524 = vmatmul.mubr.bf16.gmra.mrb[0].mxu0 %v7337
        %v7525 = vpop.f32.mrb[0].mxu0
        %v7526 = vpop.f32.mrb[0].mxu0
        %v7527 = vpop.f32.mrb[0].mxu0
        %v7528 = vpop.f32.mrb[0].mxu0
        %7529 = vmatprep.mubr.bf16.mxu0 %v7445
        %7530 = vmatmul.mubr.bf16.gmra.mrb[0].mxu0 %v7339
        %v7531 = vpop.f32.mrb[0].mxu0
        %v7532 = vadd.f32 0.0, %v7531
        %v7533 = vpop.f32.mrb[0].mxu0
        %v7534 = vpop.f32.mrb[0].mxu0
        %v7535 = vadd.f32 0.0, %v7534
        %v7536 = vpop.f32.mrb[0].mxu0
        %7537 = vmatprep.mubr.bf16.mxu0 %v7448
        %7538 = vmatmul.mubr.bf16.gmra.mrb[0].mxu0 %v7341
        %v7539 = vpop.f32.mrb[0].mxu0
        %v7540 = vpop.f32.mrb[0].mxu0
        %v7541 = vpop.f32.mrb[0].mxu0
        %v7542 = vpop.f32.mrb[0].mxu0
        %7543 = vmatprep.mubr.bf16.mxu0 %v7451
        %7544 = vmatmul.mubr.bf16.gmra.mrb[0].mxu0 %v7343
        %v7545 = vpop.f32.mrb[0].mxu0
        %v7546 = vadd.f32 0.0, %v7545
        %v7547 = vpop.f32.mrb[0].mxu0
        %v7548 = vpop.f32.mrb[0].mxu0
        %v7549 = vadd.f32 0.0, %v7548
        %v7550 = vpop.f32.mrb[0].mxu0
        %7551 = vmatprep.mubr.bf16.mxu0 %v7454
        %7552 = vmatmul.mubr.bf16.gmra.mrb[0].mxu0 %v7345
        %v7553 = vpop.f32.mrb[0].mxu0
        %v7554 = vpop.f32.mrb[0].mxu0
        %v7555 = vpop.f32.mrb[0].mxu0
        %v7556 = vpop.f32.mrb[0].mxu0
        %7557 = vmatprep.mubr.bf16.mxu0 %v7457
        %7558 = vmatmul.mubr.bf16.gmra.mrb[0].mxu0 %v7347
        %v7559 = vpop.f32.mrb[0].mxu0
        %v7560 = vadd.f32 0.0, %v7559
        %v7561 = vpop.f32.mrb[0].mxu0
        %v7562 = vpop.f32.mrb[0].mxu0
        %v7563 = vadd.f32 0.0, %v7562
        %v7564 = vpop.f32.mrb[0].mxu0
        %7565 = vmatprep.mubr.bf16.mxu0 %v7460
        %7566 = vmatmul.mubr.bf16.gmra.mrb[0].mxu0 %v7349
        %v7567 = vpop.f32.mrb[0].mxu0
        %v7568 = vpop.f32.mrb[0].mxu0
        %v7569 = vpop.f32.mrb[0].mxu0
        %v7570 = vpop.f32.mrb[0].mxu0
        %7571 = vmatprep.mubr.bf16.mxu0 %v7463
        %7572 = vmatmul.mubr.bf16.gmra.mrb[0].mxu0 %v7351
        %v7573 = vpop.f32.mrb[0].mxu0
        %v7574 = vadd.f32 0.0, %v7573
        %v7575 = vpop.f32.mrb[0].mxu0
        %v7576 = vpop.f32.mrb[0].mxu0
        %v7577 = vadd.f32 0.0, %v7576
        %v7578 = vpop.f32.mrb[0].mxu0
        %7579 = vmatprep.mubr.bf16.mxu0 %v7466
        %7580 = vmatmul.mubr.bf16.gmra.mrb[0].mxu0 %v7353
        %v7581 = vpop.f32.mrb[0].mxu0
        %v7582 = vpop.f32.mrb[0].mxu0
        %v7583 = vpop.f32.mrb[0].mxu0
        %v7584 = vpop.f32.mrb[0].mxu0
        %7585 = vmatprep.mubr.bf16.mxu0 %v7469
        %7586 = vmatmul.mubr.bf16.gmra.mrb[0].mxu0 %v7355
        %v7587 = vpop.f32.mrb[0].mxu0
        %v7588 = vadd.f32 0.0, %v7587
        %v7589 = vpop.f32.mrb[0].mxu0
        %v7590 = vpop.f32.mrb[0].mxu0
        %v7591 = vadd.f32 0.0, %v7590
        %v7592 = vpop.f32.mrb[0].mxu0
        %7593 = vmatprep.mubr.bf16.mxu0 %v7472
        %7594 = vmatmul.mubr.bf16.gmra.mrb[0].mxu0 %v7357
        %v7595 = vpop.f32.mrb[0].mxu0
        %v7596 = vpop.f32.mrb[0].mxu0
        %v7597 = vpop.f32.mrb[0].mxu0
        %v7598 = vpop.f32.mrb[0].mxu0
        %7599 = vmatprep.mubr.bf16.mxu0 %v7475
        %7600 = vmatmul.mubr.bf16.gmra.mrb[0].mxu0 %v7359
        %v7601 = vpop.f32.mrb[0].mxu0
        %v7602 = vadd.f32 0.0, %v7601
        %v7603 = vpop.f32.mrb[0].mxu0
        %v7604 = vpop.f32.mrb[0].mxu0
        %v7605 = vadd.f32 0.0, %v7604
        %v7606 = vpop.f32.mrb[0].mxu0
        %7607 = vmatprep.mubr.bf16.mxu0 %v7478
        %7608 = vmatmul.mubr.bf16.gmra.mrb[0].mxu0 %v7361
        %v7609 = vpop.f32.mrb[0].mxu0
        %v7610 = vpop.f32.mrb[0].mxu0
        %v7611 = vpop.f32.mrb[0].mxu0
        %v7612 = vpop.f32.mrb[0].mxu0
        %7613 = vmatprep.mubr.bf16.mxu0 %v7481
        %7614 = vmatmul.mubr.bf16.gmra.mrb[0].mxu0 %v7363
        %v7615 = vpop.f32.mrb[0].mxu0
        %v7616 = vadd.f32 0.0, %v7615
        %v7617 = vpop.f32.mrb[0].mxu0
        %v7618 = vpop.f32.mrb[0].mxu0
        %v7619 = vadd.f32 0.0, %v7618
        %v7620 = vpop.f32.mrb[0].mxu0
        %7621 = vmatprep.mubr.bf16.mxu0 %v4113
        %7622 = vmatmul.mubr.bf16.gmra.mrb[0].mxu0 %v7365
        %v7623 = vpop.f32.mrb[0].mxu0
        %v7624 = vpop.f32.mrb[0].mxu0
        %v7625 = vpop.f32.mrb[0].mxu0
        %v7626 = vpop.f32.mrb[0].mxu0
        %7627 = vdwg.mxu0
        %v7628 = vld [vmem:[%s23] sm:$0x1]
        %v7630 = vlaneseq
        %v7631 = vshrl.u32 %v7630, 7
        %v7632 = vsub.s32 0, %v7631
        %v7633 = vrot.slane %v7628, %v7632
        %v7635 = vmul.f32 %v7518, %v7633
        %v7636 = vmul.f32 %v7521, %v7633
        %v7637 = vmul.f32 %v7532, %v7633
        %v7638 = vmul.f32 %v7535, %v7633
        %v7639 = vmul.f32 %v7546, %v7633
        %v7640 = vmul.f32 %v7549, %v7633
        %v7641 = vmul.f32 %v7560, %v7633
        %v7642 = vmul.f32 %v7563, %v7633
        %v7643 = vmul.f32 %v7574, %v7633
        %v7644 = vmul.f32 %v7577, %v7633
        %v7645 = vmul.f32 %v7588, %v7633
        %v7646 = vmul.f32 %v7591, %v7633
        %v7647 = vmul.f32 %v7602, %v7633
        %v7648 = vmul.f32 %v7605, %v7633
        %v7649 = vmul.f32 %v7616, %v7633
        %v7650 = vmul.f32 %v7619, %v7633
        %v7651 = vld [vmem:[%s25] sm:$0x1]
        %v7653 = vlaneseq
        %v7654 = vshrl.u32 %v7653, 7
        %v7655 = vsub.s32 0, %v7654
        %v7656 = vrot.slane %v7651, %v7655
        %v7658 = vadd.f32 %v7635, %v7656
        %v7659 = vadd.f32 %v7636, %v7656
        %v7660 = vadd.f32 %v7637, %v7656
        %v7661 = vadd.f32 %v7638, %v7656
        %v7662 = vadd.f32 %v7639, %v7656
        %v7663 = vadd.f32 %v7640, %v7656
        %v7664 = vadd.f32 %v7641, %v7656
        %v7665 = vadd.f32 %v7642, %v7656
        %v7666 = vadd.f32 %v7643, %v7656
        %v7667 = vadd.f32 %v7644, %v7656
        %v7668 = vadd.f32 %v7645, %v7656
        %v7669 = vadd.f32 %v7646, %v7656
        %v7670 = vadd.f32 %v7647, %v7656
        %v7671 = vadd.f32 %v7648, %v7656
        %v7672 = vadd.f32 %v7649, %v7656
        %v7673 = vadd.f32 %v7650, %v7656
        %v7674 = vmax.f32 %v7658, 0.0
        %v7675 = vmax.f32 %v7659, 0.0
        %v7676 = vmax.f32 %v7660, 0.0
        %v7677 = vmax.f32 %v7661, 0.0
        %v7678 = vmax.f32 %v7662, 0.0
        %v7679 = vmax.f32 %v7663, 0.0
        %v7680 = vmax.f32 %v7664, 0.0
        %v7681 = vmax.f32 %v7665, 0.0
        %v7682 = vmax.f32 %v7666, 0.0
        %v7683 = vmax.f32 %v7667, 0.0
        %v7684 = vmax.f32 %v7668, 0.0
        %v7685 = vmax.f32 %v7669, 0.0
        %v7686 = vmax.f32 %v7670, 0.0
        %v7687 = vmax.f32 %v7671, 0.0
        %v7688 = vmax.f32 %v7672, 0.0
        %v7689 = vmax.f32 %v7673, 0.0
        %v7698 = vrot.slane %v7674, 1
        %v7699 = vrot.slane %v7676, 1
        %v7700 = vrot.slane %v7678, 1
        %v7701 = vrot.slane %v7680, 1
        %v7702 = vrot.slane %v7682, 1
        %v7703 = vrot.slane %v7684, 1
        %v7704 = vrot.slane %v7686, 1
        %v7705 = vrot.slane %v7688, 1
        %v7714 = vrot.slane %v7674, 2
        %v7715 = vrot.slane %v7676, 2
        %v7716 = vrot.slane %v7678, 2
        %v7717 = vrot.slane %v7680, 2
        %v7718 = vrot.slane %v7682, 2
        %v7719 = vrot.slane %v7684, 2
        %v7720 = vrot.slane %v7686, 2
        %v7721 = vrot.slane %v7688, 2
        %v7730 = vrot.slane %v7674, 3
        %v7731 = vrot.slane %v7676, 3
        %v7732 = vrot.slane %v7678, 3
        %v7733 = vrot.slane %v7680, 3
        %v7734 = vrot.slane %v7682, 3
        %v7735 = vrot.slane %v7684, 3
        %v7736 = vrot.slane %v7686, 3
        %v7737 = vrot.slane %v7688, 3
        %v7754 = vrot.slane %v7675, 4
        %v7755 = vrot.slane %v7677, 4
        %v7756 = vrot.slane %v7679, 4
        %v7757 = vrot.slane %v7681, 4
        %v7758 = vrot.slane %v7683, 4
        %v7759 = vrot.slane %v7685, 4
        %v7760 = vrot.slane %v7687, 4
        %v7761 = vrot.slane %v7689, 4
        %v7770 = vrot.slane %v7675, 5
        %v7771 = vrot.slane %v7677, 5
        %v7772 = vrot.slane %v7679, 5
        %v7773 = vrot.slane %v7681, 5
        %v7774 = vrot.slane %v7683, 5
        %v7775 = vrot.slane %v7685, 5
        %v7776 = vrot.slane %v7687, 5
        %v7777 = vrot.slane %v7689, 5
        %v7786 = vrot.slane %v7675, 6
        %v7787 = vrot.slane %v7677, 6
        %v7788 = vrot.slane %v7679, 6
        %v7789 = vrot.slane %v7681, 6
        %v7790 = vrot.slane %v7683, 6
        %v7791 = vrot.slane %v7685, 6
        %v7792 = vrot.slane %v7687, 6
        %v7793 = vrot.slane %v7689, 6
        %v7802 = vrot.slane %v7675, 7
        %v7803 = vrot.slane %v7677, 7
        %v7804 = vrot.slane %v7679, 7
        %v7805 = vrot.slane %v7681, 7
        %v7806 = vrot.slane %v7683, 7
        %v7807 = vrot.slane %v7685, 7
        %v7808 = vrot.slane %v7687, 7
        %v7809 = vrot.slane %v7689, 7
        %v7818 = vsel %vm993, %v7674, %v7698
        %v7819 = vsel %vm993, %v7676, %v7699
        %v7820 = vsel %vm993, %v7678, %v7700
        %v7821 = vsel %vm993, %v7680, %v7701
        %v7822 = vsel %vm993, %v7682, %v7702
        %v7823 = vsel %vm993, %v7684, %v7703
        %v7824 = vsel %vm993, %v7686, %v7704
        %v7825 = vsel %vm993, %v7688, %v7705
        %vm7826 = vcmask 1041408
        %v7827 = vsel %vm7826, %v7818, %v7714
        %v7828 = vsel %vm7826, %v7819, %v7715
        %v7829 = vsel %vm7826, %v7820, %v7716
        %v7830 = vsel %vm7826, %v7821, %v7717
        %v7831 = vsel %vm7826, %v7822, %v7718
        %v7832 = vsel %vm7826, %v7823, %v7719
        %v7833 = vsel %vm7826, %v7824, %v7720
        %v7834 = vsel %vm7826, %v7825, %v7721
        %vm7835 = vcmask 1042432
        %v7836 = vsel %vm7835, %v7827, %v7730
        %v7837 = vsel %vm7835, %v7828, %v7731
        %v7838 = vsel %vm7835, %v7829, %v7732
        %v7839 = vsel %vm7835, %v7830, %v7733
        %v7840 = vsel %vm7835, %v7831, %v7734
        %v7841 = vsel %vm7835, %v7832, %v7735
        %v7842 = vsel %vm7835, %v7833, %v7736
        %v7843 = vsel %vm7835, %v7834, %v7737
        %vm7844 = vcmask 1043456
        %v7845 = vsel %vm7844, %v7836, %v7754
        %v7846 = vsel %vm7844, %v7837, %v7755
        %v7847 = vsel %vm7844, %v7838, %v7756
        %v7848 = vsel %vm7844, %v7839, %v7757
        %v7849 = vsel %vm7844, %v7840, %v7758
        %v7850 = vsel %vm7844, %v7841, %v7759
        %v7851 = vsel %vm7844, %v7842, %v7760
        %v7852 = vsel %vm7844, %v7843, %v7761
        %v7853 = vsel %vm2415, %v7845, %v7770
        %v7854 = vsel %vm2415, %v7846, %v7771
        %v7855 = vsel %vm2415, %v7847, %v7772
        %v7856 = vsel %vm2415, %v7848, %v7773
        %v7857 = vsel %vm2415, %v7849, %v7774
        %v7858 = vsel %vm2415, %v7850, %v7775
        %v7859 = vsel %vm2415, %v7851, %v7776
        %v7860 = vsel %vm2415, %v7852, %v7777
        %v7861 = vsel %vm1323, %v7853, %v7786
        %v7862 = vsel %vm1323, %v7854, %v7787
        %v7863 = vsel %vm1323, %v7855, %v7788
        %v7864 = vsel %vm1323, %v7856, %v7789
        %v7865 = vsel %vm1323, %v7857, %v7790
        %v7866 = vsel %vm1323, %v7858, %v7791
        %v7867 = vsel %vm1323, %v7859, %v7792
        %v7868 = vsel %vm1323, %v7860, %v7793
        %v7869 = vsel %vm1152, %v7861, %v7802
        %v7870 = vsel %vm1152, %v7862, %v7803
        %v7871 = vsel %vm1152, %v7863, %v7804
        %v7872 = vsel %vm1152, %v7864, %v7805
        %v7873 = vsel %vm1152, %v7865, %v7806
        %v7874 = vsel %vm1152, %v7866, %v7807
        %v7875 = vsel %vm1152, %v7867, %v7808
        %v7876 = vsel %vm1152, %v7868, %v7809
        %v7877 = vrot.slane %v6054, 1
        %v7878 = vrot.slane %v6058, 1
        %v7879 = vrot.slane %v6062, 1
        %v7880 = vrot.slane %v6066, 1
        %v7881 = vrot.slane %v6070, 1
        %v7882 = vrot.slane %v6074, 1
        %v7883 = vrot.slane %v6078, 1
        %v7884 = vrot.slane %v6082, 1
        %v7893 = vrot.slane %v6054, 2
        %v7894 = vrot.slane %v6058, 2
        %v7895 = vrot.slane %v6062, 2
        %v7896 = vrot.slane %v6066, 2
        %v7897 = vrot.slane %v6070, 2
        %v7898 = vrot.slane %v6074, 2
        %v7899 = vrot.slane %v6078, 2
        %v7900 = vrot.slane %v6082, 2
        %v7909 = vrot.slane %v6054, 3
        %v7910 = vrot.slane %v6058, 3
        %v7911 = vrot.slane %v6062, 3
        %v7912 = vrot.slane %v6066, 3
        %v7913 = vrot.slane %v6070, 3
        %v7914 = vrot.slane %v6074, 3
        %v7915 = vrot.slane %v6078, 3
        %v7916 = vrot.slane %v6082, 3
        %v7925 = vrot.slane %v6055, 4
        %v7926 = vrot.slane %v6059, 4
        %v7927 = vrot.slane %v6063, 4
        %v7928 = vrot.slane %v6067, 4
        %v7929 = vrot.slane %v6071, 4
        %v7930 = vrot.slane %v6075, 4
        %v7931 = vrot.slane %v6079, 4
        %v7932 = vrot.slane %v6083, 4
        %v7941 = vrot.slane %v6055, 5
        %v7942 = vrot.slane %v6059, 5
        %v7943 = vrot.slane %v6063, 5
        %v7944 = vrot.slane %v6067, 5
        %v7945 = vrot.slane %v6071, 5
        %v7946 = vrot.slane %v6075, 5
        %v7947 = vrot.slane %v6079, 5
        %v7948 = vrot.slane %v6083, 5
        %v7957 = vrot.slane %v6055, 6
        %v7958 = vrot.slane %v6059, 6
        %v7959 = vrot.slane %v6063, 6
        %v7960 = vrot.slane %v6067, 6
        %v7961 = vrot.slane %v6071, 6
        %v7962 = vrot.slane %v6075, 6
        %v7963 = vrot.slane %v6079, 6
        %v7964 = vrot.slane %v6083, 6
        %v7973 = vsel %vm993, %v6054, %v7877
        %v7974 = vsel %vm993, %v6058, %v7878
        %v7975 = vsel %vm993, %v6062, %v7879
        %v7976 = vsel %vm993, %v6066, %v7880
        %v7977 = vsel %vm993, %v6070, %v7881
        %v7978 = vsel %vm993, %v6074, %v7882
        %v7979 = vsel %vm993, %v6078, %v7883
        %v7980 = vsel %vm993, %v6082, %v7884
        %v7981 = vsel %vm7826, %v7973, %v7893
        %v7982 = vsel %vm7826, %v7974, %v7894
        %v7983 = vsel %vm7826, %v7975, %v7895
        %v7984 = vsel %vm7826, %v7976, %v7896
        %v7985 = vsel %vm7826, %v7977, %v7897
        %v7986 = vsel %vm7826, %v7978, %v7898
        %v7987 = vsel %vm7826, %v7979, %v7899
        %v7988 = vsel %vm7826, %v7980, %v7900
        %v7989 = vsel %vm7835, %v7981, %v7909
        %v7990 = vsel %vm7835, %v7982, %v7910
        %v7991 = vsel %vm7835, %v7983, %v7911
        %v7992 = vsel %vm7835, %v7984, %v7912
        %v7993 = vsel %vm7835, %v7985, %v7913
        %v7994 = vsel %vm7835, %v7986, %v7914
        %v7995 = vsel %vm7835, %v7987, %v7915
        %v7996 = vsel %vm7835, %v7988, %v7916
        %v7997 = vsel %vm7844, %v7989, %v7925
        %v7998 = vsel %vm7844, %v7990, %v7926
        %v7999 = vsel %vm7844, %v7991, %v7927
        %v8000 = vsel %vm7844, %v7992, %v7928
        %v8001 = vsel %vm7844, %v7993, %v7929
        %v8002 = vsel %vm7844, %v7994, %v7930
        %v8003 = vsel %vm7844, %v7995, %v7931
        %v8004 = vsel %vm7844, %v7996, %v7932
        %v8005 = vsel %vm2415, %v7997, %v7941
        %v8006 = vsel %vm2415, %v7998, %v7942
        %v8007 = vsel %vm2415, %v7999, %v7943
        %v8008 = vsel %vm2415, %v8000, %v7944
        %v8009 = vsel %vm2415, %v8001, %v7945
        %v8010 = vsel %vm2415, %v8002, %v7946
        %v8011 = vsel %vm2415, %v8003, %v7947
        %v8012 = vsel %vm2415, %v8004, %v7948
        %v8013 = vsel %vm1323, %v8005, %v7957
        %v8014 = vsel %vm1323, %v8006, %v7958
        %v8015 = vsel %vm1323, %v8007, %v7959
        %v8016 = vsel %vm1323, %v8008, %v7960
        %v8017 = vsel %vm1323, %v8009, %v7961
        %v8018 = vsel %vm1323, %v8010, %v7962
        %v8019 = vsel %vm1323, %v8011, %v7963
        %v8020 = vsel %vm1323, %v8012, %v7964
        %v8021 = vsel %vm1152, %v8013, %v6119
        %v8022 = vsel %vm1152, %v8014, %v6125
        %v8023 = vsel %vm1152, %v8015, %v6131
        %v8024 = vsel %vm1152, %v8016, %v6137
        %v8025 = vsel %vm1152, %v8017, %v6143
        %v8026 = vsel %vm1152, %v8018, %v6149
        %v8027 = vsel %vm1152, %v8019, %v6155
        %v8028 = vsel %vm1152, %v8020, %v6161
        %v8029 = vpack.c.bf16 %v8022, %v8021
        %v8030 = vpack.c.bf16 %v8024, %v8023
        %v8031 = vpack.c.bf16 %v8026, %v8025
        %v8032 = vpack.c.bf16 %v8028, %v8027
        %v8033 = vld [vmem:[%s33] sm:$0xf]
        %v8034 = vld [vmem:[%s33 + $0x4] sm:$0xf]
        %v8037 = vunpack.c.l.b16 %v8033
        %v8038 = vunpack.c.l.b16 %v8034
        %v8039 = vpack.c.b16 %v8038, %v8037
        %v8042 = vsel %vm3734, %v8029, 0
        %v8045 = vsel %vm3734, %v8030, 0
        %v8048 = vsel %vm3734, %v8031, 0
        %v8051 = vsel %vm3734, %v8032, 0
        %8053 = vmatprep.subr.bf16.mxu0 0
        %8054 = vmatpush1.bf16.msra.mxu0 %v8039
        %8055 = vmatprep.subr.bf16.mxu0 0
        %8056 = vmatpush1.bf16.msra.mxu0 0
        %8057 = vmatprep.subr.bf16.mxu0 0
        %8058 = vmatpush1.bf16.msra.mxu0 0
        %8059 = vmatprep.subr.bf16.mxu0 0
        %8060 = vmatpush1.bf16.msra.mxu0 0
        %8061 = vmatprep.subr.bf16.mxu0 0
        %8062 = vmatpush1.bf16.msra.mxu0 0
        %8063 = vmatprep.subr.bf16.mxu0 0
        %8064 = vmatpush1.bf16.msra.mxu0 0
        %8065 = vmatprep.subr.bf16.mxu0 0
        %8066 = vmatpush1.bf16.msra.mxu0 0
        %8067 = vmatprep.subr.bf16.mxu0 0
        %8068 = vmatpush1.bf16.msra.mxu0 0
        %8069 = vmatprep.subr.bf16.mxu0 0
        %8070 = vmatpush1.bf16.msra.mxu0 0
        %8071 = vmatprep.subr.bf16.mxu0 0
        %8072 = vmatpush1.bf16.msra.mxu0 0
        %8073 = vmatprep.subr.bf16.mxu0 0
        %8074 = vmatpush1.bf16.msra.mxu0 0
        %8075 = vmatprep.subr.bf16.mxu0 0
        %8076 = vmatpush1.bf16.msra.mxu0 0
        %8077 = vmatprep.subr.bf16.mxu0 0
        %8078 = vmatpush1.bf16.msra.mxu0 0
        %8079 = vmatprep.subr.bf16.mxu0 0
        %8080 = vmatpush1.bf16.msra.mxu0 0
        %8081 = vmatprep.subr.bf16.mxu0 0
        %8082 = vmatpush1.bf16.msra.mxu0 0
        %8083 = vmatprep.subr.bf16.mxu0 0
        %8084 = vmatpush1.bf16.msra.mxu0 0
        %8085 = vmatprep.mubr.bf16.mxu0 0
        %8086 = vmatmul.mubr.bf16.gmra.mrb[0].mxu0 %v8042
        %v8087 = vpop.f32.mrb[0].mxu0
        %v8088 = vadd.f32 0.0, %v8087
        %v8089 = vpop.f32.mrb[0].mxu0
        %v8090 = vpop.f32.mrb[0].mxu0
        %v8091 = vadd.f32 0.0, %v8090
        %v8092 = vpop.f32.mrb[0].mxu0
        %8093 = vmatprep.mubr.bf16.mxu0 0
        %8094 = vmatmul.mubr.bf16.gmra.mrb[0].mxu0 %v8045
        %v8095 = vpop.f32.mrb[0].mxu0
        %v8096 = vadd.f32 0.0, %v8095
        %v8097 = vpop.f32.mrb[0].mxu0
        %v8098 = vpop.f32.mrb[0].mxu0
        %v8099 = vadd.f32 0.0, %v8098
        %v8100 = vpop.f32.mrb[0].mxu0
        %8101 = vmatprep.mubr.bf16.mxu0 0
        %8102 = vmatmul.mubr.bf16.gmra.mrb[0].mxu0 %v8048
        %v8103 = vpop.f32.mrb[0].mxu0
        %v8104 = vadd.f32 0.0, %v8103
        %v8105 = vpop.f32.mrb[0].mxu0
        %v8106 = vpop.f32.mrb[0].mxu0
        %v8107 = vadd.f32 0.0, %v8106
        %v8108 = vpop.f32.mrb[0].mxu0
        %8109 = vmatprep.mubr.bf16.mxu0 0
        %8110 = vmatmul.mubr.bf16.gmra.mrb[0].mxu0 %v8051
        %v8111 = vpop.f32.mrb[0].mxu0
        %v8112 = vadd.f32 0.0, %v8111
        %v8113 = vpop.f32.mrb[0].mxu0
        %v8114 = vpop.f32.mrb[0].mxu0
        %v8115 = vadd.f32 0.0, %v8114
        %v8116 = vpop.f32.mrb[0].mxu0
        %8117 = vdwg.mxu0
        %v8118 = vld [vmem:[%s35] sm:$0x1]
        %v8120 = vlaneseq
        %v8121 = vshrl.u32 %v8120, 7
        %v8122 = vsub.s32 0, %v8121
        %v8123 = vrot.slane %v8118, %v8122
        %v8125 = vmul.f32 %v8088, %v8123
        %v8126 = vmul.f32 %v8091, %v8123
        %v8127 = vmul.f32 %v8096, %v8123
        %v8128 = vmul.f32 %v8099, %v8123
        %v8129 = vmul.f32 %v8104, %v8123
        %v8130 = vmul.f32 %v8107, %v8123
        %v8131 = vmul.f32 %v8112, %v8123
        %v8132 = vmul.f32 %v8115, %v8123
        %v8133 = vld [vmem:[%s37] sm:$0x1]
        %v8135 = vlaneseq
        %v8136 = vshrl.u32 %v8135, 7
        %v8137 = vsub.s32 0, %v8136
        %v8138 = vrot.slane %v8133, %v8137
        %v8140 = vadd.f32 %v8125, %v8138
        %v8141 = vadd.f32 %v8126, %v8138
        %v8142 = vadd.f32 %v8127, %v8138
        %v8143 = vadd.f32 %v8128, %v8138
        %v8144 = vadd.f32 %v8129, %v8138
        %v8145 = vadd.f32 %v8130, %v8138
        %v8146 = vadd.f32 %v8131, %v8138
        %v8147 = vadd.f32 %v8132, %v8138
        %v8156 = vrot.slane %v7869, 7
        %v8157 = vrot.slane %v7870, 7
        %v8158 = vrot.slane %v7871, 7
        %v8159 = vrot.slane %v7872, 7
        %v8160 = vrot.slane %v7873, 7
        %v8161 = vrot.slane %v7874, 7
        %v8162 = vrot.slane %v7875, 7
        %v8163 = vrot.slane %v7876, 7
        %v8172 = vsel %vm993, 0.0, %v8156
        %v8173 = vsel %vm993, 0.0, %v8157
        %v8174 = vsel %vm993, 0.0, %v8158
        %v8175 = vsel %vm993, 0.0, %v8159
        %v8176 = vsel %vm993, 0.0, %v8160
        %v8177 = vsel %vm993, 0.0, %v8161
        %v8178 = vsel %vm993, 0.0, %v8162
        %v8179 = vsel %vm993, 0.0, %v8163
        %v8180 = vsel %vm993, %v8156, 0.0
        %v8181 = vsel %vm993, %v8157, 0.0
        %v8182 = vsel %vm993, %v8158, 0.0
        %v8183 = vsel %vm993, %v8159, 0.0
        %v8184 = vsel %vm993, %v8160, 0.0
        %v8185 = vsel %vm993, %v8161, 0.0
        %v8186 = vsel %vm993, %v8162, 0.0
        %v8187 = vsel %vm993, %v8163, 0.0
        %v8202 = vrot.slane %v8172, 1
        %v8203 = vrot.slane %v8180, 1
        %v8204 = vsel %vm1152, %v8202, %v8203
        %v8205 = vrot.slane %v8173, 1
        %v8206 = vrot.slane %v8181, 1
        %v8207 = vsel %vm1152, %v8205, %v8206
        %v8208 = vrot.slane %v8174, 1
        %v8209 = vrot.slane %v8182, 1
        %v8210 = vsel %vm1152, %v8208, %v8209
        %v8211 = vrot.slane %v8175, 1
        %v8212 = vrot.slane %v8183, 1
        %v8213 = vsel %vm1152, %v8211, %v8212
        %v8214 = vrot.slane %v8176, 1
        %v8215 = vrot.slane %v8184, 1
        %v8216 = vsel %vm1152, %v8214, %v8215
        %v8217 = vrot.slane %v8177, 1
        %v8218 = vrot.slane %v8185, 1
        %v8219 = vsel %vm1152, %v8217, %v8218
        %v8220 = vrot.slane %v8178, 1
        %v8221 = vrot.slane %v8186, 1
        %v8222 = vsel %vm1152, %v8220, %v8221
        %8223 = vrot.lane.b32.xlu0 %v1154, 32
        %v8224 = vpop.permute.xlu0 %8223
        %8225 = vrot.lane.b32.xlu0 %v8204, 32
        %v8226 = vpop.permute.xlu0 %8225
        %8227 = vrot.lane.b32.xlu0 %v8207, 32
        %v8228 = vpop.permute.xlu0 %8227
        %8229 = vrot.lane.b32.xlu0 %v8210, 32
        %v8230 = vpop.permute.xlu0 %8229
        %8231 = vrot.lane.b32.xlu0 %v8213, 32
        %v8232 = vpop.permute.xlu0 %8231
        %8233 = vrot.lane.b32.xlu0 %v8216, 32
        %v8234 = vpop.permute.xlu0 %8233
        %8235 = vrot.lane.b32.xlu0 %v8219, 32
        %v8236 = vpop.permute.xlu0 %8235
        %8237 = vrot.lane.b32.xlu0 %v8222, 32
        %v8238 = vpop.permute.xlu0 %8237
        %v8247 = vrot.slane %v8172, 2
        %v8248 = vrot.slane %v8180, 2
        %v8249 = vsel %vm1323, %v8247, %v8248
        %v8250 = vrot.slane %v8173, 2
        %v8251 = vrot.slane %v8181, 2
        %v8252 = vsel %vm1323, %v8250, %v8251
        %v8253 = vrot.slane %v8174, 2
        %v8254 = vrot.slane %v8182, 2
        %v8255 = vsel %vm1323, %v8253, %v8254
        %v8256 = vrot.slane %v8175, 2
        %v8257 = vrot.slane %v8183, 2
        %v8258 = vsel %vm1323, %v8256, %v8257
        %v8259 = vrot.slane %v8176, 2
        %v8260 = vrot.slane %v8184, 2
        %v8261 = vsel %vm1323, %v8259, %v8260
        %v8262 = vrot.slane %v8177, 2
        %v8263 = vrot.slane %v8185, 2
        %v8264 = vsel %vm1323, %v8262, %v8263
        %v8265 = vrot.slane %v8178, 2
        %v8266 = vrot.slane %v8186, 2
        %v8267 = vsel %vm1323, %v8265, %v8266
        %8268 = vrot.lane.b32.xlu0 %v1325, 64
        %v8269 = vpop.permute.xlu0 %8268
        %8270 = vrot.lane.b32.xlu0 %v8249, 64
        %v8271 = vpop.permute.xlu0 %8270
        %8272 = vrot.lane.b32.xlu0 %v8252, 64
        %v8273 = vpop.permute.xlu0 %8272
        %8274 = vrot.lane.b32.xlu0 %v8255, 64
        %v8275 = vpop.permute.xlu0 %8274
        %8276 = vrot.lane.b32.xlu0 %v8258, 64
        %v8277 = vpop.permute.xlu0 %8276
        %8278 = vrot.lane.b32.xlu0 %v8261, 64
        %v8279 = vpop.permute.xlu0 %8278
        %8280 = vrot.lane.b32.xlu0 %v8264, 64
        %v8281 = vpop.permute.xlu0 %8280
        %8282 = vrot.lane.b32.xlu0 %v8267, 64
        %v8283 = vpop.permute.xlu0 %8282
        %8293 = vrot.lane.b32.xlu0 %v8172, 96
        %v8294 = vpop.permute.xlu0 %8293
        %8295 = vrot.lane.b32.xlu0 %v8173, 96
        %v8296 = vpop.permute.xlu0 %8295
        %8297 = vrot.lane.b32.xlu0 %v8174, 96
        %v8298 = vpop.permute.xlu0 %8297
        %8299 = vrot.lane.b32.xlu0 %v8175, 96
        %v8300 = vpop.permute.xlu0 %8299
        %8301 = vrot.lane.b32.xlu0 %v8176, 96
        %v8302 = vpop.permute.xlu0 %8301
        %8303 = vrot.lane.b32.xlu0 %v8177, 96
        %v8304 = vpop.permute.xlu0 %8303
        %8305 = vrot.lane.b32.xlu0 %v8178, 96
        %v8306 = vpop.permute.xlu0 %8305
        %8307 = vrot.lane.b32.xlu0 %v8179, 96
        %v8308 = vpop.permute.xlu0 %8307
        %v8318 = vrot.slane %v8179, 1
        %v8319 = vrot.slane %v8187, 1
        %v8320 = vsel %vm1152, %v8318, %v8319
        %v8329 = vrot.slane %v8179, 2
        %v8330 = vrot.slane %v8187, 2
        %v8331 = vsel %vm1323, %v8329, %v8330
        %8332 = vrot.lane.b32.xlu0 %v8249, 32
        %v8333 = vpop.permute.xlu0 %8332
        %8334 = vrot.lane.b32.xlu0 %v8252, 32
        %v8335 = vpop.permute.xlu0 %8334
        %8336 = vrot.lane.b32.xlu0 %v8255, 32
        %v8337 = vpop.permute.xlu0 %8336
        %8338 = vrot.lane.b32.xlu0 %v8258, 32
        %v8339 = vpop.permute.xlu0 %8338
        %8340 = vrot.lane.b32.xlu0 %v8261, 32
        %v8341 = vpop.permute.xlu0 %8340
        %8342 = vrot.lane.b32.xlu0 %v8264, 32
        %v8343 = vpop.permute.xlu0 %8342
        %8344 = vrot.lane.b32.xlu0 %v8267, 32
        %v8345 = vpop.permute.xlu0 %8344
        %8346 = vrot.lane.b32.xlu0 %v8331, 32
        %v8347 = vpop.permute.xlu0 %8346
        %8356 = vrot.lane.b32.xlu0 %v8173, 64
        %v8357 = vpop.permute.xlu0 %8356
        %8358 = vrot.lane.b32.xlu0 %v8174, 64
        %v8359 = vpop.permute.xlu0 %8358
        %8360 = vrot.lane.b32.xlu0 %v8175, 64
        %v8361 = vpop.permute.xlu0 %8360
        %8362 = vrot.lane.b32.xlu0 %v8176, 64
        %v8363 = vpop.permute.xlu0 %8362
        %8364 = vrot.lane.b32.xlu0 %v8177, 64
        %v8365 = vpop.permute.xlu0 %8364
        %8366 = vrot.lane.b32.xlu0 %v8178, 64
        %v8367 = vpop.permute.xlu0 %8366
        %8368 = vrot.lane.b32.xlu0 %v8179, 64
        %v8369 = vpop.permute.xlu0 %8368
        %8370 = vrot.lane.b32.xlu0 0.0, 64
        %v8371 = vpop.permute.xlu0 %8370
        %8380 = vrot.lane.b32.xlu0 %v8207, 96
        %v8381 = vpop.permute.xlu0 %8380
        %8382 = vrot.lane.b32.xlu0 %v8210, 96
        %v8383 = vpop.permute.xlu0 %8382
        %8384 = vrot.lane.b32.xlu0 %v8213, 96
        %v8385 = vpop.permute.xlu0 %8384
        %8386 = vrot.lane.b32.xlu0 %v8216, 96
        %v8387 = vpop.permute.xlu0 %8386
        %8388 = vrot.lane.b32.xlu0 %v8219, 96
        %v8389 = vpop.permute.xlu0 %8388
        %8390 = vrot.lane.b32.xlu0 %v8222, 96
        %v8391 = vpop.permute.xlu0 %8390
        %8392 = vrot.lane.b32.xlu0 %v8320, 96
        %v8393 = vpop.permute.xlu0 %8392
        %8394 = vrot.lane.b32.xlu0 %v1154, 96
        %v8395 = vpop.permute.xlu0 %8394
        %v8411 = vsel %vm3766, 0.0, %v8224
        %v8412 = vsel %vm3766, %v8172, %v8226
        %v8413 = vsel %vm3766, %v8173, %v8228
        %v8414 = vsel %vm3766, %v8174, %v8230
        %v8415 = vsel %vm3766, %v8175, %v8232
        %v8416 = vsel %vm3766, %v8176, %v8234
        %v8417 = vsel %vm3766, %v8177, %v8236
        %v8418 = vsel %vm3766, %v8178, %v8238
        %v8419 = vsel %vm3831, %v8411, %v8269
        %v8420 = vsel %vm3831, %v8412, %v8271
        %v8421 = vsel %vm3831, %v8413, %v8273
        %v8422 = vsel %vm3831, %v8414, %v8275
        %v8423 = vsel %vm3831, %v8415, %v8277
        %v8424 = vsel %vm3831, %v8416, %v8279
        %v8425 = vsel %vm3831, %v8417, %v8281
        %v8426 = vsel %vm3831, %v8418, %v8283
        %v8427 = vsel %vm3897, %v8419, %v8294
        %v8428 = vsel %vm3897, %v8420, %v8296
        %v8429 = vsel %vm3897, %v8421, %v8298
        %v8430 = vsel %vm3897, %v8422, %v8300
        %v8431 = vsel %vm3897, %v8423, %v8302
        %v8432 = vsel %vm3897, %v8424, %v8304
        %v8433 = vsel %vm3897, %v8425, %v8306
        %v8434 = vsel %vm3897, %v8426, %v8308
        %v8435 = vsel %vm3766, %v8204, %v8333
        %v8436 = vsel %vm3766, %v8207, %v8335
        %v8437 = vsel %vm3766, %v8210, %v8337
        %v8438 = vsel %vm3766, %v8213, %v8339
        %v8439 = vsel %vm3766, %v8216, %v8341
        %v8440 = vsel %vm3766, %v8219, %v8343
        %v8441 = vsel %vm3766, %v8222, %v8345
        %v8442 = vsel %vm3766, %v8320, %v8347
        %v8443 = vsel %vm3831, %v8435, %v8357
        %v8444 = vsel %vm3831, %v8436, %v8359
        %v8445 = vsel %vm3831, %v8437, %v8361
        %v8446 = vsel %vm3831, %v8438, %v8363
        %v8447 = vsel %vm3831, %v8439, %v8365
        %v8448 = vsel %vm3831, %v8440, %v8367
        %v8449 = vsel %vm3831, %v8441, %v8369
        %v8450 = vsel %vm3831, %v8442, %v8371
        %v8451 = vsel %vm3897, %v8443, %v8381
        %v8452 = vsel %vm3897, %v8444, %v8383
        %v8453 = vsel %vm3897, %v8445, %v8385
        %v8454 = vsel %vm3897, %v8446, %v8387
        %v8455 = vsel %vm3897, %v8447, %v8389
        %v8456 = vsel %vm3897, %v8448, %v8391
        %v8457 = vsel %vm3897, %v8449, %v8393
        %v8458 = vsel %vm3897, %v8450, %v8395
        %v8459 = vpack.c.bf16 %v8428, %v8427
        %v8460 = vpack.c.bf16 %v8452, %v8451
        %v8461 = vpack.c.bf16 %v8255, %v8252
        %v8462 = vpack.c.bf16 %v8430, %v8429
        %v8463 = vpack.c.bf16 %v8454, %v8453
        %v8464 = vpack.c.bf16 %v8261, %v8258
        %v8465 = vpack.c.bf16 %v8432, %v8431
        %v8466 = vpack.c.bf16 %v8456, %v8455
        %v8467 = vpack.c.bf16 %v8267, %v8264
        %v8468 = vpack.c.bf16 %v8434, %v8433
        %v8469 = vpack.c.bf16 %v8458, %v8457
        %v8470 = vpack.c.bf16 %v1325, %v8331
        %v8471 = vld [vmem:[%s27] sm:$0xf]
        %v8472 = vld [vmem:[%s27 + $0x4] sm:$0xf]
        %v8473 = vld [vmem:[%s27 + $0x8] sm:$0xf]
        %v8474 = vld [vmem:[%s27 + $0xc] sm:$0xf]
        %v8475 = vld [vmem:[%s27 + $0x10] sm:$0xf]
        %v8476 = vld [vmem:[%s27 + $0x14] sm:$0xf]
        %v8477 = vld [vmem:[%s27 + $0x18] sm:$0xf]
        %v8478 = vld [vmem:[%s27 + $0x1c] sm:$0xf]
        %v8479 = vld [vmem:[%s27 + $0x20] sm:$0xf]
        %v8480 = vld [vmem:[%s27 + $0x24] sm:$0xf]
        %v8481 = vld [vmem:[%s27 + $0x28] sm:$0xf]
        %v8482 = vld [vmem:[%s27 + $0x2c] sm:$0xf]
        %v8483 = vld [vmem:[%s27 + $0x30] sm:$0xf]
        %v8484 = vld [vmem:[%s27 + $0x34] sm:$0xf]
        %v8485 = vld [vmem:[%s27 + $0x38] sm:$0xf]
        %v8486 = vld [vmem:[%s27 + $0x3c] sm:$0xf]
        %v8487 = vld [vmem:[%s27 + $0x40] sm:$0xf]
        %v8488 = vld [vmem:[%s27 + $0x44] sm:$0xf]
        %v8489 = vld [vmem:[%s27 + $0x48] sm:$0xf]
        %v8490 = vld [vmem:[%s27 + $0x4c] sm:$0xf]
        %v8491 = vld [vmem:[%s27 + $0x50] sm:$0xf]
        %v8492 = vld [vmem:[%s27 + $0x54] sm:$0xf]
        %v8493 = vld [vmem:[%s27 + $0x58] sm:$0xf]
        %v8494 = vld [vmem:[%s27 + $0x5c] sm:$0xf]
        %v8495 = vld [vmem:[%s27 + $0x60] sm:$0xf]
        %v8496 = vld [vmem:[%s27 + $0x64] sm:$0xf]
        %v8497 = vld [vmem:[%s27 + $0x68] sm:$0xf]
        %v8498 = vld [vmem:[%s27 + $0x6c] sm:$0xf]
        %v8499 = vld [vmem:[%s27 + $0x70] sm:$0xf]
        %v8500 = vld [vmem:[%s27 + $0x74] sm:$0xf]
        %v8501 = vld [vmem:[%s27 + $0x78] sm:$0xf]
        %v8502 = vld [vmem:[%s27 + $0x7c] sm:$0xf]
        %v8503 = vld [vmem:[%s27 + $0x80] sm:$0xf]
        %v8504 = vld [vmem:[%s27 + $0x84] sm:$0xf]
        %v8505 = vld [vmem:[%s27 + $0x88] sm:$0xf]
        %v8506 = vld [vmem:[%s27 + $0x8c] sm:$0xf]
        %v8543 = vunpack.c.l.b16 %v8471
        %v8544 = vunpack.c.l.b16 %v8472
        %v8545 = vunpack.c.l.b16 %v8473
        %v8546 = vunpack.c.l.b16 %v8474
        %v8547 = vunpack.c.l.b16 %v8475
        %v8548 = vunpack.c.l.b16 %v8476
        %v8549 = vunpack.c.l.b16 %v8477
        %v8550 = vunpack.c.l.b16 %v8478
        %v8551 = vunpack.c.l.b16 %v8479
        %v8552 = vunpack.c.l.b16 %v8480
        %v8553 = vunpack.c.l.b16 %v8481
        %v8554 = vunpack.c.l.b16 %v8482
        %v8555 = vunpack.c.l.b16 %v8483
        %v8556 = vunpack.c.l.b16 %v8484
        %v8557 = vunpack.c.l.b16 %v8485
        %v8558 = vunpack.c.l.b16 %v8486
        %v8559 = vunpack.c.l.b16 %v8487
        %v8560 = vunpack.c.l.b16 %v8488
        %v8561 = vunpack.c.l.b16 %v8489
        %v8562 = vunpack.c.l.b16 %v8490
        %v8563 = vunpack.c.l.b16 %v8491
        %v8564 = vunpack.c.l.b16 %v8492
        %v8565 = vunpack.c.l.b16 %v8493
        %v8566 = vunpack.c.l.b16 %v8494
        %v8567 = vunpack.c.l.b16 %v8495
        %v8568 = vunpack.c.l.b16 %v8496
        %v8569 = vunpack.c.l.b16 %v8497
        %v8570 = vunpack.c.l.b16 %v8498
        %v8571 = vunpack.c.l.b16 %v8499
        %v8572 = vunpack.c.l.b16 %v8500
        %v8573 = vunpack.c.l.b16 %v8501
        %v8574 = vunpack.c.l.b16 %v8502
        %v8575 = vunpack.c.l.b16 %v8503
        %v8576 = vunpack.c.l.b16 %v8504
        %v8577 = vunpack.c.l.b16 %v8505
        %v8578 = vunpack.c.l.b16 %v8506
        %v8579 = vpack.c.b16 %v8544, %v8543
        %v8580 = vpack.c.b16 %v8546, %v8545
        %v8581 = vpack.c.b16 %v8548, %v8547
        %v8582 = vpack.c.b16 %v8550, %v8549
        %v8583 = vpack.c.b16 %v8552, %v8551
        %v8584 = vpack.c.b16 %v8554, %v8553
        %v8585 = vpack.c.b16 %v8556, %v8555
        %v8586 = vpack.c.b16 %v8558, %v8557
        %v8587 = vpack.c.b16 %v8560, %v8559
        %v8588 = vpack.c.b16 %v8562, %v8561
        %v8589 = vpack.c.b16 %v8564, %v8563
        %v8590 = vpack.c.b16 %v8566, %v8565
        %v8591 = vpack.c.b16 %v8568, %v8567
        %v8592 = vpack.c.b16 %v8570, %v8569
        %v8593 = vpack.c.b16 %v8572, %v8571
        %v8594 = vpack.c.b16 %v8574, %v8573
        %v8595 = vpack.c.b16 %v8576, %v8575
        %v8596 = vpack.c.b16 %v8578, %v8577
        %v8616 = vsel %vm3766, %v8461, 0
        %v8619 = vsel %vm3766, %v8464, 0
        %v8622 = vsel %vm3766, %v8467, 0
        %v8625 = vsel %vm3766, %v8470, 0
        %8627 = vmatprep.subr.bf16.mxu0 0
        %8628 = vmatpush1.bf16.msra.mxu0 %v8579
        %8629 = vmatprep.subr.bf16.mxu0 0
        %8630 = vmatpush1.bf16.msra.mxu0 %v8580
        %8631 = vmatprep.subr.bf16.mxu0 0
        %8632 = vmatpush1.bf16.msra.mxu0 %v8581
        %8633 = vmatprep.subr.bf16.mxu0 0
        %8634 = vmatpush1.bf16.msra.mxu0 %v8582
        %8635 = vmatprep.subr.bf16.mxu0 0
        %8636 = vmatpush1.bf16.msra.mxu0 %v8583
        %8637 = vmatprep.subr.bf16.mxu0 0
        %8638 = vmatpush1.bf16.msra.mxu0 %v8584
        %8639 = vmatprep.subr.bf16.mxu0 0
        %8640 = vmatpush1.bf16.msra.mxu0 %v8585
        %8641 = vmatprep.subr.bf16.mxu0 0
        %8642 = vmatpush1.bf16.msra.mxu0 %v8586
        %8643 = vmatprep.subr.bf16.mxu0 0
        %8644 = vmatpush1.bf16.msra.mxu0 %v8587
        %8645 = vmatprep.subr.bf16.mxu0 0
        %8646 = vmatpush1.bf16.msra.mxu0 %v8588
        %8647 = vmatprep.subr.bf16.mxu0 0
        %8648 = vmatpush1.bf16.msra.mxu0 %v8589
        %8649 = vmatprep.subr.bf16.mxu0 0
        %8650 = vmatpush1.bf16.msra.mxu0 %v8590
        %8651 = vmatprep.subr.bf16.mxu0 0
        %8652 = vmatpush1.bf16.msra.mxu0 %v8591
        %8653 = vmatprep.subr.bf16.mxu0 0
        %8654 = vmatpush1.bf16.msra.mxu0 %v8592
        %8655 = vmatprep.subr.bf16.mxu0 0
        %8656 = vmatpush1.bf16.msra.mxu0 %v8593
        %8657 = vmatprep.subr.bf16.mxu0 0
        %8658 = vmatpush1.bf16.msra.mxu0 %v8594
        %8659 = vmatprep.mubr.bf16.mxu0 %v8460
        %8660 = vmatmul.mubr.bf16.gmra.mrb[0].mxu0 %v8459
        %v8661 = vpop.f32.mrb[0].mxu0
        %v8662 = vadd.f32 0.0, %v8661
        %v8663 = vpop.f32.mrb[0].mxu0
        %v8664 = vpop.f32.mrb[0].mxu0
        %v8665 = vadd.f32 0.0, %v8664
        %v8666 = vpop.f32.mrb[0].mxu0
        %8667 = vmatprep.mubr.bf16.mxu0 %v8463
        %8668 = vmatmul.mubr.bf16.gmra.mrb[0].mxu0 %v8462
        %v8669 = vpop.f32.mrb[0].mxu0
        %v8670 = vadd.f32 0.0, %v8669
        %v8671 = vpop.f32.mrb[0].mxu0
        %v8672 = vpop.f32.mrb[0].mxu0
        %v8673 = vadd.f32 0.0, %v8672
        %v8674 = vpop.f32.mrb[0].mxu0
        %8675 = vmatprep.mubr.bf16.mxu0 %v8466
        %8676 = vmatmul.mubr.bf16.gmra.mrb[0].mxu0 %v8465
        %v8677 = vpop.f32.mrb[0].mxu0
        %v8678 = vadd.f32 0.0, %v8677
        %v8679 = vpop.f32.mrb[0].mxu0
        %v8680 = vpop.f32.mrb[0].mxu0
        %v8681 = vadd.f32 0.0, %v8680
        %v8682 = vpop.f32.mrb[0].mxu0
        %8683 = vmatprep.mubr.bf16.mxu0 %v8469
        %8684 = vmatmul.mubr.bf16.gmra.mrb[0].mxu0 %v8468
        %v8685 = vpop.f32.mrb[0].mxu0
        %v8686 = vadd.f32 0.0, %v8685
        %v8687 = vpop.f32.mrb[0].mxu0
        %v8688 = vpop.f32.mrb[0].mxu0
        %v8689 = vadd.f32 0.0, %v8688
        %v8690 = vpop.f32.mrb[0].mxu0
        %8691 = vdwg.mxu0
        %8692 = vmatprep.subr.bf16.mxu0 0
        %8693 = vmatpush1.bf16.msra.mxu0 %v8595
        %8694 = vmatprep.subr.bf16.mxu0 0
        %8695 = vmatpush1.bf16.msra.mxu0 %v8596
        %8696 = vmatprep.subr.bf16.mxu0 0
        %8697 = vmatpush1.bf16.msra.mxu0 0
        %8698 = vmatprep.subr.bf16.mxu0 0
        %8699 = vmatpush1.bf16.msra.mxu0 0
        %8700 = vmatprep.subr.bf16.mxu0 0
        %8701 = vmatpush1.bf16.msra.mxu0 0
        %8702 = vmatprep.subr.bf16.mxu0 0
        %8703 = vmatpush1.bf16.msra.mxu0 0
        %8704 = vmatprep.subr.bf16.mxu0 0
        %8705 = vmatpush1.bf16.msra.mxu0 0
        %8706 = vmatprep.subr.bf16.mxu0 0
        %8707 = vmatpush1.bf16.msra.mxu0 0
        %8708 = vmatprep.subr.bf16.mxu0 0
        %8709 = vmatpush1.bf16.msra.mxu0 0
        %8710 = vmatprep.subr.bf16.mxu0 0
        %8711 = vmatpush1.bf16.msra.mxu0 0
        %8712 = vmatprep.subr.bf16.mxu0 0
        %8713 = vmatpush1.bf16.msra.mxu0 0
        %8714 = vmatprep.subr.bf16.mxu0 0
        %8715 = vmatpush1.bf16.msra.mxu0 0
        %8716 = vmatprep.subr.bf16.mxu0 0
        %8717 = vmatpush1.bf16.msra.mxu0 0
        %8718 = vmatprep.subr.bf16.mxu0 0
        %8719 = vmatpush1.bf16.msra.mxu0 0
        %8720 = vmatprep.subr.bf16.mxu0 0
        %8721 = vmatpush1.bf16.msra.mxu0 0
        %8722 = vmatprep.subr.bf16.mxu0 0
        %8723 = vmatpush1.bf16.msra.mxu0 0
        %8724 = vmatprep.mubr.bf16.mxu0 0
        %8725 = vmatmul.mubr.bf16.gmra.mrb[0].mxu0 %v8616
        %v8726 = vpop.f32.mrb[0].mxu0
        %v8727 = vadd.f32 %v8662, %v8726
        %v8728 = vpop.f32.mrb[0].mxu0
        %v8729 = vpop.f32.mrb[0].mxu0
        %v8730 = vadd.f32 %v8665, %v8729
        %v8731 = vpop.f32.mrb[0].mxu0
        %8732 = vmatprep.mubr.bf16.mxu0 0
        %8733 = vmatmul.mubr.bf16.gmra.mrb[0].mxu0 %v8619
        %v8734 = vpop.f32.mrb[0].mxu0
        %v8735 = vadd.f32 %v8670, %v8734
        %v8736 = vpop.f32.mrb[0].mxu0
        %v8737 = vpop.f32.mrb[0].mxu0
        %v8738 = vadd.f32 %v8673, %v8737
        %v8739 = vpop.f32.mrb[0].mxu0
        %8740 = vmatprep.mubr.bf16.mxu0 0
        %8741 = vmatmul.mubr.bf16.gmra.mrb[0].mxu0 %v8622
        %v8742 = vpop.f32.mrb[0].mxu0
        %v8743 = vadd.f32 %v8678, %v8742
        %v8744 = vpop.f32.mrb[0].mxu0
        %v8745 = vpop.f32.mrb[0].mxu0
        %v8746 = vadd.f32 %v8681, %v8745
        %v8747 = vpop.f32.mrb[0].mxu0
        %8748 = vmatprep.mubr.bf16.mxu0 0
        %8749 = vmatmul.mubr.bf16.gmra.mrb[0].mxu0 %v8625
        %v8750 = vpop.f32.mrb[0].mxu0
        %v8751 = vadd.f32 %v8686, %v8750
        %v8752 = vpop.f32.mrb[0].mxu0
        %v8753 = vpop.f32.mrb[0].mxu0
        %v8754 = vadd.f32 %v8689, %v8753
        %v8755 = vpop.f32.mrb[0].mxu0
        %8756 = vdwg.mxu0
        %v8757 = vld [vmem:[%s29] sm:$0x1]
        %v8759 = vlaneseq
        %v8760 = vshrl.u32 %v8759, 7
        %v8761 = vsub.s32 0, %v8760
        %v8762 = vrot.slane %v8757, %v8761
        %v8764 = vmul.f32 %v8727, %v8762
        %v8765 = vmul.f32 %v8730, %v8762
        %v8766 = vmul.f32 %v8735, %v8762
        %v8767 = vmul.f32 %v8738, %v8762
        %v8768 = vmul.f32 %v8743, %v8762
        %v8769 = vmul.f32 %v8746, %v8762
        %v8770 = vmul.f32 %v8751, %v8762
        %v8771 = vmul.f32 %v8754, %v8762
        %v8772 = vld [vmem:[%s31] sm:$0x1]
        %v8774 = vlaneseq
        %v8775 = vshrl.u32 %v8774, 7
        %v8776 = vsub.s32 0, %v8775
        %v8777 = vrot.slane %v8772, %v8776
        %v8779 = vadd.f32 %v8764, %v8777
        %v8780 = vadd.f32 %v8765, %v8777
        %v8781 = vadd.f32 %v8766, %v8777
        %v8782 = vadd.f32 %v8767, %v8777
        %v8783 = vadd.f32 %v8768, %v8777
        %v8784 = vadd.f32 %v8769, %v8777
        %v8785 = vadd.f32 %v8770, %v8777
        %v8786 = vadd.f32 %v8771, %v8777
        %v8787 = vadd.f32 %v8779, %v8140
        %v8788 = vadd.f32 %v8780, %v8141
        %v8789 = vadd.f32 %v8781, %v8142
        %v8790 = vadd.f32 %v8782, %v8143
        %v8791 = vadd.f32 %v8783, %v8144
        %v8792 = vadd.f32 %v8784, %v8145
        %v8793 = vadd.f32 %v8785, %v8146
        %v8794 = vadd.f32 %v8786, %v8147
        %v8795 = vmax.f32 %v8787, 0.0
        %v8796 = vmax.f32 %v8788, 0.0
        %v8797 = vmax.f32 %v8789, 0.0
        %v8798 = vmax.f32 %v8790, 0.0
        %v8799 = vmax.f32 %v8791, 0.0
        %v8800 = vmax.f32 %v8792, 0.0
        %v8801 = vmax.f32 %v8793, 0.0
        %v8802 = vmax.f32 %v8794, 0.0
        %v8811 = vrot.slane %v8795, 7
        %v8812 = vrot.slane %v8796, 7
        %v8813 = vrot.slane %v8797, 7
        %v8814 = vrot.slane %v8798, 7
        %v8815 = vrot.slane %v8799, 7
        %v8816 = vrot.slane %v8800, 7
        %v8817 = vrot.slane %v8801, 7
        %v8818 = vrot.slane %v8802, 7
        %v8827 = vsel %vm993, 0.0, %v8811
        %v8828 = vsel %vm993, 0.0, %v8812
        %v8829 = vsel %vm993, 0.0, %v8813
        %v8830 = vsel %vm993, 0.0, %v8814
        %v8831 = vsel %vm993, 0.0, %v8815
        %v8832 = vsel %vm993, 0.0, %v8816
        %v8833 = vsel %vm993, 0.0, %v8817
        %v8834 = vsel %vm993, 0.0, %v8818
        %v8835 = vsel %vm993, %v8811, 0.0
        %v8836 = vsel %vm993, %v8812, 0.0
        %v8837 = vsel %vm993, %v8813, 0.0
        %v8838 = vsel %vm993, %v8814, 0.0
        %v8839 = vsel %vm993, %v8815, 0.0
        %v8840 = vsel %vm993, %v8816, 0.0
        %v8841 = vsel %vm993, %v8817, 0.0
        %v8842 = vsel %vm993, %v8818, 0.0
        %v8857 = vrot.slane %v8827, 1
        %v8858 = vrot.slane %v8835, 1
        %v8859 = vsel %vm1152, %v8857, %v8858
        %v8860 = vrot.slane %v8828, 1
        %v8861 = vrot.slane %v8836, 1
        %v8862 = vsel %vm1152, %v8860, %v8861
        %v8863 = vrot.slane %v8829, 1
        %v8864 = vrot.slane %v8837, 1
        %v8865 = vsel %vm1152, %v8863, %v8864
        %v8866 = vrot.slane %v8830, 1
        %v8867 = vrot.slane %v8838, 1
        %v8868 = vsel %vm1152, %v8866, %v8867
        %v8869 = vrot.slane %v8831, 1
        %v8870 = vrot.slane %v8839, 1
        %v8871 = vsel %vm1152, %v8869, %v8870
        %v8872 = vrot.slane %v8832, 1
        %v8873 = vrot.slane %v8840, 1
        %v8874 = vsel %vm1152, %v8872, %v8873
        %v8875 = vrot.slane %v8833, 1
        %v8876 = vrot.slane %v8841, 1
        %v8877 = vsel %vm1152, %v8875, %v8876
        %8878 = vrot.lane.b32.xlu0 %v8859, 32
        %v8879 = vpop.permute.xlu0 %8878
        %8880 = vrot.lane.b32.xlu0 %v8862, 32
        %v8881 = vpop.permute.xlu0 %8880
        %8882 = vrot.lane.b32.xlu0 %v8865, 32
        %v8883 = vpop.permute.xlu0 %8882
        %8884 = vrot.lane.b32.xlu0 %v8868, 32
        %v8885 = vpop.permute.xlu0 %8884
        %8886 = vrot.lane.b32.xlu0 %v8871, 32
        %v8887 = vpop.permute.xlu0 %8886
        %8888 = vrot.lane.b32.xlu0 %v8874, 32
        %v8889 = vpop.permute.xlu0 %8888
        %8890 = vrot.lane.b32.xlu0 %v8877, 32
        %v8891 = vpop.permute.xlu0 %8890
        %v8899 = vrot.slane %v8827, 2
        %v8900 = vrot.slane %v8835, 2
        %v8901 = vsel %vm1323, %v8899, %v8900
        %v8902 = vrot.slane %v8828, 2
        %v8903 = vrot.slane %v8836, 2
        %v8904 = vsel %vm1323, %v8902, %v8903
        %v8905 = vrot.slane %v8829, 2
        %v8906 = vrot.slane %v8837, 2
        %v8907 = vsel %vm1323, %v8905, %v8906
        %v8908 = vrot.slane %v8830, 2
        %v8909 = vrot.slane %v8838, 2
        %v8910 = vsel %vm1323, %v8908, %v8909
        %v8911 = vrot.slane %v8831, 2
        %v8912 = vrot.slane %v8839, 2
        %v8913 = vsel %vm1323, %v8911, %v8912
        %v8914 = vrot.slane %v8832, 2
        %v8915 = vrot.slane %v8840, 2
        %v8916 = vsel %vm1323, %v8914, %v8915
        %v8917 = vrot.slane %v8833, 2
        %v8918 = vrot.slane %v8841, 2
        %v8919 = vsel %vm1323, %v8917, %v8918
        %8920 = vrot.lane.b32.xlu0 %v8901, 64
        %v8921 = vpop.permute.xlu0 %8920
        %8922 = vrot.lane.b32.xlu0 %v8904, 64
        %v8923 = vpop.permute.xlu0 %8922
        %8924 = vrot.lane.b32.xlu0 %v8907, 64
        %v8925 = vpop.permute.xlu0 %8924
        %8926 = vrot.lane.b32.xlu0 %v8910, 64
        %v8927 = vpop.permute.xlu0 %8926
        %8928 = vrot.lane.b32.xlu0 %v8913, 64
        %v8929 = vpop.permute.xlu0 %8928
        %8930 = vrot.lane.b32.xlu0 %v8916, 64
        %v8931 = vpop.permute.xlu0 %8930
        %8932 = vrot.lane.b32.xlu0 %v8919, 64
        %v8933 = vpop.permute.xlu0 %8932
        %8942 = vrot.lane.b32.xlu0 %v8827, 96
        %v8943 = vpop.permute.xlu0 %8942
        %8944 = vrot.lane.b32.xlu0 %v8828, 96
        %v8945 = vpop.permute.xlu0 %8944
        %8946 = vrot.lane.b32.xlu0 %v8829, 96
        %v8947 = vpop.permute.xlu0 %8946
        %8948 = vrot.lane.b32.xlu0 %v8830, 96
        %v8949 = vpop.permute.xlu0 %8948
        %8950 = vrot.lane.b32.xlu0 %v8831, 96
        %v8951 = vpop.permute.xlu0 %8950
        %8952 = vrot.lane.b32.xlu0 %v8832, 96
        %v8953 = vpop.permute.xlu0 %8952
        %8954 = vrot.lane.b32.xlu0 %v8833, 96
        %v8955 = vpop.permute.xlu0 %8954
        %8956 = vrot.lane.b32.xlu0 %v8834, 96
        %v8957 = vpop.permute.xlu0 %8956
        %v8967 = vrot.slane %v8834, 1
        %v8968 = vrot.slane %v8842, 1
        %v8969 = vsel %vm1152, %v8967, %v8968
        %v8978 = vrot.slane %v8834, 2
        %v8979 = vrot.slane %v8842, 2
        %v8980 = vsel %vm1323, %v8978, %v8979
        %8981 = vrot.lane.b32.xlu0 %v8901, 32
        %v8982 = vpop.permute.xlu0 %8981
        %8983 = vrot.lane.b32.xlu0 %v8904, 32
        %v8984 = vpop.permute.xlu0 %8983
        %8985 = vrot.lane.b32.xlu0 %v8907, 32
        %v8986 = vpop.permute.xlu0 %8985
        %8987 = vrot.lane.b32.xlu0 %v8910, 32
        %v8988 = vpop.permute.xlu0 %8987
        %8989 = vrot.lane.b32.xlu0 %v8913, 32
        %v8990 = vpop.permute.xlu0 %8989
        %8991 = vrot.lane.b32.xlu0 %v8916, 32
        %v8992 = vpop.permute.xlu0 %8991
        %8993 = vrot.lane.b32.xlu0 %v8919, 32
        %v8994 = vpop.permute.xlu0 %8993
        %8995 = vrot.lane.b32.xlu0 %v8980, 32
        %v8996 = vpop.permute.xlu0 %8995
        %9005 = vrot.lane.b32.xlu0 %v8828, 64
        %v9006 = vpop.permute.xlu0 %9005
        %9007 = vrot.lane.b32.xlu0 %v8829, 64
        %v9008 = vpop.permute.xlu0 %9007
        %9009 = vrot.lane.b32.xlu0 %v8830, 64
        %v9010 = vpop.permute.xlu0 %9009
        %9011 = vrot.lane.b32.xlu0 %v8831, 64
        %v9012 = vpop.permute.xlu0 %9011
        %9013 = vrot.lane.b32.xlu0 %v8832, 64
        %v9014 = vpop.permute.xlu0 %9013
        %9015 = vrot.lane.b32.xlu0 %v8833, 64
        %v9016 = vpop.permute.xlu0 %9015
        %9017 = vrot.lane.b32.xlu0 %v8834, 64
        %v9018 = vpop.permute.xlu0 %9017
        %9026 = vrot.lane.b32.xlu0 %v8862, 96
        %v9027 = vpop.permute.xlu0 %9026
        %9028 = vrot.lane.b32.xlu0 %v8865, 96
        %v9029 = vpop.permute.xlu0 %9028
        %9030 = vrot.lane.b32.xlu0 %v8868, 96
        %v9031 = vpop.permute.xlu0 %9030
        %9032 = vrot.lane.b32.xlu0 %v8871, 96
        %v9033 = vpop.permute.xlu0 %9032
        %9034 = vrot.lane.b32.xlu0 %v8874, 96
        %v9035 = vpop.permute.xlu0 %9034
        %9036 = vrot.lane.b32.xlu0 %v8877, 96
        %v9037 = vpop.permute.xlu0 %9036
        %9038 = vrot.lane.b32.xlu0 %v8969, 96
        %v9039 = vpop.permute.xlu0 %9038
        %v9054 = vsel %vm3766, %v8827, %v8879
        %v9055 = vsel %vm3766, %v8828, %v8881
        %v9056 = vsel %vm3766, %v8829, %v8883
        %v9057 = vsel %vm3766, %v8830, %v8885
        %v9058 = vsel %vm3766, %v8831, %v8887
        %v9059 = vsel %vm3766, %v8832, %v8889
        %v9060 = vsel %vm3766, %v8833, %v8891
        %v9061 = vsel %vm3831, %v9054, %v8921
        %v9062 = vsel %vm3831, %v9055, %v8923
        %v9063 = vsel %vm3831, %v9056, %v8925
        %v9064 = vsel %vm3831, %v9057, %v8927
        %v9065 = vsel %vm3831, %v9058, %v8929
        %v9066 = vsel %vm3831, %v9059, %v8931
        %v9067 = vsel %vm3831, %v9060, %v8933
        %v9068 = vsel %vm3897, %v8419, %v8943
        %v9069 = vsel %vm3897, %v9061, %v8945
        %v9070 = vsel %vm3897, %v9062, %v8947
        %v9071 = vsel %vm3897, %v9063, %v8949
        %v9072 = vsel %vm3897, %v9064, %v8951
        %v9073 = vsel %vm3897, %v9065, %v8953
        %v9074 = vsel %vm3897, %v9066, %v8955
        %v9075 = vsel %vm3897, %v9067, %v8957
        %v9076 = vsel %vm3766, %v8859, %v8982
        %v9077 = vsel %vm3766, %v8862, %v8984
        %v9078 = vsel %vm3766, %v8865, %v8986
        %v9079 = vsel %vm3766, %v8868, %v8988
        %v9080 = vsel %vm3766, %v8871, %v8990
        %v9081 = vsel %vm3766, %v8874, %v8992
        %v9082 = vsel %vm3766, %v8877, %v8994
        %v9083 = vsel %vm3766, %v8969, %v8996
        %v9084 = vsel %vm3831, %v9076, %v9006
        %v9085 = vsel %vm3831, %v9077, %v9008
        %v9086 = vsel %vm3831, %v9078, %v9010
        %v9087 = vsel %vm3831, %v9079, %v9012
        %v9088 = vsel %vm3831, %v9080, %v9014
        %v9089 = vsel %vm3831, %v9081, %v9016
        %v9090 = vsel %vm3831, %v9082, %v9018
        %v9091 = vsel %vm3831, %v9083, %v8371
        %v9092 = vsel %vm3897, %v9084, %v9027
        %v9093 = vsel %vm3897, %v9085, %v9029
        %v9094 = vsel %vm3897, %v9086, %v9031
        %v9095 = vsel %vm3897, %v9087, %v9033
        %v9096 = vsel %vm3897, %v9088, %v9035
        %v9097 = vsel %vm3897, %v9089, %v9037
        %v9098 = vsel %vm3897, %v9090, %v9039
        %v9099 = vsel %vm3897, %v9091, %v8395
        %v9100 = vpack.c.bf16 %v9069, %v9068
        %v9101 = vpack.c.bf16 %v9093, %v9092
        %v9102 = vpack.c.bf16 %v8907, %v8904
        %v9103 = vpack.c.bf16 %v9071, %v9070
        %v9104 = vpack.c.bf16 %v9095, %v9094
        %v9105 = vpack.c.bf16 %v8913, %v8910
        %v9106 = vpack.c.bf16 %v9073, %v9072
        %v9107 = vpack.c.bf16 %v9097, %v9096
        %v9108 = vpack.c.bf16 %v8919, %v8916
        %v9109 = vpack.c.bf16 %v9075, %v9074
        %v9110 = vpack.c.bf16 %v9099, %v9098
        %v9111 = vpack.c.bf16 %v1325, %v8980
        %v9112 = vld [vmem:[%s39] sm:$0xf]
        %v9113 = vld [vmem:[%s39 + $0x4] sm:$0xf]
        %v9114 = vld [vmem:[%s39 + $0x8] sm:$0xf]
        %v9115 = vld [vmem:[%s39 + $0xc] sm:$0xf]
        %v9116 = vld [vmem:[%s39 + $0x10] sm:$0xf]
        %v9117 = vld [vmem:[%s39 + $0x14] sm:$0xf]
        %v9118 = vld [vmem:[%s39 + $0x18] sm:$0xf]
        %v9119 = vld [vmem:[%s39 + $0x1c] sm:$0xf]
        %v9120 = vld [vmem:[%s39 + $0x20] sm:$0xf]
        %v9121 = vld [vmem:[%s39 + $0x24] sm:$0xf]
        %v9122 = vld [vmem:[%s39 + $0x28] sm:$0xf]
        %v9123 = vld [vmem:[%s39 + $0x2c] sm:$0xf]
        %v9124 = vld [vmem:[%s39 + $0x30] sm:$0xf]
        %v9125 = vld [vmem:[%s39 + $0x34] sm:$0xf]
        %v9126 = vld [vmem:[%s39 + $0x38] sm:$0xf]
        %v9127 = vld [vmem:[%s39 + $0x3c] sm:$0xf]
        %v9128 = vld [vmem:[%s39 + $0x40] sm:$0xf]
        %v9129 = vld [vmem:[%s39 + $0x44] sm:$0xf]
        %v9130 = vld [vmem:[%s39 + $0x48] sm:$0xf]
        %v9131 = vld [vmem:[%s39 + $0x4c] sm:$0xf]
        %v9132 = vld [vmem:[%s39 + $0x50] sm:$0xf]
        %v9133 = vld [vmem:[%s39 + $0x54] sm:$0xf]
        %v9134 = vld [vmem:[%s39 + $0x58] sm:$0xf]
        %v9135 = vld [vmem:[%s39 + $0x5c] sm:$0xf]
        %v9136 = vld [vmem:[%s39 + $0x60] sm:$0xf]
        %v9137 = vld [vmem:[%s39 + $0x64] sm:$0xf]
        %v9138 = vld [vmem:[%s39 + $0x68] sm:$0xf]
        %v9139 = vld [vmem:[%s39 + $0x6c] sm:$0xf]
        %v9140 = vld [vmem:[%s39 + $0x70] sm:$0xf]
        %v9141 = vld [vmem:[%s39 + $0x74] sm:$0xf]
        %v9142 = vld [vmem:[%s39 + $0x78] sm:$0xf]
        %v9143 = vld [vmem:[%s39 + $0x7c] sm:$0xf]
        %v9144 = vld [vmem:[%s39 + $0x80] sm:$0xf]
        %v9145 = vld [vmem:[%s39 + $0x84] sm:$0xf]
        %v9146 = vld [vmem:[%s39 + $0x88] sm:$0xf]
        %v9147 = vld [vmem:[%s39 + $0x8c] sm:$0xf]
        %v9184 = vunpack.c.l.b16 %v9112
        %v9185 = vunpack.c.l.b16 %v9113
        %v9186 = vunpack.c.l.b16 %v9114
        %v9187 = vunpack.c.l.b16 %v9115
        %v9188 = vunpack.c.l.b16 %v9116
        %v9189 = vunpack.c.l.b16 %v9117
        %v9190 = vunpack.c.l.b16 %v9118
        %v9191 = vunpack.c.l.b16 %v9119
        %v9192 = vunpack.c.l.b16 %v9120
        %v9193 = vunpack.c.l.b16 %v9121
        %v9194 = vunpack.c.l.b16 %v9122
        %v9195 = vunpack.c.l.b16 %v9123
        %v9196 = vunpack.c.l.b16 %v9124
        %v9197 = vunpack.c.l.b16 %v9125
        %v9198 = vunpack.c.l.b16 %v9126
        %v9199 = vunpack.c.l.b16 %v9127
        %v9200 = vunpack.c.l.b16 %v9128
        %v9201 = vunpack.c.l.b16 %v9129
        %v9202 = vunpack.c.l.b16 %v9130
        %v9203 = vunpack.c.l.b16 %v9131
        %v9204 = vunpack.c.l.b16 %v9132
        %v9205 = vunpack.c.l.b16 %v9133
        %v9206 = vunpack.c.l.b16 %v9134
        %v9207 = vunpack.c.l.b16 %v9135
        %v9208 = vunpack.c.l.b16 %v9136
        %v9209 = vunpack.c.l.b16 %v9137
        %v9210 = vunpack.c.l.b16 %v9138
        %v9211 = vunpack.c.l.b16 %v9139
        %v9212 = vunpack.c.l.b16 %v9140
        %v9213 = vunpack.c.l.b16 %v9141
        %v9214 = vunpack.c.l.b16 %v9142
        %v9215 = vunpack.c.l.b16 %v9143
        %v9216 = vunpack.c.l.b16 %v9144
        %v9217 = vunpack.c.l.b16 %v9145
        %v9218 = vunpack.c.l.b16 %v9146
        %v9219 = vunpack.c.l.b16 %v9147
        %v9220 = vpack.c.b16 %v9185, %v9184
        %v9221 = vpack.c.b16 %v9187, %v9186
        %v9222 = vpack.c.b16 %v9189, %v9188
        %v9223 = vpack.c.b16 %v9191, %v9190
        %v9224 = vpack.c.b16 %v9193, %v9192
        %v9225 = vpack.c.b16 %v9195, %v9194
        %v9226 = vpack.c.b16 %v9197, %v9196
        %v9227 = vpack.c.b16 %v9199, %v9198
        %v9228 = vpack.c.b16 %v9201, %v9200
        %v9229 = vpack.c.b16 %v9203, %v9202
        %v9230 = vpack.c.b16 %v9205, %v9204
        %v9231 = vpack.c.b16 %v9207, %v9206
        %v9232 = vpack.c.b16 %v9209, %v9208
        %v9233 = vpack.c.b16 %v9211, %v9210
        %v9234 = vpack.c.b16 %v9213, %v9212
        %v9235 = vpack.c.b16 %v9215, %v9214
        %v9236 = vpack.c.b16 %v9217, %v9216
        %v9237 = vpack.c.b16 %v9219, %v9218
        %v9257 = vsel %vm3766, %v9102, 0
        %v9260 = vsel %vm3766, %v9105, 0
        %v9263 = vsel %vm3766, %v9108, 0
        %v9266 = vsel %vm3766, %v9111, 0
        %9268 = vmatprep.subr.bf16.mxu0 0
        %9269 = vmatpush1.bf16.msra.mxu0 %v9220
        %9270 = vmatprep.subr.bf16.mxu0 0
        %9271 = vmatpush1.bf16.msra.mxu0 %v9221
        %9272 = vmatprep.subr.bf16.mxu0 0
        %9273 = vmatpush1.bf16.msra.mxu0 %v9222
        %9274 = vmatprep.subr.bf16.mxu0 0
        %9275 = vmatpush1.bf16.msra.mxu0 %v9223
        %9276 = vmatprep.subr.bf16.mxu0 0
        %9277 = vmatpush1.bf16.msra.mxu0 %v9224
        %9278 = vmatprep.subr.bf16.mxu0 0
        %9279 = vmatpush1.bf16.msra.mxu0 %v9225
        %9280 = vmatprep.subr.bf16.mxu0 0
        %9281 = vmatpush1.bf16.msra.mxu0 %v9226
        %9282 = vmatprep.subr.bf16.mxu0 0
        %9283 = vmatpush1.bf16.msra.mxu0 %v9227
        %9284 = vmatprep.subr.bf16.mxu0 0
        %9285 = vmatpush1.bf16.msra.mxu0 %v9228
        %9286 = vmatprep.subr.bf16.mxu0 0
        %9287 = vmatpush1.bf16.msra.mxu0 %v9229
        %9288 = vmatprep.subr.bf16.mxu0 0
        %9289 = vmatpush1.bf16.msra.mxu0 %v9230
        %9290 = vmatprep.subr.bf16.mxu0 0
        %9291 = vmatpush1.bf16.msra.mxu0 %v9231
        %9292 = vmatprep.subr.bf16.mxu0 0
        %9293 = vmatpush1.bf16.msra.mxu0 %v9232
        %9294 = vmatprep.subr.bf16.mxu0 0
        %9295 = vmatpush1.bf16.msra.mxu0 %v9233
        %9296 = vmatprep.subr.bf16.mxu0 0
        %9297 = vmatpush1.bf16.msra.mxu0 %v9234
        %9298 = vmatprep.subr.bf16.mxu0 0
        %9299 = vmatpush1.bf16.msra.mxu0 %v9235
        %9300 = vmatprep.mubr.bf16.mxu0 %v9101
        %9301 = vmatmul.mubr.bf16.gmra.mrb[0].mxu0 %v9100
        %v9302 = vpop.f32.mrb[0].mxu0
        %v9303 = vadd.f32 0.0, %v9302
        %v9304 = vpop.f32.mrb[0].mxu0
        %v9305 = vpop.f32.mrb[0].mxu0
        %v9306 = vpop.f32.mrb[0].mxu0
        %9307 = vmatprep.mubr.bf16.mxu0 %v9104
        %9308 = vmatmul.mubr.bf16.gmra.mrb[0].mxu0 %v9103
        %v9309 = vpop.f32.mrb[0].mxu0
        %v9310 = vadd.f32 0.0, %v9309
        %v9311 = vpop.f32.mrb[0].mxu0
        %v9312 = vpop.f32.mrb[0].mxu0
        %v9313 = vpop.f32.mrb[0].mxu0
        %9314 = vmatprep.mubr.bf16.mxu0 %v9107
        %9315 = vmatmul.mubr.bf16.gmra.mrb[0].mxu0 %v9106
        %v9316 = vpop.f32.mrb[0].mxu0
        %v9317 = vadd.f32 0.0, %v9316
        %v9318 = vpop.f32.mrb[0].mxu0
        %v9319 = vpop.f32.mrb[0].mxu0
        %v9320 = vpop.f32.mrb[0].mxu0
        %9321 = vmatprep.mubr.bf16.mxu0 %v9110
        %9322 = vmatmul.mubr.bf16.gmra.mrb[0].mxu0 %v9109
        %v9323 = vpop.f32.mrb[0].mxu0
        %v9324 = vadd.f32 0.0, %v9323
        %v9325 = vpop.f32.mrb[0].mxu0
        %v9326 = vpop.f32.mrb[0].mxu0
        %v9327 = vpop.f32.mrb[0].mxu0
        %9328 = vdwg.mxu0
        %9329 = vmatprep.subr.bf16.mxu0 0
        %9330 = vmatpush1.bf16.msra.mxu0 %v9236
        %9331 = vmatprep.subr.bf16.mxu0 0
        %9332 = vmatpush1.bf16.msra.mxu0 %v9237
        %9333 = vmatprep.subr.bf16.mxu0 0
        %9334 = vmatpush1.bf16.msra.mxu0 0
        %9335 = vmatprep.subr.bf16.mxu0 0
        %9336 = vmatpush1.bf16.msra.mxu0 0
        %9337 = vmatprep.subr.bf16.mxu0 0
        %9338 = vmatpush1.bf16.msra.mxu0 0
        %9339 = vmatprep.subr.bf16.mxu0 0
        %9340 = vmatpush1.bf16.msra.mxu0 0
        %9341 = vmatprep.subr.bf16.mxu0 0
        %9342 = vmatpush1.bf16.msra.mxu0 0
        %9343 = vmatprep.subr.bf16.mxu0 0
        %9344 = vmatpush1.bf16.msra.mxu0 0
        %9345 = vmatprep.subr.bf16.mxu0 0
        %9346 = vmatpush1.bf16.msra.mxu0 0
        %9347 = vmatprep.subr.bf16.mxu0 0
        %9348 = vmatpush1.bf16.msra.mxu0 0
        %9349 = vmatprep.subr.bf16.mxu0 0
        %9350 = vmatpush1.bf16.msra.mxu0 0
        %9351 = vmatprep.subr.bf16.mxu0 0
        %9352 = vmatpush1.bf16.msra.mxu0 0
        %9353 = vmatprep.subr.bf16.mxu0 0
        %9354 = vmatpush1.bf16.msra.mxu0 0
        %9355 = vmatprep.subr.bf16.mxu0 0
        %9356 = vmatpush1.bf16.msra.mxu0 0
        %9357 = vmatprep.subr.bf16.mxu0 0
        %9358 = vmatpush1.bf16.msra.mxu0 0
        %9359 = vmatprep.subr.bf16.mxu0 0
        %9360 = vmatpush1.bf16.msra.mxu0 0
        %9361 = vmatprep.mubr.bf16.mxu0 0
        %9362 = vmatmul.mubr.bf16.gmra.mrb[0].mxu0 %v9257
        %v9363 = vpop.f32.mrb[0].mxu0
        %v9364 = vadd.f32 %v9303, %v9363
        %v9365 = vpop.f32.mrb[0].mxu0
        %v9366 = vpop.f32.mrb[0].mxu0
        %v9367 = vpop.f32.mrb[0].mxu0
        %9368 = vmatprep.mubr.bf16.mxu0 0
        %9369 = vmatmul.mubr.bf16.gmra.mrb[0].mxu0 %v9260
        %v9370 = vpop.f32.mrb[0].mxu0
        %v9371 = vadd.f32 %v9310, %v9370
        %v9372 = vpop.f32.mrb[0].mxu0
        %v9373 = vpop.f32.mrb[0].mxu0
        %v9374 = vpop.f32.mrb[0].mxu0
        %9375 = vmatprep.mubr.bf16.mxu0 0
        %9376 = vmatmul.mubr.bf16.gmra.mrb[0].mxu0 %v9263
        %v9377 = vpop.f32.mrb[0].mxu0
        %v9378 = vadd.f32 %v9317, %v9377
        %v9379 = vpop.f32.mrb[0].mxu0
        %v9380 = vpop.f32.mrb[0].mxu0
        %v9381 = vpop.f32.mrb[0].mxu0
        %9382 = vmatprep.mubr.bf16.mxu0 0
        %9383 = vmatmul.mubr.bf16.gmra.mrb[0].mxu0 %v9266
        %v9384 = vpop.f32.mrb[0].mxu0
        %v9385 = vadd.f32 %v9324, %v9384
        %v9386 = vpop.f32.mrb[0].mxu0
        %v9387 = vpop.f32.mrb[0].mxu0
        %v9388 = vpop.f32.mrb[0].mxu0
        %9389 = vdwg.mxu0
        %v9390 = vld [vmem:[%s41] sm:$0x1]
        %v9392 = vlaneseq
        %v9393 = vshrl.u32 %v9392, 7
        %v9394 = vsub.s32 0, %v9393
        %v9395 = vrot.slane %v9390, %v9394
        %v9397 = vmul.f32 %v9364, %v9395
        %v9398 = vmul.f32 %v9371, %v9395
        %v9399 = vmul.f32 %v9378, %v9395
        %v9400 = vmul.f32 %v9385, %v9395
        %v9401 = vld [vmem:[%s43] sm:$0x1]
        %v9403 = vlaneseq
        %v9404 = vshrl.u32 %v9403, 7
        %v9405 = vsub.s32 0, %v9404
        %v9406 = vrot.slane %v9401, %v9405
        %v9408 = vadd.f32 %v9397, %v9406
        %v9409 = vadd.f32 %v9398, %v9406
        %v9410 = vadd.f32 %v9399, %v9406
        %v9411 = vadd.f32 %v9400, %v9406
        %v9412 = vmax.f32 %v9408, 0.0
        %v9413 = vmax.f32 %v9409, 0.0
        %v9414 = vmax.f32 %v9410, 0.0
        %v9415 = vmax.f32 %v9411, 0.0
        %v9420 = vrot.slane %v9412, 1
        %v9421 = vrot.slane %v9413, 1
        %v9422 = vrot.slane %v9414, 1
        %v9423 = vrot.slane %v9415, 1
        %v9428 = vrot.slane %v9412, 2
        %v9429 = vrot.slane %v9413, 2
        %v9430 = vrot.slane %v9414, 2
        %v9431 = vrot.slane %v9415, 2
        %v9436 = vrot.slane %v9412, 3
        %v9437 = vrot.slane %v9413, 3
        %v9438 = vrot.slane %v9414, 3
        %v9439 = vrot.slane %v9415, 3
        %v9444 = vsel %vm993, %v9412, %v9420
        %v9445 = vsel %vm993, %v9413, %v9421
        %v9446 = vsel %vm993, %v9414, %v9422
        %v9447 = vsel %vm993, %v9415, %v9423
        %v9448 = vsel %vm7826, %v9444, %v9428
        %v9449 = vsel %vm7826, %v9445, %v9429
        %v9450 = vsel %vm7826, %v9446, %v9430
        %v9451 = vsel %vm7826, %v9447, %v9431
        %v9452 = vsel %vm7835, %v9448, %v9436
        %v9453 = vsel %vm7835, %v9449, %v9437
        %v9454 = vsel %vm7835, %v9450, %v9438
        %v9455 = vsel %vm7835, %v9451, %v9439
        %v9456 = vrot.slane %v8795, 1
        %v9457 = vrot.slane %v8797, 1
        %v9458 = vrot.slane %v8799, 1
        %v9459 = vrot.slane %v8801, 1
        %v9464 = vrot.slane %v8795, 2
        %v9465 = vrot.slane %v8797, 2
        %v9466 = vrot.slane %v8799, 2
        %v9467 = vrot.slane %v8801, 2
        %v9472 = vrot.slane %v8795, 3
        %v9473 = vrot.slane %v8797, 3
        %v9474 = vrot.slane %v8799, 3
        %v9475 = vrot.slane %v8801, 3
        %v9480 = vsel %vm993, %v8795, %v9456
        %v9481 = vsel %vm993, %v8797, %v9457
        %v9482 = vsel %vm993, %v8799, %v9458
        %v9483 = vsel %vm993, %v8801, %v9459
        %v9484 = vsel %vm7826, %v9480, %v9464
        %v9485 = vsel %vm7826, %v9481, %v9465
        %v9486 = vsel %vm7826, %v9482, %v9466
        %v9487 = vsel %vm7826, %v9483, %v9467
        %v9488 = vsel %vm7835, %v9484, %v9472
        %v9489 = vsel %vm7835, %v9485, %v9473
        %v9490 = vsel %vm7835, %v9486, %v9474
        %v9491 = vsel %vm7835, %v9487, %v9475
        %v9496 = vcombine.low %v9488, %v9489
        %v9497 = vcombine.low %v9490, %v9491
        %v9500 = vpack.c.bf16 %v9497, %v9496
        %v9501 = vld [vmem:[%s51] sm:$0xf]
        %v9502 = vld [vmem:[%s51 + $0x4] sm:$0xf]
        %v9503 = vld [vmem:[%s51 + $0x8] sm:$0xf]
        %v9504 = vld [vmem:[%s51 + $0xc] sm:$0xf]
        %v9509 = vunpack.c.l.b16 %v9501
        %v9510 = vunpack.c.l.b16 %v9502
        %v9511 = vunpack.c.l.b16 %v9503
        %v9512 = vunpack.c.l.b16 %v9504
        %v9513 = vpack.c.b16 %v9510, %v9509
        %v9514 = vpack.c.b16 %v9512, %v9511
        %v9518 = vsel %vm3766, %v9500, 0
        %9520 = vmatprep.subr.bf16.mxu0 0
        %9521 = vmatpush1.bf16.msra.mxu0 %v9513
        %9522 = vmatprep.subr.bf16.mxu0 0
        %9523 = vmatpush1.bf16.msra.mxu0 %v9514
        %9524 = vmatprep.subr.bf16.mxu0 0
        %9525 = vmatpush1.bf16.msra.mxu0 0
        %9526 = vmatprep.subr.bf16.mxu0 0
        %9527 = vmatpush1.bf16.msra.mxu0 0
        %9528 = vmatprep.subr.bf16.mxu0 0
        %9529 = vmatpush1.bf16.msra.mxu0 0
        %9530 = vmatprep.subr.bf16.mxu0 0
        %9531 = vmatpush1.bf16.msra.mxu0 0
        %9532 = vmatprep.subr.bf16.mxu0 0
        %9533 = vmatpush1.bf16.msra.mxu0 0
        %9534 = vmatprep.subr.bf16.mxu0 0
        %9535 = vmatpush1.bf16.msra.mxu0 0
        %9536 = vmatprep.subr.bf16.mxu0 0
        %9537 = vmatpush1.bf16.msra.mxu0 0
        %9538 = vmatprep.subr.bf16.mxu0 0
        %9539 = vmatpush1.bf16.msra.mxu0 0
        %9540 = vmatprep.subr.bf16.mxu0 0
        %9541 = vmatpush1.bf16.msra.mxu0 0
        %9542 = vmatprep.subr.bf16.mxu0 0
        %9543 = vmatpush1.bf16.msra.mxu0 0
        %9544 = vmatprep.subr.bf16.mxu0 0
        %9545 = vmatpush1.bf16.msra.mxu0 0
        %9546 = vmatprep.subr.bf16.mxu0 0
        %9547 = vmatpush1.bf16.msra.mxu0 0
        %9548 = vmatprep.subr.bf16.mxu0 0
        %9549 = vmatpush1.bf16.msra.mxu0 0
        %9550 = vmatprep.subr.bf16.mxu0 0
        %9551 = vmatpush1.bf16.msra.mxu0 0
        %9552 = vmatprep.mubr.bf16.mxu0 0
        %9553 = vmatmul.mubr.bf16.gmra.mrb[0].mxu0 %v9518
        %v9554 = vpop.f32.mrb[0].mxu0
        %v9555 = vadd.f32 0.0, %v9554
        %v9556 = vpop.f32.mrb[0].mxu0
        %v9557 = vpop.f32.mrb[0].mxu0
        %v9558 = vadd.f32 0.0, %v9557
        %v9559 = vpop.f32.mrb[0].mxu0
        %9560 = vdwg.mxu0
        %v9561 = vld [vmem:[%s53] sm:$0x1]
        %v9563 = vlaneseq
        %v9564 = vshrl.u32 %v9563, 7
        %v9565 = vsub.s32 0, %v9564
        %v9566 = vrot.slane %v9561, %v9565
        %v9568 = vmul.f32 %v9555, %v9566
        %v9569 = vmul.f32 %v9558, %v9566
        %v9570 = vld [vmem:[%s55] sm:$0x1]
        %v9572 = vlaneseq
        %v9573 = vshrl.u32 %v9572, 7
        %v9574 = vsub.s32 0, %v9573
        %v9575 = vrot.slane %v9570, %v9574
        %v9577 = vadd.f32 %v9568, %v9575
        %v9578 = vadd.f32 %v9569, %v9575
        %v9581 = vcombine.high %v9577, %v9577
        %v9582 = vcombine.high %v9578, %v9578
        %v9589 = vrot.slane %v9452, 7
        %v9590 = vrot.slane %v9453, 7
        %v9591 = vrot.slane %v9454, 7
        %v9592 = vrot.slane %v9455, 7
        %v9597 = vsel %vm993, 0.0, %v9589
        %v9598 = vsel %vm993, 0.0, %v9590
        %v9599 = vsel %vm993, 0.0, %v9591
        %v9600 = vsel %vm993, 0.0, %v9592
        %v9601 = vsel %vm2415, %v9597, 0.0
        %v9602 = vsel %vm2415, %v9598, 0.0
        %v9603 = vsel %vm2415, %v9599, 0.0
        %v9604 = vsel %vm2415, %v9600, 0.0
        %v9608 = vrot.slane %v9601, 1
        %v9609 = vrot.slane %v9602, 1
        %v9610 = vrot.slane %v9603, 1
        %9611 = vrot.lane.b32.xlu0 %v1153, 64
        %v9612 = vpop.permute.xlu0 %9611
        %9613 = vrot.lane.b32.xlu0 %v9608, 64
        %v9614 = vpop.permute.xlu0 %9613
        %9615 = vrot.lane.b32.xlu0 %v9609, 64
        %v9616 = vpop.permute.xlu0 %9615
        %9617 = vrot.lane.b32.xlu0 %v9610, 64
        %v9618 = vpop.permute.xlu0 %9617
        %v9623 = vrot.slane %v9601, 2
        %v9624 = vrot.slane %v9602, 2
        %v9625 = vrot.slane %v9603, 2
        %9631 = vrot.lane.b32.xlu0 %v9601, 64
        %v9632 = vpop.permute.xlu0 %9631
        %9633 = vrot.lane.b32.xlu0 %v9602, 64
        %v9634 = vpop.permute.xlu0 %9633
        %9635 = vrot.lane.b32.xlu0 %v9603, 64
        %v9636 = vpop.permute.xlu0 %9635
        %9637 = vrot.lane.b32.xlu0 %v9604, 64
        %v9638 = vpop.permute.xlu0 %9637
        %v9643 = vrot.slane %v9604, 1
        %v9648 = vrot.slane %v9604, 2
        %9649 = vrot.lane.b32.xlu0 %v9623, 64
        %v9650 = vpop.permute.xlu0 %9649
        %9651 = vrot.lane.b32.xlu0 %v9624, 64
        %v9652 = vpop.permute.xlu0 %9651
        %9653 = vrot.lane.b32.xlu0 %v9625, 64
        %v9654 = vpop.permute.xlu0 %9653
        %9655 = vrot.lane.b32.xlu0 %v9648, 64
        %v9656 = vpop.permute.xlu0 %9655
        %9661 = vrot.lane.b32.xlu0 %v9643, 64
        %v9662 = vpop.permute.xlu0 %9661
        %v9664 = vsel %vm3831, 0.0, %v9612
        %v9665 = vsel %vm3831, %v9601, %v9614
        %v9666 = vsel %vm3831, %v9602, %v9616
        %v9667 = vsel %vm3831, %v9603, %v9618
        %v9668 = vsel %vm3831, %v1324, %v9632
        %v9669 = vsel %vm3831, %v9623, %v9634
        %v9670 = vsel %vm3831, %v9624, %v9636
        %v9671 = vsel %vm3831, %v9625, %v9638
        %v9672 = vsel %vm3831, %v9608, %v9650
        %v9673 = vsel %vm3831, %v9609, %v9652
        %v9674 = vsel %vm3831, %v9610, %v9654
        %v9675 = vsel %vm3831, %v9643, %v9656
        %v9676 = vsel %vm3831, %v9604, %v9662
        %v9690 = vcombine.low %v9664, %v9668
        %v9691 = vcombine.low %v9672, %v9666
        %v9692 = vcombine.low %v9665, %v9669
        %v9693 = vcombine.low %v9673, %v9667
        %v9694 = vcombine.low %v9666, %v9670
        %v9695 = vcombine.low %v9674, %v9676
        %v9696 = vcombine.low %v9667, %v9671
        %v9697 = vcombine.low %v9675, %v9664
        %v9698 = vcombine.low %v9690, %v9692
        %v9699 = vcombine.high %v9690, %v9692
        %v9700 = vcombine.low %v9691, %v9693
        %v9701 = vcombine.high %v9691, %v9693
        %v9702 = vcombine.low %v9624, %v9625
        %v9703 = vcombine.low %v9694, %v9696
        %v9704 = vcombine.high %v9694, %v9696
        %v9705 = vcombine.low %v9695, %v9697
        %v9706 = vcombine.high %v9695, %v9697
        %v9707 = vcombine.low %v9648, %v1324
        %v9718 = vpack.c.bf16 %v9703, %v9698
        %v9719 = vpack.c.bf16 %v9704, %v9699
        %v9720 = vpack.c.bf16 %v9705, %v9700
        %v9721 = vpack.c.bf16 %v9706, %v9701
        %v9722 = vpack.c.bf16 %v9707, %v9702
        %v9723 = vld [vmem:[%s45] sm:$0xf]
        %v9724 = vld [vmem:[%s45 + $0x4] sm:$0xf]
        %v9725 = vld [vmem:[%s45 + $0x8] sm:$0xf]
        %v9726 = vld [vmem:[%s45 + $0xc] sm:$0xf]
        %v9727 = vld [vmem:[%s45 + $0x10] sm:$0xf]
        %v9728 = vld [vmem:[%s45 + $0x14] sm:$0xf]
        %v9729 = vld [vmem:[%s45 + $0x18] sm:$0xf]
        %v9730 = vld [vmem:[%s45 + $0x1c] sm:$0xf]
        %v9731 = vld [vmem:[%s45 + $0x20] sm:$0xf]
        %v9732 = vld [vmem:[%s45 + $0x24] sm:$0xf]
        %v9733 = vld [vmem:[%s45 + $0x28] sm:$0xf]
        %v9734 = vld [vmem:[%s45 + $0x2c] sm:$0xf]
        %v9735 = vld [vmem:[%s45 + $0x30] sm:$0xf]
        %v9736 = vld [vmem:[%s45 + $0x34] sm:$0xf]
        %v9737 = vld [vmem:[%s45 + $0x38] sm:$0xf]
        %v9738 = vld [vmem:[%s45 + $0x3c] sm:$0xf]
        %v9739 = vld [vmem:[%s45 + $0x40] sm:$0xf]
        %v9740 = vld [vmem:[%s45 + $0x44] sm:$0xf]
        %v9741 = vld [vmem:[%s45 + $0x48] sm:$0xf]
        %v9742 = vld [vmem:[%s45 + $0x4c] sm:$0xf]
        %v9743 = vld [vmem:[%s45 + $0x50] sm:$0xf]
        %v9744 = vld [vmem:[%s45 + $0x54] sm:$0xf]
        %v9745 = vld [vmem:[%s45 + $0x58] sm:$0xf]
        %v9746 = vld [vmem:[%s45 + $0x5c] sm:$0xf]
        %v9747 = vld [vmem:[%s45 + $0x60] sm:$0xf]
        %v9748 = vld [vmem:[%s45 + $0x64] sm:$0xf]
        %v9749 = vld [vmem:[%s45 + $0x68] sm:$0xf]
        %v9750 = vld [vmem:[%s45 + $0x6c] sm:$0xf]
        %v9751 = vld [vmem:[%s45 + $0x70] sm:$0xf]
        %v9752 = vld [vmem:[%s45 + $0x74] sm:$0xf]
        %v9753 = vld [vmem:[%s45 + $0x78] sm:$0xf]
        %v9754 = vld [vmem:[%s45 + $0x7c] sm:$0xf]
        %v9755 = vld [vmem:[%s45 + $0x80] sm:$0xf]
        %v9756 = vld [vmem:[%s45 + $0x84] sm:$0xf]
        %v9757 = vld [vmem:[%s45 + $0x88] sm:$0xf]
        %v9758 = vld [vmem:[%s45 + $0x8c] sm:$0xf]
        %v9759 = vld [vmem:[%s45 + $0x90] sm:$0xf]
        %v9760 = vld [vmem:[%s45 + $0x94] sm:$0xf]
        %v9761 = vld [vmem:[%s45 + $0x98] sm:$0xf]
        %v9762 = vld [vmem:[%s45 + $0x9c] sm:$0xf]
        %v9763 = vld [vmem:[%s45 + $0xa0] sm:$0xf]
        %v9764 = vld [vmem:[%s45 + $0xa4] sm:$0xf]
        %v9765 = vld [vmem:[%s45 + $0xa8] sm:$0xf]
        %v9766 = vld [vmem:[%s45 + $0xac] sm:$0xf]
        %v9767 = vld [vmem:[%s45 + $0xb0] sm:$0xf]
        %v9768 = vld [vmem:[%s45 + $0xb4] sm:$0xf]
        %v9769 = vld [vmem:[%s45 + $0xb8] sm:$0xf]
        %v9770 = vld [vmem:[%s45 + $0xbc] sm:$0xf]
        %v9771 = vld [vmem:[%s45 + $0xc0] sm:$0xf]
        %v9772 = vld [vmem:[%s45 + $0xc4] sm:$0xf]
        %v9773 = vld [vmem:[%s45 + $0xc8] sm:$0xf]
        %v9774 = vld [vmem:[%s45 + $0xcc] sm:$0xf]
        %v9775 = vld [vmem:[%s45 + $0xd0] sm:$0xf]
        %v9776 = vld [vmem:[%s45 + $0xd4] sm:$0xf]
        %v9777 = vld [vmem:[%s45 + $0xd8] sm:$0xf]
        %v9778 = vld [vmem:[%s45 + $0xdc] sm:$0xf]
        %v9779 = vld [vmem:[%s45 + $0xe0] sm:$0xf]
        %v9780 = vld [vmem:[%s45 + $0xe4] sm:$0xf]
        %v9781 = vld [vmem:[%s45 + $0xe8] sm:$0xf]
        %v9782 = vld [vmem:[%s45 + $0xec] sm:$0xf]
        %v9783 = vld [vmem:[%s45 + $0xf0] sm:$0xf]
        %v9784 = vld [vmem:[%s45 + $0xf4] sm:$0xf]
        %v9785 = vld [vmem:[%s45 + $0xf8] sm:$0xf]
        %v9786 = vld [vmem:[%s45 + $0xfc] sm:$0xf]
        %v9787 = vld [vmem:[%s45 + $0x100] sm:$0xf]
        %v9788 = vld [vmem:[%s45 + $0x104] sm:$0xf]
        %v9789 = vld [vmem:[%s45 + $0x108] sm:$0xf]
        %v9790 = vld [vmem:[%s45 + $0x10c] sm:$0xf]
        %v9791 = vld [vmem:[%s45 + $0x110] sm:$0xf]
        %v9792 = vld [vmem:[%s45 + $0x114] sm:$0xf]
        %v9793 = vld [vmem:[%s45 + $0x118] sm:$0xf]
        %v9794 = vld [vmem:[%s45 + $0x11c] sm:$0xf]
        %v9867 = vunpack.c.l.b16 %v9723
        %v9868 = vunpack.c.l.b16 %v9724
        %v9869 = vunpack.c.l.b16 %v9725
        %v9870 = vunpack.c.l.b16 %v9726
        %v9871 = vunpack.c.l.b16 %v9727
        %v9872 = vunpack.c.l.b16 %v9728
        %v9873 = vunpack.c.l.b16 %v9729
        %v9874 = vunpack.c.l.b16 %v9730
        %v9875 = vunpack.c.l.b16 %v9731
        %v9876 = vunpack.c.l.b16 %v9732
        %v9877 = vunpack.c.l.b16 %v9733
        %v9878 = vunpack.c.l.b16 %v9734
        %v9879 = vunpack.c.l.b16 %v9735
        %v9880 = vunpack.c.l.b16 %v9736
        %v9881 = vunpack.c.l.b16 %v9737
        %v9882 = vunpack.c.l.b16 %v9738
        %v9883 = vunpack.c.l.b16 %v9739
        %v9884 = vunpack.c.l.b16 %v9740
        %v9885 = vunpack.c.l.b16 %v9741
        %v9886 = vunpack.c.l.b16 %v9742
        %v9887 = vunpack.c.l.b16 %v9743
        %v9888 = vunpack.c.l.b16 %v9744
        %v9889 = vunpack.c.l.b16 %v9745
        %v9890 = vunpack.c.l.b16 %v9746
        %v9891 = vunpack.c.l.b16 %v9747
        %v9892 = vunpack.c.l.b16 %v9748
        %v9893 = vunpack.c.l.b16 %v9749
        %v9894 = vunpack.c.l.b16 %v9750
        %v9895 = vunpack.c.l.b16 %v9751
        %v9896 = vunpack.c.l.b16 %v9752
        %v9897 = vunpack.c.l.b16 %v9753
        %v9898 = vunpack.c.l.b16 %v9754
        %v9899 = vunpack.c.l.b16 %v9755
        %v9900 = vunpack.c.l.b16 %v9756
        %v9901 = vunpack.c.l.b16 %v9757
        %v9902 = vunpack.c.l.b16 %v9758
        %v9903 = vunpack.c.l.b16 %v9759
        %v9904 = vunpack.c.l.b16 %v9760
        %v9905 = vunpack.c.l.b16 %v9761
        %v9906 = vunpack.c.l.b16 %v9762
        %v9907 = vunpack.c.l.b16 %v9763
        %v9908 = vunpack.c.l.b16 %v9764
        %v9909 = vunpack.c.l.b16 %v9765
        %v9910 = vunpack.c.l.b16 %v9766
        %v9911 = vunpack.c.l.b16 %v9767
        %v9912 = vunpack.c.l.b16 %v9768
        %v9913 = vunpack.c.l.b16 %v9769
        %v9914 = vunpack.c.l.b16 %v9770
        %v9915 = vunpack.c.l.b16 %v9771
        %v9916 = vunpack.c.l.b16 %v9772
        %v9917 = vunpack.c.l.b16 %v9773
        %v9918 = vunpack.c.l.b16 %v9774
        %v9919 = vunpack.c.l.b16 %v9775
        %v9920 = vunpack.c.l.b16 %v9776
        %v9921 = vunpack.c.l.b16 %v9777
        %v9922 = vunpack.c.l.b16 %v9778
        %v9923 = vunpack.c.l.b16 %v9779
        %v9924 = vunpack.c.l.b16 %v9780
        %v9925 = vunpack.c.l.b16 %v9781
        %v9926 = vunpack.c.l.b16 %v9782
        %v9927 = vunpack.c.l.b16 %v9783
        %v9928 = vunpack.c.l.b16 %v9784
        %v9929 = vunpack.c.l.b16 %v9785
        %v9930 = vunpack.c.l.b16 %v9786
        %v9931 = vunpack.c.l.b16 %v9787
        %v9932 = vunpack.c.l.b16 %v9788
        %v9933 = vunpack.c.l.b16 %v9789
        %v9934 = vunpack.c.l.b16 %v9790
        %v9935 = vunpack.c.l.b16 %v9791
        %v9936 = vunpack.c.l.b16 %v9792
        %v9937 = vunpack.c.l.b16 %v9793
        %v9938 = vunpack.c.l.b16 %v9794
        %v9939 = vpack.c.b16 %v9868, %v9867
        %v9940 = vpack.c.b16 %v9870, %v9869
        %v9941 = vpack.c.b16 %v9872, %v9871
        %v9942 = vpack.c.b16 %v9874, %v9873
        %v9943 = vpack.c.b16 %v9876, %v9875
        %v9944 = vpack.c.b16 %v9878, %v9877
        %v9945 = vpack.c.b16 %v9880, %v9879
        %v9946 = vpack.c.b16 %v9882, %v9881
        %v9947 = vpack.c.b16 %v9884, %v9883
        %v9948 = vpack.c.b16 %v9886, %v9885
        %v9949 = vpack.c.b16 %v9888, %v9887
        %v9950 = vpack.c.b16 %v9890, %v9889
        %v9951 = vpack.c.b16 %v9892, %v9891
        %v9952 = vpack.c.b16 %v9894, %v9893
        %v9953 = vpack.c.b16 %v9896, %v9895
        %v9954 = vpack.c.b16 %v9898, %v9897
        %v9955 = vpack.c.b16 %v9900, %v9899
        %v9956 = vpack.c.b16 %v9902, %v9901
        %v9957 = vpack.c.b16 %v9904, %v9903
        %v9958 = vpack.c.b16 %v9906, %v9905
        %v9959 = vpack.c.b16 %v9908, %v9907
        %v9960 = vpack.c.b16 %v9910, %v9909
        %v9961 = vpack.c.b16 %v9912, %v9911
        %v9962 = vpack.c.b16 %v9914, %v9913
        %v9963 = vpack.c.b16 %v9916, %v9915
        %v9964 = vpack.c.b16 %v9918, %v9917
        %v9965 = vpack.c.b16 %v9920, %v9919
        %v9966 = vpack.c.b16 %v9922, %v9921
        %v9967 = vpack.c.b16 %v9924, %v9923
        %v9968 = vpack.c.b16 %v9926, %v9925
        %v9969 = vpack.c.b16 %v9928, %v9927
        %v9970 = vpack.c.b16 %v9930, %v9929
        %v9971 = vpack.c.b16 %v9932, %v9931
        %v9972 = vpack.c.b16 %v9934, %v9933
        %v9973 = vpack.c.b16 %v9936, %v9935
        %v9974 = vpack.c.b16 %v9938, %v9937
        %v10012 = vsel %vm3831, %v9722, 0
        %10014 = vmatprep.subr.bf16.mxu0 0
        %10015 = vmatpush1.bf16.msra.mxu0 %v9939
        %10016 = vmatprep.subr.bf16.mxu0 0
        %10017 = vmatpush1.bf16.msra.mxu0 %v9940
        %10018 = vmatprep.subr.bf16.mxu0 0
        %10019 = vmatpush1.bf16.msra.mxu0 %v9941
        %10020 = vmatprep.subr.bf16.mxu0 0
        %10021 = vmatpush1.bf16.msra.mxu0 %v9942
        %10022 = vmatprep.subr.bf16.mxu0 0
        %10023 = vmatpush1.bf16.msra.mxu0 %v9943
        %10024 = vmatprep.subr.bf16.mxu0 0
        %10025 = vmatpush1.bf16.msra.mxu0 %v9944
        %10026 = vmatprep.subr.bf16.mxu0 0
        %10027 = vmatpush1.bf16.msra.mxu0 %v9945
        %10028 = vmatprep.subr.bf16.mxu0 0
        %10029 = vmatpush1.bf16.msra.mxu0 %v9946
        %10030 = vmatprep.subr.bf16.mxu0 0
        %10031 = vmatpush1.bf16.msra.mxu0 %v9947
        %10032 = vmatprep.subr.bf16.mxu0 0
        %10033 = vmatpush1.bf16.msra.mxu0 %v9948
        %10034 = vmatprep.subr.bf16.mxu0 0
        %10035 = vmatpush1.bf16.msra.mxu0 %v9949
        %10036 = vmatprep.subr.bf16.mxu0 0
        %10037 = vmatpush1.bf16.msra.mxu0 %v9950
        %10038 = vmatprep.subr.bf16.mxu0 0
        %10039 = vmatpush1.bf16.msra.mxu0 %v9951
        %10040 = vmatprep.subr.bf16.mxu0 0
        %10041 = vmatpush1.bf16.msra.mxu0 %v9952
        %10042 = vmatprep.subr.bf16.mxu0 0
        %10043 = vmatpush1.bf16.msra.mxu0 %v9953
        %10044 = vmatprep.subr.bf16.mxu0 0
        %10045 = vmatpush1.bf16.msra.mxu0 %v9954
        %10046 = vmatprep.mubr.bf16.mxu0 %v9719
        %10047 = vmatmul.mubr.bf16.gmra.mrb[0].mxu0 %v9718
        %v10048 = vpop.f32.mrb[0].mxu0
        %v10049 = vadd.f32 0.0, %v10048
        %v10050 = vpop.f32.mrb[0].mxu0
        %v10051 = vpop.f32.mrb[0].mxu0
        %v10052 = vadd.f32 0.0, %v10051
        %v10053 = vpop.f32.mrb[0].mxu0
        %10054 = vdwg.mxu0
        %10055 = vmatprep.subr.bf16.mxu0 0
        %10056 = vmatpush1.bf16.msra.mxu0 %v9955
        %10057 = vmatprep.subr.bf16.mxu0 0
        %10058 = vmatpush1.bf16.msra.mxu0 %v9956
        %10059 = vmatprep.subr.bf16.mxu0 0
        %10060 = vmatpush1.bf16.msra.mxu0 %v9957
        %10061 = vmatprep.subr.bf16.mxu0 0
        %10062 = vmatpush1.bf16.msra.mxu0 %v9958
        %10063 = vmatprep.subr.bf16.mxu0 0
        %10064 = vmatpush1.bf16.msra.mxu0 %v9959
        %10065 = vmatprep.subr.bf16.mxu0 0
        %10066 = vmatpush1.bf16.msra.mxu0 %v9960
        %10067 = vmatprep.subr.bf16.mxu0 0
        %10068 = vmatpush1.bf16.msra.mxu0 %v9961
        %10069 = vmatprep.subr.bf16.mxu0 0
        %10070 = vmatpush1.bf16.msra.mxu0 %v9962
        %10071 = vmatprep.subr.bf16.mxu0 0
        %10072 = vmatpush1.bf16.msra.mxu0 %v9963
        %10073 = vmatprep.subr.bf16.mxu0 0
        %10074 = vmatpush1.bf16.msra.mxu0 %v9964
        %10075 = vmatprep.subr.bf16.mxu0 0
        %10076 = vmatpush1.bf16.msra.mxu0 %v9965
        %10077 = vmatprep.subr.bf16.mxu0 0
        %10078 = vmatpush1.bf16.msra.mxu0 %v9966
        %10079 = vmatprep.subr.bf16.mxu0 0
        %10080 = vmatpush1.bf16.msra.mxu0 %v9967
        %10081 = vmatprep.subr.bf16.mxu0 0
        %10082 = vmatpush1.bf16.msra.mxu0 %v9968
        %10083 = vmatprep.subr.bf16.mxu0 0
        %10084 = vmatpush1.bf16.msra.mxu0 %v9969
        %10085 = vmatprep.subr.bf16.mxu0 0
        %10086 = vmatpush1.bf16.msra.mxu0 %v9970
        %10087 = vmatprep.mubr.bf16.mxu0 %v9721
        %10088 = vmatmul.mubr.bf16.gmra.mrb[0].mxu0 %v9720
        %v10089 = vpop.f32.mrb[0].mxu0
        %v10090 = vadd.f32 %v10049, %v10089
        %v10091 = vpop.f32.mrb[0].mxu0
        %v10092 = vpop.f32.mrb[0].mxu0
        %v10093 = vadd.f32 %v10052, %v10092
        %v10094 = vpop.f32.mrb[0].mxu0
        %10095 = vdwg.mxu0
        %10096 = vmatprep.subr.bf16.mxu0 0
        %10097 = vmatpush1.bf16.msra.mxu0 %v9971
        %10098 = vmatprep.subr.bf16.mxu0 0
        %10099 = vmatpush1.bf16.msra.mxu0 %v9972
        %10100 = vmatprep.subr.bf16.mxu0 0
        %10101 = vmatpush1.bf16.msra.mxu0 %v9973
        %10102 = vmatprep.subr.bf16.mxu0 0
        %10103 = vmatpush1.bf16.msra.mxu0 %v9974
        %10104 = vmatprep.subr.bf16.mxu0 0
        %10105 = vmatpush1.bf16.msra.mxu0 0
        %10106 = vmatprep.subr.bf16.mxu0 0
        %10107 = vmatpush1.bf16.msra.mxu0 0
        %10108 = vmatprep.subr.bf16.mxu0 0
        %10109 = vmatpush1.bf16.msra.mxu0 0
        %10110 = vmatprep.subr.bf16.mxu0 0
        %10111 = vmatpush1.bf16.msra.mxu0 0
        %10112 = vmatprep.subr.bf16.mxu0 0
        %10113 = vmatpush1.bf16.msra.mxu0 0
        %10114 = vmatprep.subr.bf16.mxu0 0
        %10115 = vmatpush1.bf16.msra.mxu0 0
        %10116 = vmatprep.subr.bf16.mxu0 0
        %10117 = vmatpush1.bf16.msra.mxu0 0
        %10118 = vmatprep.subr.bf16.mxu0 0
        %10119 = vmatpush1.bf16.msra.mxu0 0
        %10120 = vmatprep.subr.bf16.mxu0 0
        %10121 = vmatpush1.bf16.msra.mxu0 0
        %10122 = vmatprep.subr.bf16.mxu0 0
        %10123 = vmatpush1.bf16.msra.mxu0 0
        %10124 = vmatprep.subr.bf16.mxu0 0
        %10125 = vmatpush1.bf16.msra.mxu0 0
        %10126 = vmatprep.subr.bf16.mxu0 0
        %10127 = vmatpush1.bf16.msra.mxu0 0
        %10128 = vmatprep.mubr.bf16.mxu0 0
        %10129 = vmatmul.mubr.bf16.gmra.mrb[0].mxu0 %v10012
        %v10130 = vpop.f32.mrb[0].mxu0
        %v10131 = vadd.f32 %v10090, %v10130
        %v10132 = vpop.f32.mrb[0].mxu0
        %v10133 = vpop.f32.mrb[0].mxu0
        %v10134 = vadd.f32 %v10093, %v10133
        %v10135 = vpop.f32.mrb[0].mxu0
        %10136 = vdwg.mxu0
        %v10137 = vld [vmem:[%s47] sm:$0x1]
        %v10139 = vlaneseq
        %v10140 = vshrl.u32 %v10139, 7
        %v10141 = vsub.s32 0, %v10140
        %v10142 = vrot.slane %v10137, %v10141
        %v10144 = vmul.f32 %v10131, %v10142
        %v10145 = vmul.f32 %v10134, %v10142
        %v10146 = vld [vmem:[%s49] sm:$0x1]
        %v10148 = vlaneseq
        %v10149 = vshrl.u32 %v10148, 7
        %v10150 = vsub.s32 0, %v10149
        %v10151 = vrot.slane %v10146, %v10150
        %v10153 = vadd.f32 %v10144, %v10151
        %v10154 = vadd.f32 %v10145, %v10151
        %v10157 = vcombine.high %v10153, %v10153
        %v10158 = vcombine.high %v10154, %v10154
        %v10161 = vadd.f32 %v10153, %v9577
        %v10162 = vadd.f32 %v10157, %v9581
        %v10163 = vadd.f32 %v10154, %v9578
        %v10164 = vadd.f32 %v10158, %v9582
        %v10165 = vmax.f32 %v10161, 0.0
        %v10166 = vmax.f32 %v10162, 0.0
        %v10167 = vmax.f32 %v10163, 0.0
        %v10168 = vmax.f32 %v10164, 0.0
        %v10173 = vcombine.low %v10165, %v10166
        %v10174 = vcombine.low %v10167, %v10168
        %v10177 = vsel %vm3831, %v10173, 0.0
        %v10178 = vsel %vm3831, %v10174, 0.0
        %v10179 = vadd.f32 %v10177, %v10178
        %v10180 = vrot.slane %v10179, 4
        %v10181 = vadd.f32 %v10179, %v10180
        %v10182 = vrot.slane %v10181, 2
        %v10183 = vadd.f32 %v10181, %v10182
        %v10184 = vrot.slane %v10183, 1
        %v10185 = vadd.f32 %v10183, %v10184
        %v10186 = vrcp.pop 16.0
        %v10187 = vmul.f32 %v10185, %v10186
        %v10188 = vld [vmem:[%s57] sm:$0xff]
        %v10189 = vld [vmem:[%s57 + $0x8] sm:$0xff]
        %v10190 = vld [vmem:[%s57 + $0x10] sm:$0xff]
        %v10191 = vld [vmem:[%s57 + $0x18] sm:$0xff]
        %v10192 = vld [vmem:[%s57 + $0x20] sm:$0xff]
        %v10193 = vld [vmem:[%s57 + $0x28] sm:$0xff]
        %v10194 = vld [vmem:[%s57 + $0x30] sm:$0xff]
        %v10195 = vld [vmem:[%s57 + $0x38] sm:$0xff]
        %v10196 = vld [vmem:[%s59] sm:$0x1]
        %v10198 = vsel %vm3831, %v10187, 0
        %10200 = vmatprep.subr.mxu0 0.0
        %10201 = vmatpush1.msra.mxu0 %v10188
        %10202 = vmatprep.subr.mxu0 0.0
        %10203 = vmatpush1.msra.mxu0 %v10189
        %10204 = vmatprep.subr.mxu0 0.0
        %10205 = vmatpush1.msra.mxu0 %v10190
        %10206 = vmatprep.subr.mxu0 0.0
        %10207 = vmatpush1.msra.mxu0 %v10191
        %10208 = vmatprep.subr.mxu0 0.0
        %10209 = vmatpush1.msra.mxu0 %v10192
        %10210 = vmatprep.subr.mxu0 0.0
        %10211 = vmatpush1.msra.mxu0 %v10193
        %10212 = vmatprep.subr.mxu0 0.0
        %10213 = vmatpush1.msra.mxu0 %v10194
        %10214 = vmatprep.subr.mxu0 0.0
        %10215 = vmatpush1.msra.mxu0 %v10195
        %10216 = vmatprep.subr.mxu0 0.0
        %10217 = vmatpush1.msra.mxu0 0.0
        %10218 = vmatprep.subr.mxu0 0.0
        %10219 = vmatpush1.msra.mxu0 0.0
        %10220 = vmatprep.subr.mxu0 0.0
        %10221 = vmatpush1.msra.mxu0 0.0
        %10222 = vmatprep.subr.mxu0 0.0
        %10223 = vmatpush1.msra.mxu0 0.0
        %10224 = vmatprep.subr.mxu0 0.0
        %10225 = vmatpush1.msra.mxu0 0.0
        %10226 = vmatprep.subr.mxu0 0.0
        %10227 = vmatpush1.msra.mxu0 0.0
        %10228 = vmatprep.subr.mxu0 0.0
        %10229 = vmatpush1.msra.mxu0 0.0
        %10230 = vmatprep.subr.mxu0 0.0
        %10231 = vmatpush1.msra.mxu0 0.0
        %10232 = vmatprep.subr.mxu0 0.0
        %10233 = vmatpush1.msra.mxu0 0.0
        %10234 = vmatprep.subr.mxu0 0.0
        %10235 = vmatpush1.msra.mxu0 0.0
        %10236 = vmatprep.subr.mxu0 0.0
        %10237 = vmatpush1.msra.mxu0 0.0
        %10238 = vmatprep.subr.mxu0 0.0
        %10239 = vmatpush1.msra.mxu0 0.0
        %10240 = vmatprep.subr.mxu0 0.0
        %10241 = vmatpush1.msra.mxu0 0.0
        %10242 = vmatprep.subr.mxu0 0.0
        %10243 = vmatpush1.msra.mxu0 0.0
        %10244 = vmatprep.subr.mxu0 0.0
        %10245 = vmatpush1.msra.mxu0 0.0
        %10246 = vmatprep.subr.mxu0 0.0
        %10247 = vmatpush1.msra.mxu0 0.0
        %10248 = vmatprep.subr.mxu0 0.0
        %10249 = vmatpush1.msra.mxu0 0.0
        %10250 = vmatprep.subr.mxu0 0.0
        %10251 = vmatpush1.msra.mxu0 0.0
        %10252 = vmatprep.subr.mxu0 0.0
        %10253 = vmatpush1.msra.mxu0 0.0
        %10254 = vmatprep.subr.mxu0 0.0
        %10255 = vmatpush1.msra.mxu0 0.0
        %10256 = vmatprep.subr.mxu0 0.0
        %10257 = vmatpush1.msra.mxu0 0.0
        %10258 = vmatprep.subr.mxu0 0.0
        %10259 = vmatpush1.msra.mxu0 0.0
        %10260 = vmatprep.subr.mxu0 0.0
        %10261 = vmatpush1.msra.mxu0 0.0
        %10262 = vmatprep.subr.mxu0 0.0
        %10263 = vmatpush1.msra.mxu0 0.0
        %10264 = vmatprep.mubr.f32.mxu0 0.0
        %10265 = vmatmul.mubr.f32.gmra.mrb[0].mxu0 %v10198
        %v10266 = vpop.f32.mrb[0].mxu0
        %v10267 = vadd.f32 %v10196, %v10266
        %v10268 = vpop.f32.mrb[0].mxu0
        %10269 = vdwg.mxu0
        %vm10270 = vcmask 73728
        %10271 = vst.msk [vmem:[%s922] sm:$0x1] %vm10270, %v10267
        %s10272 = sand.u32 %s718, 1
        %s10273 = scalar_lea.sflag [#allocation3], %s10272
        %s10274 = sand.u32 %s718, 1
        %s10275 = scalar_lea.vmem [#allocation2], %s10274
        // Predicated region
        $region141: #{tpu_custom_call.1} parent=139 // pred_check
          %p10276 = pneg %p728
        $region142: #{tpu_custom_call.1} parent=139 // pred_check_branch
          %10278 = sbr.rel (%p10276) target = $region144
        $region143: #{tpu_custom_call.1} parent=139 // pred_region
          %s10280 = ssub.s32 16, 16
          %10281 = vsyncadd %s10273, %s10280
          %s10282 = smul.addr %s75, 16
          %s10283 = scalar_lea.hbm %s61, %s10282
          %s10285 = sshll.u32 %s10275, 4
          %s10286 = int_to_ptr.vmem [resolvable:$true] %s10285
          %10288 = dma.vmem_to_hbm [thread:$0]  %s10286, 16, %s10283, %s10273
        $region144: #{tpu_custom_call.1} parent=139 // pred_fallthru
          _
      $region140: #{tpu_custom_call.1} parent=5 // pred_fallthru
        _
      %p10289 = scmp.le.s32.totalorder 2, %s70
      // Predicated region
      $region145: #{tpu_custom_call.1} parent=5 // pred_check
        %p10290 = pneg %p10289
      $region146: #{tpu_custom_call.1} parent=5 // pred_check_branch
        %10292 = sbr.rel (%p10290) target = $region148
      $region147: #{tpu_custom_call.1} parent=5 // pred_region
        %s10293 = ssub.s32 %s70, 2
        // Predicated region
        $region149: #{tpu_custom_call.1} parent=147 // pred_check
          %p10294 = pneg %p734
        $region150: #{tpu_custom_call.1} parent=147 // pred_check_branch
          %10296 = sbr.rel (%p10294) target = $region152
        $region151: #{tpu_custom_call.1} parent=147 // pred_region
          %s10297 = sand.u32 %s719, 1
          %s10298 = scalar_lea.sflag [#allocation3], %s10297
          %s10299 = sand.u32 %s719, 1
          %s10300 = scalar_lea.vmem [#allocation2], %s10299
          %10301 = dma.done %s10298, 16
        $region152: #{tpu_custom_call.1} parent=147 // pred_fallthru
          _
      $region148: #{tpu_custom_call.1} parent=5 // pred_fallthru
        _
    $region6: #{tpu_custom_call.1} parent=1 // loop_footer
      %s74 = sadd.s32 1, %s70
    $region7: #{tpu_custom_call.1} parent=1 // loop_footer_branch
      %69 = sbr.rel target = $region3
    $region8: #{tpu_custom_call.1} parent=1 // loop_exit
      _
    %10302 = vsyncpa [#allocation3], 1
    %s10303 = scalar_lea.sflag [#allocation3], 1
    %10304 = vsyncpa %s10303, 1

</llo_original>
